<compile_context>
chip_gen: v7x
topology: tpu7x:2x2x1
jax: 0.10.0
libtpu: 0.0.40
codegen_flags: <defaults>
</compile_context>

<pallas_src>
import functools

import jax
import jax.numpy as jnp
from jax.experimental import pallas as pl
from jax.experimental.pallas import tpu as pltpu


QPAD = 128      # lane-aligned section width for each of q / k / v
CLS_PAD = 128   # lane-dense classifier width (sliced back to num_classes)


# ----------------------------------------------------------------------------
# Kernel helpers
# ----------------------------------------------------------------------------
def _layer_norm(x, w, b, eps=1e-5):      # eps = PyTorch nn.LayerNorm default
    mu = jnp.mean(x, axis=-1, keepdims=True)
    var = jnp.mean((x - mu) ** 2, axis=-1, keepdims=True)
    return (x - mu) * jax.lax.rsqrt(var + eps) * w + b


def _fused_mvit_kernel(patches_ref, pe_w_ref, base_ref,
                       wqkv_ref, wproj_ref, wfc1_ref, wfc2_ref, vecs_ref,
                       head_w_ref, headvec_ref, o_ref,
                       *, batch, depth, num_heads, num_tokens, seq_pad):
    """Entire forward pass for the whole (small) batch in one kernel body.

    refs:
      patches_ref : [B*Npad, CKpad]      bf16  im2col patches (zero-padded rows/K)
      pe_w_ref    : [CKpad, D]           bf16  patch-embed weight
      base_ref    : [B*Npad, D]          f32   pos emb + cls token + patch bias
      wqkv_ref    : [depth, D, 3*QPAD]   bf16  q|k|v sections 128-lane aligned
      wproj_ref   : [depth, D, D]        bf16
      wfc1_ref    : [depth, D, HID]      bf16
      wfc2_ref    : [depth, HID, D]      bf16
      vecs_ref    : [depth, 8, 3*QPAD]   f32   ln1w,ln1b,bqkv,bproj,ln2w,ln2b,bfc1,bfc2
      head_w_ref  : [D, CLS_PAD]         bf16
      headvec_ref : [8, CLS_PAD]         f32   norm_w, norm_b, head_b
      o_ref       : [B, CLS_PAD]         f32
    """
    B, Npad = batch, seq_pad
    D = pe_w_ref.shape[1]
    HID = wfc1_ref.shape[2]
    qpad = wqkv_ref.shape[2] // 3
    dh = D // num_heads
    f32, bf16 = jnp.float32, jnp.bfloat16

    # ---- patch embedding (pos emb / cls / conv bias folded into base) ----
    x = jnp.dot(patches_ref[...], pe_w_ref[...],
                preferred_element_type=f32) + base_ref[...]        # [B*Npad, D]

    # ---- masks, built once and hoisted out of the block loop ----
    kidx = jax.lax.broadcasted_iota(jnp.int32, (1, 1, Npad), 2)
    kmask = kidx < num_tokens                                      # pad-key mask
    lane = jax.lax.broadcasted_iota(jnp.int32, (1, 1, D), 2)
    hmask_rows = []
    for h in range(num_heads):                   # z = h*B + b ordering
        m = ((lane >= h * dh) & (lane < (h + 1) * dh)).astype(f32)
        hmask_rows += [m] * B
    hmask_f32 = jnp.concatenate(hmask_rows, axis=0)                # [H*B, 1, D]
    hmask_bf = hmask_f32.astype(bf16)

    # ---- transformer encoder blocks ----
    for blk in range(depth):
        vec = vecs_ref[blk]                                        # [8, 3*qpad] f32
        ln1w, ln1b = vec[0:1, :D], vec[1:2, :D]
        bqkv = vec[2:3, :]
        bproj = vec[3:4, :D]
        ln2w, ln2b = vec[4:5, :D], vec[5:6, :D]
        bfc1 = vec[6:7, :HID]
        bfc2 = vec[7:8, :D]

        # -- multi-head self attention --
        xn = _layer_norm(x, ln1w, ln1b)
        qkv = jnp.dot(xn.astype(bf16), wqkv_ref[blk],
                      preferred_element_type=f32) + bqkv           # [B*Npad, 3*qpad]
        qkv_bf = qkv.astype(bf16)                                  # one cast per tensor

        # lane-aligned 64-wide slices, sublane-aligned row slices (Npad % 16 == 0)
        q2 = jnp.stack([qkv_bf[b * Npad:(b + 1) * Npad, 0:D]
                        for b in range(B)], axis=0)                # [B, Npad, D]
        k2 = jnp.stack([qkv_bf[b * Npad:(b + 1) * Npad, qpad:qpad + D]
                        for b in range(B)], axis=0)
        v2 = jnp.stack([qkv_bf[b * Npad:(b + 1) * Npad, 2 * qpad:2 * qpad + D]
                        for b in range(B)], axis=0)

        # per-head scores via lane-masked full-width q (masked lanes contribute 0)
        qm = jnp.concatenate([q2] * num_heads, axis=0) * hmask_bf  # [H*B, Npad, D]
        kt = jnp.concatenate([k2] * num_heads, axis=0)
        vt = jnp.concatenate([v2] * num_heads, axis=0)

        s = jnp.einsum('zqd,zkd->zqk', qm, kt,
                       preferred_element_type=f32)                 # [H*B, Npad, Npad]
        s = jnp.where(kmask, s, -1e30)                             # mask pad keys
        s = s - jnp.max(s, axis=-1, keepdims=True)
        p = jnp.exp(s)
        p = p * pl.reciprocal(jnp.sum(p, axis=-1, keepdims=True), approx=True)

        ctx_all = jnp.einsum('zqk,zkd->zqd', p.astype(bf16), vt,
                             preferred_element_type=f32)           # [H*B, Npad, D]

        # reassemble [B*Npad, D] IN REGISTERS: head h owns lanes h*dh:(h+1)*dh,
        # so masked accumulation recovers the concatenated-head layout with no
        # VMEM scratch stores/reload and no 16-lane slicing.
        ctx_masked = ctx_all * hmask_f32
        ctx_rows = []
        for b in range(B):
            acc = ctx_masked[b]
            for h in range(1, num_heads):
                acc = acc + ctx_masked[h * B + b]
            ctx_rows.append(acc)
        ctx2d = jnp.concatenate(ctx_rows, axis=0)                  # [B*Npad, D] f32

        attn = jnp.dot(ctx2d.astype(bf16), wproj_ref[blk],
                       preferred_element_type=f32) + bproj
        x = x + attn

        # -- MLP --
        xn = _layer_norm(x, ln2w, ln2b)
        h1 = jnp.dot(xn.astype(bf16), wfc1_ref[blk],
                     preferred_element_type=f32) + bfc1
        h1 = jax.nn.gelu(h1, approximate=True)
        x = x + jnp.dot(h1.astype(bf16), wfc2_ref[blk],
                        preferred_element_type=f32) + bfc2

    # ---- head: final LN -> masked mean pool -> Linear (lane-dense logits) ----
    hv = headvec_ref[...]
    xn = _layer_norm(x, hv[0:1, :D], hv[1:2, :D])
    ridx = jax.lax.broadcasted_iota(jnp.int32, (Npad, 1), 0)
    rmask = (ridx < num_tokens).astype(f32)                        # valid-token rows
    # B=2: two cheap sublane reductions on vreg-aligned row slices.
    pooled = jnp.concatenate(
        [jnp.sum(xn[b * Npad:(b + 1) * Npad, :] * rmask, axis=0, keepdims=True)
         for b in range(B)], axis=0) * (1.0 / num_tokens)          # [B, D]
    # Dropout(p=0.5) is identity in eval mode.
    logits = jnp.dot(pooled.astype(bf16), head_w_ref[...],
                     preferred_element_type=f32) + hv[2:3, :]
    o_ref[...] = logits.astype(o_ref.dtype)


# ----------------------------------------------------------------------------
# im2col for the Conv3d patch embedding (wrapper glue; negligible at this size)
# ----------------------------------------------------------------------------
def _im2col_3d(x, kt, kh, kw, st, sh, sw, pt, ph, pw):
    B, C, T, H, W = x.shape
    xp = jnp.pad(x, ((0, 0), (0, 0), (pt, pt), (ph, ph), (pw, pw)))
    To = (T + 2 * pt - kt) // st + 1
    Ho = (H + 2 * ph - kh) // sh + 1
    Wo = (W + 2 * pw - kw) // sw + 1
    cols = []
    for it in range(kt):
        for ih in range(kh):
            for iw in range(kw):
                cols.append(xp[:, :,
                               it:it + st * To:st,
                               ih:ih + sh * Ho:sh,
                               iw:iw + sw * Wo:sw])
    patches = jnp.stack(cols, axis=2)                       # [B, C, K, To, Ho, Wo]
    patches = patches.transpose(0, 3, 4, 5, 1, 2)           # [B, To, Ho, Wo, C, K]
    patches = patches.reshape(B, To * Ho * Wo, C * kt * kh * kw)
    return patches, (To, Ho, Wo)


# ----------------------------------------------------------------------------
# Parameters (deterministic synthetic init, PyTorch-like layouts, f32)
# ----------------------------------------------------------------------------
def init_params(key, *, in_ch=3, embed_dim=64, depth=2, num_heads=4,
                mlp_ratio=4, num_classes=10, num_tokens=33):
    def nrm(k, shape, scale=0.02):
        return scale * jax.random.normal(k, shape, jnp.float32)

    keys = jax.random.split(key, 4 + depth)
    D, hidden = embed_dim, embed_dim * mlp_ratio
    params = {
        "patch_w": nrm(keys[0], (D, in_ch, 3, 7, 7)),        # Conv3d weight layout
        "patch_b": jnp.zeros((1, D), jnp.float32),
        "cls": nrm(keys[1], (1, 1, D)),
        "pos": nrm(keys[2], (1, num_tokens, D)),
        "norm_w": jnp.ones((1, 1, D), jnp.float32),
        "norm_b": jnp.zeros((1, 1, D), jnp.float32),
        "head_w": nrm(keys[3], (D, num_classes)),
        "head_b": jnp.zeros((1, num_classes), jnp.float32),
        "blocks": [],
    }
    for d in range(depth):
        bk = jax.random.split(keys[4 + d], 4)
        params["blocks"].append(dict(
            ln1_w=jnp.ones((1, D), jnp.float32), ln1_b=jnp.zeros((1, D), jnp.float32),
            wqkv=nrm(bk[0], (D, 3 * D)), bqkv=jnp.zeros((1, 3 * D), jnp.float32),
            wproj=nrm(bk[1], (D, D)), bproj=jnp.zeros((1, D), jnp.float32),
            ln2_w=jnp.ones((1, D), jnp.float32), ln2_b=jnp.zeros((1, D), jnp.float32),
            wfc1=nrm(bk[2], (D, hidden)), bfc1=jnp.zeros((1, hidden), jnp.float32),
            wfc2=nrm(bk[3], (hidden, D)), bfc2=jnp.zeros((1, D), jnp.float32),
        ))
    return params


# ----------------------------------------------------------------------------
# Pack parameters into a handful of VMEM-resident slabs (few DMAs, lane-aligned)
# ----------------------------------------------------------------------------
def _pack_inputs(params, patches, *, num_heads, seq_pad, cls_pad):
    bf16 = jnp.bfloat16
    D = params["patch_w"].shape[0]
    num_tokens = params["pos"].shape[1]
    Np = num_tokens - 1
    B = patches.shape[0]
    dh = D // num_heads
    scale = 1.0 / (dh ** 0.5)
    vec_w = 3 * QPAD
    assert cls_pad >= D and vec_w >= params["blocks"][0]["bfc1"].shape[-1]

    # patches: pad token rows to seq_pad and K to a lane multiple, fold batch
    CK = patches.shape[2]
    ck_pad = -(-CK // 128) * 128
    patches_pad = jnp.pad(patches, ((0, 0), (0, seq_pad - Np), (0, ck_pad - CK)))
    patches2d = patches_pad.reshape(B * seq_pad, ck_pad).astype(bf16)

    # patch-embed weight
    pe_w = params["patch_w"].reshape(D, -1).T                      # [CK, D]
    pe_w = jnp.pad(pe_w, ((0, ck_pad - CK), (0, 0))).astype(bf16)

    # base slab: pos emb (+patch bias) for patch rows, cls+pos[0] row, zero pad
    pos = params["pos"][0]
    cls = params["cls"][0, 0]
    pe_b = params["patch_b"][0]
    base = jnp.zeros((seq_pad, D), jnp.float32)
    base = base.at[:Np].set(pos[1:] + pe_b)
    base = base.at[Np].set(cls + pos[0])
    base_full = jnp.tile(base, (B, 1))                             # [B*Npad, D]

    def row(v):                                                    # pad to vec_w lanes
        return jnp.pad(v, (0, vec_w - v.shape[0]))

    wqkv_l, wproj_l, wfc1_l, wfc2_l, vec_l = [], [], [], [], []
    for bp in params["blocks"]:
        wq = bp["wqkv"][:, :D] * scale                             # fold 1/sqrt(dh)
        wk = bp["wqkv"][:, D:2 * D]
        wv = bp["wqkv"][:, 2 * D:]
        wqkv_pad = jnp.zeros((D, vec_w), jnp.float32)
        wqkv_pad = (wqkv_pad.at[:, 0:D].set(wq)
                    .at[:, QPAD:QPAD + D].set(wk)
                    .at[:, 2 * QPAD:2 * QPAD + D].set(wv))
        bqkv_pad = jnp.zeros((vec_w,), jnp.float32)
        bqkv_pad = (bqkv_pad.at[0:D].set(bp["bqkv"][0, :D] * scale)
                    .at[QPAD:QPAD + D].set(bp["bqkv"][0, D:2 * D])
                    .at[2 * QPAD:2 * QPAD + D].set(bp["bqkv"][0, 2 * D:]))
        vec = jnp.stack([row(bp["ln1_w"][0]), row(bp["ln1_b"][0]), bqkv_pad,
                         row(bp["bproj"][0]), row(bp["ln2_w"][0]),
                         row(bp["ln2_b"][0]), row(bp["bfc1"][0]),
                         row(bp["bfc2"][0])], axis=0)              # [8, vec_w]
        wqkv_l.append(wqkv_pad.astype(bf16))
        wproj_l.append(bp["wproj"].astype(bf16))
        wfc1_l.append(bp["wfc1"].astype(bf16))
        wfc2_l.append(bp["wfc2"].astype(bf16))
        vec_l.append(vec)

    num_classes = params["head_b"].shape[-1]
    head_w = jnp.pad(params["head_w"],
                     ((0, 0), (0, cls_pad - num_classes))).astype(bf16)
    headvec = jnp.zeros((8, cls_pad), jnp.float32)
    headvec = headvec.at[0, :D].set(params["norm_w"].reshape(D))
    headvec = headvec.at[1, :D].set(params["norm_b"].reshape(D))
    headvec = headvec.at[2, :num_classes].set(params["head_b"][0])

    return [patches2d, pe_w, base_full,
            jnp.stack(wqkv_l), jnp.stack(wproj_l),
            jnp.stack(wfc1_l), jnp.stack(wfc2_l), jnp.stack(vec_l),
            head_w, headvec]


# ----------------------------------------------------------------------------
# Forward
# ----------------------------------------------------------------------------
def mvit_forward(params, video, *, num_heads=4, cls_pad=CLS_PAD):
    B = video.shape[0]
    num_classes = params["head_b"].shape[-1]
    num_tokens = params["pos"].shape[1]
    depth = len(params["blocks"])
    # Pad the sequence to a multiple of 16 so per-batch row slices stay
    # sublane-aligned for both f32 (8) and packed bf16 (16) layouts.
    seq_pad = -(-num_tokens // 16) * 16                            # 33 -> 48

    # Conv3d(k=(3,7,7), s=(2,4,4), p=(1,3,3)) via im2col; matmul runs in-kernel.
    patches, _ = _im2col_3d(video, 3, 7, 7, 2, 4, 4, 1, 3, 3)      # [B, Np, CK]
    assert patches.shape[1] + 1 == num_tokens

    inputs = _pack_inputs(params, patches, num_heads=num_heads,
                          seq_pad=seq_pad, cls_pad=cls_pad)

    kernel = functools.partial(
        _fused_mvit_kernel, batch=B, depth=depth, num_heads=num_heads,
        num_tokens=num_tokens, seq_pad=seq_pad)

    logits_pad = pl.pallas_call(
        kernel,
        out_shape=jax.ShapeDtypeStruct((B, cls_pad), jnp.float32),
        in_specs=[pl.BlockSpec(memory_space=pltpu.MemorySpace.VMEM)] * len(inputs),
        out_specs=pl.BlockSpec(memory_space=pltpu.MemorySpace.VMEM),
    )(*inputs)

    return logits_pad[:, :num_classes]


# ----------------------------------------------------------------------------
if __name__ == "__main__":
    key = jax.random.PRNGKey(0)
    k_param, k_vid = jax.random.split(key)

    # video: [B, C, T, H, W] (NCTHW, PyTorch convention)
    video = jax.random.normal(k_vid, (2, 3, 4, 16, 16), jnp.float32)

    # Conv3d(k=(3,7,7), s=(2,4,4), p=(1,3,3)) on T=4,H=W=16 -> 32 tokens + cls = 33
    params = init_params(k_param, in_ch=3, embed_dim=64, depth=2,
                         num_heads=4, mlp_ratio=4, num_classes=10, num_tokens=33)

    out = mvit_forward(params, video, num_heads=4)
    out = jax.block_until_ready(out)
    assert out.shape == (2, 10), out.shape
    print("KERNEL_OK")
</pallas_src>

<mosaic_0001>
module attributes {stable_mosaic.version = 11 : i64} {
  func.func @_fused_mvit_kernel(%arg0: memref<96x512xbf16, #tpu.memory_space<vmem>>, %arg1: memref<512x64xbf16, #tpu.memory_space<vmem>>, %arg2: memref<96x64xf32, #tpu.memory_space<vmem>>, %arg3: memref<2x64x384xbf16, #tpu.memory_space<vmem>>, %arg4: memref<2x64x64xbf16, #tpu.memory_space<vmem>>, %arg5: memref<2x64x256xbf16, #tpu.memory_space<vmem>>, %arg6: memref<2x256x64xbf16, #tpu.memory_space<vmem>>, %arg7: memref<2x8x384xf32, #tpu.memory_space<vmem>>, %arg8: memref<64x128xbf16, #tpu.memory_space<vmem>>, %arg9: memref<8x128xf32, #tpu.memory_space<vmem>>, %arg10: memref<2x128xf32, #tpu.memory_space<vmem>>) attributes {dimension_semantics = [], scalar_prefetch = 0 : i64, scratch_operands = 0 : i64, tpu.core_type = #tpu.core_type<tc>} {
    %c0 = arith.constant 0 : index
    %c0_0 = arith.constant 0 : index
    %0 = vector.load %arg0[%c0, %c0_0] : memref<96x512xbf16, #tpu.memory_space<vmem>>, vector<96x512xbf16>
    %c0_1 = arith.constant 0 : index
    %c0_2 = arith.constant 0 : index
    %1 = vector.load %arg1[%c0_1, %c0_2] : memref<512x64xbf16, #tpu.memory_space<vmem>>, vector<512x64xbf16>
    %cst = arith.constant dense<0.000000e+00> : vector<96x64xf32>
    %2 = tpu.matmul %0, %1, %cst {dimension_numbers = #tpu.dot_dimension_numbers<[1], [0], [0], [1], [0, 0, 1, 1], [], []>} : vector<96x512xbf16>, vector<512x64xbf16>, vector<96x64xf32> -> vector<96x64xf32>
    %c0_3 = arith.constant 0 : index
    %c0_4 = arith.constant 0 : index
    %3 = vector.load %arg2[%c0_3, %c0_4] : memref<96x64xf32, #tpu.memory_space<vmem>>, vector<96x64xf32>
    %4 = arith.addf %2, %3 : vector<96x64xf32>
    %5 = tpu.iota {dimensions = array<i32: 2>} : vector<1x1x48xi32>
    %c33_i32 = arith.constant 33 : i32
    %6 = vector.broadcast %c33_i32 : i32 to vector<1x1x48xi32>
    %7 = arith.cmpi slt, %5, %6 : vector<1x1x48xi32>
    %8 = tpu.iota {dimensions = array<i32: 2>} : vector<1x1x64xi32>
    %c0_i32 = arith.constant 0 : i32
    %9 = vector.broadcast %c0_i32 : i32 to vector<1x1x64xi32>
    %10 = arith.cmpi sge, %8, %9 : vector<1x1x64xi32>
    %c16_i32 = arith.constant 16 : i32
    %11 = vector.broadcast %c16_i32 : i32 to vector<1x1x64xi32>
    %12 = arith.cmpi slt, %8, %11 : vector<1x1x64xi32>
    %13 = arith.andi %10, %12 : vector<1x1x64xi1>
    %14 = arith.extui %13 : vector<1x1x64xi1> to vector<1x1x64xi32>
    %15 = arith.sitofp %14 : vector<1x1x64xi32> to vector<1x1x64xf32>
    %c16_i32_5 = arith.constant 16 : i32
    %16 = vector.broadcast %c16_i32_5 : i32 to vector<1x1x64xi32>
    %17 = arith.cmpi sge, %8, %16 : vector<1x1x64xi32>
    %c32_i32 = arith.constant 32 : i32
    %18 = vector.broadcast %c32_i32 : i32 to vector<1x1x64xi32>
    %19 = arith.cmpi slt, %8, %18 : vector<1x1x64xi32>
    %20 = arith.andi %17, %19 : vector<1x1x64xi1>
    %21 = arith.extui %20 : vector<1x1x64xi1> to vector<1x1x64xi32>
    %22 = arith.sitofp %21 : vector<1x1x64xi32> to vector<1x1x64xf32>
    %c32_i32_6 = arith.constant 32 : i32
    %23 = vector.broadcast %c32_i32_6 : i32 to vector<1x1x64xi32>
    %24 = arith.cmpi sge, %8, %23 : vector<1x1x64xi32>
    %c48_i32 = arith.constant 48 : i32
    %25 = vector.broadcast %c48_i32 : i32 to vector<1x1x64xi32>
    %26 = arith.cmpi slt, %8, %25 : vector<1x1x64xi32>
    %27 = arith.andi %24, %26 : vector<1x1x64xi1>
    %28 = arith.extui %27 : vector<1x1x64xi1> to vector<1x1x64xi32>
    %29 = arith.sitofp %28 : vector<1x1x64xi32> to vector<1x1x64xf32>
    %c48_i32_7 = arith.constant 48 : i32
    %30 = vector.broadcast %c48_i32_7 : i32 to vector<1x1x64xi32>
    %31 = arith.cmpi sge, %8, %30 : vector<1x1x64xi32>
    %c64_i32 = arith.constant 64 : i32
    %32 = vector.broadcast %c64_i32 : i32 to vector<1x1x64xi32>
    %33 = arith.cmpi slt, %8, %32 : vector<1x1x64xi32>
    %34 = arith.andi %31, %33 : vector<1x1x64xi1>
    %35 = arith.extui %34 : vector<1x1x64xi1> to vector<1x1x64xi32>
    %36 = arith.sitofp %35 : vector<1x1x64xi32> to vector<1x1x64xf32>
    %37 = tpu.concatenate %15, %15, %22, %22, %29, %29, %36, %36 in 0 : vector<1x1x64xf32>, vector<1x1x64xf32>, vector<1x1x64xf32>, vector<1x1x64xf32>, vector<1x1x64xf32>, vector<1x1x64xf32>, vector<1x1x64xf32>, vector<1x1x64xf32> -> vector<8x1x64xf32>
    %38 = arith.truncf %37 : vector<8x1x64xf32> to vector<8x1x64xbf16>
    %c0_8 = arith.constant 0 : index
    %c0_9 = arith.constant 0 : index
    %c0_10 = arith.constant 0 : index
    %39 = vector.load %arg7[%c0_8, %c0_9, %c0_10] : memref<2x8x384xf32, #tpu.memory_space<vmem>>, vector<1x8x384xf32>
    %40 = vector.shape_cast %39 : vector<1x8x384xf32> to vector<8x384xf32>
    %41 = vector.extract_strided_slice %40 {offsets = [0, 0], sizes = [1, 64], strides = [1, 1]} : vector<8x384xf32> to vector<1x64xf32>
    %42 = vector.extract_strided_slice %40 {offsets = [1, 0], sizes = [1, 64], strides = [1, 1]} : vector<8x384xf32> to vector<1x64xf32>
    %43 = vector.extract_strided_slice %40 {offsets = [2, 0], sizes = [1, 384], strides = [1, 1]} : vector<8x384xf32> to vector<1x384xf32>
    %44 = vector.extract_strided_slice %40 {offsets = [3, 0], sizes = [1, 64], strides = [1, 1]} : vector<8x384xf32> to vector<1x64xf32>
    %45 = vector.extract_strided_slice %40 {offsets = [4, 0], sizes = [1, 64], strides = [1, 1]} : vector<8x384xf32> to vector<1x64xf32>
    %46 = vector.extract_strided_slice %40 {offsets = [5, 0], sizes = [1, 64], strides = [1, 1]} : vector<8x384xf32> to vector<1x64xf32>
    %47 = vector.extract_strided_slice %40 {offsets = [6, 0], sizes = [1, 256], strides = [1, 1]} : vector<8x384xf32> to vector<1x256xf32>
    %48 = vector.extract_strided_slice %40 {offsets = [7, 0], sizes = [1, 64], strides = [1, 1]} : vector<8x384xf32> to vector<1x64xf32>
    %cst_11 = arith.constant dense<0.000000e+00> : vector<96xf32>
    %49 = vector.multi_reduction <add>, %4, %cst_11 [1] : vector<96x64xf32> to vector<96xf32>
    %50 = vector.shape_cast %49 : vector<96xf32> to vector<96x1xf32>
    %cst_12 = arith.constant 6.400000e+01 : f32
    %51 = vector.broadcast %cst_12 : f32 to vector<96x1xf32>
    %52 = arith.divf %50, %51 : vector<96x1xf32>
    %53 = vector.broadcast %52 : vector<96x1xf32> to vector<96x64xf32>
    %54 = arith.subf %4, %53 : vector<96x64xf32>
    %55 = arith.mulf %54, %54 : vector<96x64xf32>
    %cst_13 = arith.constant dense<0.000000e+00> : vector<96xf32>
    %56 = vector.multi_reduction <add>, %55, %cst_13 [1] : vector<96x64xf32> to vector<96xf32>
    %57 = vector.shape_cast %56 : vector<96xf32> to vector<96x1xf32>
    %cst_14 = arith.constant 6.400000e+01 : f32
    %58 = vector.broadcast %cst_14 : f32 to vector<96x1xf32>
    %59 = arith.divf %57, %58 : vector<96x1xf32>
    %60 = vector.broadcast %52 : vector<96x1xf32> to vector<96x64xf32>
    %61 = arith.subf %4, %60 : vector<96x64xf32>
    %cst_15 = arith.constant 9.99999974E-6 : f32
    %62 = vector.broadcast %cst_15 : f32 to vector<96x1xf32>
    %63 = arith.addf %59, %62 : vector<96x1xf32>
    %64 = math.rsqrt %63 : vector<96x1xf32>
    %65 = vector.broadcast %64 : vector<96x1xf32> to vector<96x64xf32>
    %66 = arith.mulf %61, %65 : vector<96x64xf32>
    %67 = vector.broadcast %41 : vector<1x64xf32> to vector<96x64xf32>
    %68 = arith.mulf %66, %67 : vector<96x64xf32>
    %69 = vector.broadcast %42 : vector<1x64xf32> to vector<96x64xf32>
    %70 = arith.addf %68, %69 : vector<96x64xf32>
    %71 = arith.truncf %70 : vector<96x64xf32> to vector<96x64xbf16>
    %c0_16 = arith.constant 0 : index
    %c0_17 = arith.constant 0 : index
    %c0_18 = arith.constant 0 : index
    %72 = vector.load %arg3[%c0_16, %c0_17, %c0_18] : memref<2x64x384xbf16, #tpu.memory_space<vmem>>, vector<1x64x384xbf16>
    %73 = vector.shape_cast %72 : vector<1x64x384xbf16> to vector<64x384xbf16>
    %cst_19 = arith.constant dense<0.000000e+00> : vector<96x384xf32>
    %74 = tpu.matmul %71, %73, %cst_19 {dimension_numbers = #tpu.dot_dimension_numbers<[1], [0], [0], [1], [0, 0, 1, 1], [], []>} : vector<96x64xbf16>, vector<64x384xbf16>, vector<96x384xf32> -> vector<96x384xf32>
    %75 = vector.broadcast %43 : vector<1x384xf32> to vector<96x384xf32>
    %76 = arith.addf %74, %75 : vector<96x384xf32>
    %77 = arith.truncf %76 : vector<96x384xf32> to vector<96x384xbf16>
    %78 = vector.extract_strided_slice %77 {offsets = [0, 0], sizes = [48, 64], strides = [1, 1]} : vector<96x384xbf16> to vector<48x64xbf16>
    %79 = vector.extract_strided_slice %77 {offsets = [48, 0], sizes = [48, 64], strides = [1, 1]} : vector<96x384xbf16> to vector<48x64xbf16>
    %80 = vector.shape_cast %78 : vector<48x64xbf16> to vector<1x48x64xbf16>
    %81 = vector.shape_cast %79 : vector<48x64xbf16> to vector<1x48x64xbf16>
    %82 = tpu.concatenate %80, %81 in 0 : vector<1x48x64xbf16>, vector<1x48x64xbf16> -> vector<2x48x64xbf16>
    %83 = vector.extract_strided_slice %77 {offsets = [0, 128], sizes = [48, 64], strides = [1, 1]} : vector<96x384xbf16> to vector<48x64xbf16>
    %84 = vector.extract_strided_slice %77 {offsets = [48, 128], sizes = [48, 64], strides = [1, 1]} : vector<96x384xbf16> to vector<48x64xbf16>
    %85 = vector.shape_cast %83 : vector<48x64xbf16> to vector<1x48x64xbf16>
    %86 = vector.shape_cast %84 : vector<48x64xbf16> to vector<1x48x64xbf16>
    %87 = tpu.concatenate %85, %86 in 0 : vector<1x48x64xbf16>, vector<1x48x64xbf16> -> vector<2x48x64xbf16>
    %88 = vector.extract_strided_slice %77 {offsets = [0, 256], sizes = [48, 64], strides = [1, 1]} : vector<96x384xbf16> to vector<48x64xbf16>
    %89 = vector.extract_strided_slice %77 {offsets = [48, 256], sizes = [48, 64], strides = [1, 1]} : vector<96x384xbf16> to vector<48x64xbf16>
    %90 = vector.shape_cast %88 : vector<48x64xbf16> to vector<1x48x64xbf16>
    %91 = vector.shape_cast %89 : vector<48x64xbf16> to vector<1x48x64xbf16>
    %92 = tpu.concatenate %90, %91 in 0 : vector<1x48x64xbf16>, vector<1x48x64xbf16> -> vector<2x48x64xbf16>
    %93 = tpu.concatenate %82, %82, %82, %82 in 0 : vector<2x48x64xbf16>, vector<2x48x64xbf16>, vector<2x48x64xbf16>, vector<2x48x64xbf16> -> vector<8x48x64xbf16>
    %94 = vector.broadcast %38 : vector<8x1x64xbf16> to vector<8x48x64xbf16>
    %95 = arith.mulf %93, %94 : vector<8x48x64xbf16>
    %96 = tpu.concatenate %87, %87, %87, %87 in 0 : vector<2x48x64xbf16>, vector<2x48x64xbf16>, vector<2x48x64xbf16>, vector<2x48x64xbf16> -> vector<8x48x64xbf16>
    %97 = tpu.concatenate %92, %92, %92, %92 in 0 : vector<2x48x64xbf16>, vector<2x48x64xbf16>, vector<2x48x64xbf16>, vector<2x48x64xbf16> -> vector<8x48x64xbf16>
    "tpu.trace_start"() <{level = 10 : i32, message = "zqd,zkd->zqk"}> : () -> ()
    %cst_20 = arith.constant dense<0.000000e+00> : vector<8x48x48xf32>
    %98 = tpu.matmul %95, %96, %cst_20 {dimension_numbers = #tpu.dot_dimension_numbers<[2], [2], [1], [1], [0, 0, 0, 1, 1, 1], [0], [0]>} : vector<8x48x64xbf16>, vector<8x48x64xbf16>, vector<8x48x48xf32> -> vector<8x48x48xf32>
    %cst_21 = arith.constant -1.000000e+30 : f32
    "tpu.trace_stop"() : () -> ()
    %99 = vector.shape_cast %7 : vector<1x1x48xi1> to vector<1x1x48xi1>
    %100 = vector.broadcast %99 : vector<1x1x48xi1> to vector<8x48x48xi1>
    %101 = vector.broadcast %cst_21 : f32 to vector<8x48x48xf32>
    %102 = arith.select %100, %98, %101 : vector<8x48x48xi1>, vector<8x48x48xf32>
    %cst_22 = arith.constant dense<0xFF800000> : vector<8x48xf32>
    %103 = vector.multi_reduction <maximumf>, %102, %cst_22 [2] : vector<8x48x48xf32> to vector<8x48xf32>
    %104 = vector.shape_cast %103 : vector<8x48xf32> to vector<8x48x1xf32>
    %105 = vector.broadcast %104 : vector<8x48x1xf32> to vector<8x48x48xf32>
    %106 = arith.subf %102, %105 : vector<8x48x48xf32>
    %107 = math.exp %106 : vector<8x48x48xf32>
    %cst_23 = arith.constant dense<0.000000e+00> : vector<8x48xf32>
    %108 = vector.multi_reduction <add>, %107, %cst_23 [2] : vector<8x48x48xf32> to vector<8x48xf32>
    %109 = vector.shape_cast %108 : vector<8x48xf32> to vector<8x48x1xf32>
    %110 = tpu.reciprocal %109 {approx = true} : vector<8x48x1xf32> -> vector<8x48x1xf32>
    %111 = vector.broadcast %110 : vector<8x48x1xf32> to vector<8x48x48xf32>
    %112 = arith.mulf %107, %111 : vector<8x48x48xf32>
    %113 = arith.truncf %112 : vector<8x48x48xf32> to vector<8x48x48xbf16>
    "tpu.trace_start"() <{level = 10 : i32, message = "zqk,zkd->zqd"}> : () -> ()
    %cst_24 = arith.constant dense<0.000000e+00> : vector<8x48x64xf32>
    %114 = tpu.matmul %113, %97, %cst_24 {dimension_numbers = #tpu.dot_dimension_numbers<[2], [1], [1], [2], [0, 0, 0, 1, 1, 2], [0], [0]>} : vector<8x48x48xbf16>, vector<8x48x64xbf16>, vector<8x48x64xf32> -> vector<8x48x64xf32>
    "tpu.trace_stop"() : () -> ()
    %115 = vector.broadcast %37 : vector<8x1x64xf32> to vector<8x48x64xf32>
    %116 = arith.mulf %114, %115 : vector<8x48x64xf32>
    %117 = vector.extract_strided_slice %116 {offsets = [0, 0, 0], sizes = [1, 48, 64], strides = [1, 1, 1]} : vector<8x48x64xf32> to vector<1x48x64xf32>
    %118 = vector.shape_cast %117 : vector<1x48x64xf32> to vector<48x64xf32>
    %119 = vector.extract_strided_slice %116 {offsets = [2, 0, 0], sizes = [1, 48, 64], strides = [1, 1, 1]} : vector<8x48x64xf32> to vector<1x48x64xf32>
    %120 = vector.shape_cast %119 : vector<1x48x64xf32> to vector<48x64xf32>
    %121 = arith.addf %118, %120 : vector<48x64xf32>
    %122 = vector.extract_strided_slice %116 {offsets = [4, 0, 0], sizes = [1, 48, 64], strides = [1, 1, 1]} : vector<8x48x64xf32> to vector<1x48x64xf32>
    %123 = vector.shape_cast %122 : vector<1x48x64xf32> to vector<48x64xf32>
    %124 = arith.addf %121, %123 : vector<48x64xf32>
    %125 = vector.extract_strided_slice %116 {offsets = [6, 0, 0], sizes = [1, 48, 64], strides = [1, 1, 1]} : vector<8x48x64xf32> to vector<1x48x64xf32>
    %126 = vector.shape_cast %125 : vector<1x48x64xf32> to vector<48x64xf32>
    %127 = arith.addf %124, %126 : vector<48x64xf32>
    %128 = vector.extract_strided_slice %116 {offsets = [1, 0, 0], sizes = [1, 48, 64], strides = [1, 1, 1]} : vector<8x48x64xf32> to vector<1x48x64xf32>
    %129 = vector.shape_cast %128 : vector<1x48x64xf32> to vector<48x64xf32>
    %130 = vector.extract_strided_slice %116 {offsets = [3, 0, 0], sizes = [1, 48, 64], strides = [1, 1, 1]} : vector<8x48x64xf32> to vector<1x48x64xf32>
    %131 = vector.shape_cast %130 : vector<1x48x64xf32> to vector<48x64xf32>
    %132 = arith.addf %129, %131 : vector<48x64xf32>
    %133 = vector.extract_strided_slice %116 {offsets = [5, 0, 0], sizes = [1, 48, 64], strides = [1, 1, 1]} : vector<8x48x64xf32> to vector<1x48x64xf32>
    %134 = vector.shape_cast %133 : vector<1x48x64xf32> to vector<48x64xf32>
    %135 = arith.addf %132, %134 : vector<48x64xf32>
    %136 = vector.extract_strided_slice %116 {offsets = [7, 0, 0], sizes = [1, 48, 64], strides = [1, 1, 1]} : vector<8x48x64xf32> to vector<1x48x64xf32>
    %137 = vector.shape_cast %136 : vector<1x48x64xf32> to vector<48x64xf32>
    %138 = arith.addf %135, %137 : vector<48x64xf32>
    %139 = tpu.concatenate %127, %138 in 0 : vector<48x64xf32>, vector<48x64xf32> -> vector<96x64xf32>
    %140 = arith.truncf %139 : vector<96x64xf32> to vector<96x64xbf16>
    %c0_25 = arith.constant 0 : index
    %c0_26 = arith.constant 0 : index
    %c0_27 = arith.constant 0 : index
    %141 = vector.load %arg4[%c0_25, %c0_26, %c0_27] : memref<2x64x64xbf16, #tpu.memory_space<vmem>>, vector<1x64x64xbf16>
    %142 = vector.shape_cast %141 : vector<1x64x64xbf16> to vector<64x64xbf16>
    %cst_28 = arith.constant dense<0.000000e+00> : vector<96x64xf32>
    %143 = tpu.matmul %140, %142, %cst_28 {dimension_numbers = #tpu.dot_dimension_numbers<[1], [0], [0], [1], [0, 0, 1, 1], [], []>} : vector<96x64xbf16>, vector<64x64xbf16>, vector<96x64xf32> -> vector<96x64xf32>
    %144 = vector.broadcast %44 : vector<1x64xf32> to vector<96x64xf32>
    %145 = arith.addf %143, %144 : vector<96x64xf32>
    %146 = arith.addf %4, %145 : vector<96x64xf32>
    %cst_29 = arith.constant dense<0.000000e+00> : vector<96xf32>
    %147 = vector.multi_reduction <add>, %146, %cst_29 [1] : vector<96x64xf32> to vector<96xf32>
    %148 = vector.shape_cast %147 : vector<96xf32> to vector<96x1xf32>
    %cst_30 = arith.constant 6.400000e+01 : f32
    %149 = vector.broadcast %cst_30 : f32 to vector<96x1xf32>
    %150 = arith.divf %148, %149 : vector<96x1xf32>
    %151 = vector.broadcast %150 : vector<96x1xf32> to vector<96x64xf32>
    %152 = arith.subf %146, %151 : vector<96x64xf32>
    %153 = arith.mulf %152, %152 : vector<96x64xf32>
    %cst_31 = arith.constant dense<0.000000e+00> : vector<96xf32>
    %154 = vector.multi_reduction <add>, %153, %cst_31 [1] : vector<96x64xf32> to vector<96xf32>
    %155 = vector.shape_cast %154 : vector<96xf32> to vector<96x1xf32>
    %cst_32 = arith.constant 6.400000e+01 : f32
    %156 = vector.broadcast %cst_32 : f32 to vector<96x1xf32>
    %157 = arith.divf %155, %156 : vector<96x1xf32>
    %158 = vector.broadcast %150 : vector<96x1xf32> to vector<96x64xf32>
    %159 = arith.subf %146, %158 : vector<96x64xf32>
    %cst_33 = arith.constant 9.99999974E-6 : f32
    %160 = vector.broadcast %cst_33 : f32 to vector<96x1xf32>
    %161 = arith.addf %157, %160 : vector<96x1xf32>
    %162 = math.rsqrt %161 : vector<96x1xf32>
    %163 = vector.broadcast %162 : vector<96x1xf32> to vector<96x64xf32>
    %164 = arith.mulf %159, %163 : vector<96x64xf32>
    %165 = vector.broadcast %45 : vector<1x64xf32> to vector<96x64xf32>
    %166 = arith.mulf %164, %165 : vector<96x64xf32>
    %167 = vector.broadcast %46 : vector<1x64xf32> to vector<96x64xf32>
    %168 = arith.addf %166, %167 : vector<96x64xf32>
    %169 = arith.truncf %168 : vector<96x64xf32> to vector<96x64xbf16>
    %c0_34 = arith.constant 0 : index
    %c0_35 = arith.constant 0 : index
    %c0_36 = arith.constant 0 : index
    %170 = vector.load %arg5[%c0_34, %c0_35, %c0_36] : memref<2x64x256xbf16, #tpu.memory_space<vmem>>, vector<1x64x256xbf16>
    %171 = vector.shape_cast %170 : vector<1x64x256xbf16> to vector<64x256xbf16>
    %cst_37 = arith.constant dense<0.000000e+00> : vector<96x256xf32>
    %172 = tpu.matmul %169, %171, %cst_37 {dimension_numbers = #tpu.dot_dimension_numbers<[1], [0], [0], [1], [0, 0, 1, 1], [], []>} : vector<96x64xbf16>, vector<64x256xbf16>, vector<96x256xf32> -> vector<96x256xf32>
    %173 = vector.broadcast %47 : vector<1x256xf32> to vector<96x256xf32>
    %174 = arith.addf %172, %173 : vector<96x256xf32>
    %175 = arith.mulf %174, %174 : vector<96x256xf32>
    %176 = arith.mulf %174, %175 : vector<96x256xf32>
    %cst_38 = arith.constant 4.471500e-02 : f32
    %177 = vector.broadcast %cst_38 : f32 to vector<96x256xf32>
    %178 = arith.mulf %177, %176 : vector<96x256xf32>
    %179 = arith.addf %174, %178 : vector<96x256xf32>
    %cst_39 = arith.constant 0.797884583 : f32
    %180 = vector.broadcast %cst_39 : f32 to vector<96x256xf32>
    %181 = arith.mulf %180, %179 : vector<96x256xf32>
    %182 = math.tanh %181 : vector<96x256xf32>
    %cst_40 = arith.constant 1.000000e+00 : f32
    %183 = vector.broadcast %cst_40 : f32 to vector<96x256xf32>
    %184 = arith.addf %183, %182 : vector<96x256xf32>
    %cst_41 = arith.constant 5.000000e-01 : f32
    %185 = vector.broadcast %cst_41 : f32 to vector<96x256xf32>
    %186 = arith.mulf %185, %184 : vector<96x256xf32>
    %187 = arith.mulf %174, %186 : vector<96x256xf32>
    %188 = arith.truncf %187 : vector<96x256xf32> to vector<96x256xbf16>
    %c0_42 = arith.constant 0 : index
    %c0_43 = arith.constant 0 : index
    %c0_44 = arith.constant 0 : index
    %189 = vector.load %arg6[%c0_42, %c0_43, %c0_44] : memref<2x256x64xbf16, #tpu.memory_space<vmem>>, vector<1x256x64xbf16>
    %190 = vector.shape_cast %189 : vector<1x256x64xbf16> to vector<256x64xbf16>
    %cst_45 = arith.constant dense<0.000000e+00> : vector<96x64xf32>
    %191 = tpu.matmul %188, %190, %cst_45 {dimension_numbers = #tpu.dot_dimension_numbers<[1], [0], [0], [1], [0, 0, 1, 1], [], []>} : vector<96x256xbf16>, vector<256x64xbf16>, vector<96x64xf32> -> vector<96x64xf32>
    %192 = arith.addf %146, %191 : vector<96x64xf32>
    %193 = vector.broadcast %48 : vector<1x64xf32> to vector<96x64xf32>
    %194 = arith.addf %192, %193 : vector<96x64xf32>
    %c1 = arith.constant 1 : index
    %c0_46 = arith.constant 0 : index
    %c0_47 = arith.constant 0 : index
    %195 = vector.load %arg7[%c1, %c0_46, %c0_47] : memref<2x8x384xf32, #tpu.memory_space<vmem>>, vector<1x8x384xf32>
    %196 = vector.shape_cast %195 : vector<1x8x384xf32> to vector<8x384xf32>
    %197 = vector.extract_strided_slice %196 {offsets = [0, 0], sizes = [1, 64], strides = [1, 1]} : vector<8x384xf32> to vector<1x64xf32>
    %198 = vector.extract_strided_slice %196 {offsets = [1, 0], sizes = [1, 64], strides = [1, 1]} : vector<8x384xf32> to vector<1x64xf32>
    %199 = vector.extract_strided_slice %196 {offsets = [2, 0], sizes = [1, 384], strides = [1, 1]} : vector<8x384xf32> to vector<1x384xf32>
    %200 = vector.extract_strided_slice %196 {offsets = [3, 0], sizes = [1, 64], strides = [1, 1]} : vector<8x384xf32> to vector<1x64xf32>
    %201 = vector.extract_strided_slice %196 {offsets = [4, 0], sizes = [1, 64], strides = [1, 1]} : vector<8x384xf32> to vector<1x64xf32>
    %202 = vector.extract_strided_slice %196 {offsets = [5, 0], sizes = [1, 64], strides = [1, 1]} : vector<8x384xf32> to vector<1x64xf32>
    %203 = vector.extract_strided_slice %196 {offsets = [6, 0], sizes = [1, 256], strides = [1, 1]} : vector<8x384xf32> to vector<1x256xf32>
    %204 = vector.extract_strided_slice %196 {offsets = [7, 0], sizes = [1, 64], strides = [1, 1]} : vector<8x384xf32> to vector<1x64xf32>
    %cst_48 = arith.constant dense<0.000000e+00> : vector<96xf32>
    %205 = vector.multi_reduction <add>, %194, %cst_48 [1] : vector<96x64xf32> to vector<96xf32>
    %206 = vector.shape_cast %205 : vector<96xf32> to vector<96x1xf32>
    %cst_49 = arith.constant 6.400000e+01 : f32
    %207 = vector.broadcast %cst_49 : f32 to vector<96x1xf32>
    %208 = arith.divf %206, %207 : vector<96x1xf32>
    %209 = vector.broadcast %208 : vector<96x1xf32> to vector<96x64xf32>
    %210 = arith.subf %194, %209 : vector<96x64xf32>
    %211 = arith.mulf %210, %210 : vector<96x64xf32>
    %cst_50 = arith.constant dense<0.000000e+00> : vector<96xf32>
    %212 = vector.multi_reduction <add>, %211, %cst_50 [1] : vector<96x64xf32> to vector<96xf32>
    %213 = vector.shape_cast %212 : vector<96xf32> to vector<96x1xf32>
    %cst_51 = arith.constant 6.400000e+01 : f32
    %214 = vector.broadcast %cst_51 : f32 to vector<96x1xf32>
    %215 = arith.divf %213, %214 : vector<96x1xf32>
    %216 = vector.broadcast %208 : vector<96x1xf32> to vector<96x64xf32>
    %217 = arith.subf %194, %216 : vector<96x64xf32>
    %cst_52 = arith.constant 9.99999974E-6 : f32
    %218 = vector.broadcast %cst_52 : f32 to vector<96x1xf32>
    %219 = arith.addf %215, %218 : vector<96x1xf32>
    %220 = math.rsqrt %219 : vector<96x1xf32>
    %221 = vector.broadcast %220 : vector<96x1xf32> to vector<96x64xf32>
    %222 = arith.mulf %217, %221 : vector<96x64xf32>
    %223 = vector.broadcast %197 : vector<1x64xf32> to vector<96x64xf32>
    %224 = arith.mulf %222, %223 : vector<96x64xf32>
    %225 = vector.broadcast %198 : vector<1x64xf32> to vector<96x64xf32>
    %226 = arith.addf %224, %225 : vector<96x64xf32>
    %227 = arith.truncf %226 : vector<96x64xf32> to vector<96x64xbf16>
    %c1_53 = arith.constant 1 : index
    %c0_54 = arith.constant 0 : index
    %c0_55 = arith.constant 0 : index
    %228 = vector.load %arg3[%c1_53, %c0_54, %c0_55] : memref<2x64x384xbf16, #tpu.memory_space<vmem>>, vector<1x64x384xbf16>
    %229 = vector.shape_cast %228 : vector<1x64x384xbf16> to vector<64x384xbf16>
    %cst_56 = arith.constant dense<0.000000e+00> : vector<96x384xf32>
    %230 = tpu.matmul %227, %229, %cst_56 {dimension_numbers = #tpu.dot_dimension_numbers<[1], [0], [0], [1], [0, 0, 1, 1], [], []>} : vector<96x64xbf16>, vector<64x384xbf16>, vector<96x384xf32> -> vector<96x384xf32>
    %231 = vector.broadcast %199 : vector<1x384xf32> to vector<96x384xf32>
    %232 = arith.addf %230, %231 : vector<96x384xf32>
    %233 = arith.truncf %232 : vector<96x384xf32> to vector<96x384xbf16>
    %234 = vector.extract_strided_slice %233 {offsets = [0, 0], sizes = [48, 64], strides = [1, 1]} : vector<96x384xbf16> to vector<48x64xbf16>
    %235 = vector.extract_strided_slice %233 {offsets = [48, 0], sizes = [48, 64], strides = [1, 1]} : vector<96x384xbf16> to vector<48x64xbf16>
    %236 = vector.shape_cast %234 : vector<48x64xbf16> to vector<1x48x64xbf16>
    %237 = vector.shape_cast %235 : vector<48x64xbf16> to vector<1x48x64xbf16>
    %238 = tpu.concatenate %236, %237 in 0 : vector<1x48x64xbf16>, vector<1x48x64xbf16> -> vector<2x48x64xbf16>
    %239 = vector.extract_strided_slice %233 {offsets = [0, 128], sizes = [48, 64], strides = [1, 1]} : vector<96x384xbf16> to vector<48x64xbf16>
    %240 = vector.extract_strided_slice %233 {offsets = [48, 128], sizes = [48, 64], strides = [1, 1]} : vector<96x384xbf16> to vector<48x64xbf16>
    %241 = vector.shape_cast %239 : vector<48x64xbf16> to vector<1x48x64xbf16>
    %242 = vector.shape_cast %240 : vector<48x64xbf16> to vector<1x48x64xbf16>
    %243 = tpu.concatenate %241, %242 in 0 : vector<1x48x64xbf16>, vector<1x48x64xbf16> -> vector<2x48x64xbf16>
    %244 = vector.extract_strided_slice %233 {offsets = [0, 256], sizes = [48, 64], strides = [1, 1]} : vector<96x384xbf16> to vector<48x64xbf16>
    %245 = vector.extract_strided_slice %233 {offsets = [48, 256], sizes = [48, 64], strides = [1, 1]} : vector<96x384xbf16> to vector<48x64xbf16>
    %246 = vector.shape_cast %244 : vector<48x64xbf16> to vector<1x48x64xbf16>
    %247 = vector.shape_cast %245 : vector<48x64xbf16> to vector<1x48x64xbf16>
    %248 = tpu.concatenate %246, %247 in 0 : vector<1x48x64xbf16>, vector<1x48x64xbf16> -> vector<2x48x64xbf16>
    %249 = tpu.concatenate %238, %238, %238, %238 in 0 : vector<2x48x64xbf16>, vector<2x48x64xbf16>, vector<2x48x64xbf16>, vector<2x48x64xbf16> -> vector<8x48x64xbf16>
    %250 = vector.broadcast %38 : vector<8x1x64xbf16> to vector<8x48x64xbf16>
    %251 = arith.mulf %249, %250 : vector<8x48x64xbf16>
    %252 = tpu.concatenate %243, %243, %243, %243 in 0 : vector<2x48x64xbf16>, vector<2x48x64xbf16>, vector<2x48x64xbf16>, vector<2x48x64xbf16> -> vector<8x48x64xbf16>
    %253 = tpu.concatenate %248, %248, %248, %248 in 0 : vector<2x48x64xbf16>, vector<2x48x64xbf16>, vector<2x48x64xbf16>, vector<2x48x64xbf16> -> vector<8x48x64xbf16>
    "tpu.trace_start"() <{level = 10 : i32, message = "zqd,zkd->zqk"}> : () -> ()
    %cst_57 = arith.constant dense<0.000000e+00> : vector<8x48x48xf32>
    %254 = tpu.matmul %251, %252, %cst_57 {dimension_numbers = #tpu.dot_dimension_numbers<[2], [2], [1], [1], [0, 0, 0, 1, 1, 1], [0], [0]>} : vector<8x48x64xbf16>, vector<8x48x64xbf16>, vector<8x48x48xf32> -> vector<8x48x48xf32>
    %cst_58 = arith.constant -1.000000e+30 : f32
    "tpu.trace_stop"() : () -> ()
    %255 = vector.shape_cast %7 : vector<1x1x48xi1> to vector<1x1x48xi1>
    %256 = vector.broadcast %255 : vector<1x1x48xi1> to vector<8x48x48xi1>
    %257 = vector.broadcast %cst_58 : f32 to vector<8x48x48xf32>
    %258 = arith.select %256, %254, %257 : vector<8x48x48xi1>, vector<8x48x48xf32>
    %cst_59 = arith.constant dense<0xFF800000> : vector<8x48xf32>
    %259 = vector.multi_reduction <maximumf>, %258, %cst_59 [2] : vector<8x48x48xf32> to vector<8x48xf32>
    %260 = vector.shape_cast %259 : vector<8x48xf32> to vector<8x48x1xf32>
    %261 = vector.broadcast %260 : vector<8x48x1xf32> to vector<8x48x48xf32>
    %262 = arith.subf %258, %261 : vector<8x48x48xf32>
    %263 = math.exp %262 : vector<8x48x48xf32>
    %cst_60 = arith.constant dense<0.000000e+00> : vector<8x48xf32>
    %264 = vector.multi_reduction <add>, %263, %cst_60 [2] : vector<8x48x48xf32> to vector<8x48xf32>
    %265 = vector.shape_cast %264 : vector<8x48xf32> to vector<8x48x1xf32>
    %266 = tpu.reciprocal %265 {approx = true} : vector<8x48x1xf32> -> vector<8x48x1xf32>
    %267 = vector.broadcast %266 : vector<8x48x1xf32> to vector<8x48x48xf32>
    %268 = arith.mulf %263, %267 : vector<8x48x48xf32>
    %269 = arith.truncf %268 : vector<8x48x48xf32> to vector<8x48x48xbf16>
    "tpu.trace_start"() <{level = 10 : i32, message = "zqk,zkd->zqd"}> : () -> ()
    %cst_61 = arith.constant dense<0.000000e+00> : vector<8x48x64xf32>
    %270 = tpu.matmul %269, %253, %cst_61 {dimension_numbers = #tpu.dot_dimension_numbers<[2], [1], [1], [2], [0, 0, 0, 1, 1, 2], [0], [0]>} : vector<8x48x48xbf16>, vector<8x48x64xbf16>, vector<8x48x64xf32> -> vector<8x48x64xf32>
    "tpu.trace_stop"() : () -> ()
    %271 = vector.broadcast %37 : vector<8x1x64xf32> to vector<8x48x64xf32>
    %272 = arith.mulf %270, %271 : vector<8x48x64xf32>
    %273 = vector.extract_strided_slice %272 {offsets = [0, 0, 0], sizes = [1, 48, 64], strides = [1, 1, 1]} : vector<8x48x64xf32> to vector<1x48x64xf32>
    %274 = vector.shape_cast %273 : vector<1x48x64xf32> to vector<48x64xf32>
    %275 = vector.extract_strided_slice %272 {offsets = [2, 0, 0], sizes = [1, 48, 64], strides = [1, 1, 1]} : vector<8x48x64xf32> to vector<1x48x64xf32>
    %276 = vector.shape_cast %275 : vector<1x48x64xf32> to vector<48x64xf32>
    %277 = arith.addf %274, %276 : vector<48x64xf32>
    %278 = vector.extract_strided_slice %272 {offsets = [4, 0, 0], sizes = [1, 48, 64], strides = [1, 1, 1]} : vector<8x48x64xf32> to vector<1x48x64xf32>
    %279 = vector.shape_cast %278 : vector<1x48x64xf32> to vector<48x64xf32>
    %280 = arith.addf %277, %279 : vector<48x64xf32>
    %281 = vector.extract_strided_slice %272 {offsets = [6, 0, 0], sizes = [1, 48, 64], strides = [1, 1, 1]} : vector<8x48x64xf32> to vector<1x48x64xf32>
    %282 = vector.shape_cast %281 : vector<1x48x64xf32> to vector<48x64xf32>
    %283 = arith.addf %280, %282 : vector<48x64xf32>
    %284 = vector.extract_strided_slice %272 {offsets = [1, 0, 0], sizes = [1, 48, 64], strides = [1, 1, 1]} : vector<8x48x64xf32> to vector<1x48x64xf32>
    %285 = vector.shape_cast %284 : vector<1x48x64xf32> to vector<48x64xf32>
    %286 = vector.extract_strided_slice %272 {offsets = [3, 0, 0], sizes = [1, 48, 64], strides = [1, 1, 1]} : vector<8x48x64xf32> to vector<1x48x64xf32>
    %287 = vector.shape_cast %286 : vector<1x48x64xf32> to vector<48x64xf32>
    %288 = arith.addf %285, %287 : vector<48x64xf32>
    %289 = vector.extract_strided_slice %272 {offsets = [5, 0, 0], sizes = [1, 48, 64], strides = [1, 1, 1]} : vector<8x48x64xf32> to vector<1x48x64xf32>
    %290 = vector.shape_cast %289 : vector<1x48x64xf32> to vector<48x64xf32>
    %291 = arith.addf %288, %290 : vector<48x64xf32>
    %292 = vector.extract_strided_slice %272 {offsets = [7, 0, 0], sizes = [1, 48, 64], strides = [1, 1, 1]} : vector<8x48x64xf32> to vector<1x48x64xf32>
    %293 = vector.shape_cast %292 : vector<1x48x64xf32> to vector<48x64xf32>
    %294 = arith.addf %291, %293 : vector<48x64xf32>
    %295 = tpu.concatenate %283, %294 in 0 : vector<48x64xf32>, vector<48x64xf32> -> vector<96x64xf32>
    %296 = arith.truncf %295 : vector<96x64xf32> to vector<96x64xbf16>
    %c1_62 = arith.constant 1 : index
    %c0_63 = arith.constant 0 : index
    %c0_64 = arith.constant 0 : index
    %297 = vector.load %arg4[%c1_62, %c0_63, %c0_64] : memref<2x64x64xbf16, #tpu.memory_space<vmem>>, vector<1x64x64xbf16>
    %298 = vector.shape_cast %297 : vector<1x64x64xbf16> to vector<64x64xbf16>
    %cst_65 = arith.constant dense<0.000000e+00> : vector<96x64xf32>
    %299 = tpu.matmul %296, %298, %cst_65 {dimension_numbers = #tpu.dot_dimension_numbers<[1], [0], [0], [1], [0, 0, 1, 1], [], []>} : vector<96x64xbf16>, vector<64x64xbf16>, vector<96x64xf32> -> vector<96x64xf32>
    %300 = vector.broadcast %200 : vector<1x64xf32> to vector<96x64xf32>
    %301 = arith.addf %299, %300 : vector<96x64xf32>
    %302 = arith.addf %194, %301 : vector<96x64xf32>
    %cst_66 = arith.constant dense<0.000000e+00> : vector<96xf32>
    %303 = vector.multi_reduction <add>, %302, %cst_66 [1] : vector<96x64xf32> to vector<96xf32>
    %304 = vector.shape_cast %303 : vector<96xf32> to vector<96x1xf32>
    %cst_67 = arith.constant 6.400000e+01 : f32
    %305 = vector.broadcast %cst_67 : f32 to vector<96x1xf32>
    %306 = arith.divf %304, %305 : vector<96x1xf32>
    %307 = vector.broadcast %306 : vector<96x1xf32> to vector<96x64xf32>
    %308 = arith.subf %302, %307 : vector<96x64xf32>
    %309 = arith.mulf %308, %308 : vector<96x64xf32>
    %cst_68 = arith.constant dense<0.000000e+00> : vector<96xf32>
    %310 = vector.multi_reduction <add>, %309, %cst_68 [1] : vector<96x64xf32> to vector<96xf32>
    %311 = vector.shape_cast %310 : vector<96xf32> to vector<96x1xf32>
    %cst_69 = arith.constant 6.400000e+01 : f32
    %312 = vector.broadcast %cst_69 : f32 to vector<96x1xf32>
    %313 = arith.divf %311, %312 : vector<96x1xf32>
    %314 = vector.broadcast %306 : vector<96x1xf32> to vector<96x64xf32>
    %315 = arith.subf %302, %314 : vector<96x64xf32>
    %cst_70 = arith.constant 9.99999974E-6 : f32
    %316 = vector.broadcast %cst_70 : f32 to vector<96x1xf32>
    %317 = arith.addf %313, %316 : vector<96x1xf32>
    %318 = math.rsqrt %317 : vector<96x1xf32>
    %319 = vector.broadcast %318 : vector<96x1xf32> to vector<96x64xf32>
    %320 = arith.mulf %315, %319 : vector<96x64xf32>
    %321 = vector.broadcast %201 : vector<1x64xf32> to vector<96x64xf32>
    %322 = arith.mulf %320, %321 : vector<96x64xf32>
    %323 = vector.broadcast %202 : vector<1x64xf32> to vector<96x64xf32>
    %324 = arith.addf %322, %323 : vector<96x64xf32>
    %325 = arith.truncf %324 : vector<96x64xf32> to vector<96x64xbf16>
    %c1_71 = arith.constant 1 : index
    %c0_72 = arith.constant 0 : index
    %c0_73 = arith.constant 0 : index
    %326 = vector.load %arg5[%c1_71, %c0_72, %c0_73] : memref<2x64x256xbf16, #tpu.memory_space<vmem>>, vector<1x64x256xbf16>
    %327 = vector.shape_cast %326 : vector<1x64x256xbf16> to vector<64x256xbf16>
    %cst_74 = arith.constant dense<0.000000e+00> : vector<96x256xf32>
    %328 = tpu.matmul %325, %327, %cst_74 {dimension_numbers = #tpu.dot_dimension_numbers<[1], [0], [0], [1], [0, 0, 1, 1], [], []>} : vector<96x64xbf16>, vector<64x256xbf16>, vector<96x256xf32> -> vector<96x256xf32>
    %329 = vector.broadcast %203 : vector<1x256xf32> to vector<96x256xf32>
    %330 = arith.addf %328, %329 : vector<96x256xf32>
    %331 = arith.mulf %330, %330 : vector<96x256xf32>
    %332 = arith.mulf %330, %331 : vector<96x256xf32>
    %cst_75 = arith.constant 4.471500e-02 : f32
    %333 = vector.broadcast %cst_75 : f32 to vector<96x256xf32>
    %334 = arith.mulf %333, %332 : vector<96x256xf32>
    %335 = arith.addf %330, %334 : vector<96x256xf32>
    %cst_76 = arith.constant 0.797884583 : f32
    %336 = vector.broadcast %cst_76 : f32 to vector<96x256xf32>
    %337 = arith.mulf %336, %335 : vector<96x256xf32>
    %338 = math.tanh %337 : vector<96x256xf32>
    %cst_77 = arith.constant 1.000000e+00 : f32
    %339 = vector.broadcast %cst_77 : f32 to vector<96x256xf32>
    %340 = arith.addf %339, %338 : vector<96x256xf32>
    %cst_78 = arith.constant 5.000000e-01 : f32
    %341 = vector.broadcast %cst_78 : f32 to vector<96x256xf32>
    %342 = arith.mulf %341, %340 : vector<96x256xf32>
    %343 = arith.mulf %330, %342 : vector<96x256xf32>
    %344 = arith.truncf %343 : vector<96x256xf32> to vector<96x256xbf16>
    %c1_79 = arith.constant 1 : index
    %c0_80 = arith.constant 0 : index
    %c0_81 = arith.constant 0 : index
    %345 = vector.load %arg6[%c1_79, %c0_80, %c0_81] : memref<2x256x64xbf16, #tpu.memory_space<vmem>>, vector<1x256x64xbf16>
    %346 = vector.shape_cast %345 : vector<1x256x64xbf16> to vector<256x64xbf16>
    %cst_82 = arith.constant dense<0.000000e+00> : vector<96x64xf32>
    %347 = tpu.matmul %344, %346, %cst_82 {dimension_numbers = #tpu.dot_dimension_numbers<[1], [0], [0], [1], [0, 0, 1, 1], [], []>} : vector<96x256xbf16>, vector<256x64xbf16>, vector<96x64xf32> -> vector<96x64xf32>
    %348 = arith.addf %302, %347 : vector<96x64xf32>
    %349 = vector.broadcast %204 : vector<1x64xf32> to vector<96x64xf32>
    %350 = arith.addf %348, %349 : vector<96x64xf32>
    %c0_83 = arith.constant 0 : index
    %c0_84 = arith.constant 0 : index
    %351 = vector.load %arg9[%c0_83, %c0_84] : memref<8x128xf32, #tpu.memory_space<vmem>>, vector<8x128xf32>
    %352 = vector.extract_strided_slice %351 {offsets = [0, 0], sizes = [1, 64], strides = [1, 1]} : vector<8x128xf32> to vector<1x64xf32>
    %353 = vector.extract_strided_slice %351 {offsets = [1, 0], sizes = [1, 64], strides = [1, 1]} : vector<8x128xf32> to vector<1x64xf32>
    %cst_85 = arith.constant dense<0.000000e+00> : vector<96xf32>
    %354 = vector.multi_reduction <add>, %350, %cst_85 [1] : vector<96x64xf32> to vector<96xf32>
    %355 = vector.shape_cast %354 : vector<96xf32> to vector<96x1xf32>
    %cst_86 = arith.constant 6.400000e+01 : f32
    %356 = vector.broadcast %cst_86 : f32 to vector<96x1xf32>
    %357 = arith.divf %355, %356 : vector<96x1xf32>
    %358 = vector.broadcast %357 : vector<96x1xf32> to vector<96x64xf32>
    %359 = arith.subf %350, %358 : vector<96x64xf32>
    %360 = arith.mulf %359, %359 : vector<96x64xf32>
    %cst_87 = arith.constant dense<0.000000e+00> : vector<96xf32>
    %361 = vector.multi_reduction <add>, %360, %cst_87 [1] : vector<96x64xf32> to vector<96xf32>
    %362 = vector.shape_cast %361 : vector<96xf32> to vector<96x1xf32>
    %cst_88 = arith.constant 6.400000e+01 : f32
    %363 = vector.broadcast %cst_88 : f32 to vector<96x1xf32>
    %364 = arith.divf %362, %363 : vector<96x1xf32>
    %365 = vector.broadcast %357 : vector<96x1xf32> to vector<96x64xf32>
    %366 = arith.subf %350, %365 : vector<96x64xf32>
    %cst_89 = arith.constant 9.99999974E-6 : f32
    %367 = vector.broadcast %cst_89 : f32 to vector<96x1xf32>
    %368 = arith.addf %364, %367 : vector<96x1xf32>
    %369 = math.rsqrt %368 : vector<96x1xf32>
    %370 = vector.broadcast %369 : vector<96x1xf32> to vector<96x64xf32>
    %371 = arith.mulf %366, %370 : vector<96x64xf32>
    %372 = vector.broadcast %352 : vector<1x64xf32> to vector<96x64xf32>
    %373 = arith.mulf %371, %372 : vector<96x64xf32>
    %374 = vector.broadcast %353 : vector<1x64xf32> to vector<96x64xf32>
    %375 = arith.addf %373, %374 : vector<96x64xf32>
    %376 = tpu.iota {dimensions = array<i32: 0>} : vector<48x1xi32>
    %c33_i32_90 = arith.constant 33 : i32
    %377 = vector.broadcast %c33_i32_90 : i32 to vector<48x1xi32>
    %378 = arith.cmpi slt, %376, %377 : vector<48x1xi32>
    %379 = arith.extui %378 : vector<48x1xi1> to vector<48x1xi32>
    %380 = arith.sitofp %379 : vector<48x1xi32> to vector<48x1xf32>
    %381 = vector.extract_strided_slice %375 {offsets = [0, 0], sizes = [48, 64], strides = [1, 1]} : vector<96x64xf32> to vector<48x64xf32>
    %382 = vector.broadcast %380 : vector<48x1xf32> to vector<48x64xf32>
    %383 = arith.mulf %381, %382 : vector<48x64xf32>
    %cst_91 = arith.constant dense<0.000000e+00> : vector<64xf32>
    %384 = vector.multi_reduction <add>, %383, %cst_91 [0] : vector<48x64xf32> to vector<64xf32>
    %385 = vector.shape_cast %384 : vector<64xf32> to vector<1x64xf32>
    %386 = vector.extract_strided_slice %375 {offsets = [48, 0], sizes = [48, 64], strides = [1, 1]} : vector<96x64xf32> to vector<48x64xf32>
    %387 = vector.broadcast %380 : vector<48x1xf32> to vector<48x64xf32>
    %388 = arith.mulf %386, %387 : vector<48x64xf32>
    %cst_92 = arith.constant dense<0.000000e+00> : vector<64xf32>
    %389 = vector.multi_reduction <add>, %388, %cst_92 [0] : vector<48x64xf32> to vector<64xf32>
    %390 = vector.shape_cast %389 : vector<64xf32> to vector<1x64xf32>
    %391 = tpu.concatenate %385, %390 in 0 : vector<1x64xf32>, vector<1x64xf32> -> vector<2x64xf32>
    %cst_93 = arith.constant 0.0303030312 : f32
    %392 = vector.broadcast %cst_93 : f32 to vector<2x64xf32>
    %393 = arith.mulf %391, %392 : vector<2x64xf32>
    %394 = arith.truncf %393 : vector<2x64xf32> to vector<2x64xbf16>
    %c0_94 = arith.constant 0 : index
    %c0_95 = arith.constant 0 : index
    %395 = vector.load %arg8[%c0_94, %c0_95] : memref<64x128xbf16, #tpu.memory_space<vmem>>, vector<64x128xbf16>
    %cst_96 = arith.constant dense<0.000000e+00> : vector<2x128xf32>
    %396 = tpu.matmul %394, %395, %cst_96 {dimension_numbers = #tpu.dot_dimension_numbers<[1], [0], [0], [1], [0, 0, 1, 1], [], []>} : vector<2x64xbf16>, vector<64x128xbf16>, vector<2x128xf32> -> vector<2x128xf32>
    %397 = vector.extract_strided_slice %351 {offsets = [2, 0], sizes = [1, 128], strides = [1, 1]} : vector<8x128xf32> to vector<1x128xf32>
    %398 = vector.broadcast %397 : vector<1x128xf32> to vector<2x128xf32>
    %399 = arith.addf %396, %398 : vector<2x128xf32>
    %c0_97 = arith.constant 0 : index
    %c0_98 = arith.constant 0 : index
    %400 = vector.load %arg10[%c0_97, %c0_98] : memref<2x128xf32, #tpu.memory_space<vmem>>, vector<2x128xf32>
    tpu.vector_store %arg10[%c0_97, %c0_98], %399 {strides = array<i32>} : memref<2x128xf32, #tpu.memory_space<vmem>>, vector<2x128xf32>,
    return
  }
}

</mosaic_0001>

<llo_original>
// kernel: tpu_custom_call.1
$region0: #{tpu_custom_call.1}
  #allocation0 [shape = 'u32[]', space=smem, size = 0x4, offset = 0x4, fixed_abs, tag = 'smem constant byte address 0x4 - core index']
  #allocation1 [shape = 'u32[144,128]{1,0:T(1,128)}', space=vmem, size = 0x12000, scoped, tag = 'internal scratch']
  %s0 = inlined_call_operand.vmem [shape: bf16[96,512], index: 0, kind: input, shape index: {}]
  %s1 = inlined_call_operand.vmem [shape: bf16[512,64], index: 1, kind: input, shape index: {}]
  %s2 = inlined_call_operand.vmem [shape: f32[96,64], index: 2, kind: input, shape index: {}]
  %s3 = inlined_call_operand.vmem [shape: bf16[2,64,384], index: 3, kind: input, shape index: {}]
  %s4 = inlined_call_operand.vmem [shape: bf16[2,64,64], index: 4, kind: input, shape index: {}]
  %s5 = inlined_call_operand.vmem [shape: bf16[2,64,256], index: 5, kind: input, shape index: {}]
  %s6 = inlined_call_operand.vmem [shape: bf16[2,256,64], index: 6, kind: input, shape index: {}]
  %s7 = inlined_call_operand.vmem [shape: f32[2,8,384], index: 7, kind: input, shape index: {}]
  %s8 = inlined_call_operand.vmem [shape: bf16[64,128], index: 8, kind: input, shape index: {}]
  %s9 = inlined_call_operand.vmem [shape: f32[8,128], index: 9, kind: input, shape index: {}]
  %s10 = inlined_call_operand.hbm [shape: f32[2,128], index: 10, kind: output, shape index: {}]
  %s11 = sld [smem:[#allocation0]]
  $region50: #{tpu_custom_call.1} parent=0
    _
  %s13 = ssub.s32 1, %s11
  %s14 = scalar_select 0, %s13, %s11
  $region1: #{tpu_custom_call.1} parent=0
    #allocation2 [shape = 'u8[1024]{0}', space=vmem, size = 0x400, scoped, tag = 'output window, operand 0, single buffered']
    #allocation3 [shape = 's32[1]{0}', space=sflag, size = 0x4, scoped, tag = 'scoped memory for tpu_custom_call.1']
    %15 = vsyncpa [#allocation3], 0
    // Predicated region
    $region2: #{tpu_custom_call.1} parent=1 // pred_check
      _
    $region3: #{tpu_custom_call.1} parent=1 // pred_check_branch
      %17 = sbr.rel (0) target = $region5
    $region4: #{tpu_custom_call.1} parent=1 // pred_region
      _
    $region5: #{tpu_custom_call.1} parent=1 // pred_fallthru
      _
    // Predicated region
    $region6: #{tpu_custom_call.1} parent=1 // pred_check
      _
    $region7: #{tpu_custom_call.1} parent=1 // pred_check_branch
      %19 = sbr.rel (0) target = $region9
    $region8: #{tpu_custom_call.1} parent=1 // pred_region
      _
    $region9: #{tpu_custom_call.1} parent=1 // pred_fallthru
      _
    // Predicated region
    $region10: #{tpu_custom_call.1} parent=1 // pred_check
      _
    $region11: #{tpu_custom_call.1} parent=1 // pred_check_branch
      %21 = sbr.rel (0) target = $region13
    $region12: #{tpu_custom_call.1} parent=1 // pred_region
      _
    $region13: #{tpu_custom_call.1} parent=1 // pred_fallthru
      _
    // Predicated region
    $region14: #{tpu_custom_call.1} parent=1 // pred_check
      _
    $region15: #{tpu_custom_call.1} parent=1 // pred_check_branch
      %23 = sbr.rel (0) target = $region17
    $region16: #{tpu_custom_call.1} parent=1 // pred_region
      _
    $region17: #{tpu_custom_call.1} parent=1 // pred_fallthru
      _
    // Predicated region
    $region18: #{tpu_custom_call.1} parent=1 // pred_check
      _
    $region19: #{tpu_custom_call.1} parent=1 // pred_check_branch
      %25 = sbr.rel (0) target = $region21
    $region20: #{tpu_custom_call.1} parent=1 // pred_region
      _
    $region21: #{tpu_custom_call.1} parent=1 // pred_fallthru
      _
    // Predicated region
    $region22: #{tpu_custom_call.1} parent=1 // pred_check
      _
    $region23: #{tpu_custom_call.1} parent=1 // pred_check_branch
      %27 = sbr.rel (0) target = $region25
    $region24: #{tpu_custom_call.1} parent=1 // pred_region
      _
    $region25: #{tpu_custom_call.1} parent=1 // pred_fallthru
      _
    // Predicated region
    $region26: #{tpu_custom_call.1} parent=1 // pred_check
      _
    $region27: #{tpu_custom_call.1} parent=1 // pred_check_branch
      %29 = sbr.rel (0) target = $region29
    $region28: #{tpu_custom_call.1} parent=1 // pred_region
      _
    $region29: #{tpu_custom_call.1} parent=1 // pred_fallthru
      _
    // Predicated region
    $region30: #{tpu_custom_call.1} parent=1 // pred_check
      _
    $region31: #{tpu_custom_call.1} parent=1 // pred_check_branch
      %31 = sbr.rel (0) target = $region33
    $region32: #{tpu_custom_call.1} parent=1 // pred_region
      _
    $region33: #{tpu_custom_call.1} parent=1 // pred_fallthru
      _
    // Predicated region
    $region34: #{tpu_custom_call.1} parent=1 // pred_check
      _
    $region35: #{tpu_custom_call.1} parent=1 // pred_check_branch
      %33 = sbr.rel (0) target = $region37
    $region36: #{tpu_custom_call.1} parent=1 // pred_region
      _
    $region37: #{tpu_custom_call.1} parent=1 // pred_fallthru
      _
    // Predicated region
    $region38: #{tpu_custom_call.1} parent=1 // pred_check
      _
    $region39: #{tpu_custom_call.1} parent=1 // pred_check_branch
      %35 = sbr.rel (0) target = $region41
    $region40: #{tpu_custom_call.1} parent=1 // pred_region
      _
    $region41: #{tpu_custom_call.1} parent=1 // pred_fallthru
      _
    %v37 = vld [vmem:[%s0] sm:$0xff]
    %v38 = vld [vmem:[%s0 + $0x8] sm:$0xff]
    %v39 = vld [vmem:[%s0 + $0x10] sm:$0xff]
    %v40 = vld [vmem:[%s0 + $0x18] sm:$0xff]
    %v41 = vld [vmem:[%s0 + $0x20] sm:$0xff]
    %v42 = vld [vmem:[%s0 + $0x28] sm:$0xff]
    %v43 = vld [vmem:[%s0 + $0x30] sm:$0xff]
    %v44 = vld [vmem:[%s0 + $0x38] sm:$0xff]
    %v45 = vld [vmem:[%s0 + $0x40] sm:$0xff]
    %v46 = vld [vmem:[%s0 + $0x48] sm:$0xff]
    %v47 = vld [vmem:[%s0 + $0x50] sm:$0xff]
    %v48 = vld [vmem:[%s0 + $0x58] sm:$0xff]
    %v49 = vld [vmem:[%s0 + $0x60] sm:$0xff]
    %v50 = vld [vmem:[%s0 + $0x68] sm:$0xff]
    %v51 = vld [vmem:[%s0 + $0x70] sm:$0xff]
    %v52 = vld [vmem:[%s0 + $0x78] sm:$0xff]
    %v53 = vld [vmem:[%s0 + $0x80] sm:$0xff]
    %v54 = vld [vmem:[%s0 + $0x88] sm:$0xff]
    %v55 = vld [vmem:[%s0 + $0x90] sm:$0xff]
    %v56 = vld [vmem:[%s0 + $0x98] sm:$0xff]
    %v57 = vld [vmem:[%s0 + $0xa0] sm:$0xff]
    %v58 = vld [vmem:[%s0 + $0xa8] sm:$0xff]
    %v59 = vld [vmem:[%s0 + $0xb0] sm:$0xff]
    %v60 = vld [vmem:[%s0 + $0xb8] sm:$0xff]
    %v61 = vld [vmem:[%s1] sm:$0xf]
    %v62 = vld [vmem:[%s1 + $0x4] sm:$0xf]
    %v63 = vld [vmem:[%s1 + $0x8] sm:$0xf]
    %v64 = vld [vmem:[%s1 + $0xc] sm:$0xf]
    %v65 = vld [vmem:[%s1 + $0x10] sm:$0xf]
    %v66 = vld [vmem:[%s1 + $0x14] sm:$0xf]
    %v67 = vld [vmem:[%s1 + $0x18] sm:$0xf]
    %v68 = vld [vmem:[%s1 + $0x1c] sm:$0xf]
    %v69 = vld [vmem:[%s1 + $0x20] sm:$0xf]
    %v70 = vld [vmem:[%s1 + $0x24] sm:$0xf]
    %v71 = vld [vmem:[%s1 + $0x28] sm:$0xf]
    %v72 = vld [vmem:[%s1 + $0x2c] sm:$0xf]
    %v73 = vld [vmem:[%s1 + $0x30] sm:$0xf]
    %v74 = vld [vmem:[%s1 + $0x34] sm:$0xf]
    %v75 = vld [vmem:[%s1 + $0x38] sm:$0xf]
    %v76 = vld [vmem:[%s1 + $0x3c] sm:$0xf]
    %v77 = vld [vmem:[%s1 + $0x40] sm:$0xf]
    %v78 = vld [vmem:[%s1 + $0x44] sm:$0xf]
    %v79 = vld [vmem:[%s1 + $0x48] sm:$0xf]
    %v80 = vld [vmem:[%s1 + $0x4c] sm:$0xf]
    %v81 = vld [vmem:[%s1 + $0x50] sm:$0xf]
    %v82 = vld [vmem:[%s1 + $0x54] sm:$0xf]
    %v83 = vld [vmem:[%s1 + $0x58] sm:$0xf]
    %v84 = vld [vmem:[%s1 + $0x5c] sm:$0xf]
    %v85 = vld [vmem:[%s1 + $0x60] sm:$0xf]
    %v86 = vld [vmem:[%s1 + $0x64] sm:$0xf]
    %v87 = vld [vmem:[%s1 + $0x68] sm:$0xf]
    %v88 = vld [vmem:[%s1 + $0x6c] sm:$0xf]
    %v89 = vld [vmem:[%s1 + $0x70] sm:$0xf]
    %v90 = vld [vmem:[%s1 + $0x74] sm:$0xf]
    %v91 = vld [vmem:[%s1 + $0x78] sm:$0xf]
    %v92 = vld [vmem:[%s1 + $0x7c] sm:$0xf]
    %v93 = vld [vmem:[%s1 + $0x80] sm:$0xf]
    %v94 = vld [vmem:[%s1 + $0x84] sm:$0xf]
    %v95 = vld [vmem:[%s1 + $0x88] sm:$0xf]
    %v96 = vld [vmem:[%s1 + $0x8c] sm:$0xf]
    %v97 = vld [vmem:[%s1 + $0x90] sm:$0xf]
    %v98 = vld [vmem:[%s1 + $0x94] sm:$0xf]
    %v99 = vld [vmem:[%s1 + $0x98] sm:$0xf]
    %v100 = vld [vmem:[%s1 + $0x9c] sm:$0xf]
    %v101 = vld [vmem:[%s1 + $0xa0] sm:$0xf]
    %v102 = vld [vmem:[%s1 + $0xa4] sm:$0xf]
    %v103 = vld [vmem:[%s1 + $0xa8] sm:$0xf]
    %v104 = vld [vmem:[%s1 + $0xac] sm:$0xf]
    %v105 = vld [vmem:[%s1 + $0xb0] sm:$0xf]
    %v106 = vld [vmem:[%s1 + $0xb4] sm:$0xf]
    %v107 = vld [vmem:[%s1 + $0xb8] sm:$0xf]
    %v108 = vld [vmem:[%s1 + $0xbc] sm:$0xf]
    %v109 = vld [vmem:[%s1 + $0xc0] sm:$0xf]
    %v110 = vld [vmem:[%s1 + $0xc4] sm:$0xf]
    %v111 = vld [vmem:[%s1 + $0xc8] sm:$0xf]
    %v112 = vld [vmem:[%s1 + $0xcc] sm:$0xf]
    %v113 = vld [vmem:[%s1 + $0xd0] sm:$0xf]
    %v114 = vld [vmem:[%s1 + $0xd4] sm:$0xf]
    %v115 = vld [vmem:[%s1 + $0xd8] sm:$0xf]
    %v116 = vld [vmem:[%s1 + $0xdc] sm:$0xf]
    %v117 = vld [vmem:[%s1 + $0xe0] sm:$0xf]
    %v118 = vld [vmem:[%s1 + $0xe4] sm:$0xf]
    %v119 = vld [vmem:[%s1 + $0xe8] sm:$0xf]
    %v120 = vld [vmem:[%s1 + $0xec] sm:$0xf]
    %v121 = vld [vmem:[%s1 + $0xf0] sm:$0xf]
    %v122 = vld [vmem:[%s1 + $0xf4] sm:$0xf]
    %v123 = vld [vmem:[%s1 + $0xf8] sm:$0xf]
    %v124 = vld [vmem:[%s1 + $0xfc] sm:$0xf]
    %v125 = vld [vmem:[%s2] sm:$0xff]
    %v126 = vld [vmem:[%s2 + $0x8] sm:$0xff]
    %v127 = vld [vmem:[%s2 + $0x10] sm:$0xff]
    %v128 = vld [vmem:[%s2 + $0x18] sm:$0xff]
    %v129 = vld [vmem:[%s2 + $0x20] sm:$0xff]
    %v130 = vld [vmem:[%s2 + $0x28] sm:$0xff]
    %v131 = vld [vmem:[%s2 + $0x30] sm:$0xff]
    %v132 = vld [vmem:[%s2 + $0x38] sm:$0xff]
    %v133 = vld [vmem:[%s2 + $0x40] sm:$0xff]
    %v134 = vld [vmem:[%s2 + $0x48] sm:$0xff]
    %v135 = vld [vmem:[%s2 + $0x50] sm:$0xff]
    %v136 = vld [vmem:[%s2 + $0x58] sm:$0xff]
    %v161 = vunpack.c.l.b16 %v37
    %v162 = vunpack.c.h.b16 %v37
    %v163 = vunpack.c.l.b16 %v38
    %v164 = vunpack.c.h.b16 %v38
    %v165 = vunpack.c.l.b16 %v39
    %v166 = vunpack.c.h.b16 %v39
    %v167 = vunpack.c.l.b16 %v40
    %v168 = vunpack.c.h.b16 %v40
    %v169 = vunpack.c.l.b16 %v41
    %v170 = vunpack.c.h.b16 %v41
    %v171 = vunpack.c.l.b16 %v42
    %v172 = vunpack.c.h.b16 %v42
    %v173 = vunpack.c.l.b16 %v43
    %v174 = vunpack.c.h.b16 %v43
    %v175 = vunpack.c.l.b16 %v44
    %v176 = vunpack.c.h.b16 %v44
    %v177 = vunpack.c.l.b16 %v45
    %v178 = vunpack.c.h.b16 %v45
    %v179 = vunpack.c.l.b16 %v46
    %v180 = vunpack.c.h.b16 %v46
    %v181 = vunpack.c.l.b16 %v47
    %v182 = vunpack.c.h.b16 %v47
    %v183 = vunpack.c.l.b16 %v48
    %v184 = vunpack.c.h.b16 %v48
    %v185 = vunpack.c.l.b16 %v49
    %v186 = vunpack.c.h.b16 %v49
    %v187 = vunpack.c.l.b16 %v50
    %v188 = vunpack.c.h.b16 %v50
    %v189 = vunpack.c.l.b16 %v51
    %v190 = vunpack.c.h.b16 %v51
    %v191 = vunpack.c.l.b16 %v52
    %v192 = vunpack.c.h.b16 %v52
    %v193 = vunpack.c.l.b16 %v53
    %v194 = vunpack.c.h.b16 %v53
    %v195 = vunpack.c.l.b16 %v54
    %v196 = vunpack.c.h.b16 %v54
    %v197 = vunpack.c.l.b16 %v55
    %v198 = vunpack.c.h.b16 %v55
    %v199 = vunpack.c.l.b16 %v56
    %v200 = vunpack.c.h.b16 %v56
    %v201 = vunpack.c.l.b16 %v57
    %v202 = vunpack.c.h.b16 %v57
    %v203 = vunpack.c.l.b16 %v58
    %v204 = vunpack.c.h.b16 %v58
    %v205 = vunpack.c.l.b16 %v59
    %v206 = vunpack.c.h.b16 %v59
    %v207 = vunpack.c.l.b16 %v60
    %v208 = vunpack.c.h.b16 %v60
    %v209 = vpack.c.b16 %v165, %v161
    %v210 = vpack.c.b16 %v166, %v162
    %v211 = vpack.c.b16 %v167, %v163
    %v212 = vpack.c.b16 %v168, %v164
    %v213 = vpack.c.b16 %v173, %v169
    %v214 = vpack.c.b16 %v174, %v170
    %v215 = vpack.c.b16 %v175, %v171
    %v216 = vpack.c.b16 %v176, %v172
    %v217 = vpack.c.b16 %v181, %v177
    %v218 = vpack.c.b16 %v182, %v178
    %v219 = vpack.c.b16 %v183, %v179
    %v220 = vpack.c.b16 %v184, %v180
    %v221 = vpack.c.b16 %v189, %v185
    %v222 = vpack.c.b16 %v190, %v186
    %v223 = vpack.c.b16 %v191, %v187
    %v224 = vpack.c.b16 %v192, %v188
    %v225 = vpack.c.b16 %v197, %v193
    %v226 = vpack.c.b16 %v198, %v194
    %v227 = vpack.c.b16 %v199, %v195
    %v228 = vpack.c.b16 %v200, %v196
    %v229 = vpack.c.b16 %v205, %v201
    %v230 = vpack.c.b16 %v206, %v202
    %v231 = vpack.c.b16 %v207, %v203
    %v232 = vpack.c.b16 %v208, %v204
    %v321 = vunpack.c.l.b16 %v61
    %v322 = vunpack.c.l.b16 %v62
    %v323 = vunpack.c.l.b16 %v63
    %v324 = vunpack.c.l.b16 %v64
    %v325 = vunpack.c.l.b16 %v65
    %v326 = vunpack.c.l.b16 %v66
    %v327 = vunpack.c.l.b16 %v67
    %v328 = vunpack.c.l.b16 %v68
    %v329 = vunpack.c.l.b16 %v69
    %v330 = vunpack.c.l.b16 %v70
    %v331 = vunpack.c.l.b16 %v71
    %v332 = vunpack.c.l.b16 %v72
    %v333 = vunpack.c.l.b16 %v73
    %v334 = vunpack.c.l.b16 %v74
    %v335 = vunpack.c.l.b16 %v75
    %v336 = vunpack.c.l.b16 %v76
    %v337 = vunpack.c.l.b16 %v77
    %v338 = vunpack.c.l.b16 %v78
    %v339 = vunpack.c.l.b16 %v79
    %v340 = vunpack.c.l.b16 %v80
    %v341 = vunpack.c.l.b16 %v81
    %v342 = vunpack.c.l.b16 %v82
    %v343 = vunpack.c.l.b16 %v83
    %v344 = vunpack.c.l.b16 %v84
    %v345 = vunpack.c.l.b16 %v85
    %v346 = vunpack.c.l.b16 %v86
    %v347 = vunpack.c.l.b16 %v87
    %v348 = vunpack.c.l.b16 %v88
    %v349 = vunpack.c.l.b16 %v89
    %v350 = vunpack.c.l.b16 %v90
    %v351 = vunpack.c.l.b16 %v91
    %v352 = vunpack.c.l.b16 %v92
    %v353 = vunpack.c.l.b16 %v93
    %v354 = vunpack.c.l.b16 %v94
    %v355 = vunpack.c.l.b16 %v95
    %v356 = vunpack.c.l.b16 %v96
    %v357 = vunpack.c.l.b16 %v97
    %v358 = vunpack.c.l.b16 %v98
    %v359 = vunpack.c.l.b16 %v99
    %v360 = vunpack.c.l.b16 %v100
    %v361 = vunpack.c.l.b16 %v101
    %v362 = vunpack.c.l.b16 %v102
    %v363 = vunpack.c.l.b16 %v103
    %v364 = vunpack.c.l.b16 %v104
    %v365 = vunpack.c.l.b16 %v105
    %v366 = vunpack.c.l.b16 %v106
    %v367 = vunpack.c.l.b16 %v107
    %v368 = vunpack.c.l.b16 %v108
    %v369 = vunpack.c.l.b16 %v109
    %v370 = vunpack.c.l.b16 %v110
    %v371 = vunpack.c.l.b16 %v111
    %v372 = vunpack.c.l.b16 %v112
    %v373 = vunpack.c.l.b16 %v113
    %v374 = vunpack.c.l.b16 %v114
    %v375 = vunpack.c.l.b16 %v115
    %v376 = vunpack.c.l.b16 %v116
    %v377 = vunpack.c.l.b16 %v117
    %v378 = vunpack.c.l.b16 %v118
    %v379 = vunpack.c.l.b16 %v119
    %v380 = vunpack.c.l.b16 %v120
    %v381 = vunpack.c.l.b16 %v121
    %v382 = vunpack.c.l.b16 %v122
    %v383 = vunpack.c.l.b16 %v123
    %v384 = vunpack.c.l.b16 %v124
    %v385 = vpack.c.b16 %v322, %v321
    %v386 = vpack.c.b16 %v324, %v323
    %v387 = vpack.c.b16 %v326, %v325
    %v388 = vpack.c.b16 %v328, %v327
    %v389 = vpack.c.b16 %v330, %v329
    %v390 = vpack.c.b16 %v332, %v331
    %v391 = vpack.c.b16 %v334, %v333
    %v392 = vpack.c.b16 %v336, %v335
    %v393 = vpack.c.b16 %v338, %v337
    %v394 = vpack.c.b16 %v340, %v339
    %v395 = vpack.c.b16 %v342, %v341
    %v396 = vpack.c.b16 %v344, %v343
    %v397 = vpack.c.b16 %v346, %v345
    %v398 = vpack.c.b16 %v348, %v347
    %v399 = vpack.c.b16 %v350, %v349
    %v400 = vpack.c.b16 %v352, %v351
    %v401 = vpack.c.b16 %v354, %v353
    %v402 = vpack.c.b16 %v356, %v355
    %v403 = vpack.c.b16 %v358, %v357
    %v404 = vpack.c.b16 %v360, %v359
    %v405 = vpack.c.b16 %v362, %v361
    %v406 = vpack.c.b16 %v364, %v363
    %v407 = vpack.c.b16 %v366, %v365
    %v408 = vpack.c.b16 %v368, %v367
    %v409 = vpack.c.b16 %v370, %v369
    %v410 = vpack.c.b16 %v372, %v371
    %v411 = vpack.c.b16 %v374, %v373
    %v412 = vpack.c.b16 %v376, %v375
    %v413 = vpack.c.b16 %v378, %v377
    %v414 = vpack.c.b16 %v380, %v379
    %v415 = vpack.c.b16 %v382, %v381
    %v416 = vpack.c.b16 %v384, %v383
    %449 = vmatprep.subr.bf16.mxu0 0
    %450 = vmatpush1.bf16.msra.mxu0 %v385
    %451 = vmatprep.subr.bf16.mxu0 0
    %452 = vmatpush1.bf16.msra.mxu0 %v386
    %453 = vmatprep.subr.bf16.mxu0 0
    %454 = vmatpush1.bf16.msra.mxu0 %v387
    %455 = vmatprep.subr.bf16.mxu0 0
    %456 = vmatpush1.bf16.msra.mxu0 %v388
    %457 = vmatprep.subr.bf16.mxu0 0
    %458 = vmatpush1.bf16.msra.mxu0 %v389
    %459 = vmatprep.subr.bf16.mxu0 0
    %460 = vmatpush1.bf16.msra.mxu0 %v390
    %461 = vmatprep.subr.bf16.mxu0 0
    %462 = vmatpush1.bf16.msra.mxu0 %v391
    %463 = vmatprep.subr.bf16.mxu0 0
    %464 = vmatpush1.bf16.msra.mxu0 %v392
    %465 = vmatprep.subr.bf16.mxu0 0
    %466 = vmatpush1.bf16.msra.mxu0 %v393
    %467 = vmatprep.subr.bf16.mxu0 0
    %468 = vmatpush1.bf16.msra.mxu0 %v394
    %469 = vmatprep.subr.bf16.mxu0 0
    %470 = vmatpush1.bf16.msra.mxu0 %v395
    %471 = vmatprep.subr.bf16.mxu0 0
    %472 = vmatpush1.bf16.msra.mxu0 %v396
    %473 = vmatprep.subr.bf16.mxu0 0
    %474 = vmatpush1.bf16.msra.mxu0 %v397
    %475 = vmatprep.subr.bf16.mxu0 0
    %476 = vmatpush1.bf16.msra.mxu0 %v398
    %477 = vmatprep.subr.bf16.mxu0 0
    %478 = vmatpush1.bf16.msra.mxu0 %v399
    %479 = vmatprep.subr.bf16.mxu0 0
    %480 = vmatpush1.bf16.msra.mxu0 %v400
    %481 = vmatprep.mubr.bf16.mxu0 %v210
    %482 = vmatmul.mubr.bf16.gmra.mrb[0].mxu0 %v209
    %v483 = vpop.f32.mrb[0].mxu0
    %v484 = vadd.f32 %v125, %v483
    %v485 = vpop.f32.mrb[0].mxu0
    %v486 = vpop.f32.mrb[0].mxu0
    %v487 = vadd.f32 %v126, %v486
    %v488 = vpop.f32.mrb[0].mxu0
    %489 = vmatprep.mubr.bf16.mxu0 %v214
    %490 = vmatmul.mubr.bf16.gmra.mrb[0].mxu0 %v213
    %v491 = vpop.f32.mrb[0].mxu0
    %v492 = vadd.f32 %v127, %v491
    %v493 = vpop.f32.mrb[0].mxu0
    %v494 = vpop.f32.mrb[0].mxu0
    %v495 = vadd.f32 %v128, %v494
    %v496 = vpop.f32.mrb[0].mxu0
    %497 = vmatprep.mubr.bf16.mxu0 %v218
    %498 = vmatmul.mubr.bf16.gmra.mrb[0].mxu0 %v217
    %v499 = vpop.f32.mrb[0].mxu0
    %v500 = vadd.f32 %v129, %v499
    %v501 = vpop.f32.mrb[0].mxu0
    %v502 = vpop.f32.mrb[0].mxu0
    %v503 = vadd.f32 %v130, %v502
    %v504 = vpop.f32.mrb[0].mxu0
    %505 = vmatprep.mubr.bf16.mxu0 %v222
    %506 = vmatmul.mubr.bf16.gmra.mrb[0].mxu0 %v221
    %v507 = vpop.f32.mrb[0].mxu0
    %v508 = vadd.f32 %v131, %v507
    %v509 = vpop.f32.mrb[0].mxu0
    %v510 = vpop.f32.mrb[0].mxu0
    %v511 = vadd.f32 %v132, %v510
    %v512 = vpop.f32.mrb[0].mxu0
    %513 = vmatprep.mubr.bf16.mxu0 %v226
    %514 = vmatmul.mubr.bf16.gmra.mrb[0].mxu0 %v225
    %v515 = vpop.f32.mrb[0].mxu0
    %v516 = vadd.f32 %v133, %v515
    %v517 = vpop.f32.mrb[0].mxu0
    %v518 = vpop.f32.mrb[0].mxu0
    %v519 = vadd.f32 %v134, %v518
    %v520 = vpop.f32.mrb[0].mxu0
    %521 = vmatprep.mubr.bf16.mxu0 %v230
    %522 = vmatmul.mubr.bf16.gmra.mrb[0].mxu0 %v229
    %v523 = vpop.f32.mrb[0].mxu0
    %v524 = vadd.f32 %v135, %v523
    %v525 = vpop.f32.mrb[0].mxu0
    %v526 = vpop.f32.mrb[0].mxu0
    %v527 = vadd.f32 %v136, %v526
    %v528 = vpop.f32.mrb[0].mxu0
    %529 = vdwg.mxu0
    %530 = vmatprep.subr.bf16.mxu0 0
    %531 = vmatpush1.bf16.msra.mxu0 %v401
    %532 = vmatprep.subr.bf16.mxu0 0
    %533 = vmatpush1.bf16.msra.mxu0 %v402
    %534 = vmatprep.subr.bf16.mxu0 0
    %535 = vmatpush1.bf16.msra.mxu0 %v403
    %536 = vmatprep.subr.bf16.mxu0 0
    %537 = vmatpush1.bf16.msra.mxu0 %v404
    %538 = vmatprep.subr.bf16.mxu0 0
    %539 = vmatpush1.bf16.msra.mxu0 %v405
    %540 = vmatprep.subr.bf16.mxu0 0
    %541 = vmatpush1.bf16.msra.mxu0 %v406
    %542 = vmatprep.subr.bf16.mxu0 0
    %543 = vmatpush1.bf16.msra.mxu0 %v407
    %544 = vmatprep.subr.bf16.mxu0 0
    %545 = vmatpush1.bf16.msra.mxu0 %v408
    %546 = vmatprep.subr.bf16.mxu0 0
    %547 = vmatpush1.bf16.msra.mxu0 %v409
    %548 = vmatprep.subr.bf16.mxu0 0
    %549 = vmatpush1.bf16.msra.mxu0 %v410
    %550 = vmatprep.subr.bf16.mxu0 0
    %551 = vmatpush1.bf16.msra.mxu0 %v411
    %552 = vmatprep.subr.bf16.mxu0 0
    %553 = vmatpush1.bf16.msra.mxu0 %v412
    %554 = vmatprep.subr.bf16.mxu0 0
    %555 = vmatpush1.bf16.msra.mxu0 %v413
    %556 = vmatprep.subr.bf16.mxu0 0
    %557 = vmatpush1.bf16.msra.mxu0 %v414
    %558 = vmatprep.subr.bf16.mxu0 0
    %559 = vmatpush1.bf16.msra.mxu0 %v415
    %560 = vmatprep.subr.bf16.mxu0 0
    %561 = vmatpush1.bf16.msra.mxu0 %v416
    %562 = vmatprep.mubr.bf16.mxu0 %v212
    %563 = vmatmul.mubr.bf16.gmra.mrb[0].mxu0 %v211
    %v564 = vpop.f32.mrb[0].mxu0
    %v565 = vadd.f32 %v484, %v564
    %v566 = vpop.f32.mrb[0].mxu0
    %v567 = vpop.f32.mrb[0].mxu0
    %v568 = vadd.f32 %v487, %v567
    %v569 = vpop.f32.mrb[0].mxu0
    %570 = vmatprep.mubr.bf16.mxu0 %v216
    %571 = vmatmul.mubr.bf16.gmra.mrb[0].mxu0 %v215
    %v572 = vpop.f32.mrb[0].mxu0
    %v573 = vadd.f32 %v492, %v572
    %v574 = vpop.f32.mrb[0].mxu0
    %v575 = vpop.f32.mrb[0].mxu0
    %v576 = vadd.f32 %v495, %v575
    %v577 = vpop.f32.mrb[0].mxu0
    %578 = vmatprep.mubr.bf16.mxu0 %v220
    %579 = vmatmul.mubr.bf16.gmra.mrb[0].mxu0 %v219
    %v580 = vpop.f32.mrb[0].mxu0
    %v581 = vadd.f32 %v500, %v580
    %v582 = vpop.f32.mrb[0].mxu0
    %v583 = vpop.f32.mrb[0].mxu0
    %v584 = vadd.f32 %v503, %v583
    %v585 = vpop.f32.mrb[0].mxu0
    %586 = vmatprep.mubr.bf16.mxu0 %v224
    %587 = vmatmul.mubr.bf16.gmra.mrb[0].mxu0 %v223
    %v588 = vpop.f32.mrb[0].mxu0
    %v589 = vadd.f32 %v508, %v588
    %v590 = vpop.f32.mrb[0].mxu0
    %v591 = vpop.f32.mrb[0].mxu0
    %v592 = vadd.f32 %v511, %v591
    %v593 = vpop.f32.mrb[0].mxu0
    %594 = vmatprep.mubr.bf16.mxu0 %v228
    %595 = vmatmul.mubr.bf16.gmra.mrb[0].mxu0 %v227
    %v596 = vpop.f32.mrb[0].mxu0
    %v597 = vadd.f32 %v516, %v596
    %v598 = vpop.f32.mrb[0].mxu0
    %v599 = vpop.f32.mrb[0].mxu0
    %v600 = vadd.f32 %v519, %v599
    %v601 = vpop.f32.mrb[0].mxu0
    %602 = vmatprep.mubr.bf16.mxu0 %v232
    %603 = vmatmul.mubr.bf16.gmra.mrb[0].mxu0 %v231
    %v604 = vpop.f32.mrb[0].mxu0
    %v605 = vadd.f32 %v524, %v604
    %v606 = vpop.f32.mrb[0].mxu0
    %v607 = vpop.f32.mrb[0].mxu0
    %v608 = vadd.f32 %v527, %v607
    %v609 = vpop.f32.mrb[0].mxu0
    %610 = vdwg.mxu0
    %v611 = vlaneseq
    %v612 = vand.u32 %v611, 127
    %vm613 = vcmp.lt.s32.totalorder %v612, 33
    %vm614 = vcmp.ge.s32.totalorder %v612, 0
    %vm615 = vcmp.lt.s32.totalorder %v612, 16
    %vm616 = vmand %vm614, %vm615
    %v617 = vsel %vm616, 1, 0
    %v618 = vcvt.s32.f32 %v617
    %vm619 = vcmp.ge.s32.totalorder %v612, 16
    %vm620 = vcmp.lt.s32.totalorder %v612, 32
    %vm621 = vmand %vm619, %vm620
    %v622 = vsel %vm621, 1, 0
    %v623 = vcvt.s32.f32 %v622
    %vm624 = vcmp.ge.s32.totalorder %v612, 32
    %vm625 = vcmp.lt.s32.totalorder %v612, 48
    %vm626 = vmand %vm624, %vm625
    %v627 = vsel %vm626, 1, 0
    %v628 = vcvt.s32.f32 %v627
    %vm629 = vcmp.ge.s32.totalorder %v612, 48
    %vm630 = vcmp.lt.s32.totalorder %v612, 64
    %vm631 = vmand %vm629, %vm630
    %v632 = vsel %vm631, 1, 0
    %v633 = vcvt.s32.f32 %v632
    %v634 = vpack.c.bf16 %v618, %v618
    %v635 = vpack.c.bf16 %v623, %v623
    %v636 = vpack.c.bf16 %v628, %v628
    %v637 = vpack.c.bf16 %v633, %v633
    %v638 = vld [vmem:[%s7] sm:$0xff]
    %v639 = vld [vmem:[%s7 + $0x8] sm:$0xff]
    %v640 = vld [vmem:[%s7 + $0x10] sm:$0xff]
    %vm641 = vcmask 523264
    %v642 = vsel %vm641, %v565, 0.0
    %643 = vadd.xlane.f32.xlu0 %v642
    %v644 = vpop.xlane.xlu0 %643
    %v645 = vsel %vm641, %v568, 0.0
    %646 = vadd.xlane.f32.xlu0 %v645
    %v647 = vpop.xlane.xlu0 %646
    %v648 = vsel %vm641, %v573, 0.0
    %649 = vadd.xlane.f32.xlu0 %v648
    %v650 = vpop.xlane.xlu0 %649
    %v651 = vsel %vm641, %v576, 0.0
    %652 = vadd.xlane.f32.xlu0 %v651
    %v653 = vpop.xlane.xlu0 %652
    %v654 = vsel %vm641, %v581, 0.0
    %655 = vadd.xlane.f32.xlu0 %v654
    %v656 = vpop.xlane.xlu0 %655
    %v657 = vsel %vm641, %v584, 0.0
    %658 = vadd.xlane.f32.xlu0 %v657
    %v659 = vpop.xlane.xlu0 %658
    %v660 = vsel %vm641, %v589, 0.0
    %661 = vadd.xlane.f32.xlu0 %v660
    %v662 = vpop.xlane.xlu0 %661
    %v663 = vsel %vm641, %v592, 0.0
    %664 = vadd.xlane.f32.xlu0 %v663
    %v665 = vpop.xlane.xlu0 %664
    %v666 = vsel %vm641, %v597, 0.0
    %667 = vadd.xlane.f32.xlu0 %v666
    %v668 = vpop.xlane.xlu0 %667
    %v669 = vsel %vm641, %v600, 0.0
    %670 = vadd.xlane.f32.xlu0 %v669
    %v671 = vpop.xlane.xlu0 %670
    %v672 = vsel %vm641, %v605, 0.0
    %673 = vadd.xlane.f32.xlu0 %v672
    %v674 = vpop.xlane.xlu0 %673
    %v675 = vsel %vm641, %v608, 0.0
    %676 = vadd.xlane.f32.xlu0 %v675
    %v677 = vpop.xlane.xlu0 %676
    %v678 = vrcp.pop 64.0
    %v679 = vmul.f32 %v644, %v678
    %v680 = vmul.f32 %v647, %v678
    %v681 = vmul.f32 %v650, %v678
    %v682 = vmul.f32 %v653, %v678
    %v683 = vmul.f32 %v656, %v678
    %v684 = vmul.f32 %v659, %v678
    %v685 = vmul.f32 %v662, %v678
    %v686 = vmul.f32 %v665, %v678
    %v687 = vmul.f32 %v668, %v678
    %v688 = vmul.f32 %v671, %v678
    %v689 = vmul.f32 %v674, %v678
    %v690 = vmul.f32 %v677, %v678
    %v691 = vsub.f32 %v565, %v679
    %v692 = vsub.f32 %v568, %v680
    %v693 = vsub.f32 %v573, %v681
    %v694 = vsub.f32 %v576, %v682
    %v695 = vsub.f32 %v581, %v683
    %v696 = vsub.f32 %v584, %v684
    %v697 = vsub.f32 %v589, %v685
    %v698 = vsub.f32 %v592, %v686
    %v699 = vsub.f32 %v597, %v687
    %v700 = vsub.f32 %v600, %v688
    %v701 = vsub.f32 %v605, %v689
    %v702 = vsub.f32 %v608, %v690
    %v703 = vmul.f32 %v691, %v691
    %v704 = vmul.f32 %v692, %v692
    %v705 = vmul.f32 %v693, %v693
    %v706 = vmul.f32 %v694, %v694
    %v707 = vmul.f32 %v695, %v695
    %v708 = vmul.f32 %v696, %v696
    %v709 = vmul.f32 %v697, %v697
    %v710 = vmul.f32 %v698, %v698
    %v711 = vmul.f32 %v699, %v699
    %v712 = vmul.f32 %v700, %v700
    %v713 = vmul.f32 %v701, %v701
    %v714 = vmul.f32 %v702, %v702
    %v715 = vsel %vm641, %v703, 0.0
    %716 = vadd.xlane.f32.xlu0 %v715
    %v717 = vpop.xlane.xlu0 %716
    %v718 = vsel %vm641, %v704, 0.0
    %719 = vadd.xlane.f32.xlu0 %v718
    %v720 = vpop.xlane.xlu0 %719
    %v721 = vsel %vm641, %v705, 0.0
    %722 = vadd.xlane.f32.xlu0 %v721
    %v723 = vpop.xlane.xlu0 %722
    %v724 = vsel %vm641, %v706, 0.0
    %725 = vadd.xlane.f32.xlu0 %v724
    %v726 = vpop.xlane.xlu0 %725
    %v727 = vsel %vm641, %v707, 0.0
    %728 = vadd.xlane.f32.xlu0 %v727
    %v729 = vpop.xlane.xlu0 %728
    %v730 = vsel %vm641, %v708, 0.0
    %731 = vadd.xlane.f32.xlu0 %v730
    %v732 = vpop.xlane.xlu0 %731
    %v733 = vsel %vm641, %v709, 0.0
    %734 = vadd.xlane.f32.xlu0 %v733
    %v735 = vpop.xlane.xlu0 %734
    %v736 = vsel %vm641, %v710, 0.0
    %737 = vadd.xlane.f32.xlu0 %v736
    %v738 = vpop.xlane.xlu0 %737
    %v739 = vsel %vm641, %v711, 0.0
    %740 = vadd.xlane.f32.xlu0 %v739
    %v741 = vpop.xlane.xlu0 %740
    %v742 = vsel %vm641, %v712, 0.0
    %743 = vadd.xlane.f32.xlu0 %v742
    %v744 = vpop.xlane.xlu0 %743
    %v745 = vsel %vm641, %v713, 0.0
    %746 = vadd.xlane.f32.xlu0 %v745
    %v747 = vpop.xlane.xlu0 %746
    %v748 = vsel %vm641, %v714, 0.0
    %749 = vadd.xlane.f32.xlu0 %v748
    %v750 = vpop.xlane.xlu0 %749
    %v751 = vmul.f32 %v717, %v678
    %v752 = vmul.f32 %v720, %v678
    %v753 = vmul.f32 %v723, %v678
    %v754 = vmul.f32 %v726, %v678
    %v755 = vmul.f32 %v729, %v678
    %v756 = vmul.f32 %v732, %v678
    %v757 = vmul.f32 %v735, %v678
    %v758 = vmul.f32 %v738, %v678
    %v759 = vmul.f32 %v741, %v678
    %v760 = vmul.f32 %v744, %v678
    %v761 = vmul.f32 %v747, %v678
    %v762 = vmul.f32 %v750, %v678
    %v763 = vadd.f32 %v751, 1e-05
    %v764 = vadd.f32 %v752, 1e-05
    %v765 = vadd.f32 %v753, 1e-05
    %v766 = vadd.f32 %v754, 1e-05
    %v767 = vadd.f32 %v755, 1e-05
    %v768 = vadd.f32 %v756, 1e-05
    %v769 = vadd.f32 %v757, 1e-05
    %v770 = vadd.f32 %v758, 1e-05
    %v771 = vadd.f32 %v759, 1e-05
    %v772 = vadd.f32 %v760, 1e-05
    %v773 = vadd.f32 %v761, 1e-05
    %v774 = vadd.f32 %v762, 1e-05
    %v775 = vrsqrt.pop %v763
    %v776 = vrsqrt.pop %v764
    %v777 = vrsqrt.pop %v765
    %v778 = vrsqrt.pop %v766
    %v779 = vrsqrt.pop %v767
    %v780 = vrsqrt.pop %v768
    %v781 = vrsqrt.pop %v769
    %v782 = vrsqrt.pop %v770
    %v783 = vrsqrt.pop %v771
    %v784 = vrsqrt.pop %v772
    %v785 = vrsqrt.pop %v773
    %v786 = vrsqrt.pop %v774
    %v787 = vmul.f32 %v691, %v775
    %v788 = vmul.f32 %v692, %v776
    %v789 = vmul.f32 %v693, %v777
    %v790 = vmul.f32 %v694, %v778
    %v791 = vmul.f32 %v695, %v779
    %v792 = vmul.f32 %v696, %v780
    %v793 = vmul.f32 %v697, %v781
    %v794 = vmul.f32 %v698, %v782
    %v795 = vmul.f32 %v699, %v783
    %v796 = vmul.f32 %v700, %v784
    %v797 = vmul.f32 %v701, %v785
    %v798 = vmul.f32 %v702, %v786
    %v799 = vlaneseq
    %v800 = vshrl.u32 %v799, 7
    %v801 = vsub.s32 0, %v800
    %v802 = vrot.slane %v638, %v801
    %v803 = vmul.f32 %v787, %v802
    %v804 = vmul.f32 %v788, %v802
    %v805 = vmul.f32 %v789, %v802
    %v806 = vmul.f32 %v790, %v802
    %v807 = vmul.f32 %v791, %v802
    %v808 = vmul.f32 %v792, %v802
    %v809 = vmul.f32 %v793, %v802
    %v810 = vmul.f32 %v794, %v802
    %v811 = vmul.f32 %v795, %v802
    %v812 = vmul.f32 %v796, %v802
    %v813 = vmul.f32 %v797, %v802
    %v814 = vmul.f32 %v798, %v802
    %v815 = vlaneseq
    %v816 = vshrl.u32 %v815, 7
    %v817 = vsub.s32 1, %v816
    %v818 = vrot.slane %v638, %v817
    %v819 = vadd.f32 %v803, %v818
    %v820 = vadd.f32 %v804, %v818
    %v821 = vadd.f32 %v805, %v818
    %v822 = vadd.f32 %v806, %v818
    %v823 = vadd.f32 %v807, %v818
    %v824 = vadd.f32 %v808, %v818
    %v825 = vadd.f32 %v809, %v818
    %v826 = vadd.f32 %v810, %v818
    %v827 = vadd.f32 %v811, %v818
    %v828 = vadd.f32 %v812, %v818
    %v829 = vadd.f32 %v813, %v818
    %v830 = vadd.f32 %v814, %v818
    %v831 = vpack.c.bf16 %v820, %v819
    %v832 = vpack.c.bf16 %v822, %v821
    %v833 = vpack.c.bf16 %v824, %v823
    %v834 = vpack.c.bf16 %v826, %v825
    %v835 = vpack.c.bf16 %v828, %v827
    %v836 = vpack.c.bf16 %v830, %v829
    %v837 = vld [vmem:[%s3] sm:$0xff]
    %v838 = vld [vmem:[%s3 + $0x8] sm:$0xf]
    %v839 = vld [vmem:[%s3 + $0xc] sm:$0xff]
    %v840 = vld [vmem:[%s3 + $0x14] sm:$0xf]
    %v841 = vld [vmem:[%s3 + $0x18] sm:$0xff]
    %v842 = vld [vmem:[%s3 + $0x20] sm:$0xf]
    %v843 = vld [vmem:[%s3 + $0x24] sm:$0xff]
    %v844 = vld [vmem:[%s3 + $0x2c] sm:$0xf]
    %v845 = vld [vmem:[%s3 + $0x30] sm:$0xff]
    %v846 = vld [vmem:[%s3 + $0x38] sm:$0xf]
    %v847 = vld [vmem:[%s3 + $0x3c] sm:$0xff]
    %v848 = vld [vmem:[%s3 + $0x44] sm:$0xf]
    %v849 = vld [vmem:[%s3 + $0x48] sm:$0xff]
    %v850 = vld [vmem:[%s3 + $0x50] sm:$0xf]
    %v851 = vld [vmem:[%s3 + $0x54] sm:$0xff]
    %v852 = vld [vmem:[%s3 + $0x5c] sm:$0xf]
    %v853 = vlaneseq
    %v854 = vshrl.u32 %v853, 7
    %v855 = vsub.s32 2, %v854
    %v856 = vrot.slane %v638, %v855
    %v857 = vlaneseq
    %v858 = vshrl.u32 %v857, 7
    %v859 = vsub.s32 2, %v858
    %v860 = vrot.slane %v639, %v859
    %v861 = vlaneseq
    %v862 = vshrl.u32 %v861, 7
    %v863 = vsub.s32 2, %v862
    %v864 = vrot.slane %v640, %v863
    %v881 = vunpack.c.l.b16 %v837
    %v882 = vunpack.c.h.b16 %v837
    %v883 = vunpack.c.l.b16 %v838
    %v884 = vunpack.c.l.b16 %v839
    %v885 = vunpack.c.h.b16 %v839
    %v886 = vunpack.c.l.b16 %v840
    %v887 = vunpack.c.l.b16 %v841
    %v888 = vunpack.c.h.b16 %v841
    %v889 = vunpack.c.l.b16 %v842
    %v890 = vunpack.c.l.b16 %v843
    %v891 = vunpack.c.h.b16 %v843
    %v892 = vunpack.c.l.b16 %v844
    %v893 = vunpack.c.l.b16 %v845
    %v894 = vunpack.c.h.b16 %v845
    %v895 = vunpack.c.l.b16 %v846
    %v896 = vunpack.c.l.b16 %v847
    %v897 = vunpack.c.h.b16 %v847
    %v898 = vunpack.c.l.b16 %v848
    %v899 = vunpack.c.l.b16 %v849
    %v900 = vunpack.c.h.b16 %v849
    %v901 = vunpack.c.l.b16 %v850
    %v902 = vunpack.c.l.b16 %v851
    %v903 = vunpack.c.h.b16 %v851
    %v904 = vunpack.c.l.b16 %v852
    %v905 = vpack.c.b16 %v884, %v881
    %v906 = vpack.c.b16 %v885, %v882
    %v907 = vpack.c.b16 %v886, %v883
    %v908 = vpack.c.b16 %v890, %v887
    %v909 = vpack.c.b16 %v891, %v888
    %v910 = vpack.c.b16 %v892, %v889
    %v911 = vpack.c.b16 %v896, %v893
    %v912 = vpack.c.b16 %v897, %v894
    %v913 = vpack.c.b16 %v898, %v895
    %v914 = vpack.c.b16 %v902, %v899
    %v915 = vpack.c.b16 %v903, %v900
    %v916 = vpack.c.b16 %v904, %v901
    %v930 = vsel %vm641, %v831, 0
    %v933 = vsel %vm641, %v832, 0
    %v936 = vsel %vm641, %v833, 0
    %v939 = vsel %vm641, %v834, 0
    %v942 = vsel %vm641, %v835, 0
    %v945 = vsel %vm641, %v836, 0
    %947 = vmatprep.subr.bf16.mxu0 %v906
    %948 = vmatpush1.bf16.msra.mxu0 %v905
    %949 = vmatprep.subr.bf16.mxu0 %v909
    %950 = vmatpush1.bf16.msra.mxu0 %v908
    %951 = vmatprep.subr.bf16.mxu0 %v912
    %952 = vmatpush1.bf16.msra.mxu0 %v911
    %953 = vmatprep.subr.bf16.mxu0 %v915
    %954 = vmatpush1.bf16.msra.mxu0 %v914
    %955 = vmatprep.subr.bf16.mxu0 0
    %956 = vmatpush1.bf16.msra.mxu0 0
    %957 = vmatprep.subr.bf16.mxu0 0
    %958 = vmatpush1.bf16.msra.mxu0 0
    %959 = vmatprep.subr.bf16.mxu0 0
    %960 = vmatpush1.bf16.msra.mxu0 0
    %961 = vmatprep.subr.bf16.mxu0 0
    %962 = vmatpush1.bf16.msra.mxu0 0
    %963 = vmatprep.subr.bf16.mxu0 0
    %964 = vmatpush1.bf16.msra.mxu0 0
    %965 = vmatprep.subr.bf16.mxu0 0
    %966 = vmatpush1.bf16.msra.mxu0 0
    %967 = vmatprep.subr.bf16.mxu0 0
    %968 = vmatpush1.bf16.msra.mxu0 0
    %969 = vmatprep.subr.bf16.mxu0 0
    %970 = vmatpush1.bf16.msra.mxu0 0
    %971 = vmatprep.subr.bf16.mxu0 0
    %972 = vmatpush1.bf16.msra.mxu0 0
    %973 = vmatprep.subr.bf16.mxu0 0
    %974 = vmatpush1.bf16.msra.mxu0 0
    %975 = vmatprep.subr.bf16.mxu0 0
    %976 = vmatpush1.bf16.msra.mxu0 0
    %977 = vmatprep.subr.bf16.mxu0 0
    %978 = vmatpush1.bf16.msra.mxu0 0
    %979 = vmatprep.mubr.bf16.mxu0 0
    %980 = vmatmul.mubr.bf16.gmra.mrb[0].mxu0 %v930
    %v981 = vpop.f32.mrb[0].mxu0
    %v982 = vadd.f32 %v856, %v981
    %v983 = vpop.f32.mrb[0].mxu0
    %v984 = vadd.f32 %v860, %v983
    %v985 = vpop.f32.mrb[0].mxu0
    %v986 = vadd.f32 %v856, %v985
    %v987 = vpop.f32.mrb[0].mxu0
    %v988 = vadd.f32 %v860, %v987
    %989 = vmatprep.mubr.bf16.mxu0 0
    %990 = vmatmul.mubr.bf16.gmra.mrb[0].mxu0 %v933
    %v991 = vpop.f32.mrb[0].mxu0
    %v992 = vadd.f32 %v856, %v991
    %v993 = vpop.f32.mrb[0].mxu0
    %v994 = vadd.f32 %v860, %v993
    %v995 = vpop.f32.mrb[0].mxu0
    %v996 = vadd.f32 %v856, %v995
    %v997 = vpop.f32.mrb[0].mxu0
    %v998 = vadd.f32 %v860, %v997
    %999 = vmatprep.mubr.bf16.mxu0 0
    %1000 = vmatmul.mubr.bf16.gmra.mrb[0].mxu0 %v936
    %v1001 = vpop.f32.mrb[0].mxu0
    %v1002 = vadd.f32 %v856, %v1001
    %v1003 = vpop.f32.mrb[0].mxu0
    %v1004 = vadd.f32 %v860, %v1003
    %v1005 = vpop.f32.mrb[0].mxu0
    %v1006 = vadd.f32 %v856, %v1005
    %v1007 = vpop.f32.mrb[0].mxu0
    %v1008 = vadd.f32 %v860, %v1007
    %1009 = vmatprep.mubr.bf16.mxu0 0
    %1010 = vmatmul.mubr.bf16.gmra.mrb[0].mxu0 %v939
    %v1011 = vpop.f32.mrb[0].mxu0
    %v1012 = vadd.f32 %v856, %v1011
    %v1013 = vpop.f32.mrb[0].mxu0
    %v1014 = vadd.f32 %v860, %v1013
    %v1015 = vpop.f32.mrb[0].mxu0
    %v1016 = vadd.f32 %v856, %v1015
    %v1017 = vpop.f32.mrb[0].mxu0
    %v1018 = vadd.f32 %v860, %v1017
    %1019 = vmatprep.mubr.bf16.mxu0 0
    %1020 = vmatmul.mubr.bf16.gmra.mrb[0].mxu0 %v942
    %v1021 = vpop.f32.mrb[0].mxu0
    %v1022 = vadd.f32 %v856, %v1021
    %v1023 = vpop.f32.mrb[0].mxu0
    %v1024 = vadd.f32 %v860, %v1023
    %v1025 = vpop.f32.mrb[0].mxu0
    %v1026 = vadd.f32 %v856, %v1025
    %v1027 = vpop.f32.mrb[0].mxu0
    %v1028 = vadd.f32 %v860, %v1027
    %1029 = vmatprep.mubr.bf16.mxu0 0
    %1030 = vmatmul.mubr.bf16.gmra.mrb[0].mxu0 %v945
    %v1031 = vpop.f32.mrb[0].mxu0
    %v1032 = vadd.f32 %v856, %v1031
    %v1033 = vpop.f32.mrb[0].mxu0
    %v1034 = vadd.f32 %v860, %v1033
    %v1035 = vpop.f32.mrb[0].mxu0
    %v1036 = vadd.f32 %v856, %v1035
    %v1037 = vpop.f32.mrb[0].mxu0
    %v1038 = vadd.f32 %v860, %v1037
    %1039 = vdwg.mxu0
    %1040 = vmatprep.subr.bf16.mxu0 0
    %1041 = vmatpush1.bf16.msra.mxu0 %v907
    %1042 = vmatprep.subr.bf16.mxu0 0
    %1043 = vmatpush1.bf16.msra.mxu0 %v910
    %1044 = vmatprep.subr.bf16.mxu0 0
    %1045 = vmatpush1.bf16.msra.mxu0 %v913
    %1046 = vmatprep.subr.bf16.mxu0 0
    %1047 = vmatpush1.bf16.msra.mxu0 %v916
    %1048 = vmatprep.subr.bf16.mxu0 0
    %1049 = vmatpush1.bf16.msra.mxu0 0
    %1050 = vmatprep.subr.bf16.mxu0 0
    %1051 = vmatpush1.bf16.msra.mxu0 0
    %1052 = vmatprep.subr.bf16.mxu0 0
    %1053 = vmatpush1.bf16.msra.mxu0 0
    %1054 = vmatprep.subr.bf16.mxu0 0
    %1055 = vmatpush1.bf16.msra.mxu0 0
    %1056 = vmatprep.subr.bf16.mxu0 0
    %1057 = vmatpush1.bf16.msra.mxu0 0
    %1058 = vmatprep.subr.bf16.mxu0 0
    %1059 = vmatpush1.bf16.msra.mxu0 0
    %1060 = vmatprep.subr.bf16.mxu0 0
    %1061 = vmatpush1.bf16.msra.mxu0 0
    %1062 = vmatprep.subr.bf16.mxu0 0
    %1063 = vmatpush1.bf16.msra.mxu0 0
    %1064 = vmatprep.subr.bf16.mxu0 0
    %1065 = vmatpush1.bf16.msra.mxu0 0
    %1066 = vmatprep.subr.bf16.mxu0 0
    %1067 = vmatpush1.bf16.msra.mxu0 0
    %1068 = vmatprep.subr.bf16.mxu0 0
    %1069 = vmatpush1.bf16.msra.mxu0 0
    %1070 = vmatprep.subr.bf16.mxu0 0
    %1071 = vmatpush1.bf16.msra.mxu0 0
    %1072 = vmatprep.mubr.bf16.mxu0 0
    %1073 = vmatmul.mubr.bf16.gmra.mrb[0].mxu0 %v930
    %v1074 = vpop.f32.mrb[0].mxu0
    %v1075 = vadd.f32 %v864, %v1074
    %v1076 = vpop.f32.mrb[0].mxu0
    %v1077 = vpop.f32.mrb[0].mxu0
    %v1078 = vadd.f32 %v864, %v1077
    %v1079 = vpop.f32.mrb[0].mxu0
    %1080 = vmatprep.mubr.bf16.mxu0 0
    %1081 = vmatmul.mubr.bf16.gmra.mrb[0].mxu0 %v933
    %v1082 = vpop.f32.mrb[0].mxu0
    %v1083 = vadd.f32 %v864, %v1082
    %v1084 = vpop.f32.mrb[0].mxu0
    %v1085 = vpop.f32.mrb[0].mxu0
    %v1086 = vadd.f32 %v864, %v1085
    %v1087 = vpop.f32.mrb[0].mxu0
    %1088 = vmatprep.mubr.bf16.mxu0 0
    %1089 = vmatmul.mubr.bf16.gmra.mrb[0].mxu0 %v936
    %v1090 = vpop.f32.mrb[0].mxu0
    %v1091 = vadd.f32 %v864, %v1090
    %v1092 = vpop.f32.mrb[0].mxu0
    %v1093 = vpop.f32.mrb[0].mxu0
    %v1094 = vadd.f32 %v864, %v1093
    %v1095 = vpop.f32.mrb[0].mxu0
    %1096 = vmatprep.mubr.bf16.mxu0 0
    %1097 = vmatmul.mubr.bf16.gmra.mrb[0].mxu0 %v939
    %v1098 = vpop.f32.mrb[0].mxu0
    %v1099 = vadd.f32 %v864, %v1098
    %v1100 = vpop.f32.mrb[0].mxu0
    %v1101 = vpop.f32.mrb[0].mxu0
    %v1102 = vadd.f32 %v864, %v1101
    %v1103 = vpop.f32.mrb[0].mxu0
    %1104 = vmatprep.mubr.bf16.mxu0 0
    %1105 = vmatmul.mubr.bf16.gmra.mrb[0].mxu0 %v942
    %v1106 = vpop.f32.mrb[0].mxu0
    %v1107 = vadd.f32 %v864, %v1106
    %v1108 = vpop.f32.mrb[0].mxu0
    %v1109 = vpop.f32.mrb[0].mxu0
    %v1110 = vadd.f32 %v864, %v1109
    %v1111 = vpop.f32.mrb[0].mxu0
    %1112 = vmatprep.mubr.bf16.mxu0 0
    %1113 = vmatmul.mubr.bf16.gmra.mrb[0].mxu0 %v945
    %v1114 = vpop.f32.mrb[0].mxu0
    %v1115 = vadd.f32 %v864, %v1114
    %v1116 = vpop.f32.mrb[0].mxu0
    %v1117 = vpop.f32.mrb[0].mxu0
    %v1118 = vadd.f32 %v864, %v1117
    %v1119 = vpop.f32.mrb[0].mxu0
    %1120 = vdwg.mxu0
    %v1121 = vpack.c.bf16 %v986, %v982
    %v1122 = vpack.c.bf16 %v988, %v984
    %v1123 = vpack.c.bf16 %v1078, %v1075
    %v1124 = vpack.c.bf16 %v996, %v992
    %v1125 = vpack.c.bf16 %v998, %v994
    %v1126 = vpack.c.bf16 %v1086, %v1083
    %v1127 = vpack.c.bf16 %v1006, %v1002
    %v1128 = vpack.c.bf16 %v1008, %v1004
    %v1129 = vpack.c.bf16 %v1094, %v1091
    %v1130 = vpack.c.bf16 %v1016, %v1012
    %v1131 = vpack.c.bf16 %v1018, %v1014
    %v1132 = vpack.c.bf16 %v1102, %v1099
    %v1133 = vpack.c.bf16 %v1026, %v1022
    %v1134 = vpack.c.bf16 %v1028, %v1024
    %v1135 = vpack.c.bf16 %v1110, %v1107
    %v1136 = vpack.c.bf16 %v1036, %v1032
    %v1137 = vpack.c.bf16 %v1038, %v1034
    %v1138 = vpack.c.bf16 %v1118, %v1115
    %v1140 = vpack.i.b16 %v634, %v634
    %v1142 = vlaneseq
    %v1143 = vshrl.u32 %v1142, 7
    %v1144 = vsub.s32 0, %v1143
    %v1145 = vrot.slane %v1140, %v1144
    %v1147 = vpack.i.b16 %v635, %v635
    %v1149 = vlaneseq
    %v1150 = vshrl.u32 %v1149, 7
    %v1151 = vsub.s32 0, %v1150
    %v1152 = vrot.slane %v1147, %v1151
    %v1154 = vpack.i.b16 %v636, %v636
    %v1156 = vlaneseq
    %v1157 = vshrl.u32 %v1156, 7
    %v1158 = vsub.s32 0, %v1157
    %v1159 = vrot.slane %v1154, %v1158
    %v1161 = vpack.i.b16 %v637, %v637
    %v1163 = vlaneseq
    %v1164 = vshrl.u32 %v1163, 7
    %v1165 = vsub.s32 0, %v1164
    %v1166 = vrot.slane %v1161, %v1165
    %v1167 = vmul.bf16 %v1121, %v1145
    %v1168 = vmul.bf16 %v1124, %v1145
    %v1169 = vmul.bf16 %v1127, %v1145
    %v1170 = vmul.bf16 %v1130, %v1145
    %v1171 = vmul.bf16 %v1133, %v1145
    %v1172 = vmul.bf16 %v1136, %v1145
    %v1173 = vmul.bf16 %v1121, %v1152
    %v1174 = vmul.bf16 %v1124, %v1152
    %v1175 = vmul.bf16 %v1127, %v1152
    %v1176 = vmul.bf16 %v1130, %v1152
    %v1177 = vmul.bf16 %v1133, %v1152
    %v1178 = vmul.bf16 %v1136, %v1152
    %v1179 = vmul.bf16 %v1121, %v1159
    %v1180 = vmul.bf16 %v1124, %v1159
    %v1181 = vmul.bf16 %v1127, %v1159
    %v1182 = vmul.bf16 %v1130, %v1159
    %v1183 = vmul.bf16 %v1133, %v1159
    %v1184 = vmul.bf16 %v1136, %v1159
    %v1185 = vmul.bf16 %v1121, %v1166
    %v1186 = vmul.bf16 %v1124, %v1166
    %v1187 = vmul.bf16 %v1127, %v1166
    %v1188 = vmul.bf16 %v1130, %v1166
    %v1189 = vmul.bf16 %v1133, %v1166
    %v1190 = vmul.bf16 %v1136, %v1166
    %v1192 = vsel %vm641, %v1167, 0
    %v1195 = vsel %vm641, %v1168, 0
    %v1198 = vsel %vm641, %v1169, 0
    %v1201 = vsel %vm641, %v1122, 0
    %v1204 = vsel %vm641, %v1125, 0
    %v1207 = vsel %vm641, %v1128, 0
    %1209 = vmatprep.subr.bf16.mxu0 0
    %1210 = vmatpush1.bf16.xpose.msra.mxu0 %v1201
    %1211 = vmatprep.subr.bf16.mxu0 0
    %1212 = vmatpush1.bf16.xpose.msra.mxu0 %v1204
    %1213 = vmatprep.subr.bf16.mxu0 0
    %1214 = vmatpush1.bf16.xpose.msra.mxu0 %v1207
    %1215 = vmatprep.subr.bf16.mxu0 0
    %1216 = vmatpush1.bf16.xpose.msra.mxu0 0
    %1217 = vmatprep.subr.bf16.mxu0 0
    %1218 = vmatpush1.bf16.xpose.msra.mxu0 0
    %1219 = vmatprep.subr.bf16.mxu0 0
    %1220 = vmatpush1.bf16.xpose.msra.mxu0 0
    %1221 = vmatprep.subr.bf16.mxu0 0
    %1222 = vmatpush1.bf16.xpose.msra.mxu0 0
    %1223 = vmatprep.subr.bf16.mxu0 0
    %1224 = vmatpush1.bf16.xpose.msra.mxu0 0
    %1225 = vmatprep.subr.bf16.mxu0 0
    %1226 = vmatpush1.bf16.xpose.msra.mxu0 0
    %1227 = vmatprep.subr.bf16.mxu0 0
    %1228 = vmatpush1.bf16.xpose.msra.mxu0 0
    %1229 = vmatprep.subr.bf16.mxu0 0
    %1230 = vmatpush1.bf16.xpose.msra.mxu0 0
    %1231 = vmatprep.subr.bf16.mxu0 0
    %1232 = vmatpush1.bf16.xpose.msra.mxu0 0
    %1233 = vmatprep.subr.bf16.mxu0 0
    %1234 = vmatpush1.bf16.xpose.msra.mxu0 0
    %1235 = vmatprep.subr.bf16.mxu0 0
    %1236 = vmatpush1.bf16.xpose.msra.mxu0 0
    %1237 = vmatprep.subr.bf16.mxu0 0
    %1238 = vmatpush1.bf16.xpose.msra.mxu0 0
    %1239 = vmatprep.subr.bf16.mxu0 0
    %1240 = vmatpush1.bf16.xpose.msra.mxu0 0
    %1241 = vmatprep.mubr.bf16.mxu0 0
    %1242 = vmatmul.mubr.bf16.gmra.mrb[0].mxu0 %v1192
    %v1243 = vpop.f32.mrb[0].mxu0
    %v1244 = vadd.f32 0.0, %v1243
    %v1245 = vpop.f32.mrb[0].mxu0
    %v1246 = vpop.f32.mrb[0].mxu0
    %v1247 = vadd.f32 0.0, %v1246
    %v1248 = vpop.f32.mrb[0].mxu0
    %1249 = vmatprep.mubr.bf16.mxu0 0
    %1250 = vmatmul.mubr.bf16.gmra.mrb[0].mxu0 %v1195
    %v1251 = vpop.f32.mrb[0].mxu0
    %v1252 = vadd.f32 0.0, %v1251
    %v1253 = vpop.f32.mrb[0].mxu0
    %v1254 = vpop.f32.mrb[0].mxu0
    %v1255 = vadd.f32 0.0, %v1254
    %v1256 = vpop.f32.mrb[0].mxu0
    %1257 = vmatprep.mubr.bf16.mxu0 0
    %1258 = vmatmul.mubr.bf16.gmra.mrb[0].mxu0 %v1198
    %v1259 = vpop.f32.mrb[0].mxu0
    %v1260 = vadd.f32 0.0, %v1259
    %v1261 = vpop.f32.mrb[0].mxu0
    %v1262 = vpop.f32.mrb[0].mxu0
    %v1263 = vadd.f32 0.0, %v1262
    %v1264 = vpop.f32.mrb[0].mxu0
    %1265 = vdwg.mxu0
    %v1267 = vsel %vm641, %v1170, 0
    %v1270 = vsel %vm641, %v1171, 0
    %v1273 = vsel %vm641, %v1172, 0
    %v1276 = vsel %vm641, %v1131, 0
    %v1279 = vsel %vm641, %v1134, 0
    %v1282 = vsel %vm641, %v1137, 0
    %1284 = vmatprep.subr.bf16.mxu0 0
    %1285 = vmatpush1.bf16.xpose.msra.mxu0 %v1276
    %1286 = vmatprep.subr.bf16.mxu0 0
    %1287 = vmatpush1.bf16.xpose.msra.mxu0 %v1279
    %1288 = vmatprep.subr.bf16.mxu0 0
    %1289 = vmatpush1.bf16.xpose.msra.mxu0 %v1282
    %1290 = vmatprep.subr.bf16.mxu0 0
    %1291 = vmatpush1.bf16.xpose.msra.mxu0 0
    %1292 = vmatprep.subr.bf16.mxu0 0
    %1293 = vmatpush1.bf16.xpose.msra.mxu0 0
    %1294 = vmatprep.subr.bf16.mxu0 0
    %1295 = vmatpush1.bf16.xpose.msra.mxu0 0
    %1296 = vmatprep.subr.bf16.mxu0 0
    %1297 = vmatpush1.bf16.xpose.msra.mxu0 0
    %1298 = vmatprep.subr.bf16.mxu0 0
    %1299 = vmatpush1.bf16.xpose.msra.mxu0 0
    %1300 = vmatprep.subr.bf16.mxu0 0
    %1301 = vmatpush1.bf16.xpose.msra.mxu0 0
    %1302 = vmatprep.subr.bf16.mxu0 0
    %1303 = vmatpush1.bf16.xpose.msra.mxu0 0
    %1304 = vmatprep.subr.bf16.mxu0 0
    %1305 = vmatpush1.bf16.xpose.msra.mxu0 0
    %1306 = vmatprep.subr.bf16.mxu0 0
    %1307 = vmatpush1.bf16.xpose.msra.mxu0 0
    %1308 = vmatprep.subr.bf16.mxu0 0
    %1309 = vmatpush1.bf16.xpose.msra.mxu0 0
    %1310 = vmatprep.subr.bf16.mxu0 0
    %1311 = vmatpush1.bf16.xpose.msra.mxu0 0
    %1312 = vmatprep.subr.bf16.mxu0 0
    %1313 = vmatpush1.bf16.xpose.msra.mxu0 0
    %1314 = vmatprep.subr.bf16.mxu0 0
    %1315 = vmatpush1.bf16.xpose.msra.mxu0 0
    %1316 = vmatprep.mubr.bf16.mxu0 0
    %1317 = vmatmul.mubr.bf16.gmra.mrb[0].mxu0 %v1267
    %v1318 = vpop.f32.mrb[0].mxu0
    %v1319 = vadd.f32 0.0, %v1318
    %v1320 = vpop.f32.mrb[0].mxu0
    %v1321 = vpop.f32.mrb[0].mxu0
    %v1322 = vadd.f32 0.0, %v1321
    %v1323 = vpop.f32.mrb[0].mxu0
    %1324 = vmatprep.mubr.bf16.mxu0 0
    %1325 = vmatmul.mubr.bf16.gmra.mrb[0].mxu0 %v1270
    %v1326 = vpop.f32.mrb[0].mxu0
    %v1327 = vadd.f32 0.0, %v1326
    %v1328 = vpop.f32.mrb[0].mxu0
    %v1329 = vpop.f32.mrb[0].mxu0
    %v1330 = vadd.f32 0.0, %v1329
    %v1331 = vpop.f32.mrb[0].mxu0
    %1332 = vmatprep.mubr.bf16.mxu0 0
    %1333 = vmatmul.mubr.bf16.gmra.mrb[0].mxu0 %v1273
    %v1334 = vpop.f32.mrb[0].mxu0
    %v1335 = vadd.f32 0.0, %v1334
    %v1336 = vpop.f32.mrb[0].mxu0
    %v1337 = vpop.f32.mrb[0].mxu0
    %v1338 = vadd.f32 0.0, %v1337
    %v1339 = vpop.f32.mrb[0].mxu0
    %1340 = vdwg.mxu0
    %v1342 = vsel %vm641, %v1173, 0
    %v1345 = vsel %vm641, %v1174, 0
    %v1348 = vsel %vm641, %v1175, 0
    %1350 = vmatprep.subr.bf16.mxu0 0
    %1351 = vmatpush1.bf16.xpose.msra.mxu0 %v1201
    %1352 = vmatprep.subr.bf16.mxu0 0
    %1353 = vmatpush1.bf16.xpose.msra.mxu0 %v1204
    %1354 = vmatprep.subr.bf16.mxu0 0
    %1355 = vmatpush1.bf16.xpose.msra.mxu0 %v1207
    %1356 = vmatprep.subr.bf16.mxu0 0
    %1357 = vmatpush1.bf16.xpose.msra.mxu0 0
    %1358 = vmatprep.subr.bf16.mxu0 0
    %1359 = vmatpush1.bf16.xpose.msra.mxu0 0
    %1360 = vmatprep.subr.bf16.mxu0 0
    %1361 = vmatpush1.bf16.xpose.msra.mxu0 0
    %1362 = vmatprep.subr.bf16.mxu0 0
    %1363 = vmatpush1.bf16.xpose.msra.mxu0 0
    %1364 = vmatprep.subr.bf16.mxu0 0
    %1365 = vmatpush1.bf16.xpose.msra.mxu0 0
    %1366 = vmatprep.subr.bf16.mxu0 0
    %1367 = vmatpush1.bf16.xpose.msra.mxu0 0
    %1368 = vmatprep.subr.bf16.mxu0 0
    %1369 = vmatpush1.bf16.xpose.msra.mxu0 0
    %1370 = vmatprep.subr.bf16.mxu0 0
    %1371 = vmatpush1.bf16.xpose.msra.mxu0 0
    %1372 = vmatprep.subr.bf16.mxu0 0
    %1373 = vmatpush1.bf16.xpose.msra.mxu0 0
    %1374 = vmatprep.subr.bf16.mxu0 0
    %1375 = vmatpush1.bf16.xpose.msra.mxu0 0
    %1376 = vmatprep.subr.bf16.mxu0 0
    %1377 = vmatpush1.bf16.xpose.msra.mxu0 0
    %1378 = vmatprep.subr.bf16.mxu0 0
    %1379 = vmatpush1.bf16.xpose.msra.mxu0 0
    %1380 = vmatprep.subr.bf16.mxu0 0
    %1381 = vmatpush1.bf16.xpose.msra.mxu0 0
    %1382 = vmatprep.mubr.bf16.mxu0 0
    %1383 = vmatmul.mubr.bf16.gmra.mrb[0].mxu0 %v1342
    %v1384 = vpop.f32.mrb[0].mxu0
    %v1385 = vadd.f32 0.0, %v1384
    %v1386 = vpop.f32.mrb[0].mxu0
    %v1387 = vpop.f32.mrb[0].mxu0
    %v1388 = vadd.f32 0.0, %v1387
    %v1389 = vpop.f32.mrb[0].mxu0
    %1390 = vmatprep.mubr.bf16.mxu0 0
    %1391 = vmatmul.mubr.bf16.gmra.mrb[0].mxu0 %v1345
    %v1392 = vpop.f32.mrb[0].mxu0
    %v1393 = vadd.f32 0.0, %v1392
    %v1394 = vpop.f32.mrb[0].mxu0
    %v1395 = vpop.f32.mrb[0].mxu0
    %v1396 = vadd.f32 0.0, %v1395
    %v1397 = vpop.f32.mrb[0].mxu0
    %1398 = vmatprep.mubr.bf16.mxu0 0
    %1399 = vmatmul.mubr.bf16.gmra.mrb[0].mxu0 %v1348
    %v1400 = vpop.f32.mrb[0].mxu0
    %v1401 = vadd.f32 0.0, %v1400
    %v1402 = vpop.f32.mrb[0].mxu0
    %v1403 = vpop.f32.mrb[0].mxu0
    %v1404 = vadd.f32 0.0, %v1403
    %v1405 = vpop.f32.mrb[0].mxu0
    %1406 = vdwg.mxu0
    %v1408 = vsel %vm641, %v1176, 0
    %v1411 = vsel %vm641, %v1177, 0
    %v1414 = vsel %vm641, %v1178, 0
    %1416 = vmatprep.subr.bf16.mxu0 0
    %1417 = vmatpush1.bf16.xpose.msra.mxu0 %v1276
    %1418 = vmatprep.subr.bf16.mxu0 0
    %1419 = vmatpush1.bf16.xpose.msra.mxu0 %v1279
    %1420 = vmatprep.subr.bf16.mxu0 0
    %1421 = vmatpush1.bf16.xpose.msra.mxu0 %v1282
    %1422 = vmatprep.subr.bf16.mxu0 0
    %1423 = vmatpush1.bf16.xpose.msra.mxu0 0
    %1424 = vmatprep.subr.bf16.mxu0 0
    %1425 = vmatpush1.bf16.xpose.msra.mxu0 0
    %1426 = vmatprep.subr.bf16.mxu0 0
    %1427 = vmatpush1.bf16.xpose.msra.mxu0 0
    %1428 = vmatprep.subr.bf16.mxu0 0
    %1429 = vmatpush1.bf16.xpose.msra.mxu0 0
    %1430 = vmatprep.subr.bf16.mxu0 0
    %1431 = vmatpush1.bf16.xpose.msra.mxu0 0
    %1432 = vmatprep.subr.bf16.mxu0 0
    %1433 = vmatpush1.bf16.xpose.msra.mxu0 0
    %1434 = vmatprep.subr.bf16.mxu0 0
    %1435 = vmatpush1.bf16.xpose.msra.mxu0 0
    %1436 = vmatprep.subr.bf16.mxu0 0
    %1437 = vmatpush1.bf16.xpose.msra.mxu0 0
    %1438 = vmatprep.subr.bf16.mxu0 0
    %1439 = vmatpush1.bf16.xpose.msra.mxu0 0
    %1440 = vmatprep.subr.bf16.mxu0 0
    %1441 = vmatpush1.bf16.xpose.msra.mxu0 0
    %1442 = vmatprep.subr.bf16.mxu0 0
    %1443 = vmatpush1.bf16.xpose.msra.mxu0 0
    %1444 = vmatprep.subr.bf16.mxu0 0
    %1445 = vmatpush1.bf16.xpose.msra.mxu0 0
    %1446 = vmatprep.subr.bf16.mxu0 0
    %1447 = vmatpush1.bf16.xpose.msra.mxu0 0
    %1448 = vmatprep.mubr.bf16.mxu0 0
    %1449 = vmatmul.mubr.bf16.gmra.mrb[0].mxu0 %v1408
    %v1450 = vpop.f32.mrb[0].mxu0
    %v1451 = vadd.f32 0.0, %v1450
    %v1452 = vpop.f32.mrb[0].mxu0
    %v1453 = vpop.f32.mrb[0].mxu0
    %v1454 = vadd.f32 0.0, %v1453
    %v1455 = vpop.f32.mrb[0].mxu0
    %1456 = vmatprep.mubr.bf16.mxu0 0
    %1457 = vmatmul.mubr.bf16.gmra.mrb[0].mxu0 %v1411
    %v1458 = vpop.f32.mrb[0].mxu0
    %v1459 = vadd.f32 0.0, %v1458
    %v1460 = vpop.f32.mrb[0].mxu0
    %v1461 = vpop.f32.mrb[0].mxu0
    %v1462 = vadd.f32 0.0, %v1461
    %v1463 = vpop.f32.mrb[0].mxu0
    %1464 = vmatprep.mubr.bf16.mxu0 0
    %1465 = vmatmul.mubr.bf16.gmra.mrb[0].mxu0 %v1414
    %v1466 = vpop.f32.mrb[0].mxu0
    %v1467 = vadd.f32 0.0, %v1466
    %v1468 = vpop.f32.mrb[0].mxu0
    %v1469 = vpop.f32.mrb[0].mxu0
    %v1470 = vadd.f32 0.0, %v1469
    %v1471 = vpop.f32.mrb[0].mxu0
    %1472 = vdwg.mxu0
    %v1474 = vsel %vm641, %v1179, 0
    %v1477 = vsel %vm641, %v1180, 0
    %v1480 = vsel %vm641, %v1181, 0
    %1482 = vmatprep.subr.bf16.mxu0 0
    %1483 = vmatpush1.bf16.xpose.msra.mxu0 %v1201
    %1484 = vmatprep.subr.bf16.mxu0 0
    %1485 = vmatpush1.bf16.xpose.msra.mxu0 %v1204
    %1486 = vmatprep.subr.bf16.mxu0 0
    %1487 = vmatpush1.bf16.xpose.msra.mxu0 %v1207
    %1488 = vmatprep.subr.bf16.mxu0 0
    %1489 = vmatpush1.bf16.xpose.msra.mxu0 0
    %1490 = vmatprep.subr.bf16.mxu0 0
    %1491 = vmatpush1.bf16.xpose.msra.mxu0 0
    %1492 = vmatprep.subr.bf16.mxu0 0
    %1493 = vmatpush1.bf16.xpose.msra.mxu0 0
    %1494 = vmatprep.subr.bf16.mxu0 0
    %1495 = vmatpush1.bf16.xpose.msra.mxu0 0
    %1496 = vmatprep.subr.bf16.mxu0 0
    %1497 = vmatpush1.bf16.xpose.msra.mxu0 0
    %1498 = vmatprep.subr.bf16.mxu0 0
    %1499 = vmatpush1.bf16.xpose.msra.mxu0 0
    %1500 = vmatprep.subr.bf16.mxu0 0
    %1501 = vmatpush1.bf16.xpose.msra.mxu0 0
    %1502 = vmatprep.subr.bf16.mxu0 0
    %1503 = vmatpush1.bf16.xpose.msra.mxu0 0
    %1504 = vmatprep.subr.bf16.mxu0 0
    %1505 = vmatpush1.bf16.xpose.msra.mxu0 0
    %1506 = vmatprep.subr.bf16.mxu0 0
    %1507 = vmatpush1.bf16.xpose.msra.mxu0 0
    %1508 = vmatprep.subr.bf16.mxu0 0
    %1509 = vmatpush1.bf16.xpose.msra.mxu0 0
    %1510 = vmatprep.subr.bf16.mxu0 0
    %1511 = vmatpush1.bf16.xpose.msra.mxu0 0
    %1512 = vmatprep.subr.bf16.mxu0 0
    %1513 = vmatpush1.bf16.xpose.msra.mxu0 0
    %1514 = vmatprep.mubr.bf16.mxu0 0
    %1515 = vmatmul.mubr.bf16.gmra.mrb[0].mxu0 %v1474
    %v1516 = vpop.f32.mrb[0].mxu0
    %v1517 = vadd.f32 0.0, %v1516
    %v1518 = vpop.f32.mrb[0].mxu0
    %v1519 = vpop.f32.mrb[0].mxu0
    %v1520 = vadd.f32 0.0, %v1519
    %v1521 = vpop.f32.mrb[0].mxu0
    %1522 = vmatprep.mubr.bf16.mxu0 0
    %1523 = vmatmul.mubr.bf16.gmra.mrb[0].mxu0 %v1477
    %v1524 = vpop.f32.mrb[0].mxu0
    %v1525 = vadd.f32 0.0, %v1524
    %v1526 = vpop.f32.mrb[0].mxu0
    %v1527 = vpop.f32.mrb[0].mxu0
    %v1528 = vadd.f32 0.0, %v1527
    %v1529 = vpop.f32.mrb[0].mxu0
    %1530 = vmatprep.mubr.bf16.mxu0 0
    %1531 = vmatmul.mubr.bf16.gmra.mrb[0].mxu0 %v1480
    %v1532 = vpop.f32.mrb[0].mxu0
    %v1533 = vadd.f32 0.0, %v1532
    %v1534 = vpop.f32.mrb[0].mxu0
    %v1535 = vpop.f32.mrb[0].mxu0
    %v1536 = vadd.f32 0.0, %v1535
    %v1537 = vpop.f32.mrb[0].mxu0
    %1538 = vdwg.mxu0
    %v1540 = vsel %vm641, %v1182, 0
    %v1543 = vsel %vm641, %v1183, 0
    %v1546 = vsel %vm641, %v1184, 0
    %1548 = vmatprep.subr.bf16.mxu0 0
    %1549 = vmatpush1.bf16.xpose.msra.mxu0 %v1276
    %1550 = vmatprep.subr.bf16.mxu0 0
    %1551 = vmatpush1.bf16.xpose.msra.mxu0 %v1279
    %1552 = vmatprep.subr.bf16.mxu0 0
    %1553 = vmatpush1.bf16.xpose.msra.mxu0 %v1282
    %1554 = vmatprep.subr.bf16.mxu0 0
    %1555 = vmatpush1.bf16.xpose.msra.mxu0 0
    %1556 = vmatprep.subr.bf16.mxu0 0
    %1557 = vmatpush1.bf16.xpose.msra.mxu0 0
    %1558 = vmatprep.subr.bf16.mxu0 0
    %1559 = vmatpush1.bf16.xpose.msra.mxu0 0
    %1560 = vmatprep.subr.bf16.mxu0 0
    %1561 = vmatpush1.bf16.xpose.msra.mxu0 0
    %1562 = vmatprep.subr.bf16.mxu0 0
    %1563 = vmatpush1.bf16.xpose.msra.mxu0 0
    %1564 = vmatprep.subr.bf16.mxu0 0
    %1565 = vmatpush1.bf16.xpose.msra.mxu0 0
    %1566 = vmatprep.subr.bf16.mxu0 0
    %1567 = vmatpush1.bf16.xpose.msra.mxu0 0
    %1568 = vmatprep.subr.bf16.mxu0 0
    %1569 = vmatpush1.bf16.xpose.msra.mxu0 0
    %1570 = vmatprep.subr.bf16.mxu0 0
    %1571 = vmatpush1.bf16.xpose.msra.mxu0 0
    %1572 = vmatprep.subr.bf16.mxu0 0
    %1573 = vmatpush1.bf16.xpose.msra.mxu0 0
    %1574 = vmatprep.subr.bf16.mxu0 0
    %1575 = vmatpush1.bf16.xpose.msra.mxu0 0
    %1576 = vmatprep.subr.bf16.mxu0 0
    %1577 = vmatpush1.bf16.xpose.msra.mxu0 0
    %1578 = vmatprep.subr.bf16.mxu0 0
    %1579 = vmatpush1.bf16.xpose.msra.mxu0 0
    %1580 = vmatprep.mubr.bf16.mxu0 0
    %1581 = vmatmul.mubr.bf16.gmra.mrb[0].mxu0 %v1540
    %v1582 = vpop.f32.mrb[0].mxu0
    %v1583 = vadd.f32 0.0, %v1582
    %v1584 = vpop.f32.mrb[0].mxu0
    %v1585 = vpop.f32.mrb[0].mxu0
    %v1586 = vadd.f32 0.0, %v1585
    %v1587 = vpop.f32.mrb[0].mxu0
    %1588 = vmatprep.mubr.bf16.mxu0 0
    %1589 = vmatmul.mubr.bf16.gmra.mrb[0].mxu0 %v1543
    %v1590 = vpop.f32.mrb[0].mxu0
    %v1591 = vadd.f32 0.0, %v1590
    %v1592 = vpop.f32.mrb[0].mxu0
    %v1593 = vpop.f32.mrb[0].mxu0
    %v1594 = vadd.f32 0.0, %v1593
    %v1595 = vpop.f32.mrb[0].mxu0
    %1596 = vmatprep.mubr.bf16.mxu0 0
    %1597 = vmatmul.mubr.bf16.gmra.mrb[0].mxu0 %v1546
    %v1598 = vpop.f32.mrb[0].mxu0
    %v1599 = vadd.f32 0.0, %v1598
    %v1600 = vpop.f32.mrb[0].mxu0
    %v1601 = vpop.f32.mrb[0].mxu0
    %v1602 = vadd.f32 0.0, %v1601
    %v1603 = vpop.f32.mrb[0].mxu0
    %1604 = vdwg.mxu0
    %v1606 = vsel %vm641, %v1185, 0
    %v1609 = vsel %vm641, %v1186, 0
    %v1612 = vsel %vm641, %v1187, 0
    %1614 = vmatprep.subr.bf16.mxu0 0
    %1615 = vmatpush1.bf16.xpose.msra.mxu0 %v1201
    %1616 = vmatprep.subr.bf16.mxu0 0
    %1617 = vmatpush1.bf16.xpose.msra.mxu0 %v1204
    %1618 = vmatprep.subr.bf16.mxu0 0
    %1619 = vmatpush1.bf16.xpose.msra.mxu0 %v1207
    %1620 = vmatprep.subr.bf16.mxu0 0
    %1621 = vmatpush1.bf16.xpose.msra.mxu0 0
    %1622 = vmatprep.subr.bf16.mxu0 0
    %1623 = vmatpush1.bf16.xpose.msra.mxu0 0
    %1624 = vmatprep.subr.bf16.mxu0 0
    %1625 = vmatpush1.bf16.xpose.msra.mxu0 0
    %1626 = vmatprep.subr.bf16.mxu0 0
    %1627 = vmatpush1.bf16.xpose.msra.mxu0 0
    %1628 = vmatprep.subr.bf16.mxu0 0
    %1629 = vmatpush1.bf16.xpose.msra.mxu0 0
    %1630 = vmatprep.subr.bf16.mxu0 0
    %1631 = vmatpush1.bf16.xpose.msra.mxu0 0
    %1632 = vmatprep.subr.bf16.mxu0 0
    %1633 = vmatpush1.bf16.xpose.msra.mxu0 0
    %1634 = vmatprep.subr.bf16.mxu0 0
    %1635 = vmatpush1.bf16.xpose.msra.mxu0 0
    %1636 = vmatprep.subr.bf16.mxu0 0
    %1637 = vmatpush1.bf16.xpose.msra.mxu0 0
    %1638 = vmatprep.subr.bf16.mxu0 0
    %1639 = vmatpush1.bf16.xpose.msra.mxu0 0
    %1640 = vmatprep.subr.bf16.mxu0 0
    %1641 = vmatpush1.bf16.xpose.msra.mxu0 0
    %1642 = vmatprep.subr.bf16.mxu0 0
    %1643 = vmatpush1.bf16.xpose.msra.mxu0 0
    %1644 = vmatprep.subr.bf16.mxu0 0
    %1645 = vmatpush1.bf16.xpose.msra.mxu0 0
    %1646 = vmatprep.mubr.bf16.mxu0 0
    %1647 = vmatmul.mubr.bf16.gmra.mrb[0].mxu0 %v1606
    %v1648 = vpop.f32.mrb[0].mxu0
    %v1649 = vadd.f32 0.0, %v1648
    %v1650 = vpop.f32.mrb[0].mxu0
    %v1651 = vpop.f32.mrb[0].mxu0
    %v1652 = vadd.f32 0.0, %v1651
    %v1653 = vpop.f32.mrb[0].mxu0
    %1654 = vmatprep.mubr.bf16.mxu0 0
    %1655 = vmatmul.mubr.bf16.gmra.mrb[0].mxu0 %v1609
    %v1656 = vpop.f32.mrb[0].mxu0
    %v1657 = vadd.f32 0.0, %v1656
    %v1658 = vpop.f32.mrb[0].mxu0
    %v1659 = vpop.f32.mrb[0].mxu0
    %v1660 = vadd.f32 0.0, %v1659
    %v1661 = vpop.f32.mrb[0].mxu0
    %1662 = vmatprep.mubr.bf16.mxu0 0
    %1663 = vmatmul.mubr.bf16.gmra.mrb[0].mxu0 %v1612
    %v1664 = vpop.f32.mrb[0].mxu0
    %v1665 = vadd.f32 0.0, %v1664
    %v1666 = vpop.f32.mrb[0].mxu0
    %v1667 = vpop.f32.mrb[0].mxu0
    %v1668 = vadd.f32 0.0, %v1667
    %v1669 = vpop.f32.mrb[0].mxu0
    %1670 = vdwg.mxu0
    %v1672 = vsel %vm641, %v1188, 0
    %v1675 = vsel %vm641, %v1189, 0
    %v1678 = vsel %vm641, %v1190, 0
    %1680 = vmatprep.subr.bf16.mxu0 0
    %1681 = vmatpush1.bf16.xpose.msra.mxu0 %v1276
    %1682 = vmatprep.subr.bf16.mxu0 0
    %1683 = vmatpush1.bf16.xpose.msra.mxu0 %v1279
    %1684 = vmatprep.subr.bf16.mxu0 0
    %1685 = vmatpush1.bf16.xpose.msra.mxu0 %v1282
    %1686 = vmatprep.subr.bf16.mxu0 0
    %1687 = vmatpush1.bf16.xpose.msra.mxu0 0
    %1688 = vmatprep.subr.bf16.mxu0 0
    %1689 = vmatpush1.bf16.xpose.msra.mxu0 0
    %1690 = vmatprep.subr.bf16.mxu0 0
    %1691 = vmatpush1.bf16.xpose.msra.mxu0 0
    %1692 = vmatprep.subr.bf16.mxu0 0
    %1693 = vmatpush1.bf16.xpose.msra.mxu0 0
    %1694 = vmatprep.subr.bf16.mxu0 0
    %1695 = vmatpush1.bf16.xpose.msra.mxu0 0
    %1696 = vmatprep.subr.bf16.mxu0 0
    %1697 = vmatpush1.bf16.xpose.msra.mxu0 0
    %1698 = vmatprep.subr.bf16.mxu0 0
    %1699 = vmatpush1.bf16.xpose.msra.mxu0 0
    %1700 = vmatprep.subr.bf16.mxu0 0
    %1701 = vmatpush1.bf16.xpose.msra.mxu0 0
    %1702 = vmatprep.subr.bf16.mxu0 0
    %1703 = vmatpush1.bf16.xpose.msra.mxu0 0
    %1704 = vmatprep.subr.bf16.mxu0 0
    %1705 = vmatpush1.bf16.xpose.msra.mxu0 0
    %1706 = vmatprep.subr.bf16.mxu0 0
    %1707 = vmatpush1.bf16.xpose.msra.mxu0 0
    %1708 = vmatprep.subr.bf16.mxu0 0
    %1709 = vmatpush1.bf16.xpose.msra.mxu0 0
    %1710 = vmatprep.subr.bf16.mxu0 0
    %1711 = vmatpush1.bf16.xpose.msra.mxu0 0
    %1712 = vmatprep.mubr.bf16.mxu0 0
    %1713 = vmatmul.mubr.bf16.gmra.mrb[0].mxu0 %v1672
    %v1714 = vpop.f32.mrb[0].mxu0
    %v1715 = vadd.f32 0.0, %v1714
    %v1716 = vpop.f32.mrb[0].mxu0
    %v1717 = vpop.f32.mrb[0].mxu0
    %v1718 = vadd.f32 0.0, %v1717
    %v1719 = vpop.f32.mrb[0].mxu0
    %1720 = vmatprep.mubr.bf16.mxu0 0
    %1721 = vmatmul.mubr.bf16.gmra.mrb[0].mxu0 %v1675
    %v1722 = vpop.f32.mrb[0].mxu0
    %v1723 = vadd.f32 0.0, %v1722
    %v1724 = vpop.f32.mrb[0].mxu0
    %v1725 = vpop.f32.mrb[0].mxu0
    %v1726 = vadd.f32 0.0, %v1725
    %v1727 = vpop.f32.mrb[0].mxu0
    %1728 = vmatprep.mubr.bf16.mxu0 0
    %1729 = vmatmul.mubr.bf16.gmra.mrb[0].mxu0 %v1678
    %v1730 = vpop.f32.mrb[0].mxu0
    %v1731 = vadd.f32 0.0, %v1730
    %v1732 = vpop.f32.mrb[0].mxu0
    %v1733 = vpop.f32.mrb[0].mxu0
    %v1734 = vadd.f32 0.0, %v1733
    %v1735 = vpop.f32.mrb[0].mxu0
    %1736 = vdwg.mxu0
    %v1737 = vsel %vm613, 1, 0
    %vm1738 = vcmp.eq.s32.totalorder %v1737, 1
    %v1739 = vsel %vm1738, %v1244, -1e+30
    %v1740 = vsel %vm1738, %v1247, -1e+30
    %v1741 = vsel %vm1738, %v1252, -1e+30
    %v1742 = vsel %vm1738, %v1255, -1e+30
    %v1743 = vsel %vm1738, %v1260, -1e+30
    %v1744 = vsel %vm1738, %v1263, -1e+30
    %v1745 = vsel %vm1738, %v1319, -1e+30
    %v1746 = vsel %vm1738, %v1322, -1e+30
    %v1747 = vsel %vm1738, %v1327, -1e+30
    %v1748 = vsel %vm1738, %v1330, -1e+30
    %v1749 = vsel %vm1738, %v1335, -1e+30
    %v1750 = vsel %vm1738, %v1338, -1e+30
    %v1751 = vsel %vm1738, %v1385, -1e+30
    %v1752 = vsel %vm1738, %v1388, -1e+30
    %v1753 = vsel %vm1738, %v1393, -1e+30
    %v1754 = vsel %vm1738, %v1396, -1e+30
    %v1755 = vsel %vm1738, %v1401, -1e+30
    %v1756 = vsel %vm1738, %v1404, -1e+30
    %v1757 = vsel %vm1738, %v1451, -1e+30
    %v1758 = vsel %vm1738, %v1454, -1e+30
    %v1759 = vsel %vm1738, %v1459, -1e+30
    %v1760 = vsel %vm1738, %v1462, -1e+30
    %v1761 = vsel %vm1738, %v1467, -1e+30
    %v1762 = vsel %vm1738, %v1470, -1e+30
    %v1763 = vsel %vm1738, %v1517, -1e+30
    %v1764 = vsel %vm1738, %v1520, -1e+30
    %v1765 = vsel %vm1738, %v1525, -1e+30
    %v1766 = vsel %vm1738, %v1528, -1e+30
    %v1767 = vsel %vm1738, %v1533, -1e+30
    %v1768 = vsel %vm1738, %v1536, -1e+30
    %v1769 = vsel %vm1738, %v1583, -1e+30
    %v1770 = vsel %vm1738, %v1586, -1e+30
    %v1771 = vsel %vm1738, %v1591, -1e+30
    %v1772 = vsel %vm1738, %v1594, -1e+30
    %v1773 = vsel %vm1738, %v1599, -1e+30
    %v1774 = vsel %vm1738, %v1602, -1e+30
    %v1775 = vsel %vm1738, %v1649, -1e+30
    %v1776 = vsel %vm1738, %v1652, -1e+30
    %v1777 = vsel %vm1738, %v1657, -1e+30
    %v1778 = vsel %vm1738, %v1660, -1e+30
    %v1779 = vsel %vm1738, %v1665, -1e+30
    %v1780 = vsel %vm1738, %v1668, -1e+30
    %v1781 = vsel %vm1738, %v1715, -1e+30
    %v1782 = vsel %vm1738, %v1718, -1e+30
    %v1783 = vsel %vm1738, %v1723, -1e+30
    %v1784 = vsel %vm1738, %v1726, -1e+30
    %v1785 = vsel %vm1738, %v1731, -1e+30
    %v1786 = vsel %vm1738, %v1734, -1e+30
    %vm1787 = vcmask 392192
    %v1788 = vsel %vm1787, %v1739, -inf
    %1789 = vmax.xlane.f32.xlu0 %v1788
    %v1790 = vpop.xlane.xlu0 %1789
    %v1791 = vsel %vm1787, %v1740, -inf
    %1792 = vmax.xlane.f32.xlu0 %v1791
    %v1793 = vpop.xlane.xlu0 %1792
    %v1794 = vsel %vm1787, %v1741, -inf
    %1795 = vmax.xlane.f32.xlu0 %v1794
    %v1796 = vpop.xlane.xlu0 %1795
    %v1797 = vsel %vm1787, %v1742, -inf
    %1798 = vmax.xlane.f32.xlu0 %v1797
    %v1799 = vpop.xlane.xlu0 %1798
    %v1800 = vsel %vm1787, %v1743, -inf
    %1801 = vmax.xlane.f32.xlu0 %v1800
    %v1802 = vpop.xlane.xlu0 %1801
    %v1803 = vsel %vm1787, %v1744, -inf
    %1804 = vmax.xlane.f32.xlu0 %v1803
    %v1805 = vpop.xlane.xlu0 %1804
    %v1806 = vsel %vm1787, %v1745, -inf
    %1807 = vmax.xlane.f32.xlu0 %v1806
    %v1808 = vpop.xlane.xlu0 %1807
    %v1809 = vsel %vm1787, %v1746, -inf
    %1810 = vmax.xlane.f32.xlu0 %v1809
    %v1811 = vpop.xlane.xlu0 %1810
    %v1812 = vsel %vm1787, %v1747, -inf
    %1813 = vmax.xlane.f32.xlu0 %v1812
    %v1814 = vpop.xlane.xlu0 %1813
    %v1815 = vsel %vm1787, %v1748, -inf
    %1816 = vmax.xlane.f32.xlu0 %v1815
    %v1817 = vpop.xlane.xlu0 %1816
    %v1818 = vsel %vm1787, %v1749, -inf
    %1819 = vmax.xlane.f32.xlu0 %v1818
    %v1820 = vpop.xlane.xlu0 %1819
    %v1821 = vsel %vm1787, %v1750, -inf
    %1822 = vmax.xlane.f32.xlu0 %v1821
    %v1823 = vpop.xlane.xlu0 %1822
    %v1824 = vsel %vm1787, %v1751, -inf
    %1825 = vmax.xlane.f32.xlu0 %v1824
    %v1826 = vpop.xlane.xlu0 %1825
    %v1827 = vsel %vm1787, %v1752, -inf
    %1828 = vmax.xlane.f32.xlu0 %v1827
    %v1829 = vpop.xlane.xlu0 %1828
    %v1830 = vsel %vm1787, %v1753, -inf
    %1831 = vmax.xlane.f32.xlu0 %v1830
    %v1832 = vpop.xlane.xlu0 %1831
    %v1833 = vsel %vm1787, %v1754, -inf
    %1834 = vmax.xlane.f32.xlu0 %v1833
    %v1835 = vpop.xlane.xlu0 %1834
    %v1836 = vsel %vm1787, %v1755, -inf
    %1837 = vmax.xlane.f32.xlu0 %v1836
    %v1838 = vpop.xlane.xlu0 %1837
    %v1839 = vsel %vm1787, %v1756, -inf
    %1840 = vmax.xlane.f32.xlu0 %v1839
    %v1841 = vpop.xlane.xlu0 %1840
    %v1842 = vsel %vm1787, %v1757, -inf
    %1843 = vmax.xlane.f32.xlu0 %v1842
    %v1844 = vpop.xlane.xlu0 %1843
    %v1845 = vsel %vm1787, %v1758, -inf
    %1846 = vmax.xlane.f32.xlu0 %v1845
    %v1847 = vpop.xlane.xlu0 %1846
    %v1848 = vsel %vm1787, %v1759, -inf
    %1849 = vmax.xlane.f32.xlu0 %v1848
    %v1850 = vpop.xlane.xlu0 %1849
    %v1851 = vsel %vm1787, %v1760, -inf
    %1852 = vmax.xlane.f32.xlu0 %v1851
    %v1853 = vpop.xlane.xlu0 %1852
    %v1854 = vsel %vm1787, %v1761, -inf
    %1855 = vmax.xlane.f32.xlu0 %v1854
    %v1856 = vpop.xlane.xlu0 %1855
    %v1857 = vsel %vm1787, %v1762, -inf
    %1858 = vmax.xlane.f32.xlu0 %v1857
    %v1859 = vpop.xlane.xlu0 %1858
    %v1860 = vsel %vm1787, %v1763, -inf
    %1861 = vmax.xlane.f32.xlu0 %v1860
    %v1862 = vpop.xlane.xlu0 %1861
    %v1863 = vsel %vm1787, %v1764, -inf
    %1864 = vmax.xlane.f32.xlu0 %v1863
    %v1865 = vpop.xlane.xlu0 %1864
    %v1866 = vsel %vm1787, %v1765, -inf
    %1867 = vmax.xlane.f32.xlu0 %v1866
    %v1868 = vpop.xlane.xlu0 %1867
    %v1869 = vsel %vm1787, %v1766, -inf
    %1870 = vmax.xlane.f32.xlu0 %v1869
    %v1871 = vpop.xlane.xlu0 %1870
    %v1872 = vsel %vm1787, %v1767, -inf
    %1873 = vmax.xlane.f32.xlu0 %v1872
    %v1874 = vpop.xlane.xlu0 %1873
    %v1875 = vsel %vm1787, %v1768, -inf
    %1876 = vmax.xlane.f32.xlu0 %v1875
    %v1877 = vpop.xlane.xlu0 %1876
    %v1878 = vsel %vm1787, %v1769, -inf
    %1879 = vmax.xlane.f32.xlu0 %v1878
    %v1880 = vpop.xlane.xlu0 %1879
    %v1881 = vsel %vm1787, %v1770, -inf
    %1882 = vmax.xlane.f32.xlu0 %v1881
    %v1883 = vpop.xlane.xlu0 %1882
    %v1884 = vsel %vm1787, %v1771, -inf
    %1885 = vmax.xlane.f32.xlu0 %v1884
    %v1886 = vpop.xlane.xlu0 %1885
    %v1887 = vsel %vm1787, %v1772, -inf
    %1888 = vmax.xlane.f32.xlu0 %v1887
    %v1889 = vpop.xlane.xlu0 %1888
    %v1890 = vsel %vm1787, %v1773, -inf
    %1891 = vmax.xlane.f32.xlu0 %v1890
    %v1892 = vpop.xlane.xlu0 %1891
    %v1893 = vsel %vm1787, %v1774, -inf
    %1894 = vmax.xlane.f32.xlu0 %v1893
    %v1895 = vpop.xlane.xlu0 %1894
    %v1896 = vsel %vm1787, %v1775, -inf
    %1897 = vmax.xlane.f32.xlu0 %v1896
    %v1898 = vpop.xlane.xlu0 %1897
    %v1899 = vsel %vm1787, %v1776, -inf
    %1900 = vmax.xlane.f32.xlu0 %v1899
    %v1901 = vpop.xlane.xlu0 %1900
    %v1902 = vsel %vm1787, %v1777, -inf
    %1903 = vmax.xlane.f32.xlu0 %v1902
    %v1904 = vpop.xlane.xlu0 %1903
    %v1905 = vsel %vm1787, %v1778, -inf
    %1906 = vmax.xlane.f32.xlu0 %v1905
    %v1907 = vpop.xlane.xlu0 %1906
    %v1908 = vsel %vm1787, %v1779, -inf
    %1909 = vmax.xlane.f32.xlu0 %v1908
    %v1910 = vpop.xlane.xlu0 %1909
    %v1911 = vsel %vm1787, %v1780, -inf
    %1912 = vmax.xlane.f32.xlu0 %v1911
    %v1913 = vpop.xlane.xlu0 %1912
    %v1914 = vsel %vm1787, %v1781, -inf
    %1915 = vmax.xlane.f32.xlu0 %v1914
    %v1916 = vpop.xlane.xlu0 %1915
    %v1917 = vsel %vm1787, %v1782, -inf
    %1918 = vmax.xlane.f32.xlu0 %v1917
    %v1919 = vpop.xlane.xlu0 %1918
    %v1920 = vsel %vm1787, %v1783, -inf
    %1921 = vmax.xlane.f32.xlu0 %v1920
    %v1922 = vpop.xlane.xlu0 %1921
    %v1923 = vsel %vm1787, %v1784, -inf
    %1924 = vmax.xlane.f32.xlu0 %v1923
    %v1925 = vpop.xlane.xlu0 %1924
    %v1926 = vsel %vm1787, %v1785, -inf
    %1927 = vmax.xlane.f32.xlu0 %v1926
    %v1928 = vpop.xlane.xlu0 %1927
    %v1929 = vsel %vm1787, %v1786, -inf
    %1930 = vmax.xlane.f32.xlu0 %v1929
    %v1931 = vpop.xlane.xlu0 %1930
    %v1932 = vsub.f32 %v1739, %v1790
    %v1933 = vsub.f32 %v1740, %v1793
    %v1934 = vsub.f32 %v1741, %v1796
    %v1935 = vsub.f32 %v1742, %v1799
    %v1936 = vsub.f32 %v1743, %v1802
    %v1937 = vsub.f32 %v1744, %v1805
    %v1938 = vsub.f32 %v1745, %v1808
    %v1939 = vsub.f32 %v1746, %v1811
    %v1940 = vsub.f32 %v1747, %v1814
    %v1941 = vsub.f32 %v1748, %v1817
    %v1942 = vsub.f32 %v1749, %v1820
    %v1943 = vsub.f32 %v1750, %v1823
    %v1944 = vsub.f32 %v1751, %v1826
    %v1945 = vsub.f32 %v1752, %v1829
    %v1946 = vsub.f32 %v1753, %v1832
    %v1947 = vsub.f32 %v1754, %v1835
    %v1948 = vsub.f32 %v1755, %v1838
    %v1949 = vsub.f32 %v1756, %v1841
    %v1950 = vsub.f32 %v1757, %v1844
    %v1951 = vsub.f32 %v1758, %v1847
    %v1952 = vsub.f32 %v1759, %v1850
    %v1953 = vsub.f32 %v1760, %v1853
    %v1954 = vsub.f32 %v1761, %v1856
    %v1955 = vsub.f32 %v1762, %v1859
    %v1956 = vsub.f32 %v1763, %v1862
    %v1957 = vsub.f32 %v1764, %v1865
    %v1958 = vsub.f32 %v1765, %v1868
    %v1959 = vsub.f32 %v1766, %v1871
    %v1960 = vsub.f32 %v1767, %v1874
    %v1961 = vsub.f32 %v1768, %v1877
    %v1962 = vsub.f32 %v1769, %v1880
    %v1963 = vsub.f32 %v1770, %v1883
    %v1964 = vsub.f32 %v1771, %v1886
    %v1965 = vsub.f32 %v1772, %v1889
    %v1966 = vsub.f32 %v1773, %v1892
    %v1967 = vsub.f32 %v1774, %v1895
    %v1968 = vsub.f32 %v1775, %v1898
    %v1969 = vsub.f32 %v1776, %v1901
    %v1970 = vsub.f32 %v1777, %v1904
    %v1971 = vsub.f32 %v1778, %v1907
    %v1972 = vsub.f32 %v1779, %v1910
    %v1973 = vsub.f32 %v1780, %v1913
    %v1974 = vsub.f32 %v1781, %v1916
    %v1975 = vsub.f32 %v1782, %v1919
    %v1976 = vsub.f32 %v1783, %v1922
    %v1977 = vsub.f32 %v1784, %v1925
    %v1978 = vsub.f32 %v1785, %v1928
    %v1979 = vsub.f32 %v1786, %v1931
    %v1980 = vmul.f32 %v1932, 1.442695
    %v1981 = vpow.pop %v1980
    %v1982 = vmul.f32 %v1933, 1.442695
    %v1983 = vpow.pop %v1982
    %v1984 = vmul.f32 %v1934, 1.442695
    %v1985 = vpow.pop %v1984
    %v1986 = vmul.f32 %v1935, 1.442695
    %v1987 = vpow.pop %v1986
    %v1988 = vmul.f32 %v1936, 1.442695
    %v1989 = vpow.pop %v1988
    %v1990 = vmul.f32 %v1937, 1.442695
    %v1991 = vpow.pop %v1990
    %v1992 = vmul.f32 %v1938, 1.442695
    %v1993 = vpow.pop %v1992
    %v1994 = vmul.f32 %v1939, 1.442695
    %v1995 = vpow.pop %v1994
    %v1996 = vmul.f32 %v1940, 1.442695
    %v1997 = vpow.pop %v1996
    %v1998 = vmul.f32 %v1941, 1.442695
    %v1999 = vpow.pop %v1998
    %v2000 = vmul.f32 %v1942, 1.442695
    %v2001 = vpow.pop %v2000
    %v2002 = vmul.f32 %v1943, 1.442695
    %v2003 = vpow.pop %v2002
    %v2004 = vmul.f32 %v1944, 1.442695
    %v2005 = vpow.pop %v2004
    %v2006 = vmul.f32 %v1945, 1.442695
    %v2007 = vpow.pop %v2006
    %v2008 = vmul.f32 %v1946, 1.442695
    %v2009 = vpow.pop %v2008
    %v2010 = vmul.f32 %v1947, 1.442695
    %v2011 = vpow.pop %v2010
    %v2012 = vmul.f32 %v1948, 1.442695
    %v2013 = vpow.pop %v2012
    %v2014 = vmul.f32 %v1949, 1.442695
    %v2015 = vpow.pop %v2014
    %v2016 = vmul.f32 %v1950, 1.442695
    %v2017 = vpow.pop %v2016
    %v2018 = vmul.f32 %v1951, 1.442695
    %v2019 = vpow.pop %v2018
    %v2020 = vmul.f32 %v1952, 1.442695
    %v2021 = vpow.pop %v2020
    %v2022 = vmul.f32 %v1953, 1.442695
    %v2023 = vpow.pop %v2022
    %v2024 = vmul.f32 %v1954, 1.442695
    %v2025 = vpow.pop %v2024
    %v2026 = vmul.f32 %v1955, 1.442695
    %v2027 = vpow.pop %v2026
    %v2028 = vmul.f32 %v1956, 1.442695
    %v2029 = vpow.pop %v2028
    %v2030 = vmul.f32 %v1957, 1.442695
    %v2031 = vpow.pop %v2030
    %v2032 = vmul.f32 %v1958, 1.442695
    %v2033 = vpow.pop %v2032
    %v2034 = vmul.f32 %v1959, 1.442695
    %v2035 = vpow.pop %v2034
    %v2036 = vmul.f32 %v1960, 1.442695
    %v2037 = vpow.pop %v2036
    %v2038 = vmul.f32 %v1961, 1.442695
    %v2039 = vpow.pop %v2038
    %v2040 = vmul.f32 %v1962, 1.442695
    %v2041 = vpow.pop %v2040
    %v2042 = vmul.f32 %v1963, 1.442695
    %v2043 = vpow.pop %v2042
    %v2044 = vmul.f32 %v1964, 1.442695
    %v2045 = vpow.pop %v2044
    %v2046 = vmul.f32 %v1965, 1.442695
    %v2047 = vpow.pop %v2046
    %v2048 = vmul.f32 %v1966, 1.442695
    %v2049 = vpow.pop %v2048
    %v2050 = vmul.f32 %v1967, 1.442695
    %v2051 = vpow.pop %v2050
    %v2052 = vmul.f32 %v1968, 1.442695
    %v2053 = vpow.pop %v2052
    %v2054 = vmul.f32 %v1969, 1.442695
    %v2055 = vpow.pop %v2054
    %v2056 = vmul.f32 %v1970, 1.442695
    %v2057 = vpow.pop %v2056
    %v2058 = vmul.f32 %v1971, 1.442695
    %v2059 = vpow.pop %v2058
    %v2060 = vmul.f32 %v1972, 1.442695
    %v2061 = vpow.pop %v2060
    %v2062 = vmul.f32 %v1973, 1.442695
    %v2063 = vpow.pop %v2062
    %v2064 = vmul.f32 %v1974, 1.442695
    %v2065 = vpow.pop %v2064
    %v2066 = vmul.f32 %v1975, 1.442695
    %v2067 = vpow.pop %v2066
    %v2068 = vmul.f32 %v1976, 1.442695
    %v2069 = vpow.pop %v2068
    %v2070 = vmul.f32 %v1977, 1.442695
    %v2071 = vpow.pop %v2070
    %v2072 = vmul.f32 %v1978, 1.442695
    %v2073 = vpow.pop %v2072
    %v2074 = vmul.f32 %v1979, 1.442695
    %v2075 = vpow.pop %v2074
    %v2076 = vsel %vm1787, %v1981, 0.0
    %2077 = vadd.xlane.f32.xlu0 %v2076
    %v2078 = vpop.xlane.xlu0 %2077
    %v2079 = vsel %vm1787, %v1983, 0.0
    %2080 = vadd.xlane.f32.xlu0 %v2079
    %v2081 = vpop.xlane.xlu0 %2080
    %v2082 = vsel %vm1787, %v1985, 0.0
    %2083 = vadd.xlane.f32.xlu0 %v2082
    %v2084 = vpop.xlane.xlu0 %2083
    %v2085 = vsel %vm1787, %v1987, 0.0
    %2086 = vadd.xlane.f32.xlu0 %v2085
    %v2087 = vpop.xlane.xlu0 %2086
    %v2088 = vsel %vm1787, %v1989, 0.0
    %2089 = vadd.xlane.f32.xlu0 %v2088
    %v2090 = vpop.xlane.xlu0 %2089
    %v2091 = vsel %vm1787, %v1991, 0.0
    %2092 = vadd.xlane.f32.xlu0 %v2091
    %v2093 = vpop.xlane.xlu0 %2092
    %v2094 = vsel %vm1787, %v1993, 0.0
    %2095 = vadd.xlane.f32.xlu0 %v2094
    %v2096 = vpop.xlane.xlu0 %2095
    %v2097 = vsel %vm1787, %v1995, 0.0
    %2098 = vadd.xlane.f32.xlu0 %v2097
    %v2099 = vpop.xlane.xlu0 %2098
    %v2100 = vsel %vm1787, %v1997, 0.0
    %2101 = vadd.xlane.f32.xlu0 %v2100
    %v2102 = vpop.xlane.xlu0 %2101
    %v2103 = vsel %vm1787, %v1999, 0.0
    %2104 = vadd.xlane.f32.xlu0 %v2103
    %v2105 = vpop.xlane.xlu0 %2104
    %v2106 = vsel %vm1787, %v2001, 0.0
    %2107 = vadd.xlane.f32.xlu0 %v2106
    %v2108 = vpop.xlane.xlu0 %2107
    %v2109 = vsel %vm1787, %v2003, 0.0
    %2110 = vadd.xlane.f32.xlu0 %v2109
    %v2111 = vpop.xlane.xlu0 %2110
    %v2112 = vsel %vm1787, %v2005, 0.0
    %2113 = vadd.xlane.f32.xlu0 %v2112
    %v2114 = vpop.xlane.xlu0 %2113
    %v2115 = vsel %vm1787, %v2007, 0.0
    %2116 = vadd.xlane.f32.xlu0 %v2115
    %v2117 = vpop.xlane.xlu0 %2116
    %v2118 = vsel %vm1787, %v2009, 0.0
    %2119 = vadd.xlane.f32.xlu0 %v2118
    %v2120 = vpop.xlane.xlu0 %2119
    %v2121 = vsel %vm1787, %v2011, 0.0
    %2122 = vadd.xlane.f32.xlu0 %v2121
    %v2123 = vpop.xlane.xlu0 %2122
    %v2124 = vsel %vm1787, %v2013, 0.0
    %2125 = vadd.xlane.f32.xlu0 %v2124
    %v2126 = vpop.xlane.xlu0 %2125
    %v2127 = vsel %vm1787, %v2015, 0.0
    %2128 = vadd.xlane.f32.xlu0 %v2127
    %v2129 = vpop.xlane.xlu0 %2128
    %v2130 = vsel %vm1787, %v2017, 0.0
    %2131 = vadd.xlane.f32.xlu0 %v2130
    %v2132 = vpop.xlane.xlu0 %2131
    %v2133 = vsel %vm1787, %v2019, 0.0
    %2134 = vadd.xlane.f32.xlu0 %v2133
    %v2135 = vpop.xlane.xlu0 %2134
    %v2136 = vsel %vm1787, %v2021, 0.0
    %2137 = vadd.xlane.f32.xlu0 %v2136
    %v2138 = vpop.xlane.xlu0 %2137
    %v2139 = vsel %vm1787, %v2023, 0.0
    %2140 = vadd.xlane.f32.xlu0 %v2139
    %v2141 = vpop.xlane.xlu0 %2140
    %v2142 = vsel %vm1787, %v2025, 0.0
    %2143 = vadd.xlane.f32.xlu0 %v2142
    %v2144 = vpop.xlane.xlu0 %2143
    %v2145 = vsel %vm1787, %v2027, 0.0
    %2146 = vadd.xlane.f32.xlu0 %v2145
    %v2147 = vpop.xlane.xlu0 %2146
    %v2148 = vsel %vm1787, %v2029, 0.0
    %2149 = vadd.xlane.f32.xlu0 %v2148
    %v2150 = vpop.xlane.xlu0 %2149
    %v2151 = vsel %vm1787, %v2031, 0.0
    %2152 = vadd.xlane.f32.xlu0 %v2151
    %v2153 = vpop.xlane.xlu0 %2152
    %v2154 = vsel %vm1787, %v2033, 0.0
    %2155 = vadd.xlane.f32.xlu0 %v2154
    %v2156 = vpop.xlane.xlu0 %2155
    %v2157 = vsel %vm1787, %v2035, 0.0
    %2158 = vadd.xlane.f32.xlu0 %v2157
    %v2159 = vpop.xlane.xlu0 %2158
    %v2160 = vsel %vm1787, %v2037, 0.0
    %2161 = vadd.xlane.f32.xlu0 %v2160
    %v2162 = vpop.xlane.xlu0 %2161
    %v2163 = vsel %vm1787, %v2039, 0.0
    %2164 = vadd.xlane.f32.xlu0 %v2163
    %v2165 = vpop.xlane.xlu0 %2164
    %v2166 = vsel %vm1787, %v2041, 0.0
    %2167 = vadd.xlane.f32.xlu0 %v2166
    %v2168 = vpop.xlane.xlu0 %2167
    %v2169 = vsel %vm1787, %v2043, 0.0
    %2170 = vadd.xlane.f32.xlu0 %v2169
    %v2171 = vpop.xlane.xlu0 %2170
    %v2172 = vsel %vm1787, %v2045, 0.0
    %2173 = vadd.xlane.f32.xlu0 %v2172
    %v2174 = vpop.xlane.xlu0 %2173
    %v2175 = vsel %vm1787, %v2047, 0.0
    %2176 = vadd.xlane.f32.xlu0 %v2175
    %v2177 = vpop.xlane.xlu0 %2176
    %v2178 = vsel %vm1787, %v2049, 0.0
    %2179 = vadd.xlane.f32.xlu0 %v2178
    %v2180 = vpop.xlane.xlu0 %2179
    %v2181 = vsel %vm1787, %v2051, 0.0
    %2182 = vadd.xlane.f32.xlu0 %v2181
    %v2183 = vpop.xlane.xlu0 %2182
    %v2184 = vsel %vm1787, %v2053, 0.0
    %2185 = vadd.xlane.f32.xlu0 %v2184
    %v2186 = vpop.xlane.xlu0 %2185
    %v2187 = vsel %vm1787, %v2055, 0.0
    %2188 = vadd.xlane.f32.xlu0 %v2187
    %v2189 = vpop.xlane.xlu0 %2188
    %v2190 = vsel %vm1787, %v2057, 0.0
    %2191 = vadd.xlane.f32.xlu0 %v2190
    %v2192 = vpop.xlane.xlu0 %2191
    %v2193 = vsel %vm1787, %v2059, 0.0
    %2194 = vadd.xlane.f32.xlu0 %v2193
    %v2195 = vpop.xlane.xlu0 %2194
    %v2196 = vsel %vm1787, %v2061, 0.0
    %2197 = vadd.xlane.f32.xlu0 %v2196
    %v2198 = vpop.xlane.xlu0 %2197
    %v2199 = vsel %vm1787, %v2063, 0.0
    %2200 = vadd.xlane.f32.xlu0 %v2199
    %v2201 = vpop.xlane.xlu0 %2200
    %v2202 = vsel %vm1787, %v2065, 0.0
    %2203 = vadd.xlane.f32.xlu0 %v2202
    %v2204 = vpop.xlane.xlu0 %2203
    %v2205 = vsel %vm1787, %v2067, 0.0
    %2206 = vadd.xlane.f32.xlu0 %v2205
    %v2207 = vpop.xlane.xlu0 %2206
    %v2208 = vsel %vm1787, %v2069, 0.0
    %2209 = vadd.xlane.f32.xlu0 %v2208
    %v2210 = vpop.xlane.xlu0 %2209
    %v2211 = vsel %vm1787, %v2071, 0.0
    %2212 = vadd.xlane.f32.xlu0 %v2211
    %v2213 = vpop.xlane.xlu0 %2212
    %v2214 = vsel %vm1787, %v2073, 0.0
    %2215 = vadd.xlane.f32.xlu0 %v2214
    %v2216 = vpop.xlane.xlu0 %2215
    %v2217 = vsel %vm1787, %v2075, 0.0
    %2218 = vadd.xlane.f32.xlu0 %v2217
    %v2219 = vpop.xlane.xlu0 %2218
    %v2220 = vrcp.pop %v2078
    %v2221 = vrcp.pop %v2081
    %v2222 = vrcp.pop %v2084
    %v2223 = vrcp.pop %v2087
    %v2224 = vrcp.pop %v2090
    %v2225 = vrcp.pop %v2093
    %v2226 = vrcp.pop %v2096
    %v2227 = vrcp.pop %v2099
    %v2228 = vrcp.pop %v2102
    %v2229 = vrcp.pop %v2105
    %v2230 = vrcp.pop %v2108
    %v2231 = vrcp.pop %v2111
    %v2232 = vrcp.pop %v2114
    %v2233 = vrcp.pop %v2117
    %v2234 = vrcp.pop %v2120
    %v2235 = vrcp.pop %v2123
    %v2236 = vrcp.pop %v2126
    %v2237 = vrcp.pop %v2129
    %v2238 = vrcp.pop %v2132
    %v2239 = vrcp.pop %v2135
    %v2240 = vrcp.pop %v2138
    %v2241 = vrcp.pop %v2141
    %v2242 = vrcp.pop %v2144
    %v2243 = vrcp.pop %v2147
    %v2244 = vrcp.pop %v2150
    %v2245 = vrcp.pop %v2153
    %v2246 = vrcp.pop %v2156
    %v2247 = vrcp.pop %v2159
    %v2248 = vrcp.pop %v2162
    %v2249 = vrcp.pop %v2165
    %v2250 = vrcp.pop %v2168
    %v2251 = vrcp.pop %v2171
    %v2252 = vrcp.pop %v2174
    %v2253 = vrcp.pop %v2177
    %v2254 = vrcp.pop %v2180
    %v2255 = vrcp.pop %v2183
    %v2256 = vrcp.pop %v2186
    %v2257 = vrcp.pop %v2189
    %v2258 = vrcp.pop %v2192
    %v2259 = vrcp.pop %v2195
    %v2260 = vrcp.pop %v2198
    %v2261 = vrcp.pop %v2201
    %v2262 = vrcp.pop %v2204
    %v2263 = vrcp.pop %v2207
    %v2264 = vrcp.pop %v2210
    %v2265 = vrcp.pop %v2213
    %v2266 = vrcp.pop %v2216
    %v2267 = vrcp.pop %v2219
    %v2268 = vmul.f32 %v1981, %v2220
    %v2269 = vmul.f32 %v1983, %v2221
    %v2270 = vmul.f32 %v1985, %v2222
    %v2271 = vmul.f32 %v1987, %v2223
    %v2272 = vmul.f32 %v1989, %v2224
    %v2273 = vmul.f32 %v1991, %v2225
    %v2274 = vmul.f32 %v1993, %v2226
    %v2275 = vmul.f32 %v1995, %v2227
    %v2276 = vmul.f32 %v1997, %v2228
    %v2277 = vmul.f32 %v1999, %v2229
    %v2278 = vmul.f32 %v2001, %v2230
    %v2279 = vmul.f32 %v2003, %v2231
    %v2280 = vmul.f32 %v2005, %v2232
    %v2281 = vmul.f32 %v2007, %v2233
    %v2282 = vmul.f32 %v2009, %v2234
    %v2283 = vmul.f32 %v2011, %v2235
    %v2284 = vmul.f32 %v2013, %v2236
    %v2285 = vmul.f32 %v2015, %v2237
    %v2286 = vmul.f32 %v2017, %v2238
    %v2287 = vmul.f32 %v2019, %v2239
    %v2288 = vmul.f32 %v2021, %v2240
    %v2289 = vmul.f32 %v2023, %v2241
    %v2290 = vmul.f32 %v2025, %v2242
    %v2291 = vmul.f32 %v2027, %v2243
    %v2292 = vmul.f32 %v2029, %v2244
    %v2293 = vmul.f32 %v2031, %v2245
    %v2294 = vmul.f32 %v2033, %v2246
    %v2295 = vmul.f32 %v2035, %v2247
    %v2296 = vmul.f32 %v2037, %v2248
    %v2297 = vmul.f32 %v2039, %v2249
    %v2298 = vmul.f32 %v2041, %v2250
    %v2299 = vmul.f32 %v2043, %v2251
    %v2300 = vmul.f32 %v2045, %v2252
    %v2301 = vmul.f32 %v2047, %v2253
    %v2302 = vmul.f32 %v2049, %v2254
    %v2303 = vmul.f32 %v2051, %v2255
    %v2304 = vmul.f32 %v2053, %v2256
    %v2305 = vmul.f32 %v2055, %v2257
    %v2306 = vmul.f32 %v2057, %v2258
    %v2307 = vmul.f32 %v2059, %v2259
    %v2308 = vmul.f32 %v2061, %v2260
    %v2309 = vmul.f32 %v2063, %v2261
    %v2310 = vmul.f32 %v2065, %v2262
    %v2311 = vmul.f32 %v2067, %v2263
    %v2312 = vmul.f32 %v2069, %v2264
    %v2313 = vmul.f32 %v2071, %v2265
    %v2314 = vmul.f32 %v2073, %v2266
    %v2315 = vmul.f32 %v2075, %v2267
    %v2316 = vpack.c.bf16 %v2269, %v2268
    %v2317 = vpack.c.bf16 %v2271, %v2270
    %v2318 = vpack.c.bf16 %v2273, %v2272
    %v2319 = vpack.c.bf16 %v2275, %v2274
    %v2320 = vpack.c.bf16 %v2277, %v2276
    %v2321 = vpack.c.bf16 %v2279, %v2278
    %v2322 = vpack.c.bf16 %v2281, %v2280
    %v2323 = vpack.c.bf16 %v2283, %v2282
    %v2324 = vpack.c.bf16 %v2285, %v2284
    %v2325 = vpack.c.bf16 %v2287, %v2286
    %v2326 = vpack.c.bf16 %v2289, %v2288
    %v2327 = vpack.c.bf16 %v2291, %v2290
    %v2328 = vpack.c.bf16 %v2293, %v2292
    %v2329 = vpack.c.bf16 %v2295, %v2294
    %v2330 = vpack.c.bf16 %v2297, %v2296
    %v2331 = vpack.c.bf16 %v2299, %v2298
    %v2332 = vpack.c.bf16 %v2301, %v2300
    %v2333 = vpack.c.bf16 %v2303, %v2302
    %v2334 = vpack.c.bf16 %v2305, %v2304
    %v2335 = vpack.c.bf16 %v2307, %v2306
    %v2336 = vpack.c.bf16 %v2309, %v2308
    %v2337 = vpack.c.bf16 %v2311, %v2310
    %v2338 = vpack.c.bf16 %v2313, %v2312
    %v2339 = vpack.c.bf16 %v2315, %v2314
    %v2341 = vsel %vm1787, %v2316, 0
    %v2344 = vsel %vm1787, %v2317, 0
    %v2347 = vsel %vm1787, %v2318, 0
    %2349 = vmatprep.subr.bf16.mxu0 0
    %2350 = vmatpush1.bf16.msra.mxu0 %v1123
    %2351 = vmatprep.subr.bf16.mxu0 0
    %2352 = vmatpush1.bf16.msra.mxu0 %v1126
    %2353 = vmatprep.subr.bf16.mxu0 0
    %2354 = vmatpush1.bf16.msra.mxu0 %v1129
    %2355 = vmatprep.subr.bf16.mxu0 0
    %2356 = vmatpush1.bf16.msra.mxu0 0
    %2357 = vmatprep.subr.bf16.mxu0 0
    %2358 = vmatpush1.bf16.msra.mxu0 0
    %2359 = vmatprep.subr.bf16.mxu0 0
    %2360 = vmatpush1.bf16.msra.mxu0 0
    %2361 = vmatprep.subr.bf16.mxu0 0
    %2362 = vmatpush1.bf16.msra.mxu0 0
    %2363 = vmatprep.subr.bf16.mxu0 0
    %2364 = vmatpush1.bf16.msra.mxu0 0
    %2365 = vmatprep.subr.bf16.mxu0 0
    %2366 = vmatpush1.bf16.msra.mxu0 0
    %2367 = vmatprep.subr.bf16.mxu0 0
    %2368 = vmatpush1.bf16.msra.mxu0 0
    %2369 = vmatprep.subr.bf16.mxu0 0
    %2370 = vmatpush1.bf16.msra.mxu0 0
    %2371 = vmatprep.subr.bf16.mxu0 0
    %2372 = vmatpush1.bf16.msra.mxu0 0
    %2373 = vmatprep.subr.bf16.mxu0 0
    %2374 = vmatpush1.bf16.msra.mxu0 0
    %2375 = vmatprep.subr.bf16.mxu0 0
    %2376 = vmatpush1.bf16.msra.mxu0 0
    %2377 = vmatprep.subr.bf16.mxu0 0
    %2378 = vmatpush1.bf16.msra.mxu0 0
    %2379 = vmatprep.subr.bf16.mxu0 0
    %2380 = vmatpush1.bf16.msra.mxu0 0
    %2381 = vmatprep.mubr.bf16.mxu0 0
    %2382 = vmatmul.mubr.bf16.gmra.mrb[0].mxu0 %v2341
    %v2383 = vpop.f32.mrb[0].mxu0
    %v2384 = vadd.f32 0.0, %v2383
    %v2385 = vpop.f32.mrb[0].mxu0
    %v2386 = vpop.f32.mrb[0].mxu0
    %v2387 = vadd.f32 0.0, %v2386
    %v2388 = vpop.f32.mrb[0].mxu0
    %2389 = vmatprep.mubr.bf16.mxu0 0
    %2390 = vmatmul.mubr.bf16.gmra.mrb[0].mxu0 %v2344
    %v2391 = vpop.f32.mrb[0].mxu0
    %v2392 = vadd.f32 0.0, %v2391
    %v2393 = vpop.f32.mrb[0].mxu0
    %v2394 = vpop.f32.mrb[0].mxu0
    %v2395 = vadd.f32 0.0, %v2394
    %v2396 = vpop.f32.mrb[0].mxu0
    %2397 = vmatprep.mubr.bf16.mxu0 0
    %2398 = vmatmul.mubr.bf16.gmra.mrb[0].mxu0 %v2347
    %v2399 = vpop.f32.mrb[0].mxu0
    %v2400 = vadd.f32 0.0, %v2399
    %v2401 = vpop.f32.mrb[0].mxu0
    %v2402 = vpop.f32.mrb[0].mxu0
    %v2403 = vadd.f32 0.0, %v2402
    %v2404 = vpop.f32.mrb[0].mxu0
    %2405 = vdwg.mxu0
    %v2407 = vsel %vm1787, %v2319, 0
    %v2410 = vsel %vm1787, %v2320, 0
    %v2413 = vsel %vm1787, %v2321, 0
    %2415 = vmatprep.subr.bf16.mxu0 0
    %2416 = vmatpush1.bf16.msra.mxu0 %v1132
    %2417 = vmatprep.subr.bf16.mxu0 0
    %2418 = vmatpush1.bf16.msra.mxu0 %v1135
    %2419 = vmatprep.subr.bf16.mxu0 0
    %2420 = vmatpush1.bf16.msra.mxu0 %v1138
    %2421 = vmatprep.subr.bf16.mxu0 0
    %2422 = vmatpush1.bf16.msra.mxu0 0
    %2423 = vmatprep.subr.bf16.mxu0 0
    %2424 = vmatpush1.bf16.msra.mxu0 0
    %2425 = vmatprep.subr.bf16.mxu0 0
    %2426 = vmatpush1.bf16.msra.mxu0 0
    %2427 = vmatprep.subr.bf16.mxu0 0
    %2428 = vmatpush1.bf16.msra.mxu0 0
    %2429 = vmatprep.subr.bf16.mxu0 0
    %2430 = vmatpush1.bf16.msra.mxu0 0
    %2431 = vmatprep.subr.bf16.mxu0 0
    %2432 = vmatpush1.bf16.msra.mxu0 0
    %2433 = vmatprep.subr.bf16.mxu0 0
    %2434 = vmatpush1.bf16.msra.mxu0 0
    %2435 = vmatprep.subr.bf16.mxu0 0
    %2436 = vmatpush1.bf16.msra.mxu0 0
    %2437 = vmatprep.subr.bf16.mxu0 0
    %2438 = vmatpush1.bf16.msra.mxu0 0
    %2439 = vmatprep.subr.bf16.mxu0 0
    %2440 = vmatpush1.bf16.msra.mxu0 0
    %2441 = vmatprep.subr.bf16.mxu0 0
    %2442 = vmatpush1.bf16.msra.mxu0 0
    %2443 = vmatprep.subr.bf16.mxu0 0
    %2444 = vmatpush1.bf16.msra.mxu0 0
    %2445 = vmatprep.subr.bf16.mxu0 0
    %2446 = vmatpush1.bf16.msra.mxu0 0
    %2447 = vmatprep.mubr.bf16.mxu0 0
    %2448 = vmatmul.mubr.bf16.gmra.mrb[0].mxu0 %v2407
    %v2449 = vpop.f32.mrb[0].mxu0
    %v2450 = vadd.f32 0.0, %v2449
    %v2451 = vpop.f32.mrb[0].mxu0
    %v2452 = vpop.f32.mrb[0].mxu0
    %v2453 = vadd.f32 0.0, %v2452
    %v2454 = vpop.f32.mrb[0].mxu0
    %2455 = vmatprep.mubr.bf16.mxu0 0
    %2456 = vmatmul.mubr.bf16.gmra.mrb[0].mxu0 %v2410
    %v2457 = vpop.f32.mrb[0].mxu0
    %v2458 = vadd.f32 0.0, %v2457
    %v2459 = vpop.f32.mrb[0].mxu0
    %v2460 = vpop.f32.mrb[0].mxu0
    %v2461 = vadd.f32 0.0, %v2460
    %v2462 = vpop.f32.mrb[0].mxu0
    %2463 = vmatprep.mubr.bf16.mxu0 0
    %2464 = vmatmul.mubr.bf16.gmra.mrb[0].mxu0 %v2413
    %v2465 = vpop.f32.mrb[0].mxu0
    %v2466 = vadd.f32 0.0, %v2465
    %v2467 = vpop.f32.mrb[0].mxu0
    %v2468 = vpop.f32.mrb[0].mxu0
    %v2469 = vadd.f32 0.0, %v2468
    %v2470 = vpop.f32.mrb[0].mxu0
    %2471 = vdwg.mxu0
    %v2473 = vsel %vm1787, %v2322, 0
    %v2476 = vsel %vm1787, %v2323, 0
    %v2479 = vsel %vm1787, %v2324, 0
    %2481 = vmatprep.subr.bf16.mxu0 0
    %2482 = vmatpush1.bf16.msra.mxu0 %v1123
    %2483 = vmatprep.subr.bf16.mxu0 0
    %2484 = vmatpush1.bf16.msra.mxu0 %v1126
    %2485 = vmatprep.subr.bf16.mxu0 0
    %2486 = vmatpush1.bf16.msra.mxu0 %v1129
    %2487 = vmatprep.subr.bf16.mxu0 0
    %2488 = vmatpush1.bf16.msra.mxu0 0
    %2489 = vmatprep.subr.bf16.mxu0 0
    %2490 = vmatpush1.bf16.msra.mxu0 0
    %2491 = vmatprep.subr.bf16.mxu0 0
    %2492 = vmatpush1.bf16.msra.mxu0 0
    %2493 = vmatprep.subr.bf16.mxu0 0
    %2494 = vmatpush1.bf16.msra.mxu0 0
    %2495 = vmatprep.subr.bf16.mxu0 0
    %2496 = vmatpush1.bf16.msra.mxu0 0
    %2497 = vmatprep.subr.bf16.mxu0 0
    %2498 = vmatpush1.bf16.msra.mxu0 0
    %2499 = vmatprep.subr.bf16.mxu0 0
    %2500 = vmatpush1.bf16.msra.mxu0 0
    %2501 = vmatprep.subr.bf16.mxu0 0
    %2502 = vmatpush1.bf16.msra.mxu0 0
    %2503 = vmatprep.subr.bf16.mxu0 0
    %2504 = vmatpush1.bf16.msra.mxu0 0
    %2505 = vmatprep.subr.bf16.mxu0 0
    %2506 = vmatpush1.bf16.msra.mxu0 0
    %2507 = vmatprep.subr.bf16.mxu0 0
    %2508 = vmatpush1.bf16.msra.mxu0 0
    %2509 = vmatprep.subr.bf16.mxu0 0
    %2510 = vmatpush1.bf16.msra.mxu0 0
    %2511 = vmatprep.subr.bf16.mxu0 0
    %2512 = vmatpush1.bf16.msra.mxu0 0
    %2513 = vmatprep.mubr.bf16.mxu0 0
    %2514 = vmatmul.mubr.bf16.gmra.mrb[0].mxu0 %v2473
    %v2515 = vpop.f32.mrb[0].mxu0
    %v2516 = vadd.f32 0.0, %v2515
    %v2517 = vpop.f32.mrb[0].mxu0
    %v2518 = vpop.f32.mrb[0].mxu0
    %v2519 = vadd.f32 0.0, %v2518
    %v2520 = vpop.f32.mrb[0].mxu0
    %2521 = vmatprep.mubr.bf16.mxu0 0
    %2522 = vmatmul.mubr.bf16.gmra.mrb[0].mxu0 %v2476
    %v2523 = vpop.f32.mrb[0].mxu0
    %v2524 = vadd.f32 0.0, %v2523
    %v2525 = vpop.f32.mrb[0].mxu0
    %v2526 = vpop.f32.mrb[0].mxu0
    %v2527 = vadd.f32 0.0, %v2526
    %v2528 = vpop.f32.mrb[0].mxu0
    %2529 = vmatprep.mubr.bf16.mxu0 0
    %2530 = vmatmul.mubr.bf16.gmra.mrb[0].mxu0 %v2479
    %v2531 = vpop.f32.mrb[0].mxu0
    %v2532 = vadd.f32 0.0, %v2531
    %v2533 = vpop.f32.mrb[0].mxu0
    %v2534 = vpop.f32.mrb[0].mxu0
    %v2535 = vadd.f32 0.0, %v2534
    %v2536 = vpop.f32.mrb[0].mxu0
    %2537 = vdwg.mxu0
    %v2539 = vsel %vm1787, %v2325, 0
    %v2542 = vsel %vm1787, %v2326, 0
    %v2545 = vsel %vm1787, %v2327, 0
    %2547 = vmatprep.subr.bf16.mxu0 0
    %2548 = vmatpush1.bf16.msra.mxu0 %v1132
    %2549 = vmatprep.subr.bf16.mxu0 0
    %2550 = vmatpush1.bf16.msra.mxu0 %v1135
    %2551 = vmatprep.subr.bf16.mxu0 0
    %2552 = vmatpush1.bf16.msra.mxu0 %v1138
    %2553 = vmatprep.subr.bf16.mxu0 0
    %2554 = vmatpush1.bf16.msra.mxu0 0
    %2555 = vmatprep.subr.bf16.mxu0 0
    %2556 = vmatpush1.bf16.msra.mxu0 0
    %2557 = vmatprep.subr.bf16.mxu0 0
    %2558 = vmatpush1.bf16.msra.mxu0 0
    %2559 = vmatprep.subr.bf16.mxu0 0
    %2560 = vmatpush1.bf16.msra.mxu0 0
    %2561 = vmatprep.subr.bf16.mxu0 0
    %2562 = vmatpush1.bf16.msra.mxu0 0
    %2563 = vmatprep.subr.bf16.mxu0 0
    %2564 = vmatpush1.bf16.msra.mxu0 0
    %2565 = vmatprep.subr.bf16.mxu0 0
    %2566 = vmatpush1.bf16.msra.mxu0 0
    %2567 = vmatprep.subr.bf16.mxu0 0
    %2568 = vmatpush1.bf16.msra.mxu0 0
    %2569 = vmatprep.subr.bf16.mxu0 0
    %2570 = vmatpush1.bf16.msra.mxu0 0
    %2571 = vmatprep.subr.bf16.mxu0 0
    %2572 = vmatpush1.bf16.msra.mxu0 0
    %2573 = vmatprep.subr.bf16.mxu0 0
    %2574 = vmatpush1.bf16.msra.mxu0 0
    %2575 = vmatprep.subr.bf16.mxu0 0
    %2576 = vmatpush1.bf16.msra.mxu0 0
    %2577 = vmatprep.subr.bf16.mxu0 0
    %2578 = vmatpush1.bf16.msra.mxu0 0
    %2579 = vmatprep.mubr.bf16.mxu0 0
    %2580 = vmatmul.mubr.bf16.gmra.mrb[0].mxu0 %v2539
    %v2581 = vpop.f32.mrb[0].mxu0
    %v2582 = vadd.f32 0.0, %v2581
    %v2583 = vpop.f32.mrb[0].mxu0
    %v2584 = vpop.f32.mrb[0].mxu0
    %v2585 = vadd.f32 0.0, %v2584
    %v2586 = vpop.f32.mrb[0].mxu0
    %2587 = vmatprep.mubr.bf16.mxu0 0
    %2588 = vmatmul.mubr.bf16.gmra.mrb[0].mxu0 %v2542
    %v2589 = vpop.f32.mrb[0].mxu0
    %v2590 = vadd.f32 0.0, %v2589
    %v2591 = vpop.f32.mrb[0].mxu0
    %v2592 = vpop.f32.mrb[0].mxu0
    %v2593 = vadd.f32 0.0, %v2592
    %v2594 = vpop.f32.mrb[0].mxu0
    %2595 = vmatprep.mubr.bf16.mxu0 0
    %2596 = vmatmul.mubr.bf16.gmra.mrb[0].mxu0 %v2545
    %v2597 = vpop.f32.mrb[0].mxu0
    %v2598 = vadd.f32 0.0, %v2597
    %v2599 = vpop.f32.mrb[0].mxu0
    %v2600 = vpop.f32.mrb[0].mxu0
    %v2601 = vadd.f32 0.0, %v2600
    %v2602 = vpop.f32.mrb[0].mxu0
    %2603 = vdwg.mxu0
    %v2605 = vsel %vm1787, %v2328, 0
    %v2608 = vsel %vm1787, %v2329, 0
    %v2611 = vsel %vm1787, %v2330, 0
    %2613 = vmatprep.subr.bf16.mxu0 0
    %2614 = vmatpush1.bf16.msra.mxu0 %v1123
    %2615 = vmatprep.subr.bf16.mxu0 0
    %2616 = vmatpush1.bf16.msra.mxu0 %v1126
    %2617 = vmatprep.subr.bf16.mxu0 0
    %2618 = vmatpush1.bf16.msra.mxu0 %v1129
    %2619 = vmatprep.subr.bf16.mxu0 0
    %2620 = vmatpush1.bf16.msra.mxu0 0
    %2621 = vmatprep.subr.bf16.mxu0 0
    %2622 = vmatpush1.bf16.msra.mxu0 0
    %2623 = vmatprep.subr.bf16.mxu0 0
    %2624 = vmatpush1.bf16.msra.mxu0 0
    %2625 = vmatprep.subr.bf16.mxu0 0
    %2626 = vmatpush1.bf16.msra.mxu0 0
    %2627 = vmatprep.subr.bf16.mxu0 0
    %2628 = vmatpush1.bf16.msra.mxu0 0
    %2629 = vmatprep.subr.bf16.mxu0 0
    %2630 = vmatpush1.bf16.msra.mxu0 0
    %2631 = vmatprep.subr.bf16.mxu0 0
    %2632 = vmatpush1.bf16.msra.mxu0 0
    %2633 = vmatprep.subr.bf16.mxu0 0
    %2634 = vmatpush1.bf16.msra.mxu0 0
    %2635 = vmatprep.subr.bf16.mxu0 0
    %2636 = vmatpush1.bf16.msra.mxu0 0
    %2637 = vmatprep.subr.bf16.mxu0 0
    %2638 = vmatpush1.bf16.msra.mxu0 0
    %2639 = vmatprep.subr.bf16.mxu0 0
    %2640 = vmatpush1.bf16.msra.mxu0 0
    %2641 = vmatprep.subr.bf16.mxu0 0
    %2642 = vmatpush1.bf16.msra.mxu0 0
    %2643 = vmatprep.subr.bf16.mxu0 0
    %2644 = vmatpush1.bf16.msra.mxu0 0
    %2645 = vmatprep.mubr.bf16.mxu0 0
    %2646 = vmatmul.mubr.bf16.gmra.mrb[0].mxu0 %v2605
    %v2647 = vpop.f32.mrb[0].mxu0
    %v2648 = vadd.f32 0.0, %v2647
    %v2649 = vpop.f32.mrb[0].mxu0
    %v2650 = vpop.f32.mrb[0].mxu0
    %v2651 = vadd.f32 0.0, %v2650
    %v2652 = vpop.f32.mrb[0].mxu0
    %2653 = vmatprep.mubr.bf16.mxu0 0
    %2654 = vmatmul.mubr.bf16.gmra.mrb[0].mxu0 %v2608
    %v2655 = vpop.f32.mrb[0].mxu0
    %v2656 = vadd.f32 0.0, %v2655
    %v2657 = vpop.f32.mrb[0].mxu0
    %v2658 = vpop.f32.mrb[0].mxu0
    %v2659 = vadd.f32 0.0, %v2658
    %v2660 = vpop.f32.mrb[0].mxu0
    %2661 = vmatprep.mubr.bf16.mxu0 0
    %2662 = vmatmul.mubr.bf16.gmra.mrb[0].mxu0 %v2611
    %v2663 = vpop.f32.mrb[0].mxu0
    %v2664 = vadd.f32 0.0, %v2663
    %v2665 = vpop.f32.mrb[0].mxu0
    %v2666 = vpop.f32.mrb[0].mxu0
    %v2667 = vadd.f32 0.0, %v2666
    %v2668 = vpop.f32.mrb[0].mxu0
    %2669 = vdwg.mxu0
    %v2671 = vsel %vm1787, %v2331, 0
    %v2674 = vsel %vm1787, %v2332, 0
    %v2677 = vsel %vm1787, %v2333, 0
    %2679 = vmatprep.subr.bf16.mxu0 0
    %2680 = vmatpush1.bf16.msra.mxu0 %v1132
    %2681 = vmatprep.subr.bf16.mxu0 0
    %2682 = vmatpush1.bf16.msra.mxu0 %v1135
    %2683 = vmatprep.subr.bf16.mxu0 0
    %2684 = vmatpush1.bf16.msra.mxu0 %v1138
    %2685 = vmatprep.subr.bf16.mxu0 0
    %2686 = vmatpush1.bf16.msra.mxu0 0
    %2687 = vmatprep.subr.bf16.mxu0 0
    %2688 = vmatpush1.bf16.msra.mxu0 0
    %2689 = vmatprep.subr.bf16.mxu0 0
    %2690 = vmatpush1.bf16.msra.mxu0 0
    %2691 = vmatprep.subr.bf16.mxu0 0
    %2692 = vmatpush1.bf16.msra.mxu0 0
    %2693 = vmatprep.subr.bf16.mxu0 0
    %2694 = vmatpush1.bf16.msra.mxu0 0
    %2695 = vmatprep.subr.bf16.mxu0 0
    %2696 = vmatpush1.bf16.msra.mxu0 0
    %2697 = vmatprep.subr.bf16.mxu0 0
    %2698 = vmatpush1.bf16.msra.mxu0 0
    %2699 = vmatprep.subr.bf16.mxu0 0
    %2700 = vmatpush1.bf16.msra.mxu0 0
    %2701 = vmatprep.subr.bf16.mxu0 0
    %2702 = vmatpush1.bf16.msra.mxu0 0
    %2703 = vmatprep.subr.bf16.mxu0 0
    %2704 = vmatpush1.bf16.msra.mxu0 0
    %2705 = vmatprep.subr.bf16.mxu0 0
    %2706 = vmatpush1.bf16.msra.mxu0 0
    %2707 = vmatprep.subr.bf16.mxu0 0
    %2708 = vmatpush1.bf16.msra.mxu0 0
    %2709 = vmatprep.subr.bf16.mxu0 0
    %2710 = vmatpush1.bf16.msra.mxu0 0
    %2711 = vmatprep.mubr.bf16.mxu0 0
    %2712 = vmatmul.mubr.bf16.gmra.mrb[0].mxu0 %v2671
    %v2713 = vpop.f32.mrb[0].mxu0
    %v2714 = vadd.f32 0.0, %v2713
    %v2715 = vpop.f32.mrb[0].mxu0
    %v2716 = vpop.f32.mrb[0].mxu0
    %v2717 = vadd.f32 0.0, %v2716
    %v2718 = vpop.f32.mrb[0].mxu0
    %2719 = vmatprep.mubr.bf16.mxu0 0
    %2720 = vmatmul.mubr.bf16.gmra.mrb[0].mxu0 %v2674
    %v2721 = vpop.f32.mrb[0].mxu0
    %v2722 = vadd.f32 0.0, %v2721
    %v2723 = vpop.f32.mrb[0].mxu0
    %v2724 = vpop.f32.mrb[0].mxu0
    %v2725 = vadd.f32 0.0, %v2724
    %v2726 = vpop.f32.mrb[0].mxu0
    %2727 = vmatprep.mubr.bf16.mxu0 0
    %2728 = vmatmul.mubr.bf16.gmra.mrb[0].mxu0 %v2677
    %v2729 = vpop.f32.mrb[0].mxu0
    %v2730 = vadd.f32 0.0, %v2729
    %v2731 = vpop.f32.mrb[0].mxu0
    %v2732 = vpop.f32.mrb[0].mxu0
    %v2733 = vadd.f32 0.0, %v2732
    %v2734 = vpop.f32.mrb[0].mxu0
    %2735 = vdwg.mxu0
    %v2737 = vsel %vm1787, %v2334, 0
    %v2740 = vsel %vm1787, %v2335, 0
    %v2743 = vsel %vm1787, %v2336, 0
    %2745 = vmatprep.subr.bf16.mxu0 0
    %2746 = vmatpush1.bf16.msra.mxu0 %v1123
    %2747 = vmatprep.subr.bf16.mxu0 0
    %2748 = vmatpush1.bf16.msra.mxu0 %v1126
    %2749 = vmatprep.subr.bf16.mxu0 0
    %2750 = vmatpush1.bf16.msra.mxu0 %v1129
    %2751 = vmatprep.subr.bf16.mxu0 0
    %2752 = vmatpush1.bf16.msra.mxu0 0
    %2753 = vmatprep.subr.bf16.mxu0 0
    %2754 = vmatpush1.bf16.msra.mxu0 0
    %2755 = vmatprep.subr.bf16.mxu0 0
    %2756 = vmatpush1.bf16.msra.mxu0 0
    %2757 = vmatprep.subr.bf16.mxu0 0
    %2758 = vmatpush1.bf16.msra.mxu0 0
    %2759 = vmatprep.subr.bf16.mxu0 0
    %2760 = vmatpush1.bf16.msra.mxu0 0
    %2761 = vmatprep.subr.bf16.mxu0 0
    %2762 = vmatpush1.bf16.msra.mxu0 0
    %2763 = vmatprep.subr.bf16.mxu0 0
    %2764 = vmatpush1.bf16.msra.mxu0 0
    %2765 = vmatprep.subr.bf16.mxu0 0
    %2766 = vmatpush1.bf16.msra.mxu0 0
    %2767 = vmatprep.subr.bf16.mxu0 0
    %2768 = vmatpush1.bf16.msra.mxu0 0
    %2769 = vmatprep.subr.bf16.mxu0 0
    %2770 = vmatpush1.bf16.msra.mxu0 0
    %2771 = vmatprep.subr.bf16.mxu0 0
    %2772 = vmatpush1.bf16.msra.mxu0 0
    %2773 = vmatprep.subr.bf16.mxu0 0
    %2774 = vmatpush1.bf16.msra.mxu0 0
    %2775 = vmatprep.subr.bf16.mxu0 0
    %2776 = vmatpush1.bf16.msra.mxu0 0
    %2777 = vmatprep.mubr.bf16.mxu0 0
    %2778 = vmatmul.mubr.bf16.gmra.mrb[0].mxu0 %v2737
    %v2779 = vpop.f32.mrb[0].mxu0
    %v2780 = vadd.f32 0.0, %v2779
    %v2781 = vpop.f32.mrb[0].mxu0
    %v2782 = vpop.f32.mrb[0].mxu0
    %v2783 = vadd.f32 0.0, %v2782
    %v2784 = vpop.f32.mrb[0].mxu0
    %2785 = vmatprep.mubr.bf16.mxu0 0
    %2786 = vmatmul.mubr.bf16.gmra.mrb[0].mxu0 %v2740
    %v2787 = vpop.f32.mrb[0].mxu0
    %v2788 = vadd.f32 0.0, %v2787
    %v2789 = vpop.f32.mrb[0].mxu0
    %v2790 = vpop.f32.mrb[0].mxu0
    %v2791 = vadd.f32 0.0, %v2790
    %v2792 = vpop.f32.mrb[0].mxu0
    %2793 = vmatprep.mubr.bf16.mxu0 0
    %2794 = vmatmul.mubr.bf16.gmra.mrb[0].mxu0 %v2743
    %v2795 = vpop.f32.mrb[0].mxu0
    %v2796 = vadd.f32 0.0, %v2795
    %v2797 = vpop.f32.mrb[0].mxu0
    %v2798 = vpop.f32.mrb[0].mxu0
    %v2799 = vadd.f32 0.0, %v2798
    %v2800 = vpop.f32.mrb[0].mxu0
    %2801 = vdwg.mxu0
    %v2803 = vsel %vm1787, %v2337, 0
    %v2806 = vsel %vm1787, %v2338, 0
    %v2809 = vsel %vm1787, %v2339, 0
    %2811 = vmatprep.subr.bf16.mxu0 0
    %2812 = vmatpush1.bf16.msra.mxu0 %v1132
    %2813 = vmatprep.subr.bf16.mxu0 0
    %2814 = vmatpush1.bf16.msra.mxu0 %v1135
    %2815 = vmatprep.subr.bf16.mxu0 0
    %2816 = vmatpush1.bf16.msra.mxu0 %v1138
    %2817 = vmatprep.subr.bf16.mxu0 0
    %2818 = vmatpush1.bf16.msra.mxu0 0
    %2819 = vmatprep.subr.bf16.mxu0 0
    %2820 = vmatpush1.bf16.msra.mxu0 0
    %2821 = vmatprep.subr.bf16.mxu0 0
    %2822 = vmatpush1.bf16.msra.mxu0 0
    %2823 = vmatprep.subr.bf16.mxu0 0
    %2824 = vmatpush1.bf16.msra.mxu0 0
    %2825 = vmatprep.subr.bf16.mxu0 0
    %2826 = vmatpush1.bf16.msra.mxu0 0
    %2827 = vmatprep.subr.bf16.mxu0 0
    %2828 = vmatpush1.bf16.msra.mxu0 0
    %2829 = vmatprep.subr.bf16.mxu0 0
    %2830 = vmatpush1.bf16.msra.mxu0 0
    %2831 = vmatprep.subr.bf16.mxu0 0
    %2832 = vmatpush1.bf16.msra.mxu0 0
    %2833 = vmatprep.subr.bf16.mxu0 0
    %2834 = vmatpush1.bf16.msra.mxu0 0
    %2835 = vmatprep.subr.bf16.mxu0 0
    %2836 = vmatpush1.bf16.msra.mxu0 0
    %2837 = vmatprep.subr.bf16.mxu0 0
    %2838 = vmatpush1.bf16.msra.mxu0 0
    %2839 = vmatprep.subr.bf16.mxu0 0
    %2840 = vmatpush1.bf16.msra.mxu0 0
    %2841 = vmatprep.subr.bf16.mxu0 0
    %2842 = vmatpush1.bf16.msra.mxu0 0
    %2843 = vmatprep.mubr.bf16.mxu0 0
    %2844 = vmatmul.mubr.bf16.gmra.mrb[0].mxu0 %v2803
    %v2845 = vpop.f32.mrb[0].mxu0
    %v2846 = vadd.f32 0.0, %v2845
    %v2847 = vpop.f32.mrb[0].mxu0
    %v2848 = vpop.f32.mrb[0].mxu0
    %v2849 = vadd.f32 0.0, %v2848
    %v2850 = vpop.f32.mrb[0].mxu0
    %2851 = vmatprep.mubr.bf16.mxu0 0
    %2852 = vmatmul.mubr.bf16.gmra.mrb[0].mxu0 %v2806
    %v2853 = vpop.f32.mrb[0].mxu0
    %v2854 = vadd.f32 0.0, %v2853
    %v2855 = vpop.f32.mrb[0].mxu0
    %v2856 = vpop.f32.mrb[0].mxu0
    %v2857 = vadd.f32 0.0, %v2856
    %v2858 = vpop.f32.mrb[0].mxu0
    %2859 = vmatprep.mubr.bf16.mxu0 0
    %2860 = vmatmul.mubr.bf16.gmra.mrb[0].mxu0 %v2809
    %v2861 = vpop.f32.mrb[0].mxu0
    %v2862 = vadd.f32 0.0, %v2861
    %v2863 = vpop.f32.mrb[0].mxu0
    %v2864 = vpop.f32.mrb[0].mxu0
    %v2865 = vadd.f32 0.0, %v2864
    %v2866 = vpop.f32.mrb[0].mxu0
    %2867 = vdwg.mxu0
    %v2868 = vlaneseq
    %v2869 = vshrl.u32 %v2868, 7
    %v2870 = vsub.s32 0, %v2869
    %v2871 = vrot.slane %v618, %v2870
    %v2872 = vlaneseq
    %v2873 = vshrl.u32 %v2872, 7
    %v2874 = vsub.s32 0, %v2873
    %v2875 = vrot.slane %v623, %v2874
    %v2876 = vlaneseq
    %v2877 = vshrl.u32 %v2876, 7
    %v2878 = vsub.s32 0, %v2877
    %v2879 = vrot.slane %v628, %v2878
    %v2880 = vlaneseq
    %v2881 = vshrl.u32 %v2880, 7
    %v2882 = vsub.s32 0, %v2881
    %v2883 = vrot.slane %v633, %v2882
    %v2884 = vmul.f32 %v2384, %v2871
    %v2885 = vmul.f32 %v2387, %v2871
    %v2886 = vmul.f32 %v2392, %v2871
    %v2887 = vmul.f32 %v2395, %v2871
    %v2888 = vmul.f32 %v2400, %v2871
    %v2889 = vmul.f32 %v2403, %v2871
    %v2890 = vmul.f32 %v2450, %v2871
    %v2891 = vmul.f32 %v2453, %v2871
    %v2892 = vmul.f32 %v2458, %v2871
    %v2893 = vmul.f32 %v2461, %v2871
    %v2894 = vmul.f32 %v2466, %v2871
    %v2895 = vmul.f32 %v2469, %v2871
    %v2896 = vmul.f32 %v2516, %v2875
    %v2897 = vmul.f32 %v2519, %v2875
    %v2898 = vmul.f32 %v2524, %v2875
    %v2899 = vmul.f32 %v2527, %v2875
    %v2900 = vmul.f32 %v2532, %v2875
    %v2901 = vmul.f32 %v2535, %v2875
    %v2902 = vmul.f32 %v2582, %v2875
    %v2903 = vmul.f32 %v2585, %v2875
    %v2904 = vmul.f32 %v2590, %v2875
    %v2905 = vmul.f32 %v2593, %v2875
    %v2906 = vmul.f32 %v2598, %v2875
    %v2907 = vmul.f32 %v2601, %v2875
    %v2908 = vmul.f32 %v2648, %v2879
    %v2909 = vmul.f32 %v2651, %v2879
    %v2910 = vmul.f32 %v2656, %v2879
    %v2911 = vmul.f32 %v2659, %v2879
    %v2912 = vmul.f32 %v2664, %v2879
    %v2913 = vmul.f32 %v2667, %v2879
    %v2914 = vmul.f32 %v2714, %v2879
    %v2915 = vmul.f32 %v2717, %v2879
    %v2916 = vmul.f32 %v2722, %v2879
    %v2917 = vmul.f32 %v2725, %v2879
    %v2918 = vmul.f32 %v2730, %v2879
    %v2919 = vmul.f32 %v2733, %v2879
    %v2920 = vmul.f32 %v2780, %v2883
    %v2921 = vmul.f32 %v2783, %v2883
    %v2922 = vmul.f32 %v2788, %v2883
    %v2923 = vmul.f32 %v2791, %v2883
    %v2924 = vmul.f32 %v2796, %v2883
    %v2925 = vmul.f32 %v2799, %v2883
    %v2926 = vmul.f32 %v2846, %v2883
    %v2927 = vmul.f32 %v2849, %v2883
    %v2928 = vmul.f32 %v2854, %v2883
    %v2929 = vmul.f32 %v2857, %v2883
    %v2930 = vmul.f32 %v2862, %v2883
    %v2931 = vmul.f32 %v2865, %v2883
    %v2932 = vadd.f32 %v2884, %v2896
    %v2933 = vadd.f32 %v2885, %v2897
    %v2934 = vadd.f32 %v2886, %v2898
    %v2935 = vadd.f32 %v2887, %v2899
    %v2936 = vadd.f32 %v2888, %v2900
    %v2937 = vadd.f32 %v2889, %v2901
    %v2938 = vadd.f32 %v2932, %v2908
    %v2939 = vadd.f32 %v2933, %v2909
    %v2940 = vadd.f32 %v2934, %v2910
    %v2941 = vadd.f32 %v2935, %v2911
    %v2942 = vadd.f32 %v2936, %v2912
    %v2943 = vadd.f32 %v2937, %v2913
    %v2944 = vadd.f32 %v2938, %v2920
    %v2945 = vadd.f32 %v2939, %v2921
    %v2946 = vadd.f32 %v2940, %v2922
    %v2947 = vadd.f32 %v2941, %v2923
    %v2948 = vadd.f32 %v2942, %v2924
    %v2949 = vadd.f32 %v2943, %v2925
    %v2950 = vadd.f32 %v2890, %v2902
    %v2951 = vadd.f32 %v2891, %v2903
    %v2952 = vadd.f32 %v2892, %v2904
    %v2953 = vadd.f32 %v2893, %v2905
    %v2954 = vadd.f32 %v2894, %v2906
    %v2955 = vadd.f32 %v2895, %v2907
    %v2956 = vadd.f32 %v2950, %v2914
    %v2957 = vadd.f32 %v2951, %v2915
    %v2958 = vadd.f32 %v2952, %v2916
    %v2959 = vadd.f32 %v2953, %v2917
    %v2960 = vadd.f32 %v2954, %v2918
    %v2961 = vadd.f32 %v2955, %v2919
    %v2962 = vadd.f32 %v2956, %v2926
    %v2963 = vadd.f32 %v2957, %v2927
    %v2964 = vadd.f32 %v2958, %v2928
    %v2965 = vadd.f32 %v2959, %v2929
    %v2966 = vadd.f32 %v2960, %v2930
    %v2967 = vadd.f32 %v2961, %v2931
    %v2968 = vpack.c.bf16 %v2945, %v2944
    %v2969 = vpack.c.bf16 %v2947, %v2946
    %v2970 = vpack.c.bf16 %v2949, %v2948
    %v2971 = vpack.c.bf16 %v2963, %v2962
    %v2972 = vpack.c.bf16 %v2965, %v2964
    %v2973 = vpack.c.bf16 %v2967, %v2966
    %v2974 = vld [vmem:[%s4] sm:$0xf]
    %v2975 = vld [vmem:[%s4 + $0x4] sm:$0xf]
    %v2976 = vld [vmem:[%s4 + $0x8] sm:$0xf]
    %v2977 = vld [vmem:[%s4 + $0xc] sm:$0xf]
    %v2978 = vld [vmem:[%s4 + $0x10] sm:$0xf]
    %v2979 = vld [vmem:[%s4 + $0x14] sm:$0xf]
    %v2980 = vld [vmem:[%s4 + $0x18] sm:$0xf]
    %v2981 = vld [vmem:[%s4 + $0x1c] sm:$0xf]
    %v2982 = vlaneseq
    %v2983 = vshrl.u32 %v2982, 7
    %v2984 = vsub.s32 3, %v2983
    %v2985 = vrot.slane %v638, %v2984
    %v2994 = vunpack.c.l.b16 %v2974
    %v2995 = vunpack.c.l.b16 %v2975
    %v2996 = vunpack.c.l.b16 %v2976
    %v2997 = vunpack.c.l.b16 %v2977
    %v2998 = vunpack.c.l.b16 %v2978
    %v2999 = vunpack.c.l.b16 %v2979
    %v3000 = vunpack.c.l.b16 %v2980
    %v3001 = vunpack.c.l.b16 %v2981
    %v3002 = vpack.c.b16 %v2995, %v2994
    %v3003 = vpack.c.b16 %v2997, %v2996
    %v3004 = vpack.c.b16 %v2999, %v2998
    %v3005 = vpack.c.b16 %v3001, %v3000
    %v3011 = vsel %vm641, %v2968, 0
    %v3014 = vsel %vm641, %v2969, 0
    %v3017 = vsel %vm641, %v2970, 0
    %v3020 = vsel %vm641, %v2971, 0
    %v3023 = vsel %vm641, %v2972, 0
    %v3026 = vsel %vm641, %v2973, 0
    %3028 = vmatprep.subr.bf16.mxu0 0
    %3029 = vmatpush1.bf16.msra.mxu0 %v3002
    %3030 = vmatprep.subr.bf16.mxu0 0
    %3031 = vmatpush1.bf16.msra.mxu0 %v3003
    %3032 = vmatprep.subr.bf16.mxu0 0
    %3033 = vmatpush1.bf16.msra.mxu0 %v3004
    %3034 = vmatprep.subr.bf16.mxu0 0
    %3035 = vmatpush1.bf16.msra.mxu0 %v3005
    %3036 = vmatprep.subr.bf16.mxu0 0
    %3037 = vmatpush1.bf16.msra.mxu0 0
    %3038 = vmatprep.subr.bf16.mxu0 0
    %3039 = vmatpush1.bf16.msra.mxu0 0
    %3040 = vmatprep.subr.bf16.mxu0 0
    %3041 = vmatpush1.bf16.msra.mxu0 0
    %3042 = vmatprep.subr.bf16.mxu0 0
    %3043 = vmatpush1.bf16.msra.mxu0 0
    %3044 = vmatprep.subr.bf16.mxu0 0
    %3045 = vmatpush1.bf16.msra.mxu0 0
    %3046 = vmatprep.subr.bf16.mxu0 0
    %3047 = vmatpush1.bf16.msra.mxu0 0
    %3048 = vmatprep.subr.bf16.mxu0 0
    %3049 = vmatpush1.bf16.msra.mxu0 0
    %3050 = vmatprep.subr.bf16.mxu0 0
    %3051 = vmatpush1.bf16.msra.mxu0 0
    %3052 = vmatprep.subr.bf16.mxu0 0
    %3053 = vmatpush1.bf16.msra.mxu0 0
    %3054 = vmatprep.subr.bf16.mxu0 0
    %3055 = vmatpush1.bf16.msra.mxu0 0
    %3056 = vmatprep.subr.bf16.mxu0 0
    %3057 = vmatpush1.bf16.msra.mxu0 0
    %3058 = vmatprep.subr.bf16.mxu0 0
    %3059 = vmatpush1.bf16.msra.mxu0 0
    %3060 = vmatprep.mubr.bf16.mxu0 0
    %3061 = vmatmul.mubr.bf16.gmra.mrb[0].mxu0 %v3011
    %v3062 = vpop.f32.mrb[0].mxu0
    %v3063 = vadd.f32 %v2985, %v3062
    %v3064 = vpop.f32.mrb[0].mxu0
    %v3065 = vpop.f32.mrb[0].mxu0
    %v3066 = vadd.f32 %v2985, %v3065
    %v3067 = vpop.f32.mrb[0].mxu0
    %3068 = vmatprep.mubr.bf16.mxu0 0
    %3069 = vmatmul.mubr.bf16.gmra.mrb[0].mxu0 %v3014
    %v3070 = vpop.f32.mrb[0].mxu0
    %v3071 = vadd.f32 %v2985, %v3070
    %v3072 = vpop.f32.mrb[0].mxu0
    %v3073 = vpop.f32.mrb[0].mxu0
    %v3074 = vadd.f32 %v2985, %v3073
    %v3075 = vpop.f32.mrb[0].mxu0
    %3076 = vmatprep.mubr.bf16.mxu0 0
    %3077 = vmatmul.mubr.bf16.gmra.mrb[0].mxu0 %v3017
    %v3078 = vpop.f32.mrb[0].mxu0
    %v3079 = vadd.f32 %v2985, %v3078
    %v3080 = vpop.f32.mrb[0].mxu0
    %v3081 = vpop.f32.mrb[0].mxu0
    %v3082 = vadd.f32 %v2985, %v3081
    %v3083 = vpop.f32.mrb[0].mxu0
    %3084 = vmatprep.mubr.bf16.mxu0 0
    %3085 = vmatmul.mubr.bf16.gmra.mrb[0].mxu0 %v3020
    %v3086 = vpop.f32.mrb[0].mxu0
    %v3087 = vadd.f32 %v2985, %v3086
    %v3088 = vpop.f32.mrb[0].mxu0
    %v3089 = vpop.f32.mrb[0].mxu0
    %v3090 = vadd.f32 %v2985, %v3089
    %v3091 = vpop.f32.mrb[0].mxu0
    %3092 = vmatprep.mubr.bf16.mxu0 0
    %3093 = vmatmul.mubr.bf16.gmra.mrb[0].mxu0 %v3023
    %v3094 = vpop.f32.mrb[0].mxu0
    %v3095 = vadd.f32 %v2985, %v3094
    %v3096 = vpop.f32.mrb[0].mxu0
    %v3097 = vpop.f32.mrb[0].mxu0
    %v3098 = vadd.f32 %v2985, %v3097
    %v3099 = vpop.f32.mrb[0].mxu0
    %3100 = vmatprep.mubr.bf16.mxu0 0
    %3101 = vmatmul.mubr.bf16.gmra.mrb[0].mxu0 %v3026
    %v3102 = vpop.f32.mrb[0].mxu0
    %v3103 = vadd.f32 %v2985, %v3102
    %v3104 = vpop.f32.mrb[0].mxu0
    %v3105 = vpop.f32.mrb[0].mxu0
    %v3106 = vadd.f32 %v2985, %v3105
    %v3107 = vpop.f32.mrb[0].mxu0
    %3108 = vdwg.mxu0
    %v3109 = vadd.f32 %v565, %v3063
    %v3110 = vadd.f32 %v568, %v3066
    %v3111 = vadd.f32 %v573, %v3071
    %v3112 = vadd.f32 %v576, %v3074
    %v3113 = vadd.f32 %v581, %v3079
    %v3114 = vadd.f32 %v584, %v3082
    %v3115 = vadd.f32 %v589, %v3087
    %v3116 = vadd.f32 %v592, %v3090
    %v3117 = vadd.f32 %v597, %v3095
    %v3118 = vadd.f32 %v600, %v3098
    %v3119 = vadd.f32 %v605, %v3103
    %v3120 = vadd.f32 %v608, %v3106
    %v3121 = vsel %vm641, %v3109, 0.0
    %3122 = vadd.xlane.f32.xlu0 %v3121
    %v3123 = vpop.xlane.xlu0 %3122
    %v3124 = vsel %vm641, %v3110, 0.0
    %3125 = vadd.xlane.f32.xlu0 %v3124
    %v3126 = vpop.xlane.xlu0 %3125
    %v3127 = vsel %vm641, %v3111, 0.0
    %3128 = vadd.xlane.f32.xlu0 %v3127
    %v3129 = vpop.xlane.xlu0 %3128
    %v3130 = vsel %vm641, %v3112, 0.0
    %3131 = vadd.xlane.f32.xlu0 %v3130
    %v3132 = vpop.xlane.xlu0 %3131
    %v3133 = vsel %vm641, %v3113, 0.0
    %3134 = vadd.xlane.f32.xlu0 %v3133
    %v3135 = vpop.xlane.xlu0 %3134
    %v3136 = vsel %vm641, %v3114, 0.0
    %3137 = vadd.xlane.f32.xlu0 %v3136
    %v3138 = vpop.xlane.xlu0 %3137
    %v3139 = vsel %vm641, %v3115, 0.0
    %3140 = vadd.xlane.f32.xlu0 %v3139
    %v3141 = vpop.xlane.xlu0 %3140
    %v3142 = vsel %vm641, %v3116, 0.0
    %3143 = vadd.xlane.f32.xlu0 %v3142
    %v3144 = vpop.xlane.xlu0 %3143
    %v3145 = vsel %vm641, %v3117, 0.0
    %3146 = vadd.xlane.f32.xlu0 %v3145
    %v3147 = vpop.xlane.xlu0 %3146
    %v3148 = vsel %vm641, %v3118, 0.0
    %3149 = vadd.xlane.f32.xlu0 %v3148
    %v3150 = vpop.xlane.xlu0 %3149
    %v3151 = vsel %vm641, %v3119, 0.0
    %3152 = vadd.xlane.f32.xlu0 %v3151
    %v3153 = vpop.xlane.xlu0 %3152
    %v3154 = vsel %vm641, %v3120, 0.0
    %3155 = vadd.xlane.f32.xlu0 %v3154
    %v3156 = vpop.xlane.xlu0 %3155
    %v3157 = vmul.f32 %v3123, %v678
    %v3158 = vmul.f32 %v3126, %v678
    %v3159 = vmul.f32 %v3129, %v678
    %v3160 = vmul.f32 %v3132, %v678
    %v3161 = vmul.f32 %v3135, %v678
    %v3162 = vmul.f32 %v3138, %v678
    %v3163 = vmul.f32 %v3141, %v678
    %v3164 = vmul.f32 %v3144, %v678
    %v3165 = vmul.f32 %v3147, %v678
    %v3166 = vmul.f32 %v3150, %v678
    %v3167 = vmul.f32 %v3153, %v678
    %v3168 = vmul.f32 %v3156, %v678
    %v3169 = vsub.f32 %v3109, %v3157
    %v3170 = vsub.f32 %v3110, %v3158
    %v3171 = vsub.f32 %v3111, %v3159
    %v3172 = vsub.f32 %v3112, %v3160
    %v3173 = vsub.f32 %v3113, %v3161
    %v3174 = vsub.f32 %v3114, %v3162
    %v3175 = vsub.f32 %v3115, %v3163
    %v3176 = vsub.f32 %v3116, %v3164
    %v3177 = vsub.f32 %v3117, %v3165
    %v3178 = vsub.f32 %v3118, %v3166
    %v3179 = vsub.f32 %v3119, %v3167
    %v3180 = vsub.f32 %v3120, %v3168
    %v3181 = vmul.f32 %v3169, %v3169
    %v3182 = vmul.f32 %v3170, %v3170
    %v3183 = vmul.f32 %v3171, %v3171
    %v3184 = vmul.f32 %v3172, %v3172
    %v3185 = vmul.f32 %v3173, %v3173
    %v3186 = vmul.f32 %v3174, %v3174
    %v3187 = vmul.f32 %v3175, %v3175
    %v3188 = vmul.f32 %v3176, %v3176
    %v3189 = vmul.f32 %v3177, %v3177
    %v3190 = vmul.f32 %v3178, %v3178
    %v3191 = vmul.f32 %v3179, %v3179
    %v3192 = vmul.f32 %v3180, %v3180
    %v3193 = vsel %vm641, %v3181, 0.0
    %3194 = vadd.xlane.f32.xlu0 %v3193
    %v3195 = vpop.xlane.xlu0 %3194
    %v3196 = vsel %vm641, %v3182, 0.0
    %3197 = vadd.xlane.f32.xlu0 %v3196
    %v3198 = vpop.xlane.xlu0 %3197
    %v3199 = vsel %vm641, %v3183, 0.0
    %3200 = vadd.xlane.f32.xlu0 %v3199
    %v3201 = vpop.xlane.xlu0 %3200
    %v3202 = vsel %vm641, %v3184, 0.0
    %3203 = vadd.xlane.f32.xlu0 %v3202
    %v3204 = vpop.xlane.xlu0 %3203
    %v3205 = vsel %vm641, %v3185, 0.0
    %3206 = vadd.xlane.f32.xlu0 %v3205
    %v3207 = vpop.xlane.xlu0 %3206
    %v3208 = vsel %vm641, %v3186, 0.0
    %3209 = vadd.xlane.f32.xlu0 %v3208
    %v3210 = vpop.xlane.xlu0 %3209
    %v3211 = vsel %vm641, %v3187, 0.0
    %3212 = vadd.xlane.f32.xlu0 %v3211
    %v3213 = vpop.xlane.xlu0 %3212
    %v3214 = vsel %vm641, %v3188, 0.0
    %3215 = vadd.xlane.f32.xlu0 %v3214
    %v3216 = vpop.xlane.xlu0 %3215
    %v3217 = vsel %vm641, %v3189, 0.0
    %3218 = vadd.xlane.f32.xlu0 %v3217
    %v3219 = vpop.xlane.xlu0 %3218
    %v3220 = vsel %vm641, %v3190, 0.0
    %3221 = vadd.xlane.f32.xlu0 %v3220
    %v3222 = vpop.xlane.xlu0 %3221
    %v3223 = vsel %vm641, %v3191, 0.0
    %3224 = vadd.xlane.f32.xlu0 %v3223
    %v3225 = vpop.xlane.xlu0 %3224
    %v3226 = vsel %vm641, %v3192, 0.0
    %3227 = vadd.xlane.f32.xlu0 %v3226
    %v3228 = vpop.xlane.xlu0 %3227
    %v3229 = vmul.f32 %v3195, %v678
    %v3230 = vmul.f32 %v3198, %v678
    %v3231 = vmul.f32 %v3201, %v678
    %v3232 = vmul.f32 %v3204, %v678
    %v3233 = vmul.f32 %v3207, %v678
    %v3234 = vmul.f32 %v3210, %v678
    %v3235 = vmul.f32 %v3213, %v678
    %v3236 = vmul.f32 %v3216, %v678
    %v3237 = vmul.f32 %v3219, %v678
    %v3238 = vmul.f32 %v3222, %v678
    %v3239 = vmul.f32 %v3225, %v678
    %v3240 = vmul.f32 %v3228, %v678
    %v3241 = vadd.f32 %v3229, 1e-05
    %v3242 = vadd.f32 %v3230, 1e-05
    %v3243 = vadd.f32 %v3231, 1e-05
    %v3244 = vadd.f32 %v3232, 1e-05
    %v3245 = vadd.f32 %v3233, 1e-05
    %v3246 = vadd.f32 %v3234, 1e-05
    %v3247 = vadd.f32 %v3235, 1e-05
    %v3248 = vadd.f32 %v3236, 1e-05
    %v3249 = vadd.f32 %v3237, 1e-05
    %v3250 = vadd.f32 %v3238, 1e-05
    %v3251 = vadd.f32 %v3239, 1e-05
    %v3252 = vadd.f32 %v3240, 1e-05
    %v3253 = vrsqrt.pop %v3241
    %v3254 = vrsqrt.pop %v3242
    %v3255 = vrsqrt.pop %v3243
    %v3256 = vrsqrt.pop %v3244
    %v3257 = vrsqrt.pop %v3245
    %v3258 = vrsqrt.pop %v3246
    %v3259 = vrsqrt.pop %v3247
    %v3260 = vrsqrt.pop %v3248
    %v3261 = vrsqrt.pop %v3249
    %v3262 = vrsqrt.pop %v3250
    %v3263 = vrsqrt.pop %v3251
    %v3264 = vrsqrt.pop %v3252
    %v3265 = vmul.f32 %v3169, %v3253
    %v3266 = vmul.f32 %v3170, %v3254
    %v3267 = vmul.f32 %v3171, %v3255
    %v3268 = vmul.f32 %v3172, %v3256
    %v3269 = vmul.f32 %v3173, %v3257
    %v3270 = vmul.f32 %v3174, %v3258
    %v3271 = vmul.f32 %v3175, %v3259
    %v3272 = vmul.f32 %v3176, %v3260
    %v3273 = vmul.f32 %v3177, %v3261
    %v3274 = vmul.f32 %v3178, %v3262
    %v3275 = vmul.f32 %v3179, %v3263
    %v3276 = vmul.f32 %v3180, %v3264
    %v3277 = vlaneseq
    %v3278 = vshrl.u32 %v3277, 7
    %v3279 = vsub.s32 4, %v3278
    %v3280 = vrot.slane %v638, %v3279
    %v3281 = vmul.f32 %v3265, %v3280
    %v3282 = vmul.f32 %v3266, %v3280
    %v3283 = vmul.f32 %v3267, %v3280
    %v3284 = vmul.f32 %v3268, %v3280
    %v3285 = vmul.f32 %v3269, %v3280
    %v3286 = vmul.f32 %v3270, %v3280
    %v3287 = vmul.f32 %v3271, %v3280
    %v3288 = vmul.f32 %v3272, %v3280
    %v3289 = vmul.f32 %v3273, %v3280
    %v3290 = vmul.f32 %v3274, %v3280
    %v3291 = vmul.f32 %v3275, %v3280
    %v3292 = vmul.f32 %v3276, %v3280
    %v3293 = vlaneseq
    %v3294 = vshrl.u32 %v3293, 7
    %v3295 = vsub.s32 5, %v3294
    %v3296 = vrot.slane %v638, %v3295
    %v3297 = vadd.f32 %v3281, %v3296
    %v3298 = vadd.f32 %v3282, %v3296
    %v3299 = vadd.f32 %v3283, %v3296
    %v3300 = vadd.f32 %v3284, %v3296
    %v3301 = vadd.f32 %v3285, %v3296
    %v3302 = vadd.f32 %v3286, %v3296
    %v3303 = vadd.f32 %v3287, %v3296
    %v3304 = vadd.f32 %v3288, %v3296
    %v3305 = vadd.f32 %v3289, %v3296
    %v3306 = vadd.f32 %v3290, %v3296
    %v3307 = vadd.f32 %v3291, %v3296
    %v3308 = vadd.f32 %v3292, %v3296
    %v3309 = vpack.c.bf16 %v3298, %v3297
    %v3310 = vpack.c.bf16 %v3300, %v3299
    %v3311 = vpack.c.bf16 %v3302, %v3301
    %v3312 = vpack.c.bf16 %v3304, %v3303
    %v3313 = vpack.c.bf16 %v3306, %v3305
    %v3314 = vpack.c.bf16 %v3308, %v3307
    %v3315 = vld [vmem:[%s5] sm:$0xff]
    %v3316 = vld [vmem:[%s5 + $0x8] sm:$0xff]
    %v3317 = vld [vmem:[%s5 + $0x10] sm:$0xff]
    %v3318 = vld [vmem:[%s5 + $0x18] sm:$0xff]
    %v3319 = vld [vmem:[%s5 + $0x20] sm:$0xff]
    %v3320 = vld [vmem:[%s5 + $0x28] sm:$0xff]
    %v3321 = vld [vmem:[%s5 + $0x30] sm:$0xff]
    %v3322 = vld [vmem:[%s5 + $0x38] sm:$0xff]
    %v3323 = vlaneseq
    %v3324 = vshrl.u32 %v3323, 7
    %v3325 = vsub.s32 6, %v3324
    %v3326 = vrot.slane %v638, %v3325
    %v3327 = vlaneseq
    %v3328 = vshrl.u32 %v3327, 7
    %v3329 = vsub.s32 6, %v3328
    %v3330 = vrot.slane %v639, %v3329
    %v3339 = vunpack.c.l.b16 %v3315
    %v3340 = vunpack.c.h.b16 %v3315
    %v3341 = vunpack.c.l.b16 %v3316
    %v3342 = vunpack.c.h.b16 %v3316
    %v3343 = vunpack.c.l.b16 %v3317
    %v3344 = vunpack.c.h.b16 %v3317
    %v3345 = vunpack.c.l.b16 %v3318
    %v3346 = vunpack.c.h.b16 %v3318
    %v3347 = vunpack.c.l.b16 %v3319
    %v3348 = vunpack.c.h.b16 %v3319
    %v3349 = vunpack.c.l.b16 %v3320
    %v3350 = vunpack.c.h.b16 %v3320
    %v3351 = vunpack.c.l.b16 %v3321
    %v3352 = vunpack.c.h.b16 %v3321
    %v3353 = vunpack.c.l.b16 %v3322
    %v3354 = vunpack.c.h.b16 %v3322
    %v3355 = vpack.c.b16 %v3341, %v3339
    %v3356 = vpack.c.b16 %v3342, %v3340
    %v3357 = vpack.c.b16 %v3345, %v3343
    %v3358 = vpack.c.b16 %v3346, %v3344
    %v3359 = vpack.c.b16 %v3349, %v3347
    %v3360 = vpack.c.b16 %v3350, %v3348
    %v3361 = vpack.c.b16 %v3353, %v3351
    %v3362 = vpack.c.b16 %v3354, %v3352
    %v3372 = vsel %vm641, %v3309, 0
    %v3375 = vsel %vm641, %v3310, 0
    %v3378 = vsel %vm641, %v3311, 0
    %v3381 = vsel %vm641, %v3312, 0
    %v3384 = vsel %vm641, %v3313, 0
    %v3387 = vsel %vm641, %v3314, 0
    %3389 = vmatprep.subr.bf16.mxu0 %v3356
    %3390 = vmatpush1.bf16.msra.mxu0 %v3355
    %3391 = vmatprep.subr.bf16.mxu0 %v3358
    %3392 = vmatpush1.bf16.msra.mxu0 %v3357
    %3393 = vmatprep.subr.bf16.mxu0 %v3360
    %3394 = vmatpush1.bf16.msra.mxu0 %v3359
    %3395 = vmatprep.subr.bf16.mxu0 %v3362
    %3396 = vmatpush1.bf16.msra.mxu0 %v3361
    %3397 = vmatprep.subr.bf16.mxu0 0
    %3398 = vmatpush1.bf16.msra.mxu0 0
    %3399 = vmatprep.subr.bf16.mxu0 0
    %3400 = vmatpush1.bf16.msra.mxu0 0
    %3401 = vmatprep.subr.bf16.mxu0 0
    %3402 = vmatpush1.bf16.msra.mxu0 0
    %3403 = vmatprep.subr.bf16.mxu0 0
    %3404 = vmatpush1.bf16.msra.mxu0 0
    %3405 = vmatprep.subr.bf16.mxu0 0
    %3406 = vmatpush1.bf16.msra.mxu0 0
    %3407 = vmatprep.subr.bf16.mxu0 0
    %3408 = vmatpush1.bf16.msra.mxu0 0
    %3409 = vmatprep.subr.bf16.mxu0 0
    %3410 = vmatpush1.bf16.msra.mxu0 0
    %3411 = vmatprep.subr.bf16.mxu0 0
    %3412 = vmatpush1.bf16.msra.mxu0 0
    %3413 = vmatprep.subr.bf16.mxu0 0
    %3414 = vmatpush1.bf16.msra.mxu0 0
    %3415 = vmatprep.subr.bf16.mxu0 0
    %3416 = vmatpush1.bf16.msra.mxu0 0
    %3417 = vmatprep.subr.bf16.mxu0 0
    %3418 = vmatpush1.bf16.msra.mxu0 0
    %3419 = vmatprep.subr.bf16.mxu0 0
    %3420 = vmatpush1.bf16.msra.mxu0 0
    %3421 = vmatprep.mubr.bf16.mxu0 0
    %3422 = vmatmul.mubr.bf16.gmra.mrb[0].mxu0 %v3372
    %v3423 = vpop.f32.mrb[0].mxu0
    %v3424 = vadd.f32 %v3326, %v3423
    %v3425 = vpop.f32.mrb[0].mxu0
    %v3426 = vadd.f32 %v3330, %v3425
    %v3427 = vpop.f32.mrb[0].mxu0
    %v3428 = vadd.f32 %v3326, %v3427
    %v3429 = vpop.f32.mrb[0].mxu0
    %v3430 = vadd.f32 %v3330, %v3429
    %3431 = vmatprep.mubr.bf16.mxu0 0
    %3432 = vmatmul.mubr.bf16.gmra.mrb[0].mxu0 %v3375
    %v3433 = vpop.f32.mrb[0].mxu0
    %v3434 = vadd.f32 %v3326, %v3433
    %v3435 = vpop.f32.mrb[0].mxu0
    %v3436 = vadd.f32 %v3330, %v3435
    %v3437 = vpop.f32.mrb[0].mxu0
    %v3438 = vadd.f32 %v3326, %v3437
    %v3439 = vpop.f32.mrb[0].mxu0
    %v3440 = vadd.f32 %v3330, %v3439
    %3441 = vmatprep.mubr.bf16.mxu0 0
    %3442 = vmatmul.mubr.bf16.gmra.mrb[0].mxu0 %v3378
    %v3443 = vpop.f32.mrb[0].mxu0
    %v3444 = vadd.f32 %v3326, %v3443
    %v3445 = vpop.f32.mrb[0].mxu0
    %v3446 = vadd.f32 %v3330, %v3445
    %v3447 = vpop.f32.mrb[0].mxu0
    %v3448 = vadd.f32 %v3326, %v3447
    %v3449 = vpop.f32.mrb[0].mxu0
    %v3450 = vadd.f32 %v3330, %v3449
    %3451 = vmatprep.mubr.bf16.mxu0 0
    %3452 = vmatmul.mubr.bf16.gmra.mrb[0].mxu0 %v3381
    %v3453 = vpop.f32.mrb[0].mxu0
    %v3454 = vadd.f32 %v3326, %v3453
    %v3455 = vpop.f32.mrb[0].mxu0
    %v3456 = vadd.f32 %v3330, %v3455
    %v3457 = vpop.f32.mrb[0].mxu0
    %v3458 = vadd.f32 %v3326, %v3457
    %v3459 = vpop.f32.mrb[0].mxu0
    %v3460 = vadd.f32 %v3330, %v3459
    %3461 = vmatprep.mubr.bf16.mxu0 0
    %3462 = vmatmul.mubr.bf16.gmra.mrb[0].mxu0 %v3384
    %v3463 = vpop.f32.mrb[0].mxu0
    %v3464 = vadd.f32 %v3326, %v3463
    %v3465 = vpop.f32.mrb[0].mxu0
    %v3466 = vadd.f32 %v3330, %v3465
    %v3467 = vpop.f32.mrb[0].mxu0
    %v3468 = vadd.f32 %v3326, %v3467
    %v3469 = vpop.f32.mrb[0].mxu0
    %v3470 = vadd.f32 %v3330, %v3469
    %3471 = vmatprep.mubr.bf16.mxu0 0
    %3472 = vmatmul.mubr.bf16.gmra.mrb[0].mxu0 %v3387
    %v3473 = vpop.f32.mrb[0].mxu0
    %v3474 = vadd.f32 %v3326, %v3473
    %v3475 = vpop.f32.mrb[0].mxu0
    %v3476 = vadd.f32 %v3330, %v3475
    %v3477 = vpop.f32.mrb[0].mxu0
    %v3478 = vadd.f32 %v3326, %v3477
    %v3479 = vpop.f32.mrb[0].mxu0
    %v3480 = vadd.f32 %v3330, %v3479
    %3481 = vdwg.mxu0
    %v3482 = vmul.f32 %v3424, %v3424
    %v3483 = vmul.f32 %v3426, %v3426
    %v3484 = vmul.f32 %v3428, %v3428
    %v3485 = vmul.f32 %v3430, %v3430
    %v3486 = vmul.f32 %v3434, %v3434
    %v3487 = vmul.f32 %v3436, %v3436
    %v3488 = vmul.f32 %v3438, %v3438
    %v3489 = vmul.f32 %v3440, %v3440
    %v3490 = vmul.f32 %v3444, %v3444
    %v3491 = vmul.f32 %v3446, %v3446
    %v3492 = vmul.f32 %v3448, %v3448
    %v3493 = vmul.f32 %v3450, %v3450
    %v3494 = vmul.f32 %v3454, %v3454
    %v3495 = vmul.f32 %v3456, %v3456
    %v3496 = vmul.f32 %v3458, %v3458
    %v3497 = vmul.f32 %v3460, %v3460
    %v3498 = vmul.f32 %v3464, %v3464
    %v3499 = vmul.f32 %v3466, %v3466
    %v3500 = vmul.f32 %v3468, %v3468
    %v3501 = vmul.f32 %v3470, %v3470
    %v3502 = vmul.f32 %v3474, %v3474
    %v3503 = vmul.f32 %v3476, %v3476
    %v3504 = vmul.f32 %v3478, %v3478
    %v3505 = vmul.f32 %v3480, %v3480
    %v3506 = vmul.f32 %v3424, %v3482
    %v3507 = vmul.f32 %v3426, %v3483
    %v3508 = vmul.f32 %v3428, %v3484
    %v3509 = vmul.f32 %v3430, %v3485
    %v3510 = vmul.f32 %v3434, %v3486
    %v3511 = vmul.f32 %v3436, %v3487
    %v3512 = vmul.f32 %v3438, %v3488
    %v3513 = vmul.f32 %v3440, %v3489
    %v3514 = vmul.f32 %v3444, %v3490
    %v3515 = vmul.f32 %v3446, %v3491
    %v3516 = vmul.f32 %v3448, %v3492
    %v3517 = vmul.f32 %v3450, %v3493
    %v3518 = vmul.f32 %v3454, %v3494
    %v3519 = vmul.f32 %v3456, %v3495
    %v3520 = vmul.f32 %v3458, %v3496
    %v3521 = vmul.f32 %v3460, %v3497
    %v3522 = vmul.f32 %v3464, %v3498
    %v3523 = vmul.f32 %v3466, %v3499
    %v3524 = vmul.f32 %v3468, %v3500
    %v3525 = vmul.f32 %v3470, %v3501
    %v3526 = vmul.f32 %v3474, %v3502
    %v3527 = vmul.f32 %v3476, %v3503
    %v3528 = vmul.f32 %v3478, %v3504
    %v3529 = vmul.f32 %v3480, %v3505
    %v3530 = vmul.f32 %v3506, 0.044715
    %v3531 = vmul.f32 %v3507, 0.044715
    %v3532 = vmul.f32 %v3508, 0.044715
    %v3533 = vmul.f32 %v3509, 0.044715
    %v3534 = vmul.f32 %v3510, 0.044715
    %v3535 = vmul.f32 %v3511, 0.044715
    %v3536 = vmul.f32 %v3512, 0.044715
    %v3537 = vmul.f32 %v3513, 0.044715
    %v3538 = vmul.f32 %v3514, 0.044715
    %v3539 = vmul.f32 %v3515, 0.044715
    %v3540 = vmul.f32 %v3516, 0.044715
    %v3541 = vmul.f32 %v3517, 0.044715
    %v3542 = vmul.f32 %v3518, 0.044715
    %v3543 = vmul.f32 %v3519, 0.044715
    %v3544 = vmul.f32 %v3520, 0.044715
    %v3545 = vmul.f32 %v3521, 0.044715
    %v3546 = vmul.f32 %v3522, 0.044715
    %v3547 = vmul.f32 %v3523, 0.044715
    %v3548 = vmul.f32 %v3524, 0.044715
    %v3549 = vmul.f32 %v3525, 0.044715
    %v3550 = vmul.f32 %v3526, 0.044715
    %v3551 = vmul.f32 %v3527, 0.044715
    %v3552 = vmul.f32 %v3528, 0.044715
    %v3553 = vmul.f32 %v3529, 0.044715
    %v3554 = vadd.f32 %v3424, %v3530
    %v3555 = vadd.f32 %v3426, %v3531
    %v3556 = vadd.f32 %v3428, %v3532
    %v3557 = vadd.f32 %v3430, %v3533
    %v3558 = vadd.f32 %v3434, %v3534
    %v3559 = vadd.f32 %v3436, %v3535
    %v3560 = vadd.f32 %v3438, %v3536
    %v3561 = vadd.f32 %v3440, %v3537
    %v3562 = vadd.f32 %v3444, %v3538
    %v3563 = vadd.f32 %v3446, %v3539
    %v3564 = vadd.f32 %v3448, %v3540
    %v3565 = vadd.f32 %v3450, %v3541
    %v3566 = vadd.f32 %v3454, %v3542
    %v3567 = vadd.f32 %v3456, %v3543
    %v3568 = vadd.f32 %v3458, %v3544
    %v3569 = vadd.f32 %v3460, %v3545
    %v3570 = vadd.f32 %v3464, %v3546
    %v3571 = vadd.f32 %v3466, %v3547
    %v3572 = vadd.f32 %v3468, %v3548
    %v3573 = vadd.f32 %v3470, %v3549
    %v3574 = vadd.f32 %v3474, %v3550
    %v3575 = vadd.f32 %v3476, %v3551
    %v3576 = vadd.f32 %v3478, %v3552
    %v3577 = vadd.f32 %v3480, %v3553
    %v3578 = vmul.f32 %v3554, 0.7978846
    %v3579 = vmul.f32 %v3555, 0.7978846
    %v3580 = vmul.f32 %v3556, 0.7978846
    %v3581 = vmul.f32 %v3557, 0.7978846
    %v3582 = vmul.f32 %v3558, 0.7978846
    %v3583 = vmul.f32 %v3559, 0.7978846
    %v3584 = vmul.f32 %v3560, 0.7978846
    %v3585 = vmul.f32 %v3561, 0.7978846
    %v3586 = vmul.f32 %v3562, 0.7978846
    %v3587 = vmul.f32 %v3563, 0.7978846
    %v3588 = vmul.f32 %v3564, 0.7978846
    %v3589 = vmul.f32 %v3565, 0.7978846
    %v3590 = vmul.f32 %v3566, 0.7978846
    %v3591 = vmul.f32 %v3567, 0.7978846
    %v3592 = vmul.f32 %v3568, 0.7978846
    %v3593 = vmul.f32 %v3569, 0.7978846
    %v3594 = vmul.f32 %v3570, 0.7978846
    %v3595 = vmul.f32 %v3571, 0.7978846
    %v3596 = vmul.f32 %v3572, 0.7978846
    %v3597 = vmul.f32 %v3573, 0.7978846
    %v3598 = vmul.f32 %v3574, 0.7978846
    %v3599 = vmul.f32 %v3575, 0.7978846
    %v3600 = vmul.f32 %v3576, 0.7978846
    %v3601 = vmul.f32 %v3577, 0.7978846
    %v3602 = vtanh.pop %v3578
    %v3603 = vtanh.pop %v3579
    %v3604 = vtanh.pop %v3580
    %v3605 = vtanh.pop %v3581
    %v3606 = vtanh.pop %v3582
    %v3607 = vtanh.pop %v3583
    %v3608 = vtanh.pop %v3584
    %v3609 = vtanh.pop %v3585
    %v3610 = vtanh.pop %v3586
    %v3611 = vtanh.pop %v3587
    %v3612 = vtanh.pop %v3588
    %v3613 = vtanh.pop %v3589
    %v3614 = vtanh.pop %v3590
    %v3615 = vtanh.pop %v3591
    %v3616 = vtanh.pop %v3592
    %v3617 = vtanh.pop %v3593
    %v3618 = vtanh.pop %v3594
    %v3619 = vtanh.pop %v3595
    %v3620 = vtanh.pop %v3596
    %v3621 = vtanh.pop %v3597
    %v3622 = vtanh.pop %v3598
    %v3623 = vtanh.pop %v3599
    %v3624 = vtanh.pop %v3600
    %v3625 = vtanh.pop %v3601
    %v3626 = vadd.f32 %v3602, 1.0
    %v3627 = vadd.f32 %v3603, 1.0
    %v3628 = vadd.f32 %v3604, 1.0
    %v3629 = vadd.f32 %v3605, 1.0
    %v3630 = vadd.f32 %v3606, 1.0
    %v3631 = vadd.f32 %v3607, 1.0
    %v3632 = vadd.f32 %v3608, 1.0
    %v3633 = vadd.f32 %v3609, 1.0
    %v3634 = vadd.f32 %v3610, 1.0
    %v3635 = vadd.f32 %v3611, 1.0
    %v3636 = vadd.f32 %v3612, 1.0
    %v3637 = vadd.f32 %v3613, 1.0
    %v3638 = vadd.f32 %v3614, 1.0
    %v3639 = vadd.f32 %v3615, 1.0
    %v3640 = vadd.f32 %v3616, 1.0
    %v3641 = vadd.f32 %v3617, 1.0
    %v3642 = vadd.f32 %v3618, 1.0
    %v3643 = vadd.f32 %v3619, 1.0
    %v3644 = vadd.f32 %v3620, 1.0
    %v3645 = vadd.f32 %v3621, 1.0
    %v3646 = vadd.f32 %v3622, 1.0
    %v3647 = vadd.f32 %v3623, 1.0
    %v3648 = vadd.f32 %v3624, 1.0
    %v3649 = vadd.f32 %v3625, 1.0
    %v3650 = vmul.f32 %v3626, 0.5
    %v3651 = vmul.f32 %v3627, 0.5
    %v3652 = vmul.f32 %v3628, 0.5
    %v3653 = vmul.f32 %v3629, 0.5
    %v3654 = vmul.f32 %v3630, 0.5
    %v3655 = vmul.f32 %v3631, 0.5
    %v3656 = vmul.f32 %v3632, 0.5
    %v3657 = vmul.f32 %v3633, 0.5
    %v3658 = vmul.f32 %v3634, 0.5
    %v3659 = vmul.f32 %v3635, 0.5
    %v3660 = vmul.f32 %v3636, 0.5
    %v3661 = vmul.f32 %v3637, 0.5
    %v3662 = vmul.f32 %v3638, 0.5
    %v3663 = vmul.f32 %v3639, 0.5
    %v3664 = vmul.f32 %v3640, 0.5
    %v3665 = vmul.f32 %v3641, 0.5
    %v3666 = vmul.f32 %v3642, 0.5
    %v3667 = vmul.f32 %v3643, 0.5
    %v3668 = vmul.f32 %v3644, 0.5
    %v3669 = vmul.f32 %v3645, 0.5
    %v3670 = vmul.f32 %v3646, 0.5
    %v3671 = vmul.f32 %v3647, 0.5
    %v3672 = vmul.f32 %v3648, 0.5
    %v3673 = vmul.f32 %v3649, 0.5
    %v3674 = vmul.f32 %v3424, %v3650
    %v3675 = vmul.f32 %v3426, %v3651
    %v3676 = vmul.f32 %v3428, %v3652
    %v3677 = vmul.f32 %v3430, %v3653
    %v3678 = vmul.f32 %v3434, %v3654
    %v3679 = vmul.f32 %v3436, %v3655
    %v3680 = vmul.f32 %v3438, %v3656
    %v3681 = vmul.f32 %v3440, %v3657
    %v3682 = vmul.f32 %v3444, %v3658
    %v3683 = vmul.f32 %v3446, %v3659
    %v3684 = vmul.f32 %v3448, %v3660
    %v3685 = vmul.f32 %v3450, %v3661
    %v3686 = vmul.f32 %v3454, %v3662
    %v3687 = vmul.f32 %v3456, %v3663
    %v3688 = vmul.f32 %v3458, %v3664
    %v3689 = vmul.f32 %v3460, %v3665
    %v3690 = vmul.f32 %v3464, %v3666
    %v3691 = vmul.f32 %v3466, %v3667
    %v3692 = vmul.f32 %v3468, %v3668
    %v3693 = vmul.f32 %v3470, %v3669
    %v3694 = vmul.f32 %v3474, %v3670
    %v3695 = vmul.f32 %v3476, %v3671
    %v3696 = vmul.f32 %v3478, %v3672
    %v3697 = vmul.f32 %v3480, %v3673
    %v3698 = vpack.c.bf16 %v3676, %v3674
    %v3699 = vpack.c.bf16 %v3677, %v3675
    %v3700 = vpack.c.bf16 %v3680, %v3678
    %v3701 = vpack.c.bf16 %v3681, %v3679
    %v3702 = vpack.c.bf16 %v3684, %v3682
    %v3703 = vpack.c.bf16 %v3685, %v3683
    %v3704 = vpack.c.bf16 %v3688, %v3686
    %v3705 = vpack.c.bf16 %v3689, %v3687
    %v3706 = vpack.c.bf16 %v3692, %v3690
    %v3707 = vpack.c.bf16 %v3693, %v3691
    %v3708 = vpack.c.bf16 %v3696, %v3694
    %v3709 = vpack.c.bf16 %v3697, %v3695
    %v3710 = vld [vmem:[%s6] sm:$0xf]
    %v3711 = vld [vmem:[%s6 + $0x4] sm:$0xf]
    %v3712 = vld [vmem:[%s6 + $0x8] sm:$0xf]
    %v3713 = vld [vmem:[%s6 + $0xc] sm:$0xf]
    %v3714 = vld [vmem:[%s6 + $0x10] sm:$0xf]
    %v3715 = vld [vmem:[%s6 + $0x14] sm:$0xf]
    %v3716 = vld [vmem:[%s6 + $0x18] sm:$0xf]
    %v3717 = vld [vmem:[%s6 + $0x1c] sm:$0xf]
    %v3718 = vld [vmem:[%s6 + $0x20] sm:$0xf]
    %v3719 = vld [vmem:[%s6 + $0x24] sm:$0xf]
    %v3720 = vld [vmem:[%s6 + $0x28] sm:$0xf]
    %v3721 = vld [vmem:[%s6 + $0x2c] sm:$0xf]
    %v3722 = vld [vmem:[%s6 + $0x30] sm:$0xf]
    %v3723 = vld [vmem:[%s6 + $0x34] sm:$0xf]
    %v3724 = vld [vmem:[%s6 + $0x38] sm:$0xf]
    %v3725 = vld [vmem:[%s6 + $0x3c] sm:$0xf]
    %v3726 = vld [vmem:[%s6 + $0x40] sm:$0xf]
    %v3727 = vld [vmem:[%s6 + $0x44] sm:$0xf]
    %v3728 = vld [vmem:[%s6 + $0x48] sm:$0xf]
    %v3729 = vld [vmem:[%s6 + $0x4c] sm:$0xf]
    %v3730 = vld [vmem:[%s6 + $0x50] sm:$0xf]
    %v3731 = vld [vmem:[%s6 + $0x54] sm:$0xf]
    %v3732 = vld [vmem:[%s6 + $0x58] sm:$0xf]
    %v3733 = vld [vmem:[%s6 + $0x5c] sm:$0xf]
    %v3734 = vld [vmem:[%s6 + $0x60] sm:$0xf]
    %v3735 = vld [vmem:[%s6 + $0x64] sm:$0xf]
    %v3736 = vld [vmem:[%s6 + $0x68] sm:$0xf]
    %v3737 = vld [vmem:[%s6 + $0x6c] sm:$0xf]
    %v3738 = vld [vmem:[%s6 + $0x70] sm:$0xf]
    %v3739 = vld [vmem:[%s6 + $0x74] sm:$0xf]
    %v3740 = vld [vmem:[%s6 + $0x78] sm:$0xf]
    %v3741 = vld [vmem:[%s6 + $0x7c] sm:$0xf]
    %v3774 = vunpack.c.l.b16 %v3710
    %v3775 = vunpack.c.l.b16 %v3711
    %v3776 = vunpack.c.l.b16 %v3712
    %v3777 = vunpack.c.l.b16 %v3713
    %v3778 = vunpack.c.l.b16 %v3714
    %v3779 = vunpack.c.l.b16 %v3715
    %v3780 = vunpack.c.l.b16 %v3716
    %v3781 = vunpack.c.l.b16 %v3717
    %v3782 = vunpack.c.l.b16 %v3718
    %v3783 = vunpack.c.l.b16 %v3719
    %v3784 = vunpack.c.l.b16 %v3720
    %v3785 = vunpack.c.l.b16 %v3721
    %v3786 = vunpack.c.l.b16 %v3722
    %v3787 = vunpack.c.l.b16 %v3723
    %v3788 = vunpack.c.l.b16 %v3724
    %v3789 = vunpack.c.l.b16 %v3725
    %v3790 = vunpack.c.l.b16 %v3726
    %v3791 = vunpack.c.l.b16 %v3727
    %v3792 = vunpack.c.l.b16 %v3728
    %v3793 = vunpack.c.l.b16 %v3729
    %v3794 = vunpack.c.l.b16 %v3730
    %v3795 = vunpack.c.l.b16 %v3731
    %v3796 = vunpack.c.l.b16 %v3732
    %v3797 = vunpack.c.l.b16 %v3733
    %v3798 = vunpack.c.l.b16 %v3734
    %v3799 = vunpack.c.l.b16 %v3735
    %v3800 = vunpack.c.l.b16 %v3736
    %v3801 = vunpack.c.l.b16 %v3737
    %v3802 = vunpack.c.l.b16 %v3738
    %v3803 = vunpack.c.l.b16 %v3739
    %v3804 = vunpack.c.l.b16 %v3740
    %v3805 = vunpack.c.l.b16 %v3741
    %v3806 = vpack.c.b16 %v3775, %v3774
    %v3807 = vpack.c.b16 %v3777, %v3776
    %v3808 = vpack.c.b16 %v3779, %v3778
    %v3809 = vpack.c.b16 %v3781, %v3780
    %v3810 = vpack.c.b16 %v3783, %v3782
    %v3811 = vpack.c.b16 %v3785, %v3784
    %v3812 = vpack.c.b16 %v3787, %v3786
    %v3813 = vpack.c.b16 %v3789, %v3788
    %v3814 = vpack.c.b16 %v3791, %v3790
    %v3815 = vpack.c.b16 %v3793, %v3792
    %v3816 = vpack.c.b16 %v3795, %v3794
    %v3817 = vpack.c.b16 %v3797, %v3796
    %v3818 = vpack.c.b16 %v3799, %v3798
    %v3819 = vpack.c.b16 %v3801, %v3800
    %v3820 = vpack.c.b16 %v3803, %v3802
    %v3821 = vpack.c.b16 %v3805, %v3804
    %3838 = vmatprep.subr.bf16.mxu0 0
    %3839 = vmatpush1.bf16.msra.mxu0 %v3806
    %3840 = vmatprep.subr.bf16.mxu0 0
    %3841 = vmatpush1.bf16.msra.mxu0 %v3807
    %3842 = vmatprep.subr.bf16.mxu0 0
    %3843 = vmatpush1.bf16.msra.mxu0 %v3808
    %3844 = vmatprep.subr.bf16.mxu0 0
    %3845 = vmatpush1.bf16.msra.mxu0 %v3809
    %3846 = vmatprep.subr.bf16.mxu0 0
    %3847 = vmatpush1.bf16.msra.mxu0 %v3810
    %3848 = vmatprep.subr.bf16.mxu0 0
    %3849 = vmatpush1.bf16.msra.mxu0 %v3811
    %3850 = vmatprep.subr.bf16.mxu0 0
    %3851 = vmatpush1.bf16.msra.mxu0 %v3812
    %3852 = vmatprep.subr.bf16.mxu0 0
    %3853 = vmatpush1.bf16.msra.mxu0 %v3813
    %3854 = vmatprep.subr.bf16.mxu0 0
    %3855 = vmatpush1.bf16.msra.mxu0 %v3814
    %3856 = vmatprep.subr.bf16.mxu0 0
    %3857 = vmatpush1.bf16.msra.mxu0 %v3815
    %3858 = vmatprep.subr.bf16.mxu0 0
    %3859 = vmatpush1.bf16.msra.mxu0 %v3816
    %3860 = vmatprep.subr.bf16.mxu0 0
    %3861 = vmatpush1.bf16.msra.mxu0 %v3817
    %3862 = vmatprep.subr.bf16.mxu0 0
    %3863 = vmatpush1.bf16.msra.mxu0 %v3818
    %3864 = vmatprep.subr.bf16.mxu0 0
    %3865 = vmatpush1.bf16.msra.mxu0 %v3819
    %3866 = vmatprep.subr.bf16.mxu0 0
    %3867 = vmatpush1.bf16.msra.mxu0 %v3820
    %3868 = vmatprep.subr.bf16.mxu0 0
    %3869 = vmatpush1.bf16.msra.mxu0 %v3821
    %3870 = vmatprep.mubr.bf16.mxu0 %v3699
    %3871 = vmatmul.mubr.bf16.gmra.mrb[0].mxu0 %v3698
    %v3872 = vpop.f32.mrb[0].mxu0
    %v3873 = vadd.f32 0.0, %v3872
    %v3874 = vpop.f32.mrb[0].mxu0
    %v3875 = vpop.f32.mrb[0].mxu0
    %v3876 = vadd.f32 0.0, %v3875
    %v3877 = vpop.f32.mrb[0].mxu0
    %3878 = vmatprep.mubr.bf16.mxu0 %v3701
    %3879 = vmatmul.mubr.bf16.gmra.mrb[0].mxu0 %v3700
    %v3880 = vpop.f32.mrb[0].mxu0
    %v3881 = vadd.f32 0.0, %v3880
    %v3882 = vpop.f32.mrb[0].mxu0
    %v3883 = vpop.f32.mrb[0].mxu0
    %v3884 = vadd.f32 0.0, %v3883
    %v3885 = vpop.f32.mrb[0].mxu0
    %3886 = vmatprep.mubr.bf16.mxu0 %v3703
    %3887 = vmatmul.mubr.bf16.gmra.mrb[0].mxu0 %v3702
    %v3888 = vpop.f32.mrb[0].mxu0
    %v3889 = vadd.f32 0.0, %v3888
    %v3890 = vpop.f32.mrb[0].mxu0
    %v3891 = vpop.f32.mrb[0].mxu0
    %v3892 = vadd.f32 0.0, %v3891
    %v3893 = vpop.f32.mrb[0].mxu0
    %3894 = vmatprep.mubr.bf16.mxu0 %v3705
    %3895 = vmatmul.mubr.bf16.gmra.mrb[0].mxu0 %v3704
    %v3896 = vpop.f32.mrb[0].mxu0
    %v3897 = vadd.f32 0.0, %v3896
    %v3898 = vpop.f32.mrb[0].mxu0
    %v3899 = vpop.f32.mrb[0].mxu0
    %v3900 = vadd.f32 0.0, %v3899
    %v3901 = vpop.f32.mrb[0].mxu0
    %3902 = vmatprep.mubr.bf16.mxu0 %v3707
    %3903 = vmatmul.mubr.bf16.gmra.mrb[0].mxu0 %v3706
    %v3904 = vpop.f32.mrb[0].mxu0
    %v3905 = vadd.f32 0.0, %v3904
    %v3906 = vpop.f32.mrb[0].mxu0
    %v3907 = vpop.f32.mrb[0].mxu0
    %v3908 = vadd.f32 0.0, %v3907
    %v3909 = vpop.f32.mrb[0].mxu0
    %3910 = vmatprep.mubr.bf16.mxu0 %v3709
    %3911 = vmatmul.mubr.bf16.gmra.mrb[0].mxu0 %v3708
    %v3912 = vpop.f32.mrb[0].mxu0
    %v3913 = vadd.f32 0.0, %v3912
    %v3914 = vpop.f32.mrb[0].mxu0
    %v3915 = vpop.f32.mrb[0].mxu0
    %v3916 = vadd.f32 0.0, %v3915
    %v3917 = vpop.f32.mrb[0].mxu0
    %3918 = vdwg.mxu0
    %v3919 = vadd.f32 %v3109, %v3873
    %v3920 = vadd.f32 %v3110, %v3876
    %v3921 = vadd.f32 %v3111, %v3881
    %v3922 = vadd.f32 %v3112, %v3884
    %v3923 = vadd.f32 %v3113, %v3889
    %v3924 = vadd.f32 %v3114, %v3892
    %v3925 = vadd.f32 %v3115, %v3897
    %v3926 = vadd.f32 %v3116, %v3900
    %v3927 = vadd.f32 %v3117, %v3905
    %v3928 = vadd.f32 %v3118, %v3908
    %v3929 = vadd.f32 %v3119, %v3913
    %v3930 = vadd.f32 %v3120, %v3916
    %v3931 = vlaneseq
    %v3932 = vshrl.u32 %v3931, 7
    %v3933 = vsub.s32 7, %v3932
    %v3934 = vrot.slane %v638, %v3933
    %v3935 = vadd.f32 %v3919, %v3934
    %v3936 = vadd.f32 %v3920, %v3934
    %v3937 = vadd.f32 %v3921, %v3934
    %v3938 = vadd.f32 %v3922, %v3934
    %v3939 = vadd.f32 %v3923, %v3934
    %v3940 = vadd.f32 %v3924, %v3934
    %v3941 = vadd.f32 %v3925, %v3934
    %v3942 = vadd.f32 %v3926, %v3934
    %v3943 = vadd.f32 %v3927, %v3934
    %v3944 = vadd.f32 %v3928, %v3934
    %v3945 = vadd.f32 %v3929, %v3934
    %v3946 = vadd.f32 %v3930, %v3934
    %s3947 = scalar_lea.vmem %s7, 24
    %v3948 = vld [vmem:[%s3947] sm:$0xff]
    %v3949 = vld [vmem:[%s3947 + $0x8] sm:$0xff]
    %v3950 = vld [vmem:[%s3947 + $0x10] sm:$0xff]
    %v3951 = vsel %vm641, %v3935, 0.0
    %3952 = vadd.xlane.f32.xlu0 %v3951
    %v3953 = vpop.xlane.xlu0 %3952
    %v3954 = vsel %vm641, %v3936, 0.0
    %3955 = vadd.xlane.f32.xlu0 %v3954
    %v3956 = vpop.xlane.xlu0 %3955
    %v3957 = vsel %vm641, %v3937, 0.0
    %3958 = vadd.xlane.f32.xlu0 %v3957
    %v3959 = vpop.xlane.xlu0 %3958
    %v3960 = vsel %vm641, %v3938, 0.0
    %3961 = vadd.xlane.f32.xlu0 %v3960
    %v3962 = vpop.xlane.xlu0 %3961
    %v3963 = vsel %vm641, %v3939, 0.0
    %3964 = vadd.xlane.f32.xlu0 %v3963
    %v3965 = vpop.xlane.xlu0 %3964
    %v3966 = vsel %vm641, %v3940, 0.0
    %3967 = vadd.xlane.f32.xlu0 %v3966
    %v3968 = vpop.xlane.xlu0 %3967
    %v3969 = vsel %vm641, %v3941, 0.0
    %3970 = vadd.xlane.f32.xlu0 %v3969
    %v3971 = vpop.xlane.xlu0 %3970
    %v3972 = vsel %vm641, %v3942, 0.0
    %3973 = vadd.xlane.f32.xlu0 %v3972
    %v3974 = vpop.xlane.xlu0 %3973
    %v3975 = vsel %vm641, %v3943, 0.0
    %3976 = vadd.xlane.f32.xlu0 %v3975
    %v3977 = vpop.xlane.xlu0 %3976
    %v3978 = vsel %vm641, %v3944, 0.0
    %3979 = vadd.xlane.f32.xlu0 %v3978
    %v3980 = vpop.xlane.xlu0 %3979
    %v3981 = vsel %vm641, %v3945, 0.0
    %3982 = vadd.xlane.f32.xlu0 %v3981
    %v3983 = vpop.xlane.xlu0 %3982
    %v3984 = vsel %vm641, %v3946, 0.0
    %3985 = vadd.xlane.f32.xlu0 %v3984
    %v3986 = vpop.xlane.xlu0 %3985
    %v3987 = vmul.f32 %v3953, %v678
    %v3988 = vmul.f32 %v3956, %v678
    %v3989 = vmul.f32 %v3959, %v678
    %v3990 = vmul.f32 %v3962, %v678
    %v3991 = vmul.f32 %v3965, %v678
    %v3992 = vmul.f32 %v3968, %v678
    %v3993 = vmul.f32 %v3971, %v678
    %v3994 = vmul.f32 %v3974, %v678
    %v3995 = vmul.f32 %v3977, %v678
    %v3996 = vmul.f32 %v3980, %v678
    %v3997 = vmul.f32 %v3983, %v678
    %v3998 = vmul.f32 %v3986, %v678
    %v3999 = vsub.f32 %v3935, %v3987
    %v4000 = vsub.f32 %v3936, %v3988
    %v4001 = vsub.f32 %v3937, %v3989
    %v4002 = vsub.f32 %v3938, %v3990
    %v4003 = vsub.f32 %v3939, %v3991
    %v4004 = vsub.f32 %v3940, %v3992
    %v4005 = vsub.f32 %v3941, %v3993
    %v4006 = vsub.f32 %v3942, %v3994
    %v4007 = vsub.f32 %v3943, %v3995
    %v4008 = vsub.f32 %v3944, %v3996
    %v4009 = vsub.f32 %v3945, %v3997
    %v4010 = vsub.f32 %v3946, %v3998
    %v4011 = vmul.f32 %v3999, %v3999
    %v4012 = vmul.f32 %v4000, %v4000
    %v4013 = vmul.f32 %v4001, %v4001
    %v4014 = vmul.f32 %v4002, %v4002
    %v4015 = vmul.f32 %v4003, %v4003
    %v4016 = vmul.f32 %v4004, %v4004
    %v4017 = vmul.f32 %v4005, %v4005
    %v4018 = vmul.f32 %v4006, %v4006
    %v4019 = vmul.f32 %v4007, %v4007
    %v4020 = vmul.f32 %v4008, %v4008
    %v4021 = vmul.f32 %v4009, %v4009
    %v4022 = vmul.f32 %v4010, %v4010
    %v4023 = vsel %vm641, %v4011, 0.0
    %4024 = vadd.xlane.f32.xlu0 %v4023
    %v4025 = vpop.xlane.xlu0 %4024
    %v4026 = vsel %vm641, %v4012, 0.0
    %4027 = vadd.xlane.f32.xlu0 %v4026
    %v4028 = vpop.xlane.xlu0 %4027
    %v4029 = vsel %vm641, %v4013, 0.0
    %4030 = vadd.xlane.f32.xlu0 %v4029
    %v4031 = vpop.xlane.xlu0 %4030
    %v4032 = vsel %vm641, %v4014, 0.0
    %4033 = vadd.xlane.f32.xlu0 %v4032
    %v4034 = vpop.xlane.xlu0 %4033
    %v4035 = vsel %vm641, %v4015, 0.0
    %4036 = vadd.xlane.f32.xlu0 %v4035
    %v4037 = vpop.xlane.xlu0 %4036
    %v4038 = vsel %vm641, %v4016, 0.0
    %4039 = vadd.xlane.f32.xlu0 %v4038
    %v4040 = vpop.xlane.xlu0 %4039
    %v4041 = vsel %vm641, %v4017, 0.0
    %4042 = vadd.xlane.f32.xlu0 %v4041
    %v4043 = vpop.xlane.xlu0 %4042
    %v4044 = vsel %vm641, %v4018, 0.0
    %4045 = vadd.xlane.f32.xlu0 %v4044
    %v4046 = vpop.xlane.xlu0 %4045
    %v4047 = vsel %vm641, %v4019, 0.0
    %4048 = vadd.xlane.f32.xlu0 %v4047
    %v4049 = vpop.xlane.xlu0 %4048
    %v4050 = vsel %vm641, %v4020, 0.0
    %4051 = vadd.xlane.f32.xlu0 %v4050
    %v4052 = vpop.xlane.xlu0 %4051
    %v4053 = vsel %vm641, %v4021, 0.0
    %4054 = vadd.xlane.f32.xlu0 %v4053
    %v4055 = vpop.xlane.xlu0 %4054
    %v4056 = vsel %vm641, %v4022, 0.0
    %4057 = vadd.xlane.f32.xlu0 %v4056
    %v4058 = vpop.xlane.xlu0 %4057
    %v4059 = vmul.f32 %v4025, %v678
    %v4060 = vmul.f32 %v4028, %v678
    %v4061 = vmul.f32 %v4031, %v678
    %v4062 = vmul.f32 %v4034, %v678
    %v4063 = vmul.f32 %v4037, %v678
    %v4064 = vmul.f32 %v4040, %v678
    %v4065 = vmul.f32 %v4043, %v678
    %v4066 = vmul.f32 %v4046, %v678
    %v4067 = vmul.f32 %v4049, %v678
    %v4068 = vmul.f32 %v4052, %v678
    %v4069 = vmul.f32 %v4055, %v678
    %v4070 = vmul.f32 %v4058, %v678
    %v4071 = vadd.f32 %v4059, 1e-05
    %v4072 = vadd.f32 %v4060, 1e-05
    %v4073 = vadd.f32 %v4061, 1e-05
    %v4074 = vadd.f32 %v4062, 1e-05
    %v4075 = vadd.f32 %v4063, 1e-05
    %v4076 = vadd.f32 %v4064, 1e-05
    %v4077 = vadd.f32 %v4065, 1e-05
    %v4078 = vadd.f32 %v4066, 1e-05
    %v4079 = vadd.f32 %v4067, 1e-05
    %v4080 = vadd.f32 %v4068, 1e-05
    %v4081 = vadd.f32 %v4069, 1e-05
    %v4082 = vadd.f32 %v4070, 1e-05
    %v4083 = vrsqrt.pop %v4071
    %v4084 = vrsqrt.pop %v4072
    %v4085 = vrsqrt.pop %v4073
    %v4086 = vrsqrt.pop %v4074
    %v4087 = vrsqrt.pop %v4075
    %v4088 = vrsqrt.pop %v4076
    %v4089 = vrsqrt.pop %v4077
    %v4090 = vrsqrt.pop %v4078
    %v4091 = vrsqrt.pop %v4079
    %v4092 = vrsqrt.pop %v4080
    %v4093 = vrsqrt.pop %v4081
    %v4094 = vrsqrt.pop %v4082
    %v4095 = vmul.f32 %v3999, %v4083
    %v4096 = vmul.f32 %v4000, %v4084
    %v4097 = vmul.f32 %v4001, %v4085
    %v4098 = vmul.f32 %v4002, %v4086
    %v4099 = vmul.f32 %v4003, %v4087
    %v4100 = vmul.f32 %v4004, %v4088
    %v4101 = vmul.f32 %v4005, %v4089
    %v4102 = vmul.f32 %v4006, %v4090
    %v4103 = vmul.f32 %v4007, %v4091
    %v4104 = vmul.f32 %v4008, %v4092
    %v4105 = vmul.f32 %v4009, %v4093
    %v4106 = vmul.f32 %v4010, %v4094
    %v4107 = vlaneseq
    %v4108 = vshrl.u32 %v4107, 7
    %v4109 = vsub.s32 0, %v4108
    %v4110 = vrot.slane %v3948, %v4109
    %v4111 = vmul.f32 %v4095, %v4110
    %v4112 = vmul.f32 %v4096, %v4110
    %v4113 = vmul.f32 %v4097, %v4110
    %v4114 = vmul.f32 %v4098, %v4110
    %v4115 = vmul.f32 %v4099, %v4110
    %v4116 = vmul.f32 %v4100, %v4110
    %v4117 = vmul.f32 %v4101, %v4110
    %v4118 = vmul.f32 %v4102, %v4110
    %v4119 = vmul.f32 %v4103, %v4110
    %v4120 = vmul.f32 %v4104, %v4110
    %v4121 = vmul.f32 %v4105, %v4110
    %v4122 = vmul.f32 %v4106, %v4110
    %v4123 = vlaneseq
    %v4124 = vshrl.u32 %v4123, 7
    %v4125 = vsub.s32 1, %v4124
    %v4126 = vrot.slane %v3948, %v4125
    %v4127 = vadd.f32 %v4111, %v4126
    %v4128 = vadd.f32 %v4112, %v4126
    %v4129 = vadd.f32 %v4113, %v4126
    %v4130 = vadd.f32 %v4114, %v4126
    %v4131 = vadd.f32 %v4115, %v4126
    %v4132 = vadd.f32 %v4116, %v4126
    %v4133 = vadd.f32 %v4117, %v4126
    %v4134 = vadd.f32 %v4118, %v4126
    %v4135 = vadd.f32 %v4119, %v4126
    %v4136 = vadd.f32 %v4120, %v4126
    %v4137 = vadd.f32 %v4121, %v4126
    %v4138 = vadd.f32 %v4122, %v4126
    %v4139 = vpack.c.bf16 %v4128, %v4127
    %v4140 = vpack.c.bf16 %v4130, %v4129
    %v4141 = vpack.c.bf16 %v4132, %v4131
    %v4142 = vpack.c.bf16 %v4134, %v4133
    %v4143 = vpack.c.bf16 %v4136, %v4135
    %v4144 = vpack.c.bf16 %v4138, %v4137
    %s4145 = scalar_lea.vmem %s3, 96
    %v4146 = vld [vmem:[%s4145] sm:$0xff]
    %v4147 = vld [vmem:[%s4145 + $0x8] sm:$0xf]
    %v4148 = vld [vmem:[%s4145 + $0xc] sm:$0xff]
    %v4149 = vld [vmem:[%s4145 + $0x14] sm:$0xf]
    %v4150 = vld [vmem:[%s4145 + $0x18] sm:$0xff]
    %v4151 = vld [vmem:[%s4145 + $0x20] sm:$0xf]
    %v4152 = vld [vmem:[%s4145 + $0x24] sm:$0xff]
    %v4153 = vld [vmem:[%s4145 + $0x2c] sm:$0xf]
    %v4154 = vld [vmem:[%s4145 + $0x30] sm:$0xff]
    %v4155 = vld [vmem:[%s4145 + $0x38] sm:$0xf]
    %v4156 = vld [vmem:[%s4145 + $0x3c] sm:$0xff]
    %v4157 = vld [vmem:[%s4145 + $0x44] sm:$0xf]
    %v4158 = vld [vmem:[%s4145 + $0x48] sm:$0xff]
    %v4159 = vld [vmem:[%s4145 + $0x50] sm:$0xf]
    %v4160 = vld [vmem:[%s4145 + $0x54] sm:$0xff]
    %v4161 = vld [vmem:[%s4145 + $0x5c] sm:$0xf]
    %v4162 = vlaneseq
    %v4163 = vshrl.u32 %v4162, 7
    %v4164 = vsub.s32 2, %v4163
    %v4165 = vrot.slane %v3948, %v4164
    %v4166 = vlaneseq
    %v4167 = vshrl.u32 %v4166, 7
    %v4168 = vsub.s32 2, %v4167
    %v4169 = vrot.slane %v3949, %v4168
    %v4170 = vlaneseq
    %v4171 = vshrl.u32 %v4170, 7
    %v4172 = vsub.s32 2, %v4171
    %v4173 = vrot.slane %v3950, %v4172
    %v4190 = vunpack.c.l.b16 %v4146
    %v4191 = vunpack.c.h.b16 %v4146
    %v4192 = vunpack.c.l.b16 %v4147
    %v4193 = vunpack.c.l.b16 %v4148
    %v4194 = vunpack.c.h.b16 %v4148
    %v4195 = vunpack.c.l.b16 %v4149
    %v4196 = vunpack.c.l.b16 %v4150
    %v4197 = vunpack.c.h.b16 %v4150
    %v4198 = vunpack.c.l.b16 %v4151
    %v4199 = vunpack.c.l.b16 %v4152
    %v4200 = vunpack.c.h.b16 %v4152
    %v4201 = vunpack.c.l.b16 %v4153
    %v4202 = vunpack.c.l.b16 %v4154
    %v4203 = vunpack.c.h.b16 %v4154
    %v4204 = vunpack.c.l.b16 %v4155
    %v4205 = vunpack.c.l.b16 %v4156
    %v4206 = vunpack.c.h.b16 %v4156
    %v4207 = vunpack.c.l.b16 %v4157
    %v4208 = vunpack.c.l.b16 %v4158
    %v4209 = vunpack.c.h.b16 %v4158
    %v4210 = vunpack.c.l.b16 %v4159
    %v4211 = vunpack.c.l.b16 %v4160
    %v4212 = vunpack.c.h.b16 %v4160
    %v4213 = vunpack.c.l.b16 %v4161
    %v4214 = vpack.c.b16 %v4193, %v4190
    %v4215 = vpack.c.b16 %v4194, %v4191
    %v4216 = vpack.c.b16 %v4195, %v4192
    %v4217 = vpack.c.b16 %v4199, %v4196
    %v4218 = vpack.c.b16 %v4200, %v4197
    %v4219 = vpack.c.b16 %v4201, %v4198
    %v4220 = vpack.c.b16 %v4205, %v4202
    %v4221 = vpack.c.b16 %v4206, %v4203
    %v4222 = vpack.c.b16 %v4207, %v4204
    %v4223 = vpack.c.b16 %v4211, %v4208
    %v4224 = vpack.c.b16 %v4212, %v4209
    %v4225 = vpack.c.b16 %v4213, %v4210
    %v4239 = vsel %vm641, %v4139, 0
    %v4242 = vsel %vm641, %v4140, 0
    %v4245 = vsel %vm641, %v4141, 0
    %v4248 = vsel %vm641, %v4142, 0
    %v4251 = vsel %vm641, %v4143, 0
    %v4254 = vsel %vm641, %v4144, 0
    %4256 = vmatprep.subr.bf16.mxu0 %v4215
    %4257 = vmatpush1.bf16.msra.mxu0 %v4214
    %4258 = vmatprep.subr.bf16.mxu0 %v4218
    %4259 = vmatpush1.bf16.msra.mxu0 %v4217
    %4260 = vmatprep.subr.bf16.mxu0 %v4221
    %4261 = vmatpush1.bf16.msra.mxu0 %v4220
    %4262 = vmatprep.subr.bf16.mxu0 %v4224
    %4263 = vmatpush1.bf16.msra.mxu0 %v4223
    %4264 = vmatprep.subr.bf16.mxu0 0
    %4265 = vmatpush1.bf16.msra.mxu0 0
    %4266 = vmatprep.subr.bf16.mxu0 0
    %4267 = vmatpush1.bf16.msra.mxu0 0
    %4268 = vmatprep.subr.bf16.mxu0 0
    %4269 = vmatpush1.bf16.msra.mxu0 0
    %4270 = vmatprep.subr.bf16.mxu0 0
    %4271 = vmatpush1.bf16.msra.mxu0 0
    %4272 = vmatprep.subr.bf16.mxu0 0
    %4273 = vmatpush1.bf16.msra.mxu0 0
    %4274 = vmatprep.subr.bf16.mxu0 0
    %4275 = vmatpush1.bf16.msra.mxu0 0
    %4276 = vmatprep.subr.bf16.mxu0 0
    %4277 = vmatpush1.bf16.msra.mxu0 0
    %4278 = vmatprep.subr.bf16.mxu0 0
    %4279 = vmatpush1.bf16.msra.mxu0 0
    %4280 = vmatprep.subr.bf16.mxu0 0
    %4281 = vmatpush1.bf16.msra.mxu0 0
    %4282 = vmatprep.subr.bf16.mxu0 0
    %4283 = vmatpush1.bf16.msra.mxu0 0
    %4284 = vmatprep.subr.bf16.mxu0 0
    %4285 = vmatpush1.bf16.msra.mxu0 0
    %4286 = vmatprep.subr.bf16.mxu0 0
    %4287 = vmatpush1.bf16.msra.mxu0 0
    %4288 = vmatprep.mubr.bf16.mxu0 0
    %4289 = vmatmul.mubr.bf16.gmra.mrb[0].mxu0 %v4239
    %v4290 = vpop.f32.mrb[0].mxu0
    %v4291 = vadd.f32 %v4165, %v4290
    %v4292 = vpop.f32.mrb[0].mxu0
    %v4293 = vadd.f32 %v4169, %v4292
    %v4294 = vpop.f32.mrb[0].mxu0
    %v4295 = vadd.f32 %v4165, %v4294
    %v4296 = vpop.f32.mrb[0].mxu0
    %v4297 = vadd.f32 %v4169, %v4296
    %4298 = vmatprep.mubr.bf16.mxu0 0
    %4299 = vmatmul.mubr.bf16.gmra.mrb[0].mxu0 %v4242
    %v4300 = vpop.f32.mrb[0].mxu0
    %v4301 = vadd.f32 %v4165, %v4300
    %v4302 = vpop.f32.mrb[0].mxu0
    %v4303 = vadd.f32 %v4169, %v4302
    %v4304 = vpop.f32.mrb[0].mxu0
    %v4305 = vadd.f32 %v4165, %v4304
    %v4306 = vpop.f32.mrb[0].mxu0
    %v4307 = vadd.f32 %v4169, %v4306
    %4308 = vmatprep.mubr.bf16.mxu0 0
    %4309 = vmatmul.mubr.bf16.gmra.mrb[0].mxu0 %v4245
    %v4310 = vpop.f32.mrb[0].mxu0
    %v4311 = vadd.f32 %v4165, %v4310
    %v4312 = vpop.f32.mrb[0].mxu0
    %v4313 = vadd.f32 %v4169, %v4312
    %v4314 = vpop.f32.mrb[0].mxu0
    %v4315 = vadd.f32 %v4165, %v4314
    %v4316 = vpop.f32.mrb[0].mxu0
    %v4317 = vadd.f32 %v4169, %v4316
    %4318 = vmatprep.mubr.bf16.mxu0 0
    %4319 = vmatmul.mubr.bf16.gmra.mrb[0].mxu0 %v4248
    %v4320 = vpop.f32.mrb[0].mxu0
    %v4321 = vadd.f32 %v4165, %v4320
    %v4322 = vpop.f32.mrb[0].mxu0
    %v4323 = vadd.f32 %v4169, %v4322
    %v4324 = vpop.f32.mrb[0].mxu0
    %v4325 = vadd.f32 %v4165, %v4324
    %v4326 = vpop.f32.mrb[0].mxu0
    %v4327 = vadd.f32 %v4169, %v4326
    %4328 = vmatprep.mubr.bf16.mxu0 0
    %4329 = vmatmul.mubr.bf16.gmra.mrb[0].mxu0 %v4251
    %v4330 = vpop.f32.mrb[0].mxu0
    %v4331 = vadd.f32 %v4165, %v4330
    %v4332 = vpop.f32.mrb[0].mxu0
    %v4333 = vadd.f32 %v4169, %v4332
    %v4334 = vpop.f32.mrb[0].mxu0
    %v4335 = vadd.f32 %v4165, %v4334
    %v4336 = vpop.f32.mrb[0].mxu0
    %v4337 = vadd.f32 %v4169, %v4336
    %4338 = vmatprep.mubr.bf16.mxu0 0
    %4339 = vmatmul.mubr.bf16.gmra.mrb[0].mxu0 %v4254
    %v4340 = vpop.f32.mrb[0].mxu0
    %v4341 = vadd.f32 %v4165, %v4340
    %v4342 = vpop.f32.mrb[0].mxu0
    %v4343 = vadd.f32 %v4169, %v4342
    %v4344 = vpop.f32.mrb[0].mxu0
    %v4345 = vadd.f32 %v4165, %v4344
    %v4346 = vpop.f32.mrb[0].mxu0
    %v4347 = vadd.f32 %v4169, %v4346
    %4348 = vdwg.mxu0
    %4349 = vmatprep.subr.bf16.mxu0 0
    %4350 = vmatpush1.bf16.msra.mxu0 %v4216
    %4351 = vmatprep.subr.bf16.mxu0 0
    %4352 = vmatpush1.bf16.msra.mxu0 %v4219
    %4353 = vmatprep.subr.bf16.mxu0 0
    %4354 = vmatpush1.bf16.msra.mxu0 %v4222
    %4355 = vmatprep.subr.bf16.mxu0 0
    %4356 = vmatpush1.bf16.msra.mxu0 %v4225
    %4357 = vmatprep.subr.bf16.mxu0 0
    %4358 = vmatpush1.bf16.msra.mxu0 0
    %4359 = vmatprep.subr.bf16.mxu0 0
    %4360 = vmatpush1.bf16.msra.mxu0 0
    %4361 = vmatprep.subr.bf16.mxu0 0
    %4362 = vmatpush1.bf16.msra.mxu0 0
    %4363 = vmatprep.subr.bf16.mxu0 0
    %4364 = vmatpush1.bf16.msra.mxu0 0
    %4365 = vmatprep.subr.bf16.mxu0 0
    %4366 = vmatpush1.bf16.msra.mxu0 0
    %4367 = vmatprep.subr.bf16.mxu0 0
    %4368 = vmatpush1.bf16.msra.mxu0 0
    %4369 = vmatprep.subr.bf16.mxu0 0
    %4370 = vmatpush1.bf16.msra.mxu0 0
    %4371 = vmatprep.subr.bf16.mxu0 0
    %4372 = vmatpush1.bf16.msra.mxu0 0
    %4373 = vmatprep.subr.bf16.mxu0 0
    %4374 = vmatpush1.bf16.msra.mxu0 0
    %4375 = vmatprep.subr.bf16.mxu0 0
    %4376 = vmatpush1.bf16.msra.mxu0 0
    %4377 = vmatprep.subr.bf16.mxu0 0
    %4378 = vmatpush1.bf16.msra.mxu0 0
    %4379 = vmatprep.subr.bf16.mxu0 0
    %4380 = vmatpush1.bf16.msra.mxu0 0
    %4381 = vmatprep.mubr.bf16.mxu0 0
    %4382 = vmatmul.mubr.bf16.gmra.mrb[0].mxu0 %v4239
    %v4383 = vpop.f32.mrb[0].mxu0
    %v4384 = vadd.f32 %v4173, %v4383
    %v4385 = vpop.f32.mrb[0].mxu0
    %v4386 = vpop.f32.mrb[0].mxu0
    %v4387 = vadd.f32 %v4173, %v4386
    %v4388 = vpop.f32.mrb[0].mxu0
    %4389 = vmatprep.mubr.bf16.mxu0 0
    %4390 = vmatmul.mubr.bf16.gmra.mrb[0].mxu0 %v4242
    %v4391 = vpop.f32.mrb[0].mxu0
    %v4392 = vadd.f32 %v4173, %v4391
    %v4393 = vpop.f32.mrb[0].mxu0
    %v4394 = vpop.f32.mrb[0].mxu0
    %v4395 = vadd.f32 %v4173, %v4394
    %v4396 = vpop.f32.mrb[0].mxu0
    %4397 = vmatprep.mubr.bf16.mxu0 0
    %4398 = vmatmul.mubr.bf16.gmra.mrb[0].mxu0 %v4245
    %v4399 = vpop.f32.mrb[0].mxu0
    %v4400 = vadd.f32 %v4173, %v4399
    %v4401 = vpop.f32.mrb[0].mxu0
    %v4402 = vpop.f32.mrb[0].mxu0
    %v4403 = vadd.f32 %v4173, %v4402
    %v4404 = vpop.f32.mrb[0].mxu0
    %4405 = vmatprep.mubr.bf16.mxu0 0
    %4406 = vmatmul.mubr.bf16.gmra.mrb[0].mxu0 %v4248
    %v4407 = vpop.f32.mrb[0].mxu0
    %v4408 = vadd.f32 %v4173, %v4407
    %v4409 = vpop.f32.mrb[0].mxu0
    %v4410 = vpop.f32.mrb[0].mxu0
    %v4411 = vadd.f32 %v4173, %v4410
    %v4412 = vpop.f32.mrb[0].mxu0
    %4413 = vmatprep.mubr.bf16.mxu0 0
    %4414 = vmatmul.mubr.bf16.gmra.mrb[0].mxu0 %v4251
    %v4415 = vpop.f32.mrb[0].mxu0
    %v4416 = vadd.f32 %v4173, %v4415
    %v4417 = vpop.f32.mrb[0].mxu0
    %v4418 = vpop.f32.mrb[0].mxu0
    %v4419 = vadd.f32 %v4173, %v4418
    %v4420 = vpop.f32.mrb[0].mxu0
    %4421 = vmatprep.mubr.bf16.mxu0 0
    %4422 = vmatmul.mubr.bf16.gmra.mrb[0].mxu0 %v4254
    %v4423 = vpop.f32.mrb[0].mxu0
    %v4424 = vadd.f32 %v4173, %v4423
    %v4425 = vpop.f32.mrb[0].mxu0
    %v4426 = vpop.f32.mrb[0].mxu0
    %v4427 = vadd.f32 %v4173, %v4426
    %v4428 = vpop.f32.mrb[0].mxu0
    %4429 = vdwg.mxu0
    %v4430 = vpack.c.bf16 %v4295, %v4291
    %v4431 = vpack.c.bf16 %v4297, %v4293
    %v4432 = vpack.c.bf16 %v4387, %v4384
    %v4433 = vpack.c.bf16 %v4305, %v4301
    %v4434 = vpack.c.bf16 %v4307, %v4303
    %v4435 = vpack.c.bf16 %v4395, %v4392
    %v4436 = vpack.c.bf16 %v4315, %v4311
    %v4437 = vpack.c.bf16 %v4317, %v4313
    %v4438 = vpack.c.bf16 %v4403, %v4400
    %v4439 = vpack.c.bf16 %v4325, %v4321
    %v4440 = vpack.c.bf16 %v4327, %v4323
    %v4441 = vpack.c.bf16 %v4411, %v4408
    %v4442 = vpack.c.bf16 %v4335, %v4331
    %v4443 = vpack.c.bf16 %v4337, %v4333
    %v4444 = vpack.c.bf16 %v4419, %v4416
    %v4445 = vpack.c.bf16 %v4345, %v4341
    %v4446 = vpack.c.bf16 %v4347, %v4343
    %v4447 = vpack.c.bf16 %v4427, %v4424
    %v4448 = vmul.bf16 %v4430, %v1145
    %v4449 = vmul.bf16 %v4433, %v1145
    %v4450 = vmul.bf16 %v4436, %v1145
    %v4451 = vmul.bf16 %v4439, %v1145
    %v4452 = vmul.bf16 %v4442, %v1145
    %v4453 = vmul.bf16 %v4445, %v1145
    %v4454 = vmul.bf16 %v4430, %v1152
    %v4455 = vmul.bf16 %v4433, %v1152
    %v4456 = vmul.bf16 %v4436, %v1152
    %v4457 = vmul.bf16 %v4439, %v1152
    %v4458 = vmul.bf16 %v4442, %v1152
    %v4459 = vmul.bf16 %v4445, %v1152
    %v4460 = vmul.bf16 %v4430, %v1159
    %v4461 = vmul.bf16 %v4433, %v1159
    %v4462 = vmul.bf16 %v4436, %v1159
    %v4463 = vmul.bf16 %v4439, %v1159
    %v4464 = vmul.bf16 %v4442, %v1159
    %v4465 = vmul.bf16 %v4445, %v1159
    %v4466 = vmul.bf16 %v4430, %v1166
    %v4467 = vmul.bf16 %v4433, %v1166
    %v4468 = vmul.bf16 %v4436, %v1166
    %v4469 = vmul.bf16 %v4439, %v1166
    %v4470 = vmul.bf16 %v4442, %v1166
    %v4471 = vmul.bf16 %v4445, %v1166
    %v4473 = vsel %vm641, %v4448, 0
    %v4476 = vsel %vm641, %v4449, 0
    %v4479 = vsel %vm641, %v4450, 0
    %v4482 = vsel %vm641, %v4431, 0
    %v4485 = vsel %vm641, %v4434, 0
    %v4488 = vsel %vm641, %v4437, 0
    %4490 = vmatprep.subr.bf16.mxu0 0
    %4491 = vmatpush1.bf16.xpose.msra.mxu0 %v4482
    %4492 = vmatprep.subr.bf16.mxu0 0
    %4493 = vmatpush1.bf16.xpose.msra.mxu0 %v4485
    %4494 = vmatprep.subr.bf16.mxu0 0
    %4495 = vmatpush1.bf16.xpose.msra.mxu0 %v4488
    %4496 = vmatprep.subr.bf16.mxu0 0
    %4497 = vmatpush1.bf16.xpose.msra.mxu0 0
    %4498 = vmatprep.subr.bf16.mxu0 0
    %4499 = vmatpush1.bf16.xpose.msra.mxu0 0
    %4500 = vmatprep.subr.bf16.mxu0 0
    %4501 = vmatpush1.bf16.xpose.msra.mxu0 0
    %4502 = vmatprep.subr.bf16.mxu0 0
    %4503 = vmatpush1.bf16.xpose.msra.mxu0 0
    %4504 = vmatprep.subr.bf16.mxu0 0
    %4505 = vmatpush1.bf16.xpose.msra.mxu0 0
    %4506 = vmatprep.subr.bf16.mxu0 0
    %4507 = vmatpush1.bf16.xpose.msra.mxu0 0
    %4508 = vmatprep.subr.bf16.mxu0 0
    %4509 = vmatpush1.bf16.xpose.msra.mxu0 0
    %4510 = vmatprep.subr.bf16.mxu0 0
    %4511 = vmatpush1.bf16.xpose.msra.mxu0 0
    %4512 = vmatprep.subr.bf16.mxu0 0
    %4513 = vmatpush1.bf16.xpose.msra.mxu0 0
    %4514 = vmatprep.subr.bf16.mxu0 0
    %4515 = vmatpush1.bf16.xpose.msra.mxu0 0
    %4516 = vmatprep.subr.bf16.mxu0 0
    %4517 = vmatpush1.bf16.xpose.msra.mxu0 0
    %4518 = vmatprep.subr.bf16.mxu0 0
    %4519 = vmatpush1.bf16.xpose.msra.mxu0 0
    %4520 = vmatprep.subr.bf16.mxu0 0
    %4521 = vmatpush1.bf16.xpose.msra.mxu0 0
    %4522 = vmatprep.mubr.bf16.mxu0 0
    %4523 = vmatmul.mubr.bf16.gmra.mrb[0].mxu0 %v4473
    %v4524 = vpop.f32.mrb[0].mxu0
    %v4525 = vadd.f32 0.0, %v4524
    %v4526 = vpop.f32.mrb[0].mxu0
    %v4527 = vpop.f32.mrb[0].mxu0
    %v4528 = vadd.f32 0.0, %v4527
    %v4529 = vpop.f32.mrb[0].mxu0
    %4530 = vmatprep.mubr.bf16.mxu0 0
    %4531 = vmatmul.mubr.bf16.gmra.mrb[0].mxu0 %v4476
    %v4532 = vpop.f32.mrb[0].mxu0
    %v4533 = vadd.f32 0.0, %v4532
    %v4534 = vpop.f32.mrb[0].mxu0
    %v4535 = vpop.f32.mrb[0].mxu0
    %v4536 = vadd.f32 0.0, %v4535
    %v4537 = vpop.f32.mrb[0].mxu0
    %4538 = vmatprep.mubr.bf16.mxu0 0
    %4539 = vmatmul.mubr.bf16.gmra.mrb[0].mxu0 %v4479
    %v4540 = vpop.f32.mrb[0].mxu0
    %v4541 = vadd.f32 0.0, %v4540
    %v4542 = vpop.f32.mrb[0].mxu0
    %v4543 = vpop.f32.mrb[0].mxu0
    %v4544 = vadd.f32 0.0, %v4543
    %v4545 = vpop.f32.mrb[0].mxu0
    %4546 = vdwg.mxu0
    %v4548 = vsel %vm641, %v4451, 0
    %v4551 = vsel %vm641, %v4452, 0
    %v4554 = vsel %vm641, %v4453, 0
    %v4557 = vsel %vm641, %v4440, 0
    %v4560 = vsel %vm641, %v4443, 0
    %v4563 = vsel %vm641, %v4446, 0
    %4565 = vmatprep.subr.bf16.mxu0 0
    %4566 = vmatpush1.bf16.xpose.msra.mxu0 %v4557
    %4567 = vmatprep.subr.bf16.mxu0 0
    %4568 = vmatpush1.bf16.xpose.msra.mxu0 %v4560
    %4569 = vmatprep.subr.bf16.mxu0 0
    %4570 = vmatpush1.bf16.xpose.msra.mxu0 %v4563
    %4571 = vmatprep.subr.bf16.mxu0 0
    %4572 = vmatpush1.bf16.xpose.msra.mxu0 0
    %4573 = vmatprep.subr.bf16.mxu0 0
    %4574 = vmatpush1.bf16.xpose.msra.mxu0 0
    %4575 = vmatprep.subr.bf16.mxu0 0
    %4576 = vmatpush1.bf16.xpose.msra.mxu0 0
    %4577 = vmatprep.subr.bf16.mxu0 0
    %4578 = vmatpush1.bf16.xpose.msra.mxu0 0
    %4579 = vmatprep.subr.bf16.mxu0 0
    %4580 = vmatpush1.bf16.xpose.msra.mxu0 0
    %4581 = vmatprep.subr.bf16.mxu0 0
    %4582 = vmatpush1.bf16.xpose.msra.mxu0 0
    %4583 = vmatprep.subr.bf16.mxu0 0
    %4584 = vmatpush1.bf16.xpose.msra.mxu0 0
    %4585 = vmatprep.subr.bf16.mxu0 0
    %4586 = vmatpush1.bf16.xpose.msra.mxu0 0
    %4587 = vmatprep.subr.bf16.mxu0 0
    %4588 = vmatpush1.bf16.xpose.msra.mxu0 0
    %4589 = vmatprep.subr.bf16.mxu0 0
    %4590 = vmatpush1.bf16.xpose.msra.mxu0 0
    %4591 = vmatprep.subr.bf16.mxu0 0
    %4592 = vmatpush1.bf16.xpose.msra.mxu0 0
    %4593 = vmatprep.subr.bf16.mxu0 0
    %4594 = vmatpush1.bf16.xpose.msra.mxu0 0
    %4595 = vmatprep.subr.bf16.mxu0 0
    %4596 = vmatpush1.bf16.xpose.msra.mxu0 0
    %4597 = vmatprep.mubr.bf16.mxu0 0
    %4598 = vmatmul.mubr.bf16.gmra.mrb[0].mxu0 %v4548
    %v4599 = vpop.f32.mrb[0].mxu0
    %v4600 = vadd.f32 0.0, %v4599
    %v4601 = vpop.f32.mrb[0].mxu0
    %v4602 = vpop.f32.mrb[0].mxu0
    %v4603 = vadd.f32 0.0, %v4602
    %v4604 = vpop.f32.mrb[0].mxu0
    %4605 = vmatprep.mubr.bf16.mxu0 0
    %4606 = vmatmul.mubr.bf16.gmra.mrb[0].mxu0 %v4551
    %v4607 = vpop.f32.mrb[0].mxu0
    %v4608 = vadd.f32 0.0, %v4607
    %v4609 = vpop.f32.mrb[0].mxu0
    %v4610 = vpop.f32.mrb[0].mxu0
    %v4611 = vadd.f32 0.0, %v4610
    %v4612 = vpop.f32.mrb[0].mxu0
    %4613 = vmatprep.mubr.bf16.mxu0 0
    %4614 = vmatmul.mubr.bf16.gmra.mrb[0].mxu0 %v4554
    %v4615 = vpop.f32.mrb[0].mxu0
    %v4616 = vadd.f32 0.0, %v4615
    %v4617 = vpop.f32.mrb[0].mxu0
    %v4618 = vpop.f32.mrb[0].mxu0
    %v4619 = vadd.f32 0.0, %v4618
    %v4620 = vpop.f32.mrb[0].mxu0
    %4621 = vdwg.mxu0
    %v4623 = vsel %vm641, %v4454, 0
    %v4626 = vsel %vm641, %v4455, 0
    %v4629 = vsel %vm641, %v4456, 0
    %4631 = vmatprep.subr.bf16.mxu0 0
    %4632 = vmatpush1.bf16.xpose.msra.mxu0 %v4482
    %4633 = vmatprep.subr.bf16.mxu0 0
    %4634 = vmatpush1.bf16.xpose.msra.mxu0 %v4485
    %4635 = vmatprep.subr.bf16.mxu0 0
    %4636 = vmatpush1.bf16.xpose.msra.mxu0 %v4488
    %4637 = vmatprep.subr.bf16.mxu0 0
    %4638 = vmatpush1.bf16.xpose.msra.mxu0 0
    %4639 = vmatprep.subr.bf16.mxu0 0
    %4640 = vmatpush1.bf16.xpose.msra.mxu0 0
    %4641 = vmatprep.subr.bf16.mxu0 0
    %4642 = vmatpush1.bf16.xpose.msra.mxu0 0
    %4643 = vmatprep.subr.bf16.mxu0 0
    %4644 = vmatpush1.bf16.xpose.msra.mxu0 0
    %4645 = vmatprep.subr.bf16.mxu0 0
    %4646 = vmatpush1.bf16.xpose.msra.mxu0 0
    %4647 = vmatprep.subr.bf16.mxu0 0
    %4648 = vmatpush1.bf16.xpose.msra.mxu0 0
    %4649 = vmatprep.subr.bf16.mxu0 0
    %4650 = vmatpush1.bf16.xpose.msra.mxu0 0
    %4651 = vmatprep.subr.bf16.mxu0 0
    %4652 = vmatpush1.bf16.xpose.msra.mxu0 0
    %4653 = vmatprep.subr.bf16.mxu0 0
    %4654 = vmatpush1.bf16.xpose.msra.mxu0 0
    %4655 = vmatprep.subr.bf16.mxu0 0
    %4656 = vmatpush1.bf16.xpose.msra.mxu0 0
    %4657 = vmatprep.subr.bf16.mxu0 0
    %4658 = vmatpush1.bf16.xpose.msra.mxu0 0
    %4659 = vmatprep.subr.bf16.mxu0 0
    %4660 = vmatpush1.bf16.xpose.msra.mxu0 0
    %4661 = vmatprep.subr.bf16.mxu0 0
    %4662 = vmatpush1.bf16.xpose.msra.mxu0 0
    %4663 = vmatprep.mubr.bf16.mxu0 0
    %4664 = vmatmul.mubr.bf16.gmra.mrb[0].mxu0 %v4623
    %v4665 = vpop.f32.mrb[0].mxu0
    %v4666 = vadd.f32 0.0, %v4665
    %v4667 = vpop.f32.mrb[0].mxu0
    %v4668 = vpop.f32.mrb[0].mxu0
    %v4669 = vadd.f32 0.0, %v4668
    %v4670 = vpop.f32.mrb[0].mxu0
    %4671 = vmatprep.mubr.bf16.mxu0 0
    %4672 = vmatmul.mubr.bf16.gmra.mrb[0].mxu0 %v4626
    %v4673 = vpop.f32.mrb[0].mxu0
    %v4674 = vadd.f32 0.0, %v4673
    %v4675 = vpop.f32.mrb[0].mxu0
    %v4676 = vpop.f32.mrb[0].mxu0
    %v4677 = vadd.f32 0.0, %v4676
    %v4678 = vpop.f32.mrb[0].mxu0
    %4679 = vmatprep.mubr.bf16.mxu0 0
    %4680 = vmatmul.mubr.bf16.gmra.mrb[0].mxu0 %v4629
    %v4681 = vpop.f32.mrb[0].mxu0
    %v4682 = vadd.f32 0.0, %v4681
    %v4683 = vpop.f32.mrb[0].mxu0
    %v4684 = vpop.f32.mrb[0].mxu0
    %v4685 = vadd.f32 0.0, %v4684
    %v4686 = vpop.f32.mrb[0].mxu0
    %4687 = vdwg.mxu0
    %v4689 = vsel %vm641, %v4457, 0
    %v4692 = vsel %vm641, %v4458, 0
    %v4695 = vsel %vm641, %v4459, 0
    %4697 = vmatprep.subr.bf16.mxu0 0
    %4698 = vmatpush1.bf16.xpose.msra.mxu0 %v4557
    %4699 = vmatprep.subr.bf16.mxu0 0
    %4700 = vmatpush1.bf16.xpose.msra.mxu0 %v4560
    %4701 = vmatprep.subr.bf16.mxu0 0
    %4702 = vmatpush1.bf16.xpose.msra.mxu0 %v4563
    %4703 = vmatprep.subr.bf16.mxu0 0
    %4704 = vmatpush1.bf16.xpose.msra.mxu0 0
    %4705 = vmatprep.subr.bf16.mxu0 0
    %4706 = vmatpush1.bf16.xpose.msra.mxu0 0
    %4707 = vmatprep.subr.bf16.mxu0 0
    %4708 = vmatpush1.bf16.xpose.msra.mxu0 0
    %4709 = vmatprep.subr.bf16.mxu0 0
    %4710 = vmatpush1.bf16.xpose.msra.mxu0 0
    %4711 = vmatprep.subr.bf16.mxu0 0
    %4712 = vmatpush1.bf16.xpose.msra.mxu0 0
    %4713 = vmatprep.subr.bf16.mxu0 0
    %4714 = vmatpush1.bf16.xpose.msra.mxu0 0
    %4715 = vmatprep.subr.bf16.mxu0 0
    %4716 = vmatpush1.bf16.xpose.msra.mxu0 0
    %4717 = vmatprep.subr.bf16.mxu0 0
    %4718 = vmatpush1.bf16.xpose.msra.mxu0 0
    %4719 = vmatprep.subr.bf16.mxu0 0
    %4720 = vmatpush1.bf16.xpose.msra.mxu0 0
    %4721 = vmatprep.subr.bf16.mxu0 0
    %4722 = vmatpush1.bf16.xpose.msra.mxu0 0
    %4723 = vmatprep.subr.bf16.mxu0 0
    %4724 = vmatpush1.bf16.xpose.msra.mxu0 0
    %4725 = vmatprep.subr.bf16.mxu0 0
    %4726 = vmatpush1.bf16.xpose.msra.mxu0 0
    %4727 = vmatprep.subr.bf16.mxu0 0
    %4728 = vmatpush1.bf16.xpose.msra.mxu0 0
    %4729 = vmatprep.mubr.bf16.mxu0 0
    %4730 = vmatmul.mubr.bf16.gmra.mrb[0].mxu0 %v4689
    %v4731 = vpop.f32.mrb[0].mxu0
    %v4732 = vadd.f32 0.0, %v4731
    %v4733 = vpop.f32.mrb[0].mxu0
    %v4734 = vpop.f32.mrb[0].mxu0
    %v4735 = vadd.f32 0.0, %v4734
    %v4736 = vpop.f32.mrb[0].mxu0
    %4737 = vmatprep.mubr.bf16.mxu0 0
    %4738 = vmatmul.mubr.bf16.gmra.mrb[0].mxu0 %v4692
    %v4739 = vpop.f32.mrb[0].mxu0
    %v4740 = vadd.f32 0.0, %v4739
    %v4741 = vpop.f32.mrb[0].mxu0
    %v4742 = vpop.f32.mrb[0].mxu0
    %v4743 = vadd.f32 0.0, %v4742
    %v4744 = vpop.f32.mrb[0].mxu0
    %4745 = vmatprep.mubr.bf16.mxu0 0
    %4746 = vmatmul.mubr.bf16.gmra.mrb[0].mxu0 %v4695
    %v4747 = vpop.f32.mrb[0].mxu0
    %v4748 = vadd.f32 0.0, %v4747
    %v4749 = vpop.f32.mrb[0].mxu0
    %v4750 = vpop.f32.mrb[0].mxu0
    %v4751 = vadd.f32 0.0, %v4750
    %v4752 = vpop.f32.mrb[0].mxu0
    %4753 = vdwg.mxu0
    %v4755 = vsel %vm641, %v4460, 0
    %v4758 = vsel %vm641, %v4461, 0
    %v4761 = vsel %vm641, %v4462, 0
    %4763 = vmatprep.subr.bf16.mxu0 0
    %4764 = vmatpush1.bf16.xpose.msra.mxu0 %v4482
    %4765 = vmatprep.subr.bf16.mxu0 0
    %4766 = vmatpush1.bf16.xpose.msra.mxu0 %v4485
    %4767 = vmatprep.subr.bf16.mxu0 0
    %4768 = vmatpush1.bf16.xpose.msra.mxu0 %v4488
    %4769 = vmatprep.subr.bf16.mxu0 0
    %4770 = vmatpush1.bf16.xpose.msra.mxu0 0
    %4771 = vmatprep.subr.bf16.mxu0 0
    %4772 = vmatpush1.bf16.xpose.msra.mxu0 0
    %4773 = vmatprep.subr.bf16.mxu0 0
    %4774 = vmatpush1.bf16.xpose.msra.mxu0 0
    %4775 = vmatprep.subr.bf16.mxu0 0
    %4776 = vmatpush1.bf16.xpose.msra.mxu0 0
    %4777 = vmatprep.subr.bf16.mxu0 0
    %4778 = vmatpush1.bf16.xpose.msra.mxu0 0
    %4779 = vmatprep.subr.bf16.mxu0 0
    %4780 = vmatpush1.bf16.xpose.msra.mxu0 0
    %4781 = vmatprep.subr.bf16.mxu0 0
    %4782 = vmatpush1.bf16.xpose.msra.mxu0 0
    %4783 = vmatprep.subr.bf16.mxu0 0
    %4784 = vmatpush1.bf16.xpose.msra.mxu0 0
    %4785 = vmatprep.subr.bf16.mxu0 0
    %4786 = vmatpush1.bf16.xpose.msra.mxu0 0
    %4787 = vmatprep.subr.bf16.mxu0 0
    %4788 = vmatpush1.bf16.xpose.msra.mxu0 0
    %4789 = vmatprep.subr.bf16.mxu0 0
    %4790 = vmatpush1.bf16.xpose.msra.mxu0 0
    %4791 = vmatprep.subr.bf16.mxu0 0
    %4792 = vmatpush1.bf16.xpose.msra.mxu0 0
    %4793 = vmatprep.subr.bf16.mxu0 0
    %4794 = vmatpush1.bf16.xpose.msra.mxu0 0
    %4795 = vmatprep.mubr.bf16.mxu0 0
    %4796 = vmatmul.mubr.bf16.gmra.mrb[0].mxu0 %v4755
    %v4797 = vpop.f32.mrb[0].mxu0
    %v4798 = vadd.f32 0.0, %v4797
    %v4799 = vpop.f32.mrb[0].mxu0
    %v4800 = vpop.f32.mrb[0].mxu0
    %v4801 = vadd.f32 0.0, %v4800
    %v4802 = vpop.f32.mrb[0].mxu0
    %4803 = vmatprep.mubr.bf16.mxu0 0
    %4804 = vmatmul.mubr.bf16.gmra.mrb[0].mxu0 %v4758
    %v4805 = vpop.f32.mrb[0].mxu0
    %v4806 = vadd.f32 0.0, %v4805
    %v4807 = vpop.f32.mrb[0].mxu0
    %v4808 = vpop.f32.mrb[0].mxu0
    %v4809 = vadd.f32 0.0, %v4808
    %v4810 = vpop.f32.mrb[0].mxu0
    %4811 = vmatprep.mubr.bf16.mxu0 0
    %4812 = vmatmul.mubr.bf16.gmra.mrb[0].mxu0 %v4761
    %v4813 = vpop.f32.mrb[0].mxu0
    %v4814 = vadd.f32 0.0, %v4813
    %v4815 = vpop.f32.mrb[0].mxu0
    %v4816 = vpop.f32.mrb[0].mxu0
    %v4817 = vadd.f32 0.0, %v4816
    %v4818 = vpop.f32.mrb[0].mxu0
    %4819 = vdwg.mxu0
    %v4821 = vsel %vm641, %v4463, 0
    %v4824 = vsel %vm641, %v4464, 0
    %v4827 = vsel %vm641, %v4465, 0
    %4829 = vmatprep.subr.bf16.mxu0 0
    %4830 = vmatpush1.bf16.xpose.msra.mxu0 %v4557
    %4831 = vmatprep.subr.bf16.mxu0 0
    %4832 = vmatpush1.bf16.xpose.msra.mxu0 %v4560
    %4833 = vmatprep.subr.bf16.mxu0 0
    %4834 = vmatpush1.bf16.xpose.msra.mxu0 %v4563
    %4835 = vmatprep.subr.bf16.mxu0 0
    %4836 = vmatpush1.bf16.xpose.msra.mxu0 0
    %4837 = vmatprep.subr.bf16.mxu0 0
    %4838 = vmatpush1.bf16.xpose.msra.mxu0 0
    %4839 = vmatprep.subr.bf16.mxu0 0
    %4840 = vmatpush1.bf16.xpose.msra.mxu0 0
    %4841 = vmatprep.subr.bf16.mxu0 0
    %4842 = vmatpush1.bf16.xpose.msra.mxu0 0
    %4843 = vmatprep.subr.bf16.mxu0 0
    %4844 = vmatpush1.bf16.xpose.msra.mxu0 0
    %4845 = vmatprep.subr.bf16.mxu0 0
    %4846 = vmatpush1.bf16.xpose.msra.mxu0 0
    %4847 = vmatprep.subr.bf16.mxu0 0
    %4848 = vmatpush1.bf16.xpose.msra.mxu0 0
    %4849 = vmatprep.subr.bf16.mxu0 0
    %4850 = vmatpush1.bf16.xpose.msra.mxu0 0
    %4851 = vmatprep.subr.bf16.mxu0 0
    %4852 = vmatpush1.bf16.xpose.msra.mxu0 0
    %4853 = vmatprep.subr.bf16.mxu0 0
    %4854 = vmatpush1.bf16.xpose.msra.mxu0 0
    %4855 = vmatprep.subr.bf16.mxu0 0
    %4856 = vmatpush1.bf16.xpose.msra.mxu0 0
    %4857 = vmatprep.subr.bf16.mxu0 0
    %4858 = vmatpush1.bf16.xpose.msra.mxu0 0
    %4859 = vmatprep.subr.bf16.mxu0 0
    %4860 = vmatpush1.bf16.xpose.msra.mxu0 0
    %4861 = vmatprep.mubr.bf16.mxu0 0
    %4862 = vmatmul.mubr.bf16.gmra.mrb[0].mxu0 %v4821
    %v4863 = vpop.f32.mrb[0].mxu0
    %v4864 = vadd.f32 0.0, %v4863
    %v4865 = vpop.f32.mrb[0].mxu0
    %v4866 = vpop.f32.mrb[0].mxu0
    %v4867 = vadd.f32 0.0, %v4866
    %v4868 = vpop.f32.mrb[0].mxu0
    %4869 = vmatprep.mubr.bf16.mxu0 0
    %4870 = vmatmul.mubr.bf16.gmra.mrb[0].mxu0 %v4824
    %v4871 = vpop.f32.mrb[0].mxu0
    %v4872 = vadd.f32 0.0, %v4871
    %v4873 = vpop.f32.mrb[0].mxu0
    %v4874 = vpop.f32.mrb[0].mxu0
    %v4875 = vadd.f32 0.0, %v4874
    %v4876 = vpop.f32.mrb[0].mxu0
    %4877 = vmatprep.mubr.bf16.mxu0 0
    %4878 = vmatmul.mubr.bf16.gmra.mrb[0].mxu0 %v4827
    %v4879 = vpop.f32.mrb[0].mxu0
    %v4880 = vadd.f32 0.0, %v4879
    %v4881 = vpop.f32.mrb[0].mxu0
    %v4882 = vpop.f32.mrb[0].mxu0
    %v4883 = vadd.f32 0.0, %v4882
    %v4884 = vpop.f32.mrb[0].mxu0
    %4885 = vdwg.mxu0
    %v4887 = vsel %vm641, %v4466, 0
    %v4890 = vsel %vm641, %v4467, 0
    %v4893 = vsel %vm641, %v4468, 0
    %4895 = vmatprep.subr.bf16.mxu0 0
    %4896 = vmatpush1.bf16.xpose.msra.mxu0 %v4482
    %4897 = vmatprep.subr.bf16.mxu0 0
    %4898 = vmatpush1.bf16.xpose.msra.mxu0 %v4485
    %4899 = vmatprep.subr.bf16.mxu0 0
    %4900 = vmatpush1.bf16.xpose.msra.mxu0 %v4488
    %4901 = vmatprep.subr.bf16.mxu0 0
    %4902 = vmatpush1.bf16.xpose.msra.mxu0 0
    %4903 = vmatprep.subr.bf16.mxu0 0
    %4904 = vmatpush1.bf16.xpose.msra.mxu0 0
    %4905 = vmatprep.subr.bf16.mxu0 0
    %4906 = vmatpush1.bf16.xpose.msra.mxu0 0
    %4907 = vmatprep.subr.bf16.mxu0 0
    %4908 = vmatpush1.bf16.xpose.msra.mxu0 0
    %4909 = vmatprep.subr.bf16.mxu0 0
    %4910 = vmatpush1.bf16.xpose.msra.mxu0 0
    %4911 = vmatprep.subr.bf16.mxu0 0
    %4912 = vmatpush1.bf16.xpose.msra.mxu0 0
    %4913 = vmatprep.subr.bf16.mxu0 0
    %4914 = vmatpush1.bf16.xpose.msra.mxu0 0
    %4915 = vmatprep.subr.bf16.mxu0 0
    %4916 = vmatpush1.bf16.xpose.msra.mxu0 0
    %4917 = vmatprep.subr.bf16.mxu0 0
    %4918 = vmatpush1.bf16.xpose.msra.mxu0 0
    %4919 = vmatprep.subr.bf16.mxu0 0
    %4920 = vmatpush1.bf16.xpose.msra.mxu0 0
    %4921 = vmatprep.subr.bf16.mxu0 0
    %4922 = vmatpush1.bf16.xpose.msra.mxu0 0
    %4923 = vmatprep.subr.bf16.mxu0 0
    %4924 = vmatpush1.bf16.xpose.msra.mxu0 0
    %4925 = vmatprep.subr.bf16.mxu0 0
    %4926 = vmatpush1.bf16.xpose.msra.mxu0 0
    %4927 = vmatprep.mubr.bf16.mxu0 0
    %4928 = vmatmul.mubr.bf16.gmra.mrb[0].mxu0 %v4887
    %v4929 = vpop.f32.mrb[0].mxu0
    %v4930 = vadd.f32 0.0, %v4929
    %v4931 = vpop.f32.mrb[0].mxu0
    %v4932 = vpop.f32.mrb[0].mxu0
    %v4933 = vadd.f32 0.0, %v4932
    %v4934 = vpop.f32.mrb[0].mxu0
    %4935 = vmatprep.mubr.bf16.mxu0 0
    %4936 = vmatmul.mubr.bf16.gmra.mrb[0].mxu0 %v4890
    %v4937 = vpop.f32.mrb[0].mxu0
    %v4938 = vadd.f32 0.0, %v4937
    %v4939 = vpop.f32.mrb[0].mxu0
    %v4940 = vpop.f32.mrb[0].mxu0
    %v4941 = vadd.f32 0.0, %v4940
    %v4942 = vpop.f32.mrb[0].mxu0
    %4943 = vmatprep.mubr.bf16.mxu0 0
    %4944 = vmatmul.mubr.bf16.gmra.mrb[0].mxu0 %v4893
    %v4945 = vpop.f32.mrb[0].mxu0
    %v4946 = vadd.f32 0.0, %v4945
    %v4947 = vpop.f32.mrb[0].mxu0
    %v4948 = vpop.f32.mrb[0].mxu0
    %v4949 = vadd.f32 0.0, %v4948
    %v4950 = vpop.f32.mrb[0].mxu0
    %4951 = vdwg.mxu0
    %v4953 = vsel %vm641, %v4469, 0
    %v4956 = vsel %vm641, %v4470, 0
    %v4959 = vsel %vm641, %v4471, 0
    %4961 = vmatprep.subr.bf16.mxu0 0
    %4962 = vmatpush1.bf16.xpose.msra.mxu0 %v4557
    %4963 = vmatprep.subr.bf16.mxu0 0
    %4964 = vmatpush1.bf16.xpose.msra.mxu0 %v4560
    %4965 = vmatprep.subr.bf16.mxu0 0
    %4966 = vmatpush1.bf16.xpose.msra.mxu0 %v4563
    %4967 = vmatprep.subr.bf16.mxu0 0
    %4968 = vmatpush1.bf16.xpose.msra.mxu0 0
    %4969 = vmatprep.subr.bf16.mxu0 0
    %4970 = vmatpush1.bf16.xpose.msra.mxu0 0
    %4971 = vmatprep.subr.bf16.mxu0 0
    %4972 = vmatpush1.bf16.xpose.msra.mxu0 0
    %4973 = vmatprep.subr.bf16.mxu0 0
    %4974 = vmatpush1.bf16.xpose.msra.mxu0 0
    %4975 = vmatprep.subr.bf16.mxu0 0
    %4976 = vmatpush1.bf16.xpose.msra.mxu0 0
    %4977 = vmatprep.subr.bf16.mxu0 0
    %4978 = vmatpush1.bf16.xpose.msra.mxu0 0
    %4979 = vmatprep.subr.bf16.mxu0 0
    %4980 = vmatpush1.bf16.xpose.msra.mxu0 0
    %4981 = vmatprep.subr.bf16.mxu0 0
    %4982 = vmatpush1.bf16.xpose.msra.mxu0 0
    %4983 = vmatprep.subr.bf16.mxu0 0
    %4984 = vmatpush1.bf16.xpose.msra.mxu0 0
    %4985 = vmatprep.subr.bf16.mxu0 0
    %4986 = vmatpush1.bf16.xpose.msra.mxu0 0
    %4987 = vmatprep.subr.bf16.mxu0 0
    %4988 = vmatpush1.bf16.xpose.msra.mxu0 0
    %4989 = vmatprep.subr.bf16.mxu0 0
    %4990 = vmatpush1.bf16.xpose.msra.mxu0 0
    %4991 = vmatprep.subr.bf16.mxu0 0
    %4992 = vmatpush1.bf16.xpose.msra.mxu0 0
    %4993 = vmatprep.mubr.bf16.mxu0 0
    %4994 = vmatmul.mubr.bf16.gmra.mrb[0].mxu0 %v4953
    %v4995 = vpop.f32.mrb[0].mxu0
    %v4996 = vadd.f32 0.0, %v4995
    %v4997 = vpop.f32.mrb[0].mxu0
    %v4998 = vpop.f32.mrb[0].mxu0
    %v4999 = vadd.f32 0.0, %v4998
    %v5000 = vpop.f32.mrb[0].mxu0
    %5001 = vmatprep.mubr.bf16.mxu0 0
    %5002 = vmatmul.mubr.bf16.gmra.mrb[0].mxu0 %v4956
    %v5003 = vpop.f32.mrb[0].mxu0
    %v5004 = vadd.f32 0.0, %v5003
    %v5005 = vpop.f32.mrb[0].mxu0
    %v5006 = vpop.f32.mrb[0].mxu0
    %v5007 = vadd.f32 0.0, %v5006
    %v5008 = vpop.f32.mrb[0].mxu0
    %5009 = vmatprep.mubr.bf16.mxu0 0
    %5010 = vmatmul.mubr.bf16.gmra.mrb[0].mxu0 %v4959
    %v5011 = vpop.f32.mrb[0].mxu0
    %v5012 = vadd.f32 0.0, %v5011
    %v5013 = vpop.f32.mrb[0].mxu0
    %v5014 = vpop.f32.mrb[0].mxu0
    %v5015 = vadd.f32 0.0, %v5014
    %v5016 = vpop.f32.mrb[0].mxu0
    %5017 = vdwg.mxu0
    %v5018 = vsel %vm1738, %v4525, -1e+30
    %v5019 = vsel %vm1738, %v4528, -1e+30
    %v5020 = vsel %vm1738, %v4533, -1e+30
    %v5021 = vsel %vm1738, %v4536, -1e+30
    %v5022 = vsel %vm1738, %v4541, -1e+30
    %v5023 = vsel %vm1738, %v4544, -1e+30
    %v5024 = vsel %vm1738, %v4600, -1e+30
    %v5025 = vsel %vm1738, %v4603, -1e+30
    %v5026 = vsel %vm1738, %v4608, -1e+30
    %v5027 = vsel %vm1738, %v4611, -1e+30
    %v5028 = vsel %vm1738, %v4616, -1e+30
    %v5029 = vsel %vm1738, %v4619, -1e+30
    %v5030 = vsel %vm1738, %v4666, -1e+30
    %v5031 = vsel %vm1738, %v4669, -1e+30
    %v5032 = vsel %vm1738, %v4674, -1e+30
    %v5033 = vsel %vm1738, %v4677, -1e+30
    %v5034 = vsel %vm1738, %v4682, -1e+30
    %v5035 = vsel %vm1738, %v4685, -1e+30
    %v5036 = vsel %vm1738, %v4732, -1e+30
    %v5037 = vsel %vm1738, %v4735, -1e+30
    %v5038 = vsel %vm1738, %v4740, -1e+30
    %v5039 = vsel %vm1738, %v4743, -1e+30
    %v5040 = vsel %vm1738, %v4748, -1e+30
    %v5041 = vsel %vm1738, %v4751, -1e+30
    %v5042 = vsel %vm1738, %v4798, -1e+30
    %v5043 = vsel %vm1738, %v4801, -1e+30
    %v5044 = vsel %vm1738, %v4806, -1e+30
    %v5045 = vsel %vm1738, %v4809, -1e+30
    %v5046 = vsel %vm1738, %v4814, -1e+30
    %v5047 = vsel %vm1738, %v4817, -1e+30
    %v5048 = vsel %vm1738, %v4864, -1e+30
    %v5049 = vsel %vm1738, %v4867, -1e+30
    %v5050 = vsel %vm1738, %v4872, -1e+30
    %v5051 = vsel %vm1738, %v4875, -1e+30
    %v5052 = vsel %vm1738, %v4880, -1e+30
    %v5053 = vsel %vm1738, %v4883, -1e+30
    %v5054 = vsel %vm1738, %v4930, -1e+30
    %v5055 = vsel %vm1738, %v4933, -1e+30
    %v5056 = vsel %vm1738, %v4938, -1e+30
    %v5057 = vsel %vm1738, %v4941, -1e+30
    %v5058 = vsel %vm1738, %v4946, -1e+30
    %v5059 = vsel %vm1738, %v4949, -1e+30
    %v5060 = vsel %vm1738, %v4996, -1e+30
    %v5061 = vsel %vm1738, %v4999, -1e+30
    %v5062 = vsel %vm1738, %v5004, -1e+30
    %v5063 = vsel %vm1738, %v5007, -1e+30
    %v5064 = vsel %vm1738, %v5012, -1e+30
    %v5065 = vsel %vm1738, %v5015, -1e+30
    %v5066 = vsel %vm1787, %v5018, -inf
    %5067 = vmax.xlane.f32.xlu0 %v5066
    %v5068 = vpop.xlane.xlu0 %5067
    %v5069 = vsel %vm1787, %v5019, -inf
    %5070 = vmax.xlane.f32.xlu0 %v5069
    %v5071 = vpop.xlane.xlu0 %5070
    %v5072 = vsel %vm1787, %v5020, -inf
    %5073 = vmax.xlane.f32.xlu0 %v5072
    %v5074 = vpop.xlane.xlu0 %5073
    %v5075 = vsel %vm1787, %v5021, -inf
    %5076 = vmax.xlane.f32.xlu0 %v5075
    %v5077 = vpop.xlane.xlu0 %5076
    %v5078 = vsel %vm1787, %v5022, -inf
    %5079 = vmax.xlane.f32.xlu0 %v5078
    %v5080 = vpop.xlane.xlu0 %5079
    %v5081 = vsel %vm1787, %v5023, -inf
    %5082 = vmax.xlane.f32.xlu0 %v5081
    %v5083 = vpop.xlane.xlu0 %5082
    %v5084 = vsel %vm1787, %v5024, -inf
    %5085 = vmax.xlane.f32.xlu0 %v5084
    %v5086 = vpop.xlane.xlu0 %5085
    %v5087 = vsel %vm1787, %v5025, -inf
    %5088 = vmax.xlane.f32.xlu0 %v5087
    %v5089 = vpop.xlane.xlu0 %5088
    %v5090 = vsel %vm1787, %v5026, -inf
    %5091 = vmax.xlane.f32.xlu0 %v5090
    %v5092 = vpop.xlane.xlu0 %5091
    %v5093 = vsel %vm1787, %v5027, -inf
    %5094 = vmax.xlane.f32.xlu0 %v5093
    %v5095 = vpop.xlane.xlu0 %5094
    %v5096 = vsel %vm1787, %v5028, -inf
    %5097 = vmax.xlane.f32.xlu0 %v5096
    %v5098 = vpop.xlane.xlu0 %5097
    %v5099 = vsel %vm1787, %v5029, -inf
    %5100 = vmax.xlane.f32.xlu0 %v5099
    %v5101 = vpop.xlane.xlu0 %5100
    %v5102 = vsel %vm1787, %v5030, -inf
    %5103 = vmax.xlane.f32.xlu0 %v5102
    %v5104 = vpop.xlane.xlu0 %5103
    %v5105 = vsel %vm1787, %v5031, -inf
    %5106 = vmax.xlane.f32.xlu0 %v5105
    %v5107 = vpop.xlane.xlu0 %5106
    %v5108 = vsel %vm1787, %v5032, -inf
    %5109 = vmax.xlane.f32.xlu0 %v5108
    %v5110 = vpop.xlane.xlu0 %5109
    %v5111 = vsel %vm1787, %v5033, -inf
    %5112 = vmax.xlane.f32.xlu0 %v5111
    %v5113 = vpop.xlane.xlu0 %5112
    %v5114 = vsel %vm1787, %v5034, -inf
    %5115 = vmax.xlane.f32.xlu0 %v5114
    %v5116 = vpop.xlane.xlu0 %5115
    %v5117 = vsel %vm1787, %v5035, -inf
    %5118 = vmax.xlane.f32.xlu0 %v5117
    %v5119 = vpop.xlane.xlu0 %5118
    %v5120 = vsel %vm1787, %v5036, -inf
    %5121 = vmax.xlane.f32.xlu0 %v5120
    %v5122 = vpop.xlane.xlu0 %5121
    %v5123 = vsel %vm1787, %v5037, -inf
    %5124 = vmax.xlane.f32.xlu0 %v5123
    %v5125 = vpop.xlane.xlu0 %5124
    %v5126 = vsel %vm1787, %v5038, -inf
    %5127 = vmax.xlane.f32.xlu0 %v5126
    %v5128 = vpop.xlane.xlu0 %5127
    %v5129 = vsel %vm1787, %v5039, -inf
    %5130 = vmax.xlane.f32.xlu0 %v5129
    %v5131 = vpop.xlane.xlu0 %5130
    %v5132 = vsel %vm1787, %v5040, -inf
    %5133 = vmax.xlane.f32.xlu0 %v5132
    %v5134 = vpop.xlane.xlu0 %5133
    %v5135 = vsel %vm1787, %v5041, -inf
    %5136 = vmax.xlane.f32.xlu0 %v5135
    %v5137 = vpop.xlane.xlu0 %5136
    %v5138 = vsel %vm1787, %v5042, -inf
    %5139 = vmax.xlane.f32.xlu0 %v5138
    %v5140 = vpop.xlane.xlu0 %5139
    %v5141 = vsel %vm1787, %v5043, -inf
    %5142 = vmax.xlane.f32.xlu0 %v5141
    %v5143 = vpop.xlane.xlu0 %5142
    %v5144 = vsel %vm1787, %v5044, -inf
    %5145 = vmax.xlane.f32.xlu0 %v5144
    %v5146 = vpop.xlane.xlu0 %5145
    %v5147 = vsel %vm1787, %v5045, -inf
    %5148 = vmax.xlane.f32.xlu0 %v5147
    %v5149 = vpop.xlane.xlu0 %5148
    %v5150 = vsel %vm1787, %v5046, -inf
    %5151 = vmax.xlane.f32.xlu0 %v5150
    %v5152 = vpop.xlane.xlu0 %5151
    %v5153 = vsel %vm1787, %v5047, -inf
    %5154 = vmax.xlane.f32.xlu0 %v5153
    %v5155 = vpop.xlane.xlu0 %5154
    %v5156 = vsel %vm1787, %v5048, -inf
    %5157 = vmax.xlane.f32.xlu0 %v5156
    %v5158 = vpop.xlane.xlu0 %5157
    %v5159 = vsel %vm1787, %v5049, -inf
    %5160 = vmax.xlane.f32.xlu0 %v5159
    %v5161 = vpop.xlane.xlu0 %5160
    %v5162 = vsel %vm1787, %v5050, -inf
    %5163 = vmax.xlane.f32.xlu0 %v5162
    %v5164 = vpop.xlane.xlu0 %5163
    %v5165 = vsel %vm1787, %v5051, -inf
    %5166 = vmax.xlane.f32.xlu0 %v5165
    %v5167 = vpop.xlane.xlu0 %5166
    %v5168 = vsel %vm1787, %v5052, -inf
    %5169 = vmax.xlane.f32.xlu0 %v5168
    %v5170 = vpop.xlane.xlu0 %5169
    %v5171 = vsel %vm1787, %v5053, -inf
    %5172 = vmax.xlane.f32.xlu0 %v5171
    %v5173 = vpop.xlane.xlu0 %5172
    %v5174 = vsel %vm1787, %v5054, -inf
    %5175 = vmax.xlane.f32.xlu0 %v5174
    %v5176 = vpop.xlane.xlu0 %5175
    %v5177 = vsel %vm1787, %v5055, -inf
    %5178 = vmax.xlane.f32.xlu0 %v5177
    %v5179 = vpop.xlane.xlu0 %5178
    %v5180 = vsel %vm1787, %v5056, -inf
    %5181 = vmax.xlane.f32.xlu0 %v5180
    %v5182 = vpop.xlane.xlu0 %5181
    %v5183 = vsel %vm1787, %v5057, -inf
    %5184 = vmax.xlane.f32.xlu0 %v5183
    %v5185 = vpop.xlane.xlu0 %5184
    %v5186 = vsel %vm1787, %v5058, -inf
    %5187 = vmax.xlane.f32.xlu0 %v5186
    %v5188 = vpop.xlane.xlu0 %5187
    %v5189 = vsel %vm1787, %v5059, -inf
    %5190 = vmax.xlane.f32.xlu0 %v5189
    %v5191 = vpop.xlane.xlu0 %5190
    %v5192 = vsel %vm1787, %v5060, -inf
    %5193 = vmax.xlane.f32.xlu0 %v5192
    %v5194 = vpop.xlane.xlu0 %5193
    %v5195 = vsel %vm1787, %v5061, -inf
    %5196 = vmax.xlane.f32.xlu0 %v5195
    %v5197 = vpop.xlane.xlu0 %5196
    %v5198 = vsel %vm1787, %v5062, -inf
    %5199 = vmax.xlane.f32.xlu0 %v5198
    %v5200 = vpop.xlane.xlu0 %5199
    %v5201 = vsel %vm1787, %v5063, -inf
    %5202 = vmax.xlane.f32.xlu0 %v5201
    %v5203 = vpop.xlane.xlu0 %5202
    %v5204 = vsel %vm1787, %v5064, -inf
    %5205 = vmax.xlane.f32.xlu0 %v5204
    %v5206 = vpop.xlane.xlu0 %5205
    %v5207 = vsel %vm1787, %v5065, -inf
    %5208 = vmax.xlane.f32.xlu0 %v5207
    %v5209 = vpop.xlane.xlu0 %5208
    %v5210 = vsub.f32 %v5018, %v5068
    %v5211 = vsub.f32 %v5019, %v5071
    %v5212 = vsub.f32 %v5020, %v5074
    %v5213 = vsub.f32 %v5021, %v5077
    %v5214 = vsub.f32 %v5022, %v5080
    %v5215 = vsub.f32 %v5023, %v5083
    %v5216 = vsub.f32 %v5024, %v5086
    %v5217 = vsub.f32 %v5025, %v5089
    %v5218 = vsub.f32 %v5026, %v5092
    %v5219 = vsub.f32 %v5027, %v5095
    %v5220 = vsub.f32 %v5028, %v5098
    %v5221 = vsub.f32 %v5029, %v5101
    %v5222 = vsub.f32 %v5030, %v5104
    %v5223 = vsub.f32 %v5031, %v5107
    %v5224 = vsub.f32 %v5032, %v5110
    %v5225 = vsub.f32 %v5033, %v5113
    %v5226 = vsub.f32 %v5034, %v5116
    %v5227 = vsub.f32 %v5035, %v5119
    %v5228 = vsub.f32 %v5036, %v5122
    %v5229 = vsub.f32 %v5037, %v5125
    %v5230 = vsub.f32 %v5038, %v5128
    %v5231 = vsub.f32 %v5039, %v5131
    %v5232 = vsub.f32 %v5040, %v5134
    %v5233 = vsub.f32 %v5041, %v5137
    %v5234 = vsub.f32 %v5042, %v5140
    %v5235 = vsub.f32 %v5043, %v5143
    %v5236 = vsub.f32 %v5044, %v5146
    %v5237 = vsub.f32 %v5045, %v5149
    %v5238 = vsub.f32 %v5046, %v5152
    %v5239 = vsub.f32 %v5047, %v5155
    %v5240 = vsub.f32 %v5048, %v5158
    %v5241 = vsub.f32 %v5049, %v5161
    %v5242 = vsub.f32 %v5050, %v5164
    %v5243 = vsub.f32 %v5051, %v5167
    %v5244 = vsub.f32 %v5052, %v5170
    %v5245 = vsub.f32 %v5053, %v5173
    %v5246 = vsub.f32 %v5054, %v5176
    %v5247 = vsub.f32 %v5055, %v5179
    %v5248 = vsub.f32 %v5056, %v5182
    %v5249 = vsub.f32 %v5057, %v5185
    %v5250 = vsub.f32 %v5058, %v5188
    %v5251 = vsub.f32 %v5059, %v5191
    %v5252 = vsub.f32 %v5060, %v5194
    %v5253 = vsub.f32 %v5061, %v5197
    %v5254 = vsub.f32 %v5062, %v5200
    %v5255 = vsub.f32 %v5063, %v5203
    %v5256 = vsub.f32 %v5064, %v5206
    %v5257 = vsub.f32 %v5065, %v5209
    %v5258 = vmul.f32 %v5210, 1.442695
    %v5259 = vpow.pop %v5258
    %v5260 = vmul.f32 %v5211, 1.442695
    %v5261 = vpow.pop %v5260
    %v5262 = vmul.f32 %v5212, 1.442695
    %v5263 = vpow.pop %v5262
    %v5264 = vmul.f32 %v5213, 1.442695
    %v5265 = vpow.pop %v5264
    %v5266 = vmul.f32 %v5214, 1.442695
    %v5267 = vpow.pop %v5266
    %v5268 = vmul.f32 %v5215, 1.442695
    %v5269 = vpow.pop %v5268
    %v5270 = vmul.f32 %v5216, 1.442695
    %v5271 = vpow.pop %v5270
    %v5272 = vmul.f32 %v5217, 1.442695
    %v5273 = vpow.pop %v5272
    %v5274 = vmul.f32 %v5218, 1.442695
    %v5275 = vpow.pop %v5274
    %v5276 = vmul.f32 %v5219, 1.442695
    %v5277 = vpow.pop %v5276
    %v5278 = vmul.f32 %v5220, 1.442695
    %v5279 = vpow.pop %v5278
    %v5280 = vmul.f32 %v5221, 1.442695
    %v5281 = vpow.pop %v5280
    %v5282 = vmul.f32 %v5222, 1.442695
    %v5283 = vpow.pop %v5282
    %v5284 = vmul.f32 %v5223, 1.442695
    %v5285 = vpow.pop %v5284
    %v5286 = vmul.f32 %v5224, 1.442695
    %v5287 = vpow.pop %v5286
    %v5288 = vmul.f32 %v5225, 1.442695
    %v5289 = vpow.pop %v5288
    %v5290 = vmul.f32 %v5226, 1.442695
    %v5291 = vpow.pop %v5290
    %v5292 = vmul.f32 %v5227, 1.442695
    %v5293 = vpow.pop %v5292
    %v5294 = vmul.f32 %v5228, 1.442695
    %v5295 = vpow.pop %v5294
    %v5296 = vmul.f32 %v5229, 1.442695
    %v5297 = vpow.pop %v5296
    %v5298 = vmul.f32 %v5230, 1.442695
    %v5299 = vpow.pop %v5298
    %v5300 = vmul.f32 %v5231, 1.442695
    %v5301 = vpow.pop %v5300
    %v5302 = vmul.f32 %v5232, 1.442695
    %v5303 = vpow.pop %v5302
    %v5304 = vmul.f32 %v5233, 1.442695
    %v5305 = vpow.pop %v5304
    %v5306 = vmul.f32 %v5234, 1.442695
    %v5307 = vpow.pop %v5306
    %v5308 = vmul.f32 %v5235, 1.442695
    %v5309 = vpow.pop %v5308
    %v5310 = vmul.f32 %v5236, 1.442695
    %v5311 = vpow.pop %v5310
    %v5312 = vmul.f32 %v5237, 1.442695
    %v5313 = vpow.pop %v5312
    %v5314 = vmul.f32 %v5238, 1.442695
    %v5315 = vpow.pop %v5314
    %v5316 = vmul.f32 %v5239, 1.442695
    %v5317 = vpow.pop %v5316
    %v5318 = vmul.f32 %v5240, 1.442695
    %v5319 = vpow.pop %v5318
    %v5320 = vmul.f32 %v5241, 1.442695
    %v5321 = vpow.pop %v5320
    %v5322 = vmul.f32 %v5242, 1.442695
    %v5323 = vpow.pop %v5322
    %v5324 = vmul.f32 %v5243, 1.442695
    %v5325 = vpow.pop %v5324
    %v5326 = vmul.f32 %v5244, 1.442695
    %v5327 = vpow.pop %v5326
    %v5328 = vmul.f32 %v5245, 1.442695
    %v5329 = vpow.pop %v5328
    %v5330 = vmul.f32 %v5246, 1.442695
    %v5331 = vpow.pop %v5330
    %v5332 = vmul.f32 %v5247, 1.442695
    %v5333 = vpow.pop %v5332
    %v5334 = vmul.f32 %v5248, 1.442695
    %v5335 = vpow.pop %v5334
    %v5336 = vmul.f32 %v5249, 1.442695
    %v5337 = vpow.pop %v5336
    %v5338 = vmul.f32 %v5250, 1.442695
    %v5339 = vpow.pop %v5338
    %v5340 = vmul.f32 %v5251, 1.442695
    %v5341 = vpow.pop %v5340
    %v5342 = vmul.f32 %v5252, 1.442695
    %v5343 = vpow.pop %v5342
    %v5344 = vmul.f32 %v5253, 1.442695
    %v5345 = vpow.pop %v5344
    %v5346 = vmul.f32 %v5254, 1.442695
    %v5347 = vpow.pop %v5346
    %v5348 = vmul.f32 %v5255, 1.442695
    %v5349 = vpow.pop %v5348
    %v5350 = vmul.f32 %v5256, 1.442695
    %v5351 = vpow.pop %v5350
    %v5352 = vmul.f32 %v5257, 1.442695
    %v5353 = vpow.pop %v5352
    %v5354 = vsel %vm1787, %v5259, 0.0
    %5355 = vadd.xlane.f32.xlu0 %v5354
    %v5356 = vpop.xlane.xlu0 %5355
    %v5357 = vsel %vm1787, %v5261, 0.0
    %5358 = vadd.xlane.f32.xlu0 %v5357
    %v5359 = vpop.xlane.xlu0 %5358
    %v5360 = vsel %vm1787, %v5263, 0.0
    %5361 = vadd.xlane.f32.xlu0 %v5360
    %v5362 = vpop.xlane.xlu0 %5361
    %v5363 = vsel %vm1787, %v5265, 0.0
    %5364 = vadd.xlane.f32.xlu0 %v5363
    %v5365 = vpop.xlane.xlu0 %5364
    %v5366 = vsel %vm1787, %v5267, 0.0
    %5367 = vadd.xlane.f32.xlu0 %v5366
    %v5368 = vpop.xlane.xlu0 %5367
    %v5369 = vsel %vm1787, %v5269, 0.0
    %5370 = vadd.xlane.f32.xlu0 %v5369
    %v5371 = vpop.xlane.xlu0 %5370
    %v5372 = vsel %vm1787, %v5271, 0.0
    %5373 = vadd.xlane.f32.xlu0 %v5372
    %v5374 = vpop.xlane.xlu0 %5373
    %v5375 = vsel %vm1787, %v5273, 0.0
    %5376 = vadd.xlane.f32.xlu0 %v5375
    %v5377 = vpop.xlane.xlu0 %5376
    %v5378 = vsel %vm1787, %v5275, 0.0
    %5379 = vadd.xlane.f32.xlu0 %v5378
    %v5380 = vpop.xlane.xlu0 %5379
    %v5381 = vsel %vm1787, %v5277, 0.0
    %5382 = vadd.xlane.f32.xlu0 %v5381
    %v5383 = vpop.xlane.xlu0 %5382
    %v5384 = vsel %vm1787, %v5279, 0.0
    %5385 = vadd.xlane.f32.xlu0 %v5384
    %v5386 = vpop.xlane.xlu0 %5385
    %v5387 = vsel %vm1787, %v5281, 0.0
    %5388 = vadd.xlane.f32.xlu0 %v5387
    %v5389 = vpop.xlane.xlu0 %5388
    %v5390 = vsel %vm1787, %v5283, 0.0
    %5391 = vadd.xlane.f32.xlu0 %v5390
    %v5392 = vpop.xlane.xlu0 %5391
    %v5393 = vsel %vm1787, %v5285, 0.0
    %5394 = vadd.xlane.f32.xlu0 %v5393
    %v5395 = vpop.xlane.xlu0 %5394
    %v5396 = vsel %vm1787, %v5287, 0.0
    %5397 = vadd.xlane.f32.xlu0 %v5396
    %v5398 = vpop.xlane.xlu0 %5397
    %v5399 = vsel %vm1787, %v5289, 0.0
    %5400 = vadd.xlane.f32.xlu0 %v5399
    %v5401 = vpop.xlane.xlu0 %5400
    %v5402 = vsel %vm1787, %v5291, 0.0
    %5403 = vadd.xlane.f32.xlu0 %v5402
    %v5404 = vpop.xlane.xlu0 %5403
    %v5405 = vsel %vm1787, %v5293, 0.0
    %5406 = vadd.xlane.f32.xlu0 %v5405
    %v5407 = vpop.xlane.xlu0 %5406
    %v5408 = vsel %vm1787, %v5295, 0.0
    %5409 = vadd.xlane.f32.xlu0 %v5408
    %v5410 = vpop.xlane.xlu0 %5409
    %v5411 = vsel %vm1787, %v5297, 0.0
    %5412 = vadd.xlane.f32.xlu0 %v5411
    %v5413 = vpop.xlane.xlu0 %5412
    %v5414 = vsel %vm1787, %v5299, 0.0
    %5415 = vadd.xlane.f32.xlu0 %v5414
    %v5416 = vpop.xlane.xlu0 %5415
    %v5417 = vsel %vm1787, %v5301, 0.0
    %5418 = vadd.xlane.f32.xlu0 %v5417
    %v5419 = vpop.xlane.xlu0 %5418
    %v5420 = vsel %vm1787, %v5303, 0.0
    %5421 = vadd.xlane.f32.xlu0 %v5420
    %v5422 = vpop.xlane.xlu0 %5421
    %v5423 = vsel %vm1787, %v5305, 0.0
    %5424 = vadd.xlane.f32.xlu0 %v5423
    %v5425 = vpop.xlane.xlu0 %5424
    %v5426 = vsel %vm1787, %v5307, 0.0
    %5427 = vadd.xlane.f32.xlu0 %v5426
    %v5428 = vpop.xlane.xlu0 %5427
    %v5429 = vsel %vm1787, %v5309, 0.0
    %5430 = vadd.xlane.f32.xlu0 %v5429
    %v5431 = vpop.xlane.xlu0 %5430
    %v5432 = vsel %vm1787, %v5311, 0.0
    %5433 = vadd.xlane.f32.xlu0 %v5432
    %v5434 = vpop.xlane.xlu0 %5433
    %v5435 = vsel %vm1787, %v5313, 0.0
    %5436 = vadd.xlane.f32.xlu0 %v5435
    %v5437 = vpop.xlane.xlu0 %5436
    %v5438 = vsel %vm1787, %v5315, 0.0
    %5439 = vadd.xlane.f32.xlu0 %v5438
    %v5440 = vpop.xlane.xlu0 %5439
    %v5441 = vsel %vm1787, %v5317, 0.0
    %5442 = vadd.xlane.f32.xlu0 %v5441
    %v5443 = vpop.xlane.xlu0 %5442
    %v5444 = vsel %vm1787, %v5319, 0.0
    %5445 = vadd.xlane.f32.xlu0 %v5444
    %v5446 = vpop.xlane.xlu0 %5445
    %v5447 = vsel %vm1787, %v5321, 0.0
    %5448 = vadd.xlane.f32.xlu0 %v5447
    %v5449 = vpop.xlane.xlu0 %5448
    %v5450 = vsel %vm1787, %v5323, 0.0
    %5451 = vadd.xlane.f32.xlu0 %v5450
    %v5452 = vpop.xlane.xlu0 %5451
    %v5453 = vsel %vm1787, %v5325, 0.0
    %5454 = vadd.xlane.f32.xlu0 %v5453
    %v5455 = vpop.xlane.xlu0 %5454
    %v5456 = vsel %vm1787, %v5327, 0.0
    %5457 = vadd.xlane.f32.xlu0 %v5456
    %v5458 = vpop.xlane.xlu0 %5457
    %v5459 = vsel %vm1787, %v5329, 0.0
    %5460 = vadd.xlane.f32.xlu0 %v5459
    %v5461 = vpop.xlane.xlu0 %5460
    %v5462 = vsel %vm1787, %v5331, 0.0
    %5463 = vadd.xlane.f32.xlu0 %v5462
    %v5464 = vpop.xlane.xlu0 %5463
    %v5465 = vsel %vm1787, %v5333, 0.0
    %5466 = vadd.xlane.f32.xlu0 %v5465
    %v5467 = vpop.xlane.xlu0 %5466
    %v5468 = vsel %vm1787, %v5335, 0.0
    %5469 = vadd.xlane.f32.xlu0 %v5468
    %v5470 = vpop.xlane.xlu0 %5469
    %v5471 = vsel %vm1787, %v5337, 0.0
    %5472 = vadd.xlane.f32.xlu0 %v5471
    %v5473 = vpop.xlane.xlu0 %5472
    %v5474 = vsel %vm1787, %v5339, 0.0
    %5475 = vadd.xlane.f32.xlu0 %v5474
    %v5476 = vpop.xlane.xlu0 %5475
    %v5477 = vsel %vm1787, %v5341, 0.0
    %5478 = vadd.xlane.f32.xlu0 %v5477
    %v5479 = vpop.xlane.xlu0 %5478
    %v5480 = vsel %vm1787, %v5343, 0.0
    %5481 = vadd.xlane.f32.xlu0 %v5480
    %v5482 = vpop.xlane.xlu0 %5481
    %v5483 = vsel %vm1787, %v5345, 0.0
    %5484 = vadd.xlane.f32.xlu0 %v5483
    %v5485 = vpop.xlane.xlu0 %5484
    %v5486 = vsel %vm1787, %v5347, 0.0
    %5487 = vadd.xlane.f32.xlu0 %v5486
    %v5488 = vpop.xlane.xlu0 %5487
    %v5489 = vsel %vm1787, %v5349, 0.0
    %5490 = vadd.xlane.f32.xlu0 %v5489
    %v5491 = vpop.xlane.xlu0 %5490
    %v5492 = vsel %vm1787, %v5351, 0.0
    %5493 = vadd.xlane.f32.xlu0 %v5492
    %v5494 = vpop.xlane.xlu0 %5493
    %v5495 = vsel %vm1787, %v5353, 0.0
    %5496 = vadd.xlane.f32.xlu0 %v5495
    %v5497 = vpop.xlane.xlu0 %5496
    %v5498 = vrcp.pop %v5356
    %v5499 = vrcp.pop %v5359
    %v5500 = vrcp.pop %v5362
    %v5501 = vrcp.pop %v5365
    %v5502 = vrcp.pop %v5368
    %v5503 = vrcp.pop %v5371
    %v5504 = vrcp.pop %v5374
    %v5505 = vrcp.pop %v5377
    %v5506 = vrcp.pop %v5380
    %v5507 = vrcp.pop %v5383
    %v5508 = vrcp.pop %v5386
    %v5509 = vrcp.pop %v5389
    %v5510 = vrcp.pop %v5392
    %v5511 = vrcp.pop %v5395
    %v5512 = vrcp.pop %v5398
    %v5513 = vrcp.pop %v5401
    %v5514 = vrcp.pop %v5404
    %v5515 = vrcp.pop %v5407
    %v5516 = vrcp.pop %v5410
    %v5517 = vrcp.pop %v5413
    %v5518 = vrcp.pop %v5416
    %v5519 = vrcp.pop %v5419
    %v5520 = vrcp.pop %v5422
    %v5521 = vrcp.pop %v5425
    %v5522 = vrcp.pop %v5428
    %v5523 = vrcp.pop %v5431
    %v5524 = vrcp.pop %v5434
    %v5525 = vrcp.pop %v5437
    %v5526 = vrcp.pop %v5440
    %v5527 = vrcp.pop %v5443
    %v5528 = vrcp.pop %v5446
    %v5529 = vrcp.pop %v5449
    %v5530 = vrcp.pop %v5452
    %v5531 = vrcp.pop %v5455
    %v5532 = vrcp.pop %v5458
    %v5533 = vrcp.pop %v5461
    %v5534 = vrcp.pop %v5464
    %v5535 = vrcp.pop %v5467
    %v5536 = vrcp.pop %v5470
    %v5537 = vrcp.pop %v5473
    %v5538 = vrcp.pop %v5476
    %v5539 = vrcp.pop %v5479
    %v5540 = vrcp.pop %v5482
    %v5541 = vrcp.pop %v5485
    %v5542 = vrcp.pop %v5488
    %v5543 = vrcp.pop %v5491
    %v5544 = vrcp.pop %v5494
    %v5545 = vrcp.pop %v5497
    %v5546 = vmul.f32 %v5259, %v5498
    %v5547 = vmul.f32 %v5261, %v5499
    %v5548 = vmul.f32 %v5263, %v5500
    %v5549 = vmul.f32 %v5265, %v5501
    %v5550 = vmul.f32 %v5267, %v5502
    %v5551 = vmul.f32 %v5269, %v5503
    %v5552 = vmul.f32 %v5271, %v5504
    %v5553 = vmul.f32 %v5273, %v5505
    %v5554 = vmul.f32 %v5275, %v5506
    %v5555 = vmul.f32 %v5277, %v5507
    %v5556 = vmul.f32 %v5279, %v5508
    %v5557 = vmul.f32 %v5281, %v5509
    %v5558 = vmul.f32 %v5283, %v5510
    %v5559 = vmul.f32 %v5285, %v5511
    %v5560 = vmul.f32 %v5287, %v5512
    %v5561 = vmul.f32 %v5289, %v5513
    %v5562 = vmul.f32 %v5291, %v5514
    %v5563 = vmul.f32 %v5293, %v5515
    %v5564 = vmul.f32 %v5295, %v5516
    %v5565 = vmul.f32 %v5297, %v5517
    %v5566 = vmul.f32 %v5299, %v5518
    %v5567 = vmul.f32 %v5301, %v5519
    %v5568 = vmul.f32 %v5303, %v5520
    %v5569 = vmul.f32 %v5305, %v5521
    %v5570 = vmul.f32 %v5307, %v5522
    %v5571 = vmul.f32 %v5309, %v5523
    %v5572 = vmul.f32 %v5311, %v5524
    %v5573 = vmul.f32 %v5313, %v5525
    %v5574 = vmul.f32 %v5315, %v5526
    %v5575 = vmul.f32 %v5317, %v5527
    %v5576 = vmul.f32 %v5319, %v5528
    %v5577 = vmul.f32 %v5321, %v5529
    %v5578 = vmul.f32 %v5323, %v5530
    %v5579 = vmul.f32 %v5325, %v5531
    %v5580 = vmul.f32 %v5327, %v5532
    %v5581 = vmul.f32 %v5329, %v5533
    %v5582 = vmul.f32 %v5331, %v5534
    %v5583 = vmul.f32 %v5333, %v5535
    %v5584 = vmul.f32 %v5335, %v5536
    %v5585 = vmul.f32 %v5337, %v5537
    %v5586 = vmul.f32 %v5339, %v5538
    %v5587 = vmul.f32 %v5341, %v5539
    %v5588 = vmul.f32 %v5343, %v5540
    %v5589 = vmul.f32 %v5345, %v5541
    %v5590 = vmul.f32 %v5347, %v5542
    %v5591 = vmul.f32 %v5349, %v5543
    %v5592 = vmul.f32 %v5351, %v5544
    %v5593 = vmul.f32 %v5353, %v5545
    %v5594 = vpack.c.bf16 %v5547, %v5546
    %v5595 = vpack.c.bf16 %v5549, %v5548
    %v5596 = vpack.c.bf16 %v5551, %v5550
    %v5597 = vpack.c.bf16 %v5553, %v5552
    %v5598 = vpack.c.bf16 %v5555, %v5554
    %v5599 = vpack.c.bf16 %v5557, %v5556
    %v5600 = vpack.c.bf16 %v5559, %v5558
    %v5601 = vpack.c.bf16 %v5561, %v5560
    %v5602 = vpack.c.bf16 %v5563, %v5562
    %v5603 = vpack.c.bf16 %v5565, %v5564
    %v5604 = vpack.c.bf16 %v5567, %v5566
    %v5605 = vpack.c.bf16 %v5569, %v5568
    %v5606 = vpack.c.bf16 %v5571, %v5570
    %v5607 = vpack.c.bf16 %v5573, %v5572
    %v5608 = vpack.c.bf16 %v5575, %v5574
    %v5609 = vpack.c.bf16 %v5577, %v5576
    %v5610 = vpack.c.bf16 %v5579, %v5578
    %v5611 = vpack.c.bf16 %v5581, %v5580
    %v5612 = vpack.c.bf16 %v5583, %v5582
    %v5613 = vpack.c.bf16 %v5585, %v5584
    %v5614 = vpack.c.bf16 %v5587, %v5586
    %v5615 = vpack.c.bf16 %v5589, %v5588
    %v5616 = vpack.c.bf16 %v5591, %v5590
    %v5617 = vpack.c.bf16 %v5593, %v5592
    %v5619 = vsel %vm1787, %v5594, 0
    %v5622 = vsel %vm1787, %v5595, 0
    %v5625 = vsel %vm1787, %v5596, 0
    %5627 = vmatprep.subr.bf16.mxu0 0
    %5628 = vmatpush1.bf16.msra.mxu0 %v4432
    %5629 = vmatprep.subr.bf16.mxu0 0
    %5630 = vmatpush1.bf16.msra.mxu0 %v4435
    %5631 = vmatprep.subr.bf16.mxu0 0
    %5632 = vmatpush1.bf16.msra.mxu0 %v4438
    %5633 = vmatprep.subr.bf16.mxu0 0
    %5634 = vmatpush1.bf16.msra.mxu0 0
    %5635 = vmatprep.subr.bf16.mxu0 0
    %5636 = vmatpush1.bf16.msra.mxu0 0
    %5637 = vmatprep.subr.bf16.mxu0 0
    %5638 = vmatpush1.bf16.msra.mxu0 0
    %5639 = vmatprep.subr.bf16.mxu0 0
    %5640 = vmatpush1.bf16.msra.mxu0 0
    %5641 = vmatprep.subr.bf16.mxu0 0
    %5642 = vmatpush1.bf16.msra.mxu0 0
    %5643 = vmatprep.subr.bf16.mxu0 0
    %5644 = vmatpush1.bf16.msra.mxu0 0
    %5645 = vmatprep.subr.bf16.mxu0 0
    %5646 = vmatpush1.bf16.msra.mxu0 0
    %5647 = vmatprep.subr.bf16.mxu0 0
    %5648 = vmatpush1.bf16.msra.mxu0 0
    %5649 = vmatprep.subr.bf16.mxu0 0
    %5650 = vmatpush1.bf16.msra.mxu0 0
    %5651 = vmatprep.subr.bf16.mxu0 0
    %5652 = vmatpush1.bf16.msra.mxu0 0
    %5653 = vmatprep.subr.bf16.mxu0 0
    %5654 = vmatpush1.bf16.msra.mxu0 0
    %5655 = vmatprep.subr.bf16.mxu0 0
    %5656 = vmatpush1.bf16.msra.mxu0 0
    %5657 = vmatprep.subr.bf16.mxu0 0
    %5658 = vmatpush1.bf16.msra.mxu0 0
    %5659 = vmatprep.mubr.bf16.mxu0 0
    %5660 = vmatmul.mubr.bf16.gmra.mrb[0].mxu0 %v5619
    %v5661 = vpop.f32.mrb[0].mxu0
    %v5662 = vadd.f32 0.0, %v5661
    %v5663 = vpop.f32.mrb[0].mxu0
    %v5664 = vpop.f32.mrb[0].mxu0
    %v5665 = vadd.f32 0.0, %v5664
    %v5666 = vpop.f32.mrb[0].mxu0
    %5667 = vmatprep.mubr.bf16.mxu0 0
    %5668 = vmatmul.mubr.bf16.gmra.mrb[0].mxu0 %v5622
    %v5669 = vpop.f32.mrb[0].mxu0
    %v5670 = vadd.f32 0.0, %v5669
    %v5671 = vpop.f32.mrb[0].mxu0
    %v5672 = vpop.f32.mrb[0].mxu0
    %v5673 = vadd.f32 0.0, %v5672
    %v5674 = vpop.f32.mrb[0].mxu0
    %5675 = vmatprep.mubr.bf16.mxu0 0
    %5676 = vmatmul.mubr.bf16.gmra.mrb[0].mxu0 %v5625
    %v5677 = vpop.f32.mrb[0].mxu0
    %v5678 = vadd.f32 0.0, %v5677
    %v5679 = vpop.f32.mrb[0].mxu0
    %v5680 = vpop.f32.mrb[0].mxu0
    %v5681 = vadd.f32 0.0, %v5680
    %v5682 = vpop.f32.mrb[0].mxu0
    %5683 = vdwg.mxu0
    %v5685 = vsel %vm1787, %v5597, 0
    %v5688 = vsel %vm1787, %v5598, 0
    %v5691 = vsel %vm1787, %v5599, 0
    %5693 = vmatprep.subr.bf16.mxu0 0
    %5694 = vmatpush1.bf16.msra.mxu0 %v4441
    %5695 = vmatprep.subr.bf16.mxu0 0
    %5696 = vmatpush1.bf16.msra.mxu0 %v4444
    %5697 = vmatprep.subr.bf16.mxu0 0
    %5698 = vmatpush1.bf16.msra.mxu0 %v4447
    %5699 = vmatprep.subr.bf16.mxu0 0
    %5700 = vmatpush1.bf16.msra.mxu0 0
    %5701 = vmatprep.subr.bf16.mxu0 0
    %5702 = vmatpush1.bf16.msra.mxu0 0
    %5703 = vmatprep.subr.bf16.mxu0 0
    %5704 = vmatpush1.bf16.msra.mxu0 0
    %5705 = vmatprep.subr.bf16.mxu0 0
    %5706 = vmatpush1.bf16.msra.mxu0 0
    %5707 = vmatprep.subr.bf16.mxu0 0
    %5708 = vmatpush1.bf16.msra.mxu0 0
    %5709 = vmatprep.subr.bf16.mxu0 0
    %5710 = vmatpush1.bf16.msra.mxu0 0
    %5711 = vmatprep.subr.bf16.mxu0 0
    %5712 = vmatpush1.bf16.msra.mxu0 0
    %5713 = vmatprep.subr.bf16.mxu0 0
    %5714 = vmatpush1.bf16.msra.mxu0 0
    %5715 = vmatprep.subr.bf16.mxu0 0
    %5716 = vmatpush1.bf16.msra.mxu0 0
    %5717 = vmatprep.subr.bf16.mxu0 0
    %5718 = vmatpush1.bf16.msra.mxu0 0
    %5719 = vmatprep.subr.bf16.mxu0 0
    %5720 = vmatpush1.bf16.msra.mxu0 0
    %5721 = vmatprep.subr.bf16.mxu0 0
    %5722 = vmatpush1.bf16.msra.mxu0 0
    %5723 = vmatprep.subr.bf16.mxu0 0
    %5724 = vmatpush1.bf16.msra.mxu0 0
    %5725 = vmatprep.mubr.bf16.mxu0 0
    %5726 = vmatmul.mubr.bf16.gmra.mrb[0].mxu0 %v5685
    %v5727 = vpop.f32.mrb[0].mxu0
    %v5728 = vadd.f32 0.0, %v5727
    %v5729 = vpop.f32.mrb[0].mxu0
    %v5730 = vpop.f32.mrb[0].mxu0
    %v5731 = vadd.f32 0.0, %v5730
    %v5732 = vpop.f32.mrb[0].mxu0
    %5733 = vmatprep.mubr.bf16.mxu0 0
    %5734 = vmatmul.mubr.bf16.gmra.mrb[0].mxu0 %v5688
    %v5735 = vpop.f32.mrb[0].mxu0
    %v5736 = vadd.f32 0.0, %v5735
    %v5737 = vpop.f32.mrb[0].mxu0
    %v5738 = vpop.f32.mrb[0].mxu0
    %v5739 = vadd.f32 0.0, %v5738
    %v5740 = vpop.f32.mrb[0].mxu0
    %5741 = vmatprep.mubr.bf16.mxu0 0
    %5742 = vmatmul.mubr.bf16.gmra.mrb[0].mxu0 %v5691
    %v5743 = vpop.f32.mrb[0].mxu0
    %v5744 = vadd.f32 0.0, %v5743
    %v5745 = vpop.f32.mrb[0].mxu0
    %v5746 = vpop.f32.mrb[0].mxu0
    %v5747 = vadd.f32 0.0, %v5746
    %v5748 = vpop.f32.mrb[0].mxu0
    %5749 = vdwg.mxu0
    %v5751 = vsel %vm1787, %v5600, 0
    %v5754 = vsel %vm1787, %v5601, 0
    %v5757 = vsel %vm1787, %v5602, 0
    %5759 = vmatprep.subr.bf16.mxu0 0
    %5760 = vmatpush1.bf16.msra.mxu0 %v4432
    %5761 = vmatprep.subr.bf16.mxu0 0
    %5762 = vmatpush1.bf16.msra.mxu0 %v4435
    %5763 = vmatprep.subr.bf16.mxu0 0
    %5764 = vmatpush1.bf16.msra.mxu0 %v4438
    %5765 = vmatprep.subr.bf16.mxu0 0
    %5766 = vmatpush1.bf16.msra.mxu0 0
    %5767 = vmatprep.subr.bf16.mxu0 0
    %5768 = vmatpush1.bf16.msra.mxu0 0
    %5769 = vmatprep.subr.bf16.mxu0 0
    %5770 = vmatpush1.bf16.msra.mxu0 0
    %5771 = vmatprep.subr.bf16.mxu0 0
    %5772 = vmatpush1.bf16.msra.mxu0 0
    %5773 = vmatprep.subr.bf16.mxu0 0
    %5774 = vmatpush1.bf16.msra.mxu0 0
    %5775 = vmatprep.subr.bf16.mxu0 0
    %5776 = vmatpush1.bf16.msra.mxu0 0
    %5777 = vmatprep.subr.bf16.mxu0 0
    %5778 = vmatpush1.bf16.msra.mxu0 0
    %5779 = vmatprep.subr.bf16.mxu0 0
    %5780 = vmatpush1.bf16.msra.mxu0 0
    %5781 = vmatprep.subr.bf16.mxu0 0
    %5782 = vmatpush1.bf16.msra.mxu0 0
    %5783 = vmatprep.subr.bf16.mxu0 0
    %5784 = vmatpush1.bf16.msra.mxu0 0
    %5785 = vmatprep.subr.bf16.mxu0 0
    %5786 = vmatpush1.bf16.msra.mxu0 0
    %5787 = vmatprep.subr.bf16.mxu0 0
    %5788 = vmatpush1.bf16.msra.mxu0 0
    %5789 = vmatprep.subr.bf16.mxu0 0
    %5790 = vmatpush1.bf16.msra.mxu0 0
    %5791 = vmatprep.mubr.bf16.mxu0 0
    %5792 = vmatmul.mubr.bf16.gmra.mrb[0].mxu0 %v5751
    %v5793 = vpop.f32.mrb[0].mxu0
    %v5794 = vadd.f32 0.0, %v5793
    %v5795 = vpop.f32.mrb[0].mxu0
    %v5796 = vpop.f32.mrb[0].mxu0
    %v5797 = vadd.f32 0.0, %v5796
    %v5798 = vpop.f32.mrb[0].mxu0
    %5799 = vmatprep.mubr.bf16.mxu0 0
    %5800 = vmatmul.mubr.bf16.gmra.mrb[0].mxu0 %v5754
    %v5801 = vpop.f32.mrb[0].mxu0
    %v5802 = vadd.f32 0.0, %v5801
    %v5803 = vpop.f32.mrb[0].mxu0
    %v5804 = vpop.f32.mrb[0].mxu0
    %v5805 = vadd.f32 0.0, %v5804
    %v5806 = vpop.f32.mrb[0].mxu0
    %5807 = vmatprep.mubr.bf16.mxu0 0
    %5808 = vmatmul.mubr.bf16.gmra.mrb[0].mxu0 %v5757
    %v5809 = vpop.f32.mrb[0].mxu0
    %v5810 = vadd.f32 0.0, %v5809
    %v5811 = vpop.f32.mrb[0].mxu0
    %v5812 = vpop.f32.mrb[0].mxu0
    %v5813 = vadd.f32 0.0, %v5812
    %v5814 = vpop.f32.mrb[0].mxu0
    %5815 = vdwg.mxu0
    %v5817 = vsel %vm1787, %v5603, 0
    %v5820 = vsel %vm1787, %v5604, 0
    %v5823 = vsel %vm1787, %v5605, 0
    %5825 = vmatprep.subr.bf16.mxu0 0
    %5826 = vmatpush1.bf16.msra.mxu0 %v4441
    %5827 = vmatprep.subr.bf16.mxu0 0
    %5828 = vmatpush1.bf16.msra.mxu0 %v4444
    %5829 = vmatprep.subr.bf16.mxu0 0
    %5830 = vmatpush1.bf16.msra.mxu0 %v4447
    %5831 = vmatprep.subr.bf16.mxu0 0
    %5832 = vmatpush1.bf16.msra.mxu0 0
    %5833 = vmatprep.subr.bf16.mxu0 0
    %5834 = vmatpush1.bf16.msra.mxu0 0
    %5835 = vmatprep.subr.bf16.mxu0 0
    %5836 = vmatpush1.bf16.msra.mxu0 0
    %5837 = vmatprep.subr.bf16.mxu0 0
    %5838 = vmatpush1.bf16.msra.mxu0 0
    %5839 = vmatprep.subr.bf16.mxu0 0
    %5840 = vmatpush1.bf16.msra.mxu0 0
    %5841 = vmatprep.subr.bf16.mxu0 0
    %5842 = vmatpush1.bf16.msra.mxu0 0
    %5843 = vmatprep.subr.bf16.mxu0 0
    %5844 = vmatpush1.bf16.msra.mxu0 0
    %5845 = vmatprep.subr.bf16.mxu0 0
    %5846 = vmatpush1.bf16.msra.mxu0 0
    %5847 = vmatprep.subr.bf16.mxu0 0
    %5848 = vmatpush1.bf16.msra.mxu0 0
    %5849 = vmatprep.subr.bf16.mxu0 0
    %5850 = vmatpush1.bf16.msra.mxu0 0
    %5851 = vmatprep.subr.bf16.mxu0 0
    %5852 = vmatpush1.bf16.msra.mxu0 0
    %5853 = vmatprep.subr.bf16.mxu0 0
    %5854 = vmatpush1.bf16.msra.mxu0 0
    %5855 = vmatprep.subr.bf16.mxu0 0
    %5856 = vmatpush1.bf16.msra.mxu0 0
    %5857 = vmatprep.mubr.bf16.mxu0 0
    %5858 = vmatmul.mubr.bf16.gmra.mrb[0].mxu0 %v5817
    %v5859 = vpop.f32.mrb[0].mxu0
    %v5860 = vadd.f32 0.0, %v5859
    %v5861 = vpop.f32.mrb[0].mxu0
    %v5862 = vpop.f32.mrb[0].mxu0
    %v5863 = vadd.f32 0.0, %v5862
    %v5864 = vpop.f32.mrb[0].mxu0
    %5865 = vmatprep.mubr.bf16.mxu0 0
    %5866 = vmatmul.mubr.bf16.gmra.mrb[0].mxu0 %v5820
    %v5867 = vpop.f32.mrb[0].mxu0
    %v5868 = vadd.f32 0.0, %v5867
    %v5869 = vpop.f32.mrb[0].mxu0
    %v5870 = vpop.f32.mrb[0].mxu0
    %v5871 = vadd.f32 0.0, %v5870
    %v5872 = vpop.f32.mrb[0].mxu0
    %5873 = vmatprep.mubr.bf16.mxu0 0
    %5874 = vmatmul.mubr.bf16.gmra.mrb[0].mxu0 %v5823
    %v5875 = vpop.f32.mrb[0].mxu0
    %v5876 = vadd.f32 0.0, %v5875
    %v5877 = vpop.f32.mrb[0].mxu0
    %v5878 = vpop.f32.mrb[0].mxu0
    %v5879 = vadd.f32 0.0, %v5878
    %v5880 = vpop.f32.mrb[0].mxu0
    %5881 = vdwg.mxu0
    %v5883 = vsel %vm1787, %v5606, 0
    %v5886 = vsel %vm1787, %v5607, 0
    %v5889 = vsel %vm1787, %v5608, 0
    %5891 = vmatprep.subr.bf16.mxu0 0
    %5892 = vmatpush1.bf16.msra.mxu0 %v4432
    %5893 = vmatprep.subr.bf16.mxu0 0
    %5894 = vmatpush1.bf16.msra.mxu0 %v4435
    %5895 = vmatprep.subr.bf16.mxu0 0
    %5896 = vmatpush1.bf16.msra.mxu0 %v4438
    %5897 = vmatprep.subr.bf16.mxu0 0
    %5898 = vmatpush1.bf16.msra.mxu0 0
    %5899 = vmatprep.subr.bf16.mxu0 0
    %5900 = vmatpush1.bf16.msra.mxu0 0
    %5901 = vmatprep.subr.bf16.mxu0 0
    %5902 = vmatpush1.bf16.msra.mxu0 0
    %5903 = vmatprep.subr.bf16.mxu0 0
    %5904 = vmatpush1.bf16.msra.mxu0 0
    %5905 = vmatprep.subr.bf16.mxu0 0
    %5906 = vmatpush1.bf16.msra.mxu0 0
    %5907 = vmatprep.subr.bf16.mxu0 0
    %5908 = vmatpush1.bf16.msra.mxu0 0
    %5909 = vmatprep.subr.bf16.mxu0 0
    %5910 = vmatpush1.bf16.msra.mxu0 0
    %5911 = vmatprep.subr.bf16.mxu0 0
    %5912 = vmatpush1.bf16.msra.mxu0 0
    %5913 = vmatprep.subr.bf16.mxu0 0
    %5914 = vmatpush1.bf16.msra.mxu0 0
    %5915 = vmatprep.subr.bf16.mxu0 0
    %5916 = vmatpush1.bf16.msra.mxu0 0
    %5917 = vmatprep.subr.bf16.mxu0 0
    %5918 = vmatpush1.bf16.msra.mxu0 0
    %5919 = vmatprep.subr.bf16.mxu0 0
    %5920 = vmatpush1.bf16.msra.mxu0 0
    %5921 = vmatprep.subr.bf16.mxu0 0
    %5922 = vmatpush1.bf16.msra.mxu0 0
    %5923 = vmatprep.mubr.bf16.mxu0 0
    %5924 = vmatmul.mubr.bf16.gmra.mrb[0].mxu0 %v5883
    %v5925 = vpop.f32.mrb[0].mxu0
    %v5926 = vadd.f32 0.0, %v5925
    %v5927 = vpop.f32.mrb[0].mxu0
    %v5928 = vpop.f32.mrb[0].mxu0
    %v5929 = vadd.f32 0.0, %v5928
    %v5930 = vpop.f32.mrb[0].mxu0
    %5931 = vmatprep.mubr.bf16.mxu0 0
    %5932 = vmatmul.mubr.bf16.gmra.mrb[0].mxu0 %v5886
    %v5933 = vpop.f32.mrb[0].mxu0
    %v5934 = vadd.f32 0.0, %v5933
    %v5935 = vpop.f32.mrb[0].mxu0
    %v5936 = vpop.f32.mrb[0].mxu0
    %v5937 = vadd.f32 0.0, %v5936
    %v5938 = vpop.f32.mrb[0].mxu0
    %5939 = vmatprep.mubr.bf16.mxu0 0
    %5940 = vmatmul.mubr.bf16.gmra.mrb[0].mxu0 %v5889
    %v5941 = vpop.f32.mrb[0].mxu0
    %v5942 = vadd.f32 0.0, %v5941
    %v5943 = vpop.f32.mrb[0].mxu0
    %v5944 = vpop.f32.mrb[0].mxu0
    %v5945 = vadd.f32 0.0, %v5944
    %v5946 = vpop.f32.mrb[0].mxu0
    %5947 = vdwg.mxu0
    %v5949 = vsel %vm1787, %v5609, 0
    %v5952 = vsel %vm1787, %v5610, 0
    %v5955 = vsel %vm1787, %v5611, 0
    %5957 = vmatprep.subr.bf16.mxu0 0
    %5958 = vmatpush1.bf16.msra.mxu0 %v4441
    %5959 = vmatprep.subr.bf16.mxu0 0
    %5960 = vmatpush1.bf16.msra.mxu0 %v4444
    %5961 = vmatprep.subr.bf16.mxu0 0
    %5962 = vmatpush1.bf16.msra.mxu0 %v4447
    %5963 = vmatprep.subr.bf16.mxu0 0
    %5964 = vmatpush1.bf16.msra.mxu0 0
    %5965 = vmatprep.subr.bf16.mxu0 0
    %5966 = vmatpush1.bf16.msra.mxu0 0
    %5967 = vmatprep.subr.bf16.mxu0 0
    %5968 = vmatpush1.bf16.msra.mxu0 0
    %5969 = vmatprep.subr.bf16.mxu0 0
    %5970 = vmatpush1.bf16.msra.mxu0 0
    %5971 = vmatprep.subr.bf16.mxu0 0
    %5972 = vmatpush1.bf16.msra.mxu0 0
    %5973 = vmatprep.subr.bf16.mxu0 0
    %5974 = vmatpush1.bf16.msra.mxu0 0
    %5975 = vmatprep.subr.bf16.mxu0 0
    %5976 = vmatpush1.bf16.msra.mxu0 0
    %5977 = vmatprep.subr.bf16.mxu0 0
    %5978 = vmatpush1.bf16.msra.mxu0 0
    %5979 = vmatprep.subr.bf16.mxu0 0
    %5980 = vmatpush1.bf16.msra.mxu0 0
    %5981 = vmatprep.subr.bf16.mxu0 0
    %5982 = vmatpush1.bf16.msra.mxu0 0
    %5983 = vmatprep.subr.bf16.mxu0 0
    %5984 = vmatpush1.bf16.msra.mxu0 0
    %5985 = vmatprep.subr.bf16.mxu0 0
    %5986 = vmatpush1.bf16.msra.mxu0 0
    %5987 = vmatprep.subr.bf16.mxu0 0
    %5988 = vmatpush1.bf16.msra.mxu0 0
    %5989 = vmatprep.mubr.bf16.mxu0 0
    %5990 = vmatmul.mubr.bf16.gmra.mrb[0].mxu0 %v5949
    %v5991 = vpop.f32.mrb[0].mxu0
    %v5992 = vadd.f32 0.0, %v5991
    %v5993 = vpop.f32.mrb[0].mxu0
    %v5994 = vpop.f32.mrb[0].mxu0
    %v5995 = vadd.f32 0.0, %v5994
    %v5996 = vpop.f32.mrb[0].mxu0
    %5997 = vmatprep.mubr.bf16.mxu0 0
    %5998 = vmatmul.mubr.bf16.gmra.mrb[0].mxu0 %v5952
    %v5999 = vpop.f32.mrb[0].mxu0
    %v6000 = vadd.f32 0.0, %v5999
    %v6001 = vpop.f32.mrb[0].mxu0
    %v6002 = vpop.f32.mrb[0].mxu0
    %v6003 = vadd.f32 0.0, %v6002
    %v6004 = vpop.f32.mrb[0].mxu0
    %6005 = vmatprep.mubr.bf16.mxu0 0
    %6006 = vmatmul.mubr.bf16.gmra.mrb[0].mxu0 %v5955
    %v6007 = vpop.f32.mrb[0].mxu0
    %v6008 = vadd.f32 0.0, %v6007
    %v6009 = vpop.f32.mrb[0].mxu0
    %v6010 = vpop.f32.mrb[0].mxu0
    %v6011 = vadd.f32 0.0, %v6010
    %v6012 = vpop.f32.mrb[0].mxu0
    %6013 = vdwg.mxu0
    %v6015 = vsel %vm1787, %v5612, 0
    %v6018 = vsel %vm1787, %v5613, 0
    %v6021 = vsel %vm1787, %v5614, 0
    %6023 = vmatprep.subr.bf16.mxu0 0
    %6024 = vmatpush1.bf16.msra.mxu0 %v4432
    %6025 = vmatprep.subr.bf16.mxu0 0
    %6026 = vmatpush1.bf16.msra.mxu0 %v4435
    %6027 = vmatprep.subr.bf16.mxu0 0
    %6028 = vmatpush1.bf16.msra.mxu0 %v4438
    %6029 = vmatprep.subr.bf16.mxu0 0
    %6030 = vmatpush1.bf16.msra.mxu0 0
    %6031 = vmatprep.subr.bf16.mxu0 0
    %6032 = vmatpush1.bf16.msra.mxu0 0
    %6033 = vmatprep.subr.bf16.mxu0 0
    %6034 = vmatpush1.bf16.msra.mxu0 0
    %6035 = vmatprep.subr.bf16.mxu0 0
    %6036 = vmatpush1.bf16.msra.mxu0 0
    %6037 = vmatprep.subr.bf16.mxu0 0
    %6038 = vmatpush1.bf16.msra.mxu0 0
    %6039 = vmatprep.subr.bf16.mxu0 0
    %6040 = vmatpush1.bf16.msra.mxu0 0
    %6041 = vmatprep.subr.bf16.mxu0 0
    %6042 = vmatpush1.bf16.msra.mxu0 0
    %6043 = vmatprep.subr.bf16.mxu0 0
    %6044 = vmatpush1.bf16.msra.mxu0 0
    %6045 = vmatprep.subr.bf16.mxu0 0
    %6046 = vmatpush1.bf16.msra.mxu0 0
    %6047 = vmatprep.subr.bf16.mxu0 0
    %6048 = vmatpush1.bf16.msra.mxu0 0
    %6049 = vmatprep.subr.bf16.mxu0 0
    %6050 = vmatpush1.bf16.msra.mxu0 0
    %6051 = vmatprep.subr.bf16.mxu0 0
    %6052 = vmatpush1.bf16.msra.mxu0 0
    %6053 = vmatprep.subr.bf16.mxu0 0
    %6054 = vmatpush1.bf16.msra.mxu0 0
    %6055 = vmatprep.mubr.bf16.mxu0 0
    %6056 = vmatmul.mubr.bf16.gmra.mrb[0].mxu0 %v6015
    %v6057 = vpop.f32.mrb[0].mxu0
    %v6058 = vadd.f32 0.0, %v6057
    %v6059 = vpop.f32.mrb[0].mxu0
    %v6060 = vpop.f32.mrb[0].mxu0
    %v6061 = vadd.f32 0.0, %v6060
    %v6062 = vpop.f32.mrb[0].mxu0
    %6063 = vmatprep.mubr.bf16.mxu0 0
    %6064 = vmatmul.mubr.bf16.gmra.mrb[0].mxu0 %v6018
    %v6065 = vpop.f32.mrb[0].mxu0
    %v6066 = vadd.f32 0.0, %v6065
    %v6067 = vpop.f32.mrb[0].mxu0
    %v6068 = vpop.f32.mrb[0].mxu0
    %v6069 = vadd.f32 0.0, %v6068
    %v6070 = vpop.f32.mrb[0].mxu0
    %6071 = vmatprep.mubr.bf16.mxu0 0
    %6072 = vmatmul.mubr.bf16.gmra.mrb[0].mxu0 %v6021
    %v6073 = vpop.f32.mrb[0].mxu0
    %v6074 = vadd.f32 0.0, %v6073
    %v6075 = vpop.f32.mrb[0].mxu0
    %v6076 = vpop.f32.mrb[0].mxu0
    %v6077 = vadd.f32 0.0, %v6076
    %v6078 = vpop.f32.mrb[0].mxu0
    %6079 = vdwg.mxu0
    %v6081 = vsel %vm1787, %v5615, 0
    %v6084 = vsel %vm1787, %v5616, 0
    %v6087 = vsel %vm1787, %v5617, 0
    %6089 = vmatprep.subr.bf16.mxu0 0
    %6090 = vmatpush1.bf16.msra.mxu0 %v4441
    %6091 = vmatprep.subr.bf16.mxu0 0
    %6092 = vmatpush1.bf16.msra.mxu0 %v4444
    %6093 = vmatprep.subr.bf16.mxu0 0
    %6094 = vmatpush1.bf16.msra.mxu0 %v4447
    %6095 = vmatprep.subr.bf16.mxu0 0
    %6096 = vmatpush1.bf16.msra.mxu0 0
    %6097 = vmatprep.subr.bf16.mxu0 0
    %6098 = vmatpush1.bf16.msra.mxu0 0
    %6099 = vmatprep.subr.bf16.mxu0 0
    %6100 = vmatpush1.bf16.msra.mxu0 0
    %6101 = vmatprep.subr.bf16.mxu0 0
    %6102 = vmatpush1.bf16.msra.mxu0 0
    %6103 = vmatprep.subr.bf16.mxu0 0
    %6104 = vmatpush1.bf16.msra.mxu0 0
    %6105 = vmatprep.subr.bf16.mxu0 0
    %6106 = vmatpush1.bf16.msra.mxu0 0
    %6107 = vmatprep.subr.bf16.mxu0 0
    %6108 = vmatpush1.bf16.msra.mxu0 0
    %6109 = vmatprep.subr.bf16.mxu0 0
    %6110 = vmatpush1.bf16.msra.mxu0 0
    %6111 = vmatprep.subr.bf16.mxu0 0
    %6112 = vmatpush1.bf16.msra.mxu0 0
    %6113 = vmatprep.subr.bf16.mxu0 0
    %6114 = vmatpush1.bf16.msra.mxu0 0
    %6115 = vmatprep.subr.bf16.mxu0 0
    %6116 = vmatpush1.bf16.msra.mxu0 0
    %6117 = vmatprep.subr.bf16.mxu0 0
    %6118 = vmatpush1.bf16.msra.mxu0 0
    %6119 = vmatprep.subr.bf16.mxu0 0
    %6120 = vmatpush1.bf16.msra.mxu0 0
    %6121 = vmatprep.mubr.bf16.mxu0 0
    %6122 = vmatmul.mubr.bf16.gmra.mrb[0].mxu0 %v6081
    %v6123 = vpop.f32.mrb[0].mxu0
    %v6124 = vadd.f32 0.0, %v6123
    %v6125 = vpop.f32.mrb[0].mxu0
    %v6126 = vpop.f32.mrb[0].mxu0
    %v6127 = vadd.f32 0.0, %v6126
    %v6128 = vpop.f32.mrb[0].mxu0
    %6129 = vmatprep.mubr.bf16.mxu0 0
    %6130 = vmatmul.mubr.bf16.gmra.mrb[0].mxu0 %v6084
    %v6131 = vpop.f32.mrb[0].mxu0
    %v6132 = vadd.f32 0.0, %v6131
    %v6133 = vpop.f32.mrb[0].mxu0
    %v6134 = vpop.f32.mrb[0].mxu0
    %v6135 = vadd.f32 0.0, %v6134
    %v6136 = vpop.f32.mrb[0].mxu0
    %6137 = vmatprep.mubr.bf16.mxu0 0
    %6138 = vmatmul.mubr.bf16.gmra.mrb[0].mxu0 %v6087
    %v6139 = vpop.f32.mrb[0].mxu0
    %v6140 = vadd.f32 0.0, %v6139
    %v6141 = vpop.f32.mrb[0].mxu0
    %v6142 = vpop.f32.mrb[0].mxu0
    %v6143 = vadd.f32 0.0, %v6142
    %v6144 = vpop.f32.mrb[0].mxu0
    %6145 = vdwg.mxu0
    %v6146 = vmul.f32 %v5662, %v2871
    %v6147 = vmul.f32 %v5665, %v2871
    %v6148 = vmul.f32 %v5670, %v2871
    %v6149 = vmul.f32 %v5673, %v2871
    %v6150 = vmul.f32 %v5678, %v2871
    %v6151 = vmul.f32 %v5681, %v2871
    %v6152 = vmul.f32 %v5728, %v2871
    %v6153 = vmul.f32 %v5731, %v2871
    %v6154 = vmul.f32 %v5736, %v2871
    %v6155 = vmul.f32 %v5739, %v2871
    %v6156 = vmul.f32 %v5744, %v2871
    %v6157 = vmul.f32 %v5747, %v2871
    %v6158 = vmul.f32 %v5794, %v2875
    %v6159 = vmul.f32 %v5797, %v2875
    %v6160 = vmul.f32 %v5802, %v2875
    %v6161 = vmul.f32 %v5805, %v2875
    %v6162 = vmul.f32 %v5810, %v2875
    %v6163 = vmul.f32 %v5813, %v2875
    %v6164 = vmul.f32 %v5860, %v2875
    %v6165 = vmul.f32 %v5863, %v2875
    %v6166 = vmul.f32 %v5868, %v2875
    %v6167 = vmul.f32 %v5871, %v2875
    %v6168 = vmul.f32 %v5876, %v2875
    %v6169 = vmul.f32 %v5879, %v2875
    %v6170 = vmul.f32 %v5926, %v2879
    %v6171 = vmul.f32 %v5929, %v2879
    %v6172 = vmul.f32 %v5934, %v2879
    %v6173 = vmul.f32 %v5937, %v2879
    %v6174 = vmul.f32 %v5942, %v2879
    %v6175 = vmul.f32 %v5945, %v2879
    %v6176 = vmul.f32 %v5992, %v2879
    %v6177 = vmul.f32 %v5995, %v2879
    %v6178 = vmul.f32 %v6000, %v2879
    %v6179 = vmul.f32 %v6003, %v2879
    %v6180 = vmul.f32 %v6008, %v2879
    %v6181 = vmul.f32 %v6011, %v2879
    %v6182 = vmul.f32 %v6058, %v2883
    %v6183 = vmul.f32 %v6061, %v2883
    %v6184 = vmul.f32 %v6066, %v2883
    %v6185 = vmul.f32 %v6069, %v2883
    %v6186 = vmul.f32 %v6074, %v2883
    %v6187 = vmul.f32 %v6077, %v2883
    %v6188 = vmul.f32 %v6124, %v2883
    %v6189 = vmul.f32 %v6127, %v2883
    %v6190 = vmul.f32 %v6132, %v2883
    %v6191 = vmul.f32 %v6135, %v2883
    %v6192 = vmul.f32 %v6140, %v2883
    %v6193 = vmul.f32 %v6143, %v2883
    %v6194 = vadd.f32 %v6146, %v6158
    %v6195 = vadd.f32 %v6147, %v6159
    %v6196 = vadd.f32 %v6148, %v6160
    %v6197 = vadd.f32 %v6149, %v6161
    %v6198 = vadd.f32 %v6150, %v6162
    %v6199 = vadd.f32 %v6151, %v6163
    %v6200 = vadd.f32 %v6194, %v6170
    %v6201 = vadd.f32 %v6195, %v6171
    %v6202 = vadd.f32 %v6196, %v6172
    %v6203 = vadd.f32 %v6197, %v6173
    %v6204 = vadd.f32 %v6198, %v6174
    %v6205 = vadd.f32 %v6199, %v6175
    %v6206 = vadd.f32 %v6200, %v6182
    %v6207 = vadd.f32 %v6201, %v6183
    %v6208 = vadd.f32 %v6202, %v6184
    %v6209 = vadd.f32 %v6203, %v6185
    %v6210 = vadd.f32 %v6204, %v6186
    %v6211 = vadd.f32 %v6205, %v6187
    %v6212 = vadd.f32 %v6152, %v6164
    %v6213 = vadd.f32 %v6153, %v6165
    %v6214 = vadd.f32 %v6154, %v6166
    %v6215 = vadd.f32 %v6155, %v6167
    %v6216 = vadd.f32 %v6156, %v6168
    %v6217 = vadd.f32 %v6157, %v6169
    %v6218 = vadd.f32 %v6212, %v6176
    %v6219 = vadd.f32 %v6213, %v6177
    %v6220 = vadd.f32 %v6214, %v6178
    %v6221 = vadd.f32 %v6215, %v6179
    %v6222 = vadd.f32 %v6216, %v6180
    %v6223 = vadd.f32 %v6217, %v6181
    %v6224 = vadd.f32 %v6218, %v6188
    %v6225 = vadd.f32 %v6219, %v6189
    %v6226 = vadd.f32 %v6220, %v6190
    %v6227 = vadd.f32 %v6221, %v6191
    %v6228 = vadd.f32 %v6222, %v6192
    %v6229 = vadd.f32 %v6223, %v6193
    %v6230 = vpack.c.bf16 %v6207, %v6206
    %v6231 = vpack.c.bf16 %v6209, %v6208
    %v6232 = vpack.c.bf16 %v6211, %v6210
    %v6233 = vpack.c.bf16 %v6225, %v6224
    %v6234 = vpack.c.bf16 %v6227, %v6226
    %v6235 = vpack.c.bf16 %v6229, %v6228
    %s6236 = scalar_lea.vmem %s4, 32
    %v6237 = vld [vmem:[%s6236] sm:$0xf]
    %v6238 = vld [vmem:[%s6236 + $0x4] sm:$0xf]
    %v6239 = vld [vmem:[%s6236 + $0x8] sm:$0xf]
    %v6240 = vld [vmem:[%s6236 + $0xc] sm:$0xf]
    %v6241 = vld [vmem:[%s6236 + $0x10] sm:$0xf]
    %v6242 = vld [vmem:[%s6236 + $0x14] sm:$0xf]
    %v6243 = vld [vmem:[%s6236 + $0x18] sm:$0xf]
    %v6244 = vld [vmem:[%s6236 + $0x1c] sm:$0xf]
    %v6245 = vlaneseq
    %v6246 = vshrl.u32 %v6245, 7
    %v6247 = vsub.s32 3, %v6246
    %v6248 = vrot.slane %v3948, %v6247
    %v6257 = vunpack.c.l.b16 %v6237
    %v6258 = vunpack.c.l.b16 %v6238
    %v6259 = vunpack.c.l.b16 %v6239
    %v6260 = vunpack.c.l.b16 %v6240
    %v6261 = vunpack.c.l.b16 %v6241
    %v6262 = vunpack.c.l.b16 %v6242
    %v6263 = vunpack.c.l.b16 %v6243
    %v6264 = vunpack.c.l.b16 %v6244
    %v6265 = vpack.c.b16 %v6258, %v6257
    %v6266 = vpack.c.b16 %v6260, %v6259
    %v6267 = vpack.c.b16 %v6262, %v6261
    %v6268 = vpack.c.b16 %v6264, %v6263
    %v6274 = vsel %vm641, %v6230, 0
    %v6277 = vsel %vm641, %v6231, 0
    %v6280 = vsel %vm641, %v6232, 0
    %v6283 = vsel %vm641, %v6233, 0
    %v6286 = vsel %vm641, %v6234, 0
    %v6289 = vsel %vm641, %v6235, 0
    %6291 = vmatprep.subr.bf16.mxu0 0
    %6292 = vmatpush1.bf16.msra.mxu0 %v6265
    %6293 = vmatprep.subr.bf16.mxu0 0
    %6294 = vmatpush1.bf16.msra.mxu0 %v6266
    %6295 = vmatprep.subr.bf16.mxu0 0
    %6296 = vmatpush1.bf16.msra.mxu0 %v6267
    %6297 = vmatprep.subr.bf16.mxu0 0
    %6298 = vmatpush1.bf16.msra.mxu0 %v6268
    %6299 = vmatprep.subr.bf16.mxu0 0
    %6300 = vmatpush1.bf16.msra.mxu0 0
    %6301 = vmatprep.subr.bf16.mxu0 0
    %6302 = vmatpush1.bf16.msra.mxu0 0
    %6303 = vmatprep.subr.bf16.mxu0 0
    %6304 = vmatpush1.bf16.msra.mxu0 0
    %6305 = vmatprep.subr.bf16.mxu0 0
    %6306 = vmatpush1.bf16.msra.mxu0 0
    %6307 = vmatprep.subr.bf16.mxu0 0
    %6308 = vmatpush1.bf16.msra.mxu0 0
    %6309 = vmatprep.subr.bf16.mxu0 0
    %6310 = vmatpush1.bf16.msra.mxu0 0
    %6311 = vmatprep.subr.bf16.mxu0 0
    %6312 = vmatpush1.bf16.msra.mxu0 0
    %6313 = vmatprep.subr.bf16.mxu0 0
    %6314 = vmatpush1.bf16.msra.mxu0 0
    %6315 = vmatprep.subr.bf16.mxu0 0
    %6316 = vmatpush1.bf16.msra.mxu0 0
    %6317 = vmatprep.subr.bf16.mxu0 0
    %6318 = vmatpush1.bf16.msra.mxu0 0
    %6319 = vmatprep.subr.bf16.mxu0 0
    %6320 = vmatpush1.bf16.msra.mxu0 0
    %6321 = vmatprep.subr.bf16.mxu0 0
    %6322 = vmatpush1.bf16.msra.mxu0 0
    %6323 = vmatprep.mubr.bf16.mxu0 0
    %6324 = vmatmul.mubr.bf16.gmra.mrb[0].mxu0 %v6274
    %v6325 = vpop.f32.mrb[0].mxu0
    %v6326 = vadd.f32 %v6248, %v6325
    %v6327 = vpop.f32.mrb[0].mxu0
    %v6328 = vpop.f32.mrb[0].mxu0
    %v6329 = vadd.f32 %v6248, %v6328
    %v6330 = vpop.f32.mrb[0].mxu0
    %6331 = vmatprep.mubr.bf16.mxu0 0
    %6332 = vmatmul.mubr.bf16.gmra.mrb[0].mxu0 %v6277
    %v6333 = vpop.f32.mrb[0].mxu0
    %v6334 = vadd.f32 %v6248, %v6333
    %v6335 = vpop.f32.mrb[0].mxu0
    %v6336 = vpop.f32.mrb[0].mxu0
    %v6337 = vadd.f32 %v6248, %v6336
    %v6338 = vpop.f32.mrb[0].mxu0
    %6339 = vmatprep.mubr.bf16.mxu0 0
    %6340 = vmatmul.mubr.bf16.gmra.mrb[0].mxu0 %v6280
    %v6341 = vpop.f32.mrb[0].mxu0
    %v6342 = vadd.f32 %v6248, %v6341
    %v6343 = vpop.f32.mrb[0].mxu0
    %v6344 = vpop.f32.mrb[0].mxu0
    %v6345 = vadd.f32 %v6248, %v6344
    %v6346 = vpop.f32.mrb[0].mxu0
    %6347 = vmatprep.mubr.bf16.mxu0 0
    %6348 = vmatmul.mubr.bf16.gmra.mrb[0].mxu0 %v6283
    %v6349 = vpop.f32.mrb[0].mxu0
    %v6350 = vadd.f32 %v6248, %v6349
    %v6351 = vpop.f32.mrb[0].mxu0
    %v6352 = vpop.f32.mrb[0].mxu0
    %v6353 = vadd.f32 %v6248, %v6352
    %v6354 = vpop.f32.mrb[0].mxu0
    %6355 = vmatprep.mubr.bf16.mxu0 0
    %6356 = vmatmul.mubr.bf16.gmra.mrb[0].mxu0 %v6286
    %v6357 = vpop.f32.mrb[0].mxu0
    %v6358 = vadd.f32 %v6248, %v6357
    %v6359 = vpop.f32.mrb[0].mxu0
    %v6360 = vpop.f32.mrb[0].mxu0
    %v6361 = vadd.f32 %v6248, %v6360
    %v6362 = vpop.f32.mrb[0].mxu0
    %6363 = vmatprep.mubr.bf16.mxu0 0
    %6364 = vmatmul.mubr.bf16.gmra.mrb[0].mxu0 %v6289
    %v6365 = vpop.f32.mrb[0].mxu0
    %v6366 = vadd.f32 %v6248, %v6365
    %v6367 = vpop.f32.mrb[0].mxu0
    %v6368 = vpop.f32.mrb[0].mxu0
    %v6369 = vadd.f32 %v6248, %v6368
    %v6370 = vpop.f32.mrb[0].mxu0
    %6371 = vdwg.mxu0
    %v6372 = vadd.f32 %v3935, %v6326
    %v6373 = vadd.f32 %v3936, %v6329
    %v6374 = vadd.f32 %v3937, %v6334
    %v6375 = vadd.f32 %v3938, %v6337
    %v6376 = vadd.f32 %v3939, %v6342
    %v6377 = vadd.f32 %v3940, %v6345
    %v6378 = vadd.f32 %v3941, %v6350
    %v6379 = vadd.f32 %v3942, %v6353
    %v6380 = vadd.f32 %v3943, %v6358
    %v6381 = vadd.f32 %v3944, %v6361
    %v6382 = vadd.f32 %v3945, %v6366
    %v6383 = vadd.f32 %v3946, %v6369
    %v6384 = vsel %vm641, %v6372, 0.0
    %6385 = vadd.xlane.f32.xlu0 %v6384
    %v6386 = vpop.xlane.xlu0 %6385
    %v6387 = vsel %vm641, %v6373, 0.0
    %6388 = vadd.xlane.f32.xlu0 %v6387
    %v6389 = vpop.xlane.xlu0 %6388
    %v6390 = vsel %vm641, %v6374, 0.0
    %6391 = vadd.xlane.f32.xlu0 %v6390
    %v6392 = vpop.xlane.xlu0 %6391
    %v6393 = vsel %vm641, %v6375, 0.0
    %6394 = vadd.xlane.f32.xlu0 %v6393
    %v6395 = vpop.xlane.xlu0 %6394
    %v6396 = vsel %vm641, %v6376, 0.0
    %6397 = vadd.xlane.f32.xlu0 %v6396
    %v6398 = vpop.xlane.xlu0 %6397
    %v6399 = vsel %vm641, %v6377, 0.0
    %6400 = vadd.xlane.f32.xlu0 %v6399
    %v6401 = vpop.xlane.xlu0 %6400
    %v6402 = vsel %vm641, %v6378, 0.0
    %6403 = vadd.xlane.f32.xlu0 %v6402
    %v6404 = vpop.xlane.xlu0 %6403
    %v6405 = vsel %vm641, %v6379, 0.0
    %6406 = vadd.xlane.f32.xlu0 %v6405
    %v6407 = vpop.xlane.xlu0 %6406
    %v6408 = vsel %vm641, %v6380, 0.0
    %6409 = vadd.xlane.f32.xlu0 %v6408
    %v6410 = vpop.xlane.xlu0 %6409
    %v6411 = vsel %vm641, %v6381, 0.0
    %6412 = vadd.xlane.f32.xlu0 %v6411
    %v6413 = vpop.xlane.xlu0 %6412
    %v6414 = vsel %vm641, %v6382, 0.0
    %6415 = vadd.xlane.f32.xlu0 %v6414
    %v6416 = vpop.xlane.xlu0 %6415
    %v6417 = vsel %vm641, %v6383, 0.0
    %6418 = vadd.xlane.f32.xlu0 %v6417
    %v6419 = vpop.xlane.xlu0 %6418
    %v6420 = vmul.f32 %v6386, %v678
    %v6421 = vmul.f32 %v6389, %v678
    %v6422 = vmul.f32 %v6392, %v678
    %v6423 = vmul.f32 %v6395, %v678
    %v6424 = vmul.f32 %v6398, %v678
    %v6425 = vmul.f32 %v6401, %v678
    %v6426 = vmul.f32 %v6404, %v678
    %v6427 = vmul.f32 %v6407, %v678
    %v6428 = vmul.f32 %v6410, %v678
    %v6429 = vmul.f32 %v6413, %v678
    %v6430 = vmul.f32 %v6416, %v678
    %v6431 = vmul.f32 %v6419, %v678
    %v6432 = vsub.f32 %v6372, %v6420
    %v6433 = vsub.f32 %v6373, %v6421
    %v6434 = vsub.f32 %v6374, %v6422
    %v6435 = vsub.f32 %v6375, %v6423
    %v6436 = vsub.f32 %v6376, %v6424
    %v6437 = vsub.f32 %v6377, %v6425
    %v6438 = vsub.f32 %v6378, %v6426
    %v6439 = vsub.f32 %v6379, %v6427
    %v6440 = vsub.f32 %v6380, %v6428
    %v6441 = vsub.f32 %v6381, %v6429
    %v6442 = vsub.f32 %v6382, %v6430
    %v6443 = vsub.f32 %v6383, %v6431
    %v6444 = vmul.f32 %v6432, %v6432
    %v6445 = vmul.f32 %v6433, %v6433
    %v6446 = vmul.f32 %v6434, %v6434
    %v6447 = vmul.f32 %v6435, %v6435
    %v6448 = vmul.f32 %v6436, %v6436
    %v6449 = vmul.f32 %v6437, %v6437
    %v6450 = vmul.f32 %v6438, %v6438
    %v6451 = vmul.f32 %v6439, %v6439
    %v6452 = vmul.f32 %v6440, %v6440
    %v6453 = vmul.f32 %v6441, %v6441
    %v6454 = vmul.f32 %v6442, %v6442
    %v6455 = vmul.f32 %v6443, %v6443
    %v6456 = vsel %vm641, %v6444, 0.0
    %6457 = vadd.xlane.f32.xlu0 %v6456
    %v6458 = vpop.xlane.xlu0 %6457
    %v6459 = vsel %vm641, %v6445, 0.0
    %6460 = vadd.xlane.f32.xlu0 %v6459
    %v6461 = vpop.xlane.xlu0 %6460
    %v6462 = vsel %vm641, %v6446, 0.0
    %6463 = vadd.xlane.f32.xlu0 %v6462
    %v6464 = vpop.xlane.xlu0 %6463
    %v6465 = vsel %vm641, %v6447, 0.0
    %6466 = vadd.xlane.f32.xlu0 %v6465
    %v6467 = vpop.xlane.xlu0 %6466
    %v6468 = vsel %vm641, %v6448, 0.0
    %6469 = vadd.xlane.f32.xlu0 %v6468
    %v6470 = vpop.xlane.xlu0 %6469
    %v6471 = vsel %vm641, %v6449, 0.0
    %6472 = vadd.xlane.f32.xlu0 %v6471
    %v6473 = vpop.xlane.xlu0 %6472
    %v6474 = vsel %vm641, %v6450, 0.0
    %6475 = vadd.xlane.f32.xlu0 %v6474
    %v6476 = vpop.xlane.xlu0 %6475
    %v6477 = vsel %vm641, %v6451, 0.0
    %6478 = vadd.xlane.f32.xlu0 %v6477
    %v6479 = vpop.xlane.xlu0 %6478
    %v6480 = vsel %vm641, %v6452, 0.0
    %6481 = vadd.xlane.f32.xlu0 %v6480
    %v6482 = vpop.xlane.xlu0 %6481
    %v6483 = vsel %vm641, %v6453, 0.0
    %6484 = vadd.xlane.f32.xlu0 %v6483
    %v6485 = vpop.xlane.xlu0 %6484
    %v6486 = vsel %vm641, %v6454, 0.0
    %6487 = vadd.xlane.f32.xlu0 %v6486
    %v6488 = vpop.xlane.xlu0 %6487
    %v6489 = vsel %vm641, %v6455, 0.0
    %6490 = vadd.xlane.f32.xlu0 %v6489
    %v6491 = vpop.xlane.xlu0 %6490
    %v6492 = vmul.f32 %v6458, %v678
    %v6493 = vmul.f32 %v6461, %v678
    %v6494 = vmul.f32 %v6464, %v678
    %v6495 = vmul.f32 %v6467, %v678
    %v6496 = vmul.f32 %v6470, %v678
    %v6497 = vmul.f32 %v6473, %v678
    %v6498 = vmul.f32 %v6476, %v678
    %v6499 = vmul.f32 %v6479, %v678
    %v6500 = vmul.f32 %v6482, %v678
    %v6501 = vmul.f32 %v6485, %v678
    %v6502 = vmul.f32 %v6488, %v678
    %v6503 = vmul.f32 %v6491, %v678
    %v6504 = vadd.f32 %v6492, 1e-05
    %v6505 = vadd.f32 %v6493, 1e-05
    %v6506 = vadd.f32 %v6494, 1e-05
    %v6507 = vadd.f32 %v6495, 1e-05
    %v6508 = vadd.f32 %v6496, 1e-05
    %v6509 = vadd.f32 %v6497, 1e-05
    %v6510 = vadd.f32 %v6498, 1e-05
    %v6511 = vadd.f32 %v6499, 1e-05
    %v6512 = vadd.f32 %v6500, 1e-05
    %v6513 = vadd.f32 %v6501, 1e-05
    %v6514 = vadd.f32 %v6502, 1e-05
    %v6515 = vadd.f32 %v6503, 1e-05
    %v6516 = vrsqrt.pop %v6504
    %v6517 = vrsqrt.pop %v6505
    %v6518 = vrsqrt.pop %v6506
    %v6519 = vrsqrt.pop %v6507
    %v6520 = vrsqrt.pop %v6508
    %v6521 = vrsqrt.pop %v6509
    %v6522 = vrsqrt.pop %v6510
    %v6523 = vrsqrt.pop %v6511
    %v6524 = vrsqrt.pop %v6512
    %v6525 = vrsqrt.pop %v6513
    %v6526 = vrsqrt.pop %v6514
    %v6527 = vrsqrt.pop %v6515
    %v6528 = vmul.f32 %v6432, %v6516
    %v6529 = vmul.f32 %v6433, %v6517
    %v6530 = vmul.f32 %v6434, %v6518
    %v6531 = vmul.f32 %v6435, %v6519
    %v6532 = vmul.f32 %v6436, %v6520
    %v6533 = vmul.f32 %v6437, %v6521
    %v6534 = vmul.f32 %v6438, %v6522
    %v6535 = vmul.f32 %v6439, %v6523
    %v6536 = vmul.f32 %v6440, %v6524
    %v6537 = vmul.f32 %v6441, %v6525
    %v6538 = vmul.f32 %v6442, %v6526
    %v6539 = vmul.f32 %v6443, %v6527
    %v6540 = vlaneseq
    %v6541 = vshrl.u32 %v6540, 7
    %v6542 = vsub.s32 4, %v6541
    %v6543 = vrot.slane %v3948, %v6542
    %v6544 = vmul.f32 %v6528, %v6543
    %v6545 = vmul.f32 %v6529, %v6543
    %v6546 = vmul.f32 %v6530, %v6543
    %v6547 = vmul.f32 %v6531, %v6543
    %v6548 = vmul.f32 %v6532, %v6543
    %v6549 = vmul.f32 %v6533, %v6543
    %v6550 = vmul.f32 %v6534, %v6543
    %v6551 = vmul.f32 %v6535, %v6543
    %v6552 = vmul.f32 %v6536, %v6543
    %v6553 = vmul.f32 %v6537, %v6543
    %v6554 = vmul.f32 %v6538, %v6543
    %v6555 = vmul.f32 %v6539, %v6543
    %v6556 = vlaneseq
    %v6557 = vshrl.u32 %v6556, 7
    %v6558 = vsub.s32 5, %v6557
    %v6559 = vrot.slane %v3948, %v6558
    %v6560 = vadd.f32 %v6544, %v6559
    %v6561 = vadd.f32 %v6545, %v6559
    %v6562 = vadd.f32 %v6546, %v6559
    %v6563 = vadd.f32 %v6547, %v6559
    %v6564 = vadd.f32 %v6548, %v6559
    %v6565 = vadd.f32 %v6549, %v6559
    %v6566 = vadd.f32 %v6550, %v6559
    %v6567 = vadd.f32 %v6551, %v6559
    %v6568 = vadd.f32 %v6552, %v6559
    %v6569 = vadd.f32 %v6553, %v6559
    %v6570 = vadd.f32 %v6554, %v6559
    %v6571 = vadd.f32 %v6555, %v6559
    %v6572 = vpack.c.bf16 %v6561, %v6560
    %v6573 = vpack.c.bf16 %v6563, %v6562
    %v6574 = vpack.c.bf16 %v6565, %v6564
    %v6575 = vpack.c.bf16 %v6567, %v6566
    %v6576 = vpack.c.bf16 %v6569, %v6568
    %v6577 = vpack.c.bf16 %v6571, %v6570
    %s6578 = scalar_lea.vmem %s5, 64
    %v6579 = vld [vmem:[%s6578] sm:$0xff]
    %v6580 = vld [vmem:[%s6578 + $0x8] sm:$0xff]
    %v6581 = vld [vmem:[%s6578 + $0x10] sm:$0xff]
    %v6582 = vld [vmem:[%s6578 + $0x18] sm:$0xff]
    %v6583 = vld [vmem:[%s6578 + $0x20] sm:$0xff]
    %v6584 = vld [vmem:[%s6578 + $0x28] sm:$0xff]
    %v6585 = vld [vmem:[%s6578 + $0x30] sm:$0xff]
    %v6586 = vld [vmem:[%s6578 + $0x38] sm:$0xff]
    %v6587 = vlaneseq
    %v6588 = vshrl.u32 %v6587, 7
    %v6589 = vsub.s32 6, %v6588
    %v6590 = vrot.slane %v3948, %v6589
    %v6591 = vlaneseq
    %v6592 = vshrl.u32 %v6591, 7
    %v6593 = vsub.s32 6, %v6592
    %v6594 = vrot.slane %v3949, %v6593
    %v6603 = vunpack.c.l.b16 %v6579
    %v6604 = vunpack.c.h.b16 %v6579
    %v6605 = vunpack.c.l.b16 %v6580
    %v6606 = vunpack.c.h.b16 %v6580
    %v6607 = vunpack.c.l.b16 %v6581
    %v6608 = vunpack.c.h.b16 %v6581
    %v6609 = vunpack.c.l.b16 %v6582
    %v6610 = vunpack.c.h.b16 %v6582
    %v6611 = vunpack.c.l.b16 %v6583
    %v6612 = vunpack.c.h.b16 %v6583
    %v6613 = vunpack.c.l.b16 %v6584
    %v6614 = vunpack.c.h.b16 %v6584
    %v6615 = vunpack.c.l.b16 %v6585
    %v6616 = vunpack.c.h.b16 %v6585
    %v6617 = vunpack.c.l.b16 %v6586
    %v6618 = vunpack.c.h.b16 %v6586
    %v6619 = vpack.c.b16 %v6605, %v6603
    %v6620 = vpack.c.b16 %v6606, %v6604
    %v6621 = vpack.c.b16 %v6609, %v6607
    %v6622 = vpack.c.b16 %v6610, %v6608
    %v6623 = vpack.c.b16 %v6613, %v6611
    %v6624 = vpack.c.b16 %v6614, %v6612
    %v6625 = vpack.c.b16 %v6617, %v6615
    %v6626 = vpack.c.b16 %v6618, %v6616
    %v6636 = vsel %vm641, %v6572, 0
    %v6639 = vsel %vm641, %v6573, 0
    %v6642 = vsel %vm641, %v6574, 0
    %v6645 = vsel %vm641, %v6575, 0
    %v6648 = vsel %vm641, %v6576, 0
    %v6651 = vsel %vm641, %v6577, 0
    %6653 = vmatprep.subr.bf16.mxu0 %v6620
    %6654 = vmatpush1.bf16.msra.mxu0 %v6619
    %6655 = vmatprep.subr.bf16.mxu0 %v6622
    %6656 = vmatpush1.bf16.msra.mxu0 %v6621
    %6657 = vmatprep.subr.bf16.mxu0 %v6624
    %6658 = vmatpush1.bf16.msra.mxu0 %v6623
    %6659 = vmatprep.subr.bf16.mxu0 %v6626
    %6660 = vmatpush1.bf16.msra.mxu0 %v6625
    %6661 = vmatprep.subr.bf16.mxu0 0
    %6662 = vmatpush1.bf16.msra.mxu0 0
    %6663 = vmatprep.subr.bf16.mxu0 0
    %6664 = vmatpush1.bf16.msra.mxu0 0
    %6665 = vmatprep.subr.bf16.mxu0 0
    %6666 = vmatpush1.bf16.msra.mxu0 0
    %6667 = vmatprep.subr.bf16.mxu0 0
    %6668 = vmatpush1.bf16.msra.mxu0 0
    %6669 = vmatprep.subr.bf16.mxu0 0
    %6670 = vmatpush1.bf16.msra.mxu0 0
    %6671 = vmatprep.subr.bf16.mxu0 0
    %6672 = vmatpush1.bf16.msra.mxu0 0
    %6673 = vmatprep.subr.bf16.mxu0 0
    %6674 = vmatpush1.bf16.msra.mxu0 0
    %6675 = vmatprep.subr.bf16.mxu0 0
    %6676 = vmatpush1.bf16.msra.mxu0 0
    %6677 = vmatprep.subr.bf16.mxu0 0
    %6678 = vmatpush1.bf16.msra.mxu0 0
    %6679 = vmatprep.subr.bf16.mxu0 0
    %6680 = vmatpush1.bf16.msra.mxu0 0
    %6681 = vmatprep.subr.bf16.mxu0 0
    %6682 = vmatpush1.bf16.msra.mxu0 0
    %6683 = vmatprep.subr.bf16.mxu0 0
    %6684 = vmatpush1.bf16.msra.mxu0 0
    %6685 = vmatprep.mubr.bf16.mxu0 0
    %6686 = vmatmul.mubr.bf16.gmra.mrb[0].mxu0 %v6636
    %v6687 = vpop.f32.mrb[0].mxu0
    %v6688 = vadd.f32 %v6590, %v6687
    %v6689 = vpop.f32.mrb[0].mxu0
    %v6690 = vadd.f32 %v6594, %v6689
    %v6691 = vpop.f32.mrb[0].mxu0
    %v6692 = vadd.f32 %v6590, %v6691
    %v6693 = vpop.f32.mrb[0].mxu0
    %v6694 = vadd.f32 %v6594, %v6693
    %6695 = vmatprep.mubr.bf16.mxu0 0
    %6696 = vmatmul.mubr.bf16.gmra.mrb[0].mxu0 %v6639
    %v6697 = vpop.f32.mrb[0].mxu0
    %v6698 = vadd.f32 %v6590, %v6697
    %v6699 = vpop.f32.mrb[0].mxu0
    %v6700 = vadd.f32 %v6594, %v6699
    %v6701 = vpop.f32.mrb[0].mxu0
    %v6702 = vadd.f32 %v6590, %v6701
    %v6703 = vpop.f32.mrb[0].mxu0
    %v6704 = vadd.f32 %v6594, %v6703
    %6705 = vmatprep.mubr.bf16.mxu0 0
    %6706 = vmatmul.mubr.bf16.gmra.mrb[0].mxu0 %v6642
    %v6707 = vpop.f32.mrb[0].mxu0
    %v6708 = vadd.f32 %v6590, %v6707
    %v6709 = vpop.f32.mrb[0].mxu0
    %v6710 = vadd.f32 %v6594, %v6709
    %v6711 = vpop.f32.mrb[0].mxu0
    %v6712 = vadd.f32 %v6590, %v6711
    %v6713 = vpop.f32.mrb[0].mxu0
    %v6714 = vadd.f32 %v6594, %v6713
    %6715 = vmatprep.mubr.bf16.mxu0 0
    %6716 = vmatmul.mubr.bf16.gmra.mrb[0].mxu0 %v6645
    %v6717 = vpop.f32.mrb[0].mxu0
    %v6718 = vadd.f32 %v6590, %v6717
    %v6719 = vpop.f32.mrb[0].mxu0
    %v6720 = vadd.f32 %v6594, %v6719
    %v6721 = vpop.f32.mrb[0].mxu0
    %v6722 = vadd.f32 %v6590, %v6721
    %v6723 = vpop.f32.mrb[0].mxu0
    %v6724 = vadd.f32 %v6594, %v6723
    %6725 = vmatprep.mubr.bf16.mxu0 0
    %6726 = vmatmul.mubr.bf16.gmra.mrb[0].mxu0 %v6648
    %v6727 = vpop.f32.mrb[0].mxu0
    %v6728 = vadd.f32 %v6590, %v6727
    %v6729 = vpop.f32.mrb[0].mxu0
    %v6730 = vadd.f32 %v6594, %v6729
    %v6731 = vpop.f32.mrb[0].mxu0
    %v6732 = vadd.f32 %v6590, %v6731
    %v6733 = vpop.f32.mrb[0].mxu0
    %v6734 = vadd.f32 %v6594, %v6733
    %6735 = vmatprep.mubr.bf16.mxu0 0
    %6736 = vmatmul.mubr.bf16.gmra.mrb[0].mxu0 %v6651
    %v6737 = vpop.f32.mrb[0].mxu0
    %v6738 = vadd.f32 %v6590, %v6737
    %v6739 = vpop.f32.mrb[0].mxu0
    %v6740 = vadd.f32 %v6594, %v6739
    %v6741 = vpop.f32.mrb[0].mxu0
    %v6742 = vadd.f32 %v6590, %v6741
    %v6743 = vpop.f32.mrb[0].mxu0
    %v6744 = vadd.f32 %v6594, %v6743
    %6745 = vdwg.mxu0
    %v6746 = vmul.f32 %v6688, %v6688
    %v6747 = vmul.f32 %v6690, %v6690
    %v6748 = vmul.f32 %v6692, %v6692
    %v6749 = vmul.f32 %v6694, %v6694
    %v6750 = vmul.f32 %v6698, %v6698
    %v6751 = vmul.f32 %v6700, %v6700
    %v6752 = vmul.f32 %v6702, %v6702
    %v6753 = vmul.f32 %v6704, %v6704
    %v6754 = vmul.f32 %v6708, %v6708
    %v6755 = vmul.f32 %v6710, %v6710
    %v6756 = vmul.f32 %v6712, %v6712
    %v6757 = vmul.f32 %v6714, %v6714
    %v6758 = vmul.f32 %v6718, %v6718
    %v6759 = vmul.f32 %v6720, %v6720
    %v6760 = vmul.f32 %v6722, %v6722
    %v6761 = vmul.f32 %v6724, %v6724
    %v6762 = vmul.f32 %v6728, %v6728
    %v6763 = vmul.f32 %v6730, %v6730
    %v6764 = vmul.f32 %v6732, %v6732
    %v6765 = vmul.f32 %v6734, %v6734
    %v6766 = vmul.f32 %v6738, %v6738
    %v6767 = vmul.f32 %v6740, %v6740
    %v6768 = vmul.f32 %v6742, %v6742
    %v6769 = vmul.f32 %v6744, %v6744
    %v6770 = vmul.f32 %v6688, %v6746
    %v6771 = vmul.f32 %v6690, %v6747
    %v6772 = vmul.f32 %v6692, %v6748
    %v6773 = vmul.f32 %v6694, %v6749
    %v6774 = vmul.f32 %v6698, %v6750
    %v6775 = vmul.f32 %v6700, %v6751
    %v6776 = vmul.f32 %v6702, %v6752
    %v6777 = vmul.f32 %v6704, %v6753
    %v6778 = vmul.f32 %v6708, %v6754
    %v6779 = vmul.f32 %v6710, %v6755
    %v6780 = vmul.f32 %v6712, %v6756
    %v6781 = vmul.f32 %v6714, %v6757
    %v6782 = vmul.f32 %v6718, %v6758
    %v6783 = vmul.f32 %v6720, %v6759
    %v6784 = vmul.f32 %v6722, %v6760
    %v6785 = vmul.f32 %v6724, %v6761
    %v6786 = vmul.f32 %v6728, %v6762
    %v6787 = vmul.f32 %v6730, %v6763
    %v6788 = vmul.f32 %v6732, %v6764
    %v6789 = vmul.f32 %v6734, %v6765
    %v6790 = vmul.f32 %v6738, %v6766
    %v6791 = vmul.f32 %v6740, %v6767
    %v6792 = vmul.f32 %v6742, %v6768
    %v6793 = vmul.f32 %v6744, %v6769
    %v6794 = vmul.f32 %v6770, 0.044715
    %v6795 = vmul.f32 %v6771, 0.044715
    %v6796 = vmul.f32 %v6772, 0.044715
    %v6797 = vmul.f32 %v6773, 0.044715
    %v6798 = vmul.f32 %v6774, 0.044715
    %v6799 = vmul.f32 %v6775, 0.044715
    %v6800 = vmul.f32 %v6776, 0.044715
    %v6801 = vmul.f32 %v6777, 0.044715
    %v6802 = vmul.f32 %v6778, 0.044715
    %v6803 = vmul.f32 %v6779, 0.044715
    %v6804 = vmul.f32 %v6780, 0.044715
    %v6805 = vmul.f32 %v6781, 0.044715
    %v6806 = vmul.f32 %v6782, 0.044715
    %v6807 = vmul.f32 %v6783, 0.044715
    %v6808 = vmul.f32 %v6784, 0.044715
    %v6809 = vmul.f32 %v6785, 0.044715
    %v6810 = vmul.f32 %v6786, 0.044715
    %v6811 = vmul.f32 %v6787, 0.044715
    %v6812 = vmul.f32 %v6788, 0.044715
    %v6813 = vmul.f32 %v6789, 0.044715
    %v6814 = vmul.f32 %v6790, 0.044715
    %v6815 = vmul.f32 %v6791, 0.044715
    %v6816 = vmul.f32 %v6792, 0.044715
    %v6817 = vmul.f32 %v6793, 0.044715
    %v6818 = vadd.f32 %v6688, %v6794
    %v6819 = vadd.f32 %v6690, %v6795
    %v6820 = vadd.f32 %v6692, %v6796
    %v6821 = vadd.f32 %v6694, %v6797
    %v6822 = vadd.f32 %v6698, %v6798
    %v6823 = vadd.f32 %v6700, %v6799
    %v6824 = vadd.f32 %v6702, %v6800
    %v6825 = vadd.f32 %v6704, %v6801
    %v6826 = vadd.f32 %v6708, %v6802
    %v6827 = vadd.f32 %v6710, %v6803
    %v6828 = vadd.f32 %v6712, %v6804
    %v6829 = vadd.f32 %v6714, %v6805
    %v6830 = vadd.f32 %v6718, %v6806
    %v6831 = vadd.f32 %v6720, %v6807
    %v6832 = vadd.f32 %v6722, %v6808
    %v6833 = vadd.f32 %v6724, %v6809
    %v6834 = vadd.f32 %v6728, %v6810
    %v6835 = vadd.f32 %v6730, %v6811
    %v6836 = vadd.f32 %v6732, %v6812
    %v6837 = vadd.f32 %v6734, %v6813
    %v6838 = vadd.f32 %v6738, %v6814
    %v6839 = vadd.f32 %v6740, %v6815
    %v6840 = vadd.f32 %v6742, %v6816
    %v6841 = vadd.f32 %v6744, %v6817
    %v6842 = vmul.f32 %v6818, 0.7978846
    %v6843 = vmul.f32 %v6819, 0.7978846
    %v6844 = vmul.f32 %v6820, 0.7978846
    %v6845 = vmul.f32 %v6821, 0.7978846
    %v6846 = vmul.f32 %v6822, 0.7978846
    %v6847 = vmul.f32 %v6823, 0.7978846
    %v6848 = vmul.f32 %v6824, 0.7978846
    %v6849 = vmul.f32 %v6825, 0.7978846
    %v6850 = vmul.f32 %v6826, 0.7978846
    %v6851 = vmul.f32 %v6827, 0.7978846
    %v6852 = vmul.f32 %v6828, 0.7978846
    %v6853 = vmul.f32 %v6829, 0.7978846
    %v6854 = vmul.f32 %v6830, 0.7978846
    %v6855 = vmul.f32 %v6831, 0.7978846
    %v6856 = vmul.f32 %v6832, 0.7978846
    %v6857 = vmul.f32 %v6833, 0.7978846
    %v6858 = vmul.f32 %v6834, 0.7978846
    %v6859 = vmul.f32 %v6835, 0.7978846
    %v6860 = vmul.f32 %v6836, 0.7978846
    %v6861 = vmul.f32 %v6837, 0.7978846
    %v6862 = vmul.f32 %v6838, 0.7978846
    %v6863 = vmul.f32 %v6839, 0.7978846
    %v6864 = vmul.f32 %v6840, 0.7978846
    %v6865 = vmul.f32 %v6841, 0.7978846
    %v6866 = vtanh.pop %v6842
    %v6867 = vtanh.pop %v6843
    %v6868 = vtanh.pop %v6844
    %v6869 = vtanh.pop %v6845
    %v6870 = vtanh.pop %v6846
    %v6871 = vtanh.pop %v6847
    %v6872 = vtanh.pop %v6848
    %v6873 = vtanh.pop %v6849
    %v6874 = vtanh.pop %v6850
    %v6875 = vtanh.pop %v6851
    %v6876 = vtanh.pop %v6852
    %v6877 = vtanh.pop %v6853
    %v6878 = vtanh.pop %v6854
    %v6879 = vtanh.pop %v6855
    %v6880 = vtanh.pop %v6856
    %v6881 = vtanh.pop %v6857
    %v6882 = vtanh.pop %v6858
    %v6883 = vtanh.pop %v6859
    %v6884 = vtanh.pop %v6860
    %v6885 = vtanh.pop %v6861
    %v6886 = vtanh.pop %v6862
    %v6887 = vtanh.pop %v6863
    %v6888 = vtanh.pop %v6864
    %v6889 = vtanh.pop %v6865
    %v6890 = vadd.f32 %v6866, 1.0
    %v6891 = vadd.f32 %v6867, 1.0
    %v6892 = vadd.f32 %v6868, 1.0
    %v6893 = vadd.f32 %v6869, 1.0
    %v6894 = vadd.f32 %v6870, 1.0
    %v6895 = vadd.f32 %v6871, 1.0
    %v6896 = vadd.f32 %v6872, 1.0
    %v6897 = vadd.f32 %v6873, 1.0
    %v6898 = vadd.f32 %v6874, 1.0
    %v6899 = vadd.f32 %v6875, 1.0
    %v6900 = vadd.f32 %v6876, 1.0
    %v6901 = vadd.f32 %v6877, 1.0
    %v6902 = vadd.f32 %v6878, 1.0
    %v6903 = vadd.f32 %v6879, 1.0
    %v6904 = vadd.f32 %v6880, 1.0
    %v6905 = vadd.f32 %v6881, 1.0
    %v6906 = vadd.f32 %v6882, 1.0
    %v6907 = vadd.f32 %v6883, 1.0
    %v6908 = vadd.f32 %v6884, 1.0
    %v6909 = vadd.f32 %v6885, 1.0
    %v6910 = vadd.f32 %v6886, 1.0
    %v6911 = vadd.f32 %v6887, 1.0
    %v6912 = vadd.f32 %v6888, 1.0
    %v6913 = vadd.f32 %v6889, 1.0
    %v6914 = vmul.f32 %v6890, 0.5
    %v6915 = vmul.f32 %v6891, 0.5
    %v6916 = vmul.f32 %v6892, 0.5
    %v6917 = vmul.f32 %v6893, 0.5
    %v6918 = vmul.f32 %v6894, 0.5
    %v6919 = vmul.f32 %v6895, 0.5
    %v6920 = vmul.f32 %v6896, 0.5
    %v6921 = vmul.f32 %v6897, 0.5
    %v6922 = vmul.f32 %v6898, 0.5
    %v6923 = vmul.f32 %v6899, 0.5
    %v6924 = vmul.f32 %v6900, 0.5
    %v6925 = vmul.f32 %v6901, 0.5
    %v6926 = vmul.f32 %v6902, 0.5
    %v6927 = vmul.f32 %v6903, 0.5
    %v6928 = vmul.f32 %v6904, 0.5
    %v6929 = vmul.f32 %v6905, 0.5
    %v6930 = vmul.f32 %v6906, 0.5
    %v6931 = vmul.f32 %v6907, 0.5
    %v6932 = vmul.f32 %v6908, 0.5
    %v6933 = vmul.f32 %v6909, 0.5
    %v6934 = vmul.f32 %v6910, 0.5
    %v6935 = vmul.f32 %v6911, 0.5
    %v6936 = vmul.f32 %v6912, 0.5
    %v6937 = vmul.f32 %v6913, 0.5
    %v6938 = vmul.f32 %v6688, %v6914
    %v6939 = vmul.f32 %v6690, %v6915
    %v6940 = vmul.f32 %v6692, %v6916
    %v6941 = vmul.f32 %v6694, %v6917
    %v6942 = vmul.f32 %v6698, %v6918
    %v6943 = vmul.f32 %v6700, %v6919
    %v6944 = vmul.f32 %v6702, %v6920
    %v6945 = vmul.f32 %v6704, %v6921
    %v6946 = vmul.f32 %v6708, %v6922
    %v6947 = vmul.f32 %v6710, %v6923
    %v6948 = vmul.f32 %v6712, %v6924
    %v6949 = vmul.f32 %v6714, %v6925
    %v6950 = vmul.f32 %v6718, %v6926
    %v6951 = vmul.f32 %v6720, %v6927
    %v6952 = vmul.f32 %v6722, %v6928
    %v6953 = vmul.f32 %v6724, %v6929
    %v6954 = vmul.f32 %v6728, %v6930
    %v6955 = vmul.f32 %v6730, %v6931
    %v6956 = vmul.f32 %v6732, %v6932
    %v6957 = vmul.f32 %v6734, %v6933
    %v6958 = vmul.f32 %v6738, %v6934
    %v6959 = vmul.f32 %v6740, %v6935
    %v6960 = vmul.f32 %v6742, %v6936
    %v6961 = vmul.f32 %v6744, %v6937
    %v6962 = vpack.c.bf16 %v6940, %v6938
    %v6963 = vpack.c.bf16 %v6941, %v6939
    %v6964 = vpack.c.bf16 %v6944, %v6942
    %v6965 = vpack.c.bf16 %v6945, %v6943
    %v6966 = vpack.c.bf16 %v6948, %v6946
    %v6967 = vpack.c.bf16 %v6949, %v6947
    %v6968 = vpack.c.bf16 %v6952, %v6950
    %v6969 = vpack.c.bf16 %v6953, %v6951
    %v6970 = vpack.c.bf16 %v6956, %v6954
    %v6971 = vpack.c.bf16 %v6957, %v6955
    %v6972 = vpack.c.bf16 %v6960, %v6958
    %v6973 = vpack.c.bf16 %v6961, %v6959
    %s6974 = scalar_lea.vmem %s6, 128
    %v6975 = vld [vmem:[%s6974] sm:$0xf]
    %v6976 = vld [vmem:[%s6974 + $0x4] sm:$0xf]
    %v6977 = vld [vmem:[%s6974 + $0x8] sm:$0xf]
    %v6978 = vld [vmem:[%s6974 + $0xc] sm:$0xf]
    %v6979 = vld [vmem:[%s6974 + $0x10] sm:$0xf]
    %v6980 = vld [vmem:[%s6974 + $0x14] sm:$0xf]
    %v6981 = vld [vmem:[%s6974 + $0x18] sm:$0xf]
    %v6982 = vld [vmem:[%s6974 + $0x1c] sm:$0xf]
    %v6983 = vld [vmem:[%s6974 + $0x20] sm:$0xf]
    %v6984 = vld [vmem:[%s6974 + $0x24] sm:$0xf]
    %v6985 = vld [vmem:[%s6974 + $0x28] sm:$0xf]
    %v6986 = vld [vmem:[%s6974 + $0x2c] sm:$0xf]
    %v6987 = vld [vmem:[%s6974 + $0x30] sm:$0xf]
    %v6988 = vld [vmem:[%s6974 + $0x34] sm:$0xf]
    %v6989 = vld [vmem:[%s6974 + $0x38] sm:$0xf]
    %v6990 = vld [vmem:[%s6974 + $0x3c] sm:$0xf]
    %v6991 = vld [vmem:[%s6974 + $0x40] sm:$0xf]
    %v6992 = vld [vmem:[%s6974 + $0x44] sm:$0xf]
    %v6993 = vld [vmem:[%s6974 + $0x48] sm:$0xf]
    %v6994 = vld [vmem:[%s6974 + $0x4c] sm:$0xf]
    %v6995 = vld [vmem:[%s6974 + $0x50] sm:$0xf]
    %v6996 = vld [vmem:[%s6974 + $0x54] sm:$0xf]
    %v6997 = vld [vmem:[%s6974 + $0x58] sm:$0xf]
    %v6998 = vld [vmem:[%s6974 + $0x5c] sm:$0xf]
    %v6999 = vld [vmem:[%s6974 + $0x60] sm:$0xf]
    %v7000 = vld [vmem:[%s6974 + $0x64] sm:$0xf]
    %v7001 = vld [vmem:[%s6974 + $0x68] sm:$0xf]
    %v7002 = vld [vmem:[%s6974 + $0x6c] sm:$0xf]
    %v7003 = vld [vmem:[%s6974 + $0x70] sm:$0xf]
    %v7004 = vld [vmem:[%s6974 + $0x74] sm:$0xf]
    %v7005 = vld [vmem:[%s6974 + $0x78] sm:$0xf]
    %v7006 = vld [vmem:[%s6974 + $0x7c] sm:$0xf]
    %v7039 = vunpack.c.l.b16 %v6975
    %v7040 = vunpack.c.l.b16 %v6976
    %v7041 = vunpack.c.l.b16 %v6977
    %v7042 = vunpack.c.l.b16 %v6978
    %v7043 = vunpack.c.l.b16 %v6979
    %v7044 = vunpack.c.l.b16 %v6980
    %v7045 = vunpack.c.l.b16 %v6981
    %v7046 = vunpack.c.l.b16 %v6982
    %v7047 = vunpack.c.l.b16 %v6983
    %v7048 = vunpack.c.l.b16 %v6984
    %v7049 = vunpack.c.l.b16 %v6985
    %v7050 = vunpack.c.l.b16 %v6986
    %v7051 = vunpack.c.l.b16 %v6987
    %v7052 = vunpack.c.l.b16 %v6988
    %v7053 = vunpack.c.l.b16 %v6989
    %v7054 = vunpack.c.l.b16 %v6990
    %v7055 = vunpack.c.l.b16 %v6991
    %v7056 = vunpack.c.l.b16 %v6992
    %v7057 = vunpack.c.l.b16 %v6993
    %v7058 = vunpack.c.l.b16 %v6994
    %v7059 = vunpack.c.l.b16 %v6995
    %v7060 = vunpack.c.l.b16 %v6996
    %v7061 = vunpack.c.l.b16 %v6997
    %v7062 = vunpack.c.l.b16 %v6998
    %v7063 = vunpack.c.l.b16 %v6999
    %v7064 = vunpack.c.l.b16 %v7000
    %v7065 = vunpack.c.l.b16 %v7001
    %v7066 = vunpack.c.l.b16 %v7002
    %v7067 = vunpack.c.l.b16 %v7003
    %v7068 = vunpack.c.l.b16 %v7004
    %v7069 = vunpack.c.l.b16 %v7005
    %v7070 = vunpack.c.l.b16 %v7006
    %v7071 = vpack.c.b16 %v7040, %v7039
    %v7072 = vpack.c.b16 %v7042, %v7041
    %v7073 = vpack.c.b16 %v7044, %v7043
    %v7074 = vpack.c.b16 %v7046, %v7045
    %v7075 = vpack.c.b16 %v7048, %v7047
    %v7076 = vpack.c.b16 %v7050, %v7049
    %v7077 = vpack.c.b16 %v7052, %v7051
    %v7078 = vpack.c.b16 %v7054, %v7053
    %v7079 = vpack.c.b16 %v7056, %v7055
    %v7080 = vpack.c.b16 %v7058, %v7057
    %v7081 = vpack.c.b16 %v7060, %v7059
    %v7082 = vpack.c.b16 %v7062, %v7061
    %v7083 = vpack.c.b16 %v7064, %v7063
    %v7084 = vpack.c.b16 %v7066, %v7065
    %v7085 = vpack.c.b16 %v7068, %v7067
    %v7086 = vpack.c.b16 %v7070, %v7069
    %7103 = vmatprep.subr.bf16.mxu0 0
    %7104 = vmatpush1.bf16.msra.mxu0 %v7071
    %7105 = vmatprep.subr.bf16.mxu0 0
    %7106 = vmatpush1.bf16.msra.mxu0 %v7072
    %7107 = vmatprep.subr.bf16.mxu0 0
    %7108 = vmatpush1.bf16.msra.mxu0 %v7073
    %7109 = vmatprep.subr.bf16.mxu0 0
    %7110 = vmatpush1.bf16.msra.mxu0 %v7074
    %7111 = vmatprep.subr.bf16.mxu0 0
    %7112 = vmatpush1.bf16.msra.mxu0 %v7075
    %7113 = vmatprep.subr.bf16.mxu0 0
    %7114 = vmatpush1.bf16.msra.mxu0 %v7076
    %7115 = vmatprep.subr.bf16.mxu0 0
    %7116 = vmatpush1.bf16.msra.mxu0 %v7077
    %7117 = vmatprep.subr.bf16.mxu0 0
    %7118 = vmatpush1.bf16.msra.mxu0 %v7078
    %7119 = vmatprep.subr.bf16.mxu0 0
    %7120 = vmatpush1.bf16.msra.mxu0 %v7079
    %7121 = vmatprep.subr.bf16.mxu0 0
    %7122 = vmatpush1.bf16.msra.mxu0 %v7080
    %7123 = vmatprep.subr.bf16.mxu0 0
    %7124 = vmatpush1.bf16.msra.mxu0 %v7081
    %7125 = vmatprep.subr.bf16.mxu0 0
    %7126 = vmatpush1.bf16.msra.mxu0 %v7082
    %7127 = vmatprep.subr.bf16.mxu0 0
    %7128 = vmatpush1.bf16.msra.mxu0 %v7083
    %7129 = vmatprep.subr.bf16.mxu0 0
    %7130 = vmatpush1.bf16.msra.mxu0 %v7084
    %7131 = vmatprep.subr.bf16.mxu0 0
    %7132 = vmatpush1.bf16.msra.mxu0 %v7085
    %7133 = vmatprep.subr.bf16.mxu0 0
    %7134 = vmatpush1.bf16.msra.mxu0 %v7086
    %7135 = vmatprep.mubr.bf16.mxu0 %v6963
    %7136 = vmatmul.mubr.bf16.gmra.mrb[0].mxu0 %v6962
    %v7137 = vpop.f32.mrb[0].mxu0
    %v7138 = vadd.f32 0.0, %v7137
    %v7139 = vpop.f32.mrb[0].mxu0
    %v7140 = vpop.f32.mrb[0].mxu0
    %v7141 = vadd.f32 0.0, %v7140
    %v7142 = vpop.f32.mrb[0].mxu0
    %7143 = vmatprep.mubr.bf16.mxu0 %v6965
    %7144 = vmatmul.mubr.bf16.gmra.mrb[0].mxu0 %v6964
    %v7145 = vpop.f32.mrb[0].mxu0
    %v7146 = vadd.f32 0.0, %v7145
    %v7147 = vpop.f32.mrb[0].mxu0
    %v7148 = vpop.f32.mrb[0].mxu0
    %v7149 = vadd.f32 0.0, %v7148
    %v7150 = vpop.f32.mrb[0].mxu0
    %7151 = vmatprep.mubr.bf16.mxu0 %v6967
    %7152 = vmatmul.mubr.bf16.gmra.mrb[0].mxu0 %v6966
    %v7153 = vpop.f32.mrb[0].mxu0
    %v7154 = vadd.f32 0.0, %v7153
    %v7155 = vpop.f32.mrb[0].mxu0
    %v7156 = vpop.f32.mrb[0].mxu0
    %v7157 = vadd.f32 0.0, %v7156
    %v7158 = vpop.f32.mrb[0].mxu0
    %7159 = vmatprep.mubr.bf16.mxu0 %v6969
    %7160 = vmatmul.mubr.bf16.gmra.mrb[0].mxu0 %v6968
    %v7161 = vpop.f32.mrb[0].mxu0
    %v7162 = vadd.f32 0.0, %v7161
    %v7163 = vpop.f32.mrb[0].mxu0
    %v7164 = vpop.f32.mrb[0].mxu0
    %v7165 = vadd.f32 0.0, %v7164
    %v7166 = vpop.f32.mrb[0].mxu0
    %7167 = vmatprep.mubr.bf16.mxu0 %v6971
    %7168 = vmatmul.mubr.bf16.gmra.mrb[0].mxu0 %v6970
    %v7169 = vpop.f32.mrb[0].mxu0
    %v7170 = vadd.f32 0.0, %v7169
    %v7171 = vpop.f32.mrb[0].mxu0
    %v7172 = vpop.f32.mrb[0].mxu0
    %v7173 = vadd.f32 0.0, %v7172
    %v7174 = vpop.f32.mrb[0].mxu0
    %7175 = vmatprep.mubr.bf16.mxu0 %v6973
    %7176 = vmatmul.mubr.bf16.gmra.mrb[0].mxu0 %v6972
    %v7177 = vpop.f32.mrb[0].mxu0
    %v7178 = vadd.f32 0.0, %v7177
    %v7179 = vpop.f32.mrb[0].mxu0
    %v7180 = vpop.f32.mrb[0].mxu0
    %v7181 = vadd.f32 0.0, %v7180
    %v7182 = vpop.f32.mrb[0].mxu0
    %7183 = vdwg.mxu0
    %v7184 = vadd.f32 %v6372, %v7138
    %v7185 = vadd.f32 %v6373, %v7141
    %v7186 = vadd.f32 %v6374, %v7146
    %v7187 = vadd.f32 %v6375, %v7149
    %v7188 = vadd.f32 %v6376, %v7154
    %v7189 = vadd.f32 %v6377, %v7157
    %v7190 = vadd.f32 %v6378, %v7162
    %v7191 = vadd.f32 %v6379, %v7165
    %v7192 = vadd.f32 %v6380, %v7170
    %v7193 = vadd.f32 %v6381, %v7173
    %v7194 = vadd.f32 %v6382, %v7178
    %v7195 = vadd.f32 %v6383, %v7181
    %v7196 = vlaneseq
    %v7197 = vshrl.u32 %v7196, 7
    %v7198 = vsub.s32 7, %v7197
    %v7199 = vrot.slane %v3948, %v7198
    %v7200 = vadd.f32 %v7184, %v7199
    %v7201 = vadd.f32 %v7185, %v7199
    %v7202 = vadd.f32 %v7186, %v7199
    %v7203 = vadd.f32 %v7187, %v7199
    %v7204 = vadd.f32 %v7188, %v7199
    %v7205 = vadd.f32 %v7189, %v7199
    %v7206 = vadd.f32 %v7190, %v7199
    %v7207 = vadd.f32 %v7191, %v7199
    %v7208 = vadd.f32 %v7192, %v7199
    %v7209 = vadd.f32 %v7193, %v7199
    %v7210 = vadd.f32 %v7194, %v7199
    %v7211 = vadd.f32 %v7195, %v7199
    %v7212 = vld [vmem:[%s9] sm:$0xff]
    %v7213 = vsel %vm641, %v7200, 0.0
    %7214 = vadd.xlane.f32.xlu0 %v7213
    %v7215 = vpop.xlane.xlu0 %7214
    %v7216 = vsel %vm641, %v7201, 0.0
    %7217 = vadd.xlane.f32.xlu0 %v7216
    %v7218 = vpop.xlane.xlu0 %7217
    %v7219 = vsel %vm641, %v7202, 0.0
    %7220 = vadd.xlane.f32.xlu0 %v7219
    %v7221 = vpop.xlane.xlu0 %7220
    %v7222 = vsel %vm641, %v7203, 0.0
    %7223 = vadd.xlane.f32.xlu0 %v7222
    %v7224 = vpop.xlane.xlu0 %7223
    %v7225 = vsel %vm641, %v7204, 0.0
    %7226 = vadd.xlane.f32.xlu0 %v7225
    %v7227 = vpop.xlane.xlu0 %7226
    %v7228 = vsel %vm641, %v7205, 0.0
    %7229 = vadd.xlane.f32.xlu0 %v7228
    %v7230 = vpop.xlane.xlu0 %7229
    %v7231 = vsel %vm641, %v7206, 0.0
    %7232 = vadd.xlane.f32.xlu0 %v7231
    %v7233 = vpop.xlane.xlu0 %7232
    %v7234 = vsel %vm641, %v7207, 0.0
    %7235 = vadd.xlane.f32.xlu0 %v7234
    %v7236 = vpop.xlane.xlu0 %7235
    %v7237 = vsel %vm641, %v7208, 0.0
    %7238 = vadd.xlane.f32.xlu0 %v7237
    %v7239 = vpop.xlane.xlu0 %7238
    %v7240 = vsel %vm641, %v7209, 0.0
    %7241 = vadd.xlane.f32.xlu0 %v7240
    %v7242 = vpop.xlane.xlu0 %7241
    %v7243 = vsel %vm641, %v7210, 0.0
    %7244 = vadd.xlane.f32.xlu0 %v7243
    %v7245 = vpop.xlane.xlu0 %7244
    %v7246 = vsel %vm641, %v7211, 0.0
    %7247 = vadd.xlane.f32.xlu0 %v7246
    %v7248 = vpop.xlane.xlu0 %7247
    %v7249 = vmul.f32 %v7215, %v678
    %v7250 = vmul.f32 %v7218, %v678
    %v7251 = vmul.f32 %v7221, %v678
    %v7252 = vmul.f32 %v7224, %v678
    %v7253 = vmul.f32 %v7227, %v678
    %v7254 = vmul.f32 %v7230, %v678
    %v7255 = vmul.f32 %v7233, %v678
    %v7256 = vmul.f32 %v7236, %v678
    %v7257 = vmul.f32 %v7239, %v678
    %v7258 = vmul.f32 %v7242, %v678
    %v7259 = vmul.f32 %v7245, %v678
    %v7260 = vmul.f32 %v7248, %v678
    %v7261 = vsub.f32 %v7200, %v7249
    %v7262 = vsub.f32 %v7201, %v7250
    %v7263 = vsub.f32 %v7202, %v7251
    %v7264 = vsub.f32 %v7203, %v7252
    %v7265 = vsub.f32 %v7204, %v7253
    %v7266 = vsub.f32 %v7205, %v7254
    %v7267 = vsub.f32 %v7206, %v7255
    %v7268 = vsub.f32 %v7207, %v7256
    %v7269 = vsub.f32 %v7208, %v7257
    %v7270 = vsub.f32 %v7209, %v7258
    %v7271 = vsub.f32 %v7210, %v7259
    %v7272 = vsub.f32 %v7211, %v7260
    %v7273 = vmul.f32 %v7261, %v7261
    %v7274 = vmul.f32 %v7262, %v7262
    %v7275 = vmul.f32 %v7263, %v7263
    %v7276 = vmul.f32 %v7264, %v7264
    %v7277 = vmul.f32 %v7265, %v7265
    %v7278 = vmul.f32 %v7266, %v7266
    %v7279 = vmul.f32 %v7267, %v7267
    %v7280 = vmul.f32 %v7268, %v7268
    %v7281 = vmul.f32 %v7269, %v7269
    %v7282 = vmul.f32 %v7270, %v7270
    %v7283 = vmul.f32 %v7271, %v7271
    %v7284 = vmul.f32 %v7272, %v7272
    %v7285 = vsel %vm641, %v7273, 0.0
    %7286 = vadd.xlane.f32.xlu0 %v7285
    %v7287 = vpop.xlane.xlu0 %7286
    %v7288 = vsel %vm641, %v7274, 0.0
    %7289 = vadd.xlane.f32.xlu0 %v7288
    %v7290 = vpop.xlane.xlu0 %7289
    %v7291 = vsel %vm641, %v7275, 0.0
    %7292 = vadd.xlane.f32.xlu0 %v7291
    %v7293 = vpop.xlane.xlu0 %7292
    %v7294 = vsel %vm641, %v7276, 0.0
    %7295 = vadd.xlane.f32.xlu0 %v7294
    %v7296 = vpop.xlane.xlu0 %7295
    %v7297 = vsel %vm641, %v7277, 0.0
    %7298 = vadd.xlane.f32.xlu0 %v7297
    %v7299 = vpop.xlane.xlu0 %7298
    %v7300 = vsel %vm641, %v7278, 0.0
    %7301 = vadd.xlane.f32.xlu0 %v7300
    %v7302 = vpop.xlane.xlu0 %7301
    %v7303 = vsel %vm641, %v7279, 0.0
    %7304 = vadd.xlane.f32.xlu0 %v7303
    %v7305 = vpop.xlane.xlu0 %7304
    %v7306 = vsel %vm641, %v7280, 0.0
    %7307 = vadd.xlane.f32.xlu0 %v7306
    %v7308 = vpop.xlane.xlu0 %7307
    %v7309 = vsel %vm641, %v7281, 0.0
    %7310 = vadd.xlane.f32.xlu0 %v7309
    %v7311 = vpop.xlane.xlu0 %7310
    %v7312 = vsel %vm641, %v7282, 0.0
    %7313 = vadd.xlane.f32.xlu0 %v7312
    %v7314 = vpop.xlane.xlu0 %7313
    %v7315 = vsel %vm641, %v7283, 0.0
    %7316 = vadd.xlane.f32.xlu0 %v7315
    %v7317 = vpop.xlane.xlu0 %7316
    %v7318 = vsel %vm641, %v7284, 0.0
    %7319 = vadd.xlane.f32.xlu0 %v7318
    %v7320 = vpop.xlane.xlu0 %7319
    %v7321 = vmul.f32 %v7287, %v678
    %v7322 = vmul.f32 %v7290, %v678
    %v7323 = vmul.f32 %v7293, %v678
    %v7324 = vmul.f32 %v7296, %v678
    %v7325 = vmul.f32 %v7299, %v678
    %v7326 = vmul.f32 %v7302, %v678
    %v7327 = vmul.f32 %v7305, %v678
    %v7328 = vmul.f32 %v7308, %v678
    %v7329 = vmul.f32 %v7311, %v678
    %v7330 = vmul.f32 %v7314, %v678
    %v7331 = vmul.f32 %v7317, %v678
    %v7332 = vmul.f32 %v7320, %v678
    %v7333 = vadd.f32 %v7321, 1e-05
    %v7334 = vadd.f32 %v7322, 1e-05
    %v7335 = vadd.f32 %v7323, 1e-05
    %v7336 = vadd.f32 %v7324, 1e-05
    %v7337 = vadd.f32 %v7325, 1e-05
    %v7338 = vadd.f32 %v7326, 1e-05
    %v7339 = vadd.f32 %v7327, 1e-05
    %v7340 = vadd.f32 %v7328, 1e-05
    %v7341 = vadd.f32 %v7329, 1e-05
    %v7342 = vadd.f32 %v7330, 1e-05
    %v7343 = vadd.f32 %v7331, 1e-05
    %v7344 = vadd.f32 %v7332, 1e-05
    %v7345 = vrsqrt.pop %v7333
    %v7346 = vrsqrt.pop %v7334
    %v7347 = vrsqrt.pop %v7335
    %v7348 = vrsqrt.pop %v7336
    %v7349 = vrsqrt.pop %v7337
    %v7350 = vrsqrt.pop %v7338
    %v7351 = vrsqrt.pop %v7339
    %v7352 = vrsqrt.pop %v7340
    %v7353 = vrsqrt.pop %v7341
    %v7354 = vrsqrt.pop %v7342
    %v7355 = vrsqrt.pop %v7343
    %v7356 = vrsqrt.pop %v7344
    %v7357 = vmul.f32 %v7261, %v7345
    %v7358 = vmul.f32 %v7262, %v7346
    %v7359 = vmul.f32 %v7263, %v7347
    %v7360 = vmul.f32 %v7264, %v7348
    %v7361 = vmul.f32 %v7265, %v7349
    %v7362 = vmul.f32 %v7266, %v7350
    %v7363 = vmul.f32 %v7267, %v7351
    %v7364 = vmul.f32 %v7268, %v7352
    %v7365 = vmul.f32 %v7269, %v7353
    %v7366 = vmul.f32 %v7270, %v7354
    %v7367 = vmul.f32 %v7271, %v7355
    %v7368 = vmul.f32 %v7272, %v7356
    %v7369 = vlaneseq
    %v7370 = vshrl.u32 %v7369, 7
    %v7371 = vsub.s32 0, %v7370
    %v7372 = vrot.slane %v7212, %v7371
    %v7373 = vmul.f32 %v7357, %v7372
    %v7374 = vmul.f32 %v7358, %v7372
    %v7375 = vmul.f32 %v7359, %v7372
    %v7376 = vmul.f32 %v7360, %v7372
    %v7377 = vmul.f32 %v7361, %v7372
    %v7378 = vmul.f32 %v7362, %v7372
    %v7379 = vmul.f32 %v7363, %v7372
    %v7380 = vmul.f32 %v7364, %v7372
    %v7381 = vmul.f32 %v7365, %v7372
    %v7382 = vmul.f32 %v7366, %v7372
    %v7383 = vmul.f32 %v7367, %v7372
    %v7384 = vmul.f32 %v7368, %v7372
    %v7385 = vlaneseq
    %v7386 = vshrl.u32 %v7385, 7
    %v7387 = vsub.s32 1, %v7386
    %v7388 = vrot.slane %v7212, %v7387
    %v7389 = vadd.f32 %v7373, %v7388
    %v7390 = vadd.f32 %v7374, %v7388
    %v7391 = vadd.f32 %v7375, %v7388
    %v7392 = vadd.f32 %v7376, %v7388
    %v7393 = vadd.f32 %v7377, %v7388
    %v7394 = vadd.f32 %v7378, %v7388
    %v7395 = vadd.f32 %v7379, %v7388
    %v7396 = vadd.f32 %v7380, %v7388
    %v7397 = vadd.f32 %v7381, %v7388
    %v7398 = vadd.f32 %v7382, %v7388
    %v7399 = vadd.f32 %v7383, %v7388
    %v7400 = vadd.f32 %v7384, %v7388
    %v7401 = vlaneseq
    %v7402 = vshrl.u32 %v7401, 7
    %v7403 = vadd.s32 %v7402, 8
    %v7404 = vadd.s32 %v7402, 16
    %v7405 = vadd.s32 %v7402, 24
    %v7406 = vadd.s32 %v7402, 32
    %v7407 = vadd.s32 %v7402, 40
    %vm7408 = vcmp.lt.s32.totalorder %v7402, 33
    %vm7409 = vcmp.lt.s32.totalorder %v7403, 33
    %vm7410 = vcmp.lt.s32.totalorder %v7404, 33
    %vm7411 = vcmp.lt.s32.totalorder %v7405, 33
    %vm7412 = vcmp.lt.s32.totalorder %v7406, 33
    %vm7413 = vcmp.lt.s32.totalorder %v7407, 33
    %v7414 = vsel %vm7408, 1, 0
    %v7415 = vsel %vm7409, 1, 0
    %v7416 = vsel %vm7410, 1, 0
    %v7417 = vsel %vm7411, 1, 0
    %v7418 = vsel %vm7412, 1, 0
    %v7419 = vsel %vm7413, 1, 0
    %v7420 = vcvt.s32.f32 %v7414
    %v7421 = vcvt.s32.f32 %v7415
    %v7422 = vcvt.s32.f32 %v7416
    %v7423 = vcvt.s32.f32 %v7417
    %v7424 = vcvt.s32.f32 %v7418
    %v7425 = vcvt.s32.f32 %v7419
    %v7426 = vmul.f32 %v7389, %v7420
    %v7427 = vmul.f32 %v7390, %v7421
    %v7428 = vmul.f32 %v7391, %v7422
    %v7429 = vmul.f32 %v7392, %v7423
    %v7430 = vmul.f32 %v7393, %v7424
    %v7431 = vmul.f32 %v7394, %v7425
    %v7432 = vsel %vm641, %v7426, 0.0
    %v7433 = vsel %vm641, %v7427, 0.0
    %v7434 = vadd.f32 %v7432, %v7433
    %v7435 = vsel %vm641, %v7428, 0.0
    %v7436 = vadd.f32 %v7434, %v7435
    %v7437 = vsel %vm641, %v7429, 0.0
    %v7438 = vadd.f32 %v7436, %v7437
    %v7439 = vsel %vm641, %v7430, 0.0
    %v7440 = vadd.f32 %v7438, %v7439
    %v7441 = vsel %vm641, %v7431, 0.0
    %v7442 = vadd.f32 %v7440, %v7441
    %v7443 = vrot.slane %v7442, 4
    %v7444 = vadd.f32 %v7442, %v7443
    %v7445 = vrot.slane %v7444, 2
    %v7446 = vadd.f32 %v7444, %v7445
    %v7447 = vrot.slane %v7446, 1
    %v7448 = vadd.f32 %v7446, %v7447
    %v7449 = vmul.f32 %v7395, %v7420
    %v7450 = vmul.f32 %v7396, %v7421
    %v7451 = vmul.f32 %v7397, %v7422
    %v7452 = vmul.f32 %v7398, %v7423
    %v7453 = vmul.f32 %v7399, %v7424
    %v7454 = vmul.f32 %v7400, %v7425
    %v7455 = vsel %vm641, %v7449, 0.0
    %v7456 = vsel %vm641, %v7450, 0.0
    %v7457 = vadd.f32 %v7455, %v7456
    %v7458 = vsel %vm641, %v7451, 0.0
    %v7459 = vadd.f32 %v7457, %v7458
    %v7460 = vsel %vm641, %v7452, 0.0
    %v7461 = vadd.f32 %v7459, %v7460
    %v7462 = vsel %vm641, %v7453, 0.0
    %v7463 = vadd.f32 %v7461, %v7462
    %v7464 = vsel %vm641, %v7454, 0.0
    %v7465 = vadd.f32 %v7463, %v7464
    %v7466 = vrot.slane %v7465, 4
    %v7467 = vadd.f32 %v7465, %v7466
    %v7468 = vrot.slane %v7467, 2
    %v7469 = vadd.f32 %v7467, %v7468
    %v7470 = vrot.slane %v7469, 1
    %v7471 = vadd.f32 %v7469, %v7470
    %vm7472 = vcmask 1040384
    %v7473 = vsel %vm7472, %v7448, %v7471
    %v7474 = vmul.f32 %v7473, 0.030303031
    %v7475 = vpack.c.bf16 %v7474, %v7474
    %v7476 = vld [vmem:[%s8] sm:$0xf]
    %v7477 = vld [vmem:[%s8 + $0x4] sm:$0xf]
    %v7478 = vld [vmem:[%s8 + $0x8] sm:$0xf]
    %v7479 = vld [vmem:[%s8 + $0xc] sm:$0xf]
    %v7480 = vld [vmem:[%s8 + $0x10] sm:$0xf]
    %v7481 = vld [vmem:[%s8 + $0x14] sm:$0xf]
    %v7482 = vld [vmem:[%s8 + $0x18] sm:$0xf]
    %v7483 = vld [vmem:[%s8 + $0x1c] sm:$0xf]
    %v7484 = vlaneseq
    %v7485 = vshrl.u32 %v7484, 7
    %v7486 = vsub.s32 2, %v7485
    %v7487 = vrot.slane %v7212, %v7486
    %v7496 = vunpack.c.l.b16 %v7476
    %v7497 = vunpack.c.l.b16 %v7477
    %v7498 = vunpack.c.l.b16 %v7478
    %v7499 = vunpack.c.l.b16 %v7479
    %v7500 = vunpack.c.l.b16 %v7480
    %v7501 = vunpack.c.l.b16 %v7481
    %v7502 = vunpack.c.l.b16 %v7482
    %v7503 = vunpack.c.l.b16 %v7483
    %v7504 = vpack.c.b16 %v7497, %v7496
    %v7505 = vpack.c.b16 %v7499, %v7498
    %v7506 = vpack.c.b16 %v7501, %v7500
    %v7507 = vpack.c.b16 %v7503, %v7502
    %v7513 = vsel %vm641, %v7475, 0
    %7515 = vmatprep.subr.bf16.mxu0 0
    %7516 = vmatpush1.bf16.msra.mxu0 %v7504
    %7517 = vmatprep.subr.bf16.mxu0 0
    %7518 = vmatpush1.bf16.msra.mxu0 %v7505
    %7519 = vmatprep.subr.bf16.mxu0 0
    %7520 = vmatpush1.bf16.msra.mxu0 %v7506
    %7521 = vmatprep.subr.bf16.mxu0 0
    %7522 = vmatpush1.bf16.msra.mxu0 %v7507
    %7523 = vmatprep.subr.bf16.mxu0 0
    %7524 = vmatpush1.bf16.msra.mxu0 0
    %7525 = vmatprep.subr.bf16.mxu0 0
    %7526 = vmatpush1.bf16.msra.mxu0 0
    %7527 = vmatprep.subr.bf16.mxu0 0
    %7528 = vmatpush1.bf16.msra.mxu0 0
    %7529 = vmatprep.subr.bf16.mxu0 0
    %7530 = vmatpush1.bf16.msra.mxu0 0
    %7531 = vmatprep.subr.bf16.mxu0 0
    %7532 = vmatpush1.bf16.msra.mxu0 0
    %7533 = vmatprep.subr.bf16.mxu0 0
    %7534 = vmatpush1.bf16.msra.mxu0 0
    %7535 = vmatprep.subr.bf16.mxu0 0
    %7536 = vmatpush1.bf16.msra.mxu0 0
    %7537 = vmatprep.subr.bf16.mxu0 0
    %7538 = vmatpush1.bf16.msra.mxu0 0
    %7539 = vmatprep.subr.bf16.mxu0 0
    %7540 = vmatpush1.bf16.msra.mxu0 0
    %7541 = vmatprep.subr.bf16.mxu0 0
    %7542 = vmatpush1.bf16.msra.mxu0 0
    %7543 = vmatprep.subr.bf16.mxu0 0
    %7544 = vmatpush1.bf16.msra.mxu0 0
    %7545 = vmatprep.subr.bf16.mxu0 0
    %7546 = vmatpush1.bf16.msra.mxu0 0
    %7547 = vmatprep.mubr.bf16.mxu0 0
    %7548 = vmatmul.mubr.bf16.gmra.mrb[0].mxu0 %v7513
    %v7549 = vpop.f32.mrb[0].mxu0
    %v7550 = vadd.f32 %v7487, %v7549
    %v7551 = vpop.f32.mrb[0].mxu0
    %v7552 = vpop.f32.mrb[0].mxu0
    %v7553 = vpop.f32.mrb[0].mxu0
    %7554 = vdwg.mxu0
    %7555 = vst [vmem:[#allocation2] sm:$0x3] %v7550
    // Predicated region
    $region42: #{tpu_custom_call.1} parent=1 // pred_check
      _
    $region43: #{tpu_custom_call.1} parent=1 // pred_check_branch
      %7557 = sbr.rel (0) target = $region45
    $region44: #{tpu_custom_call.1} parent=1 // pred_region
      %s7559 = ssub.s32 32, 32
      %7560 = vsyncadd [#allocation3], %s7559
      %s7562 = sshll.u32 [#allocation2], 4
      %s7563 = int_to_ptr.vmem [resolvable:$true] %s7562
      %7565 = dma.vmem_to_hbm [thread:$0]  %s7563, 32, %s10, [#allocation3]
    $region45: #{tpu_custom_call.1} parent=1 // pred_fallthru
      _
    // Predicated region
    $region46: #{tpu_custom_call.1} parent=1 // pred_check
      _
    $region47: #{tpu_custom_call.1} parent=1 // pred_check_branch
      %7567 = sbr.rel (0) target = $region49
    $region48: #{tpu_custom_call.1} parent=1 // pred_region
      %7568 = dma.done [#allocation3], 32
    $region49: #{tpu_custom_call.1} parent=1 // pred_fallthru
      _
    %7569 = vsyncpa [#allocation3], 1

</llo_original>
